<compile_context>
chip_gen: v5e
topology: v5e:2x2
jax: 0.10.0
libtpu: 0.0.40
codegen_flags: <defaults>
</compile_context>

<pallas_src>
import functools
import numpy as np
import jax
import jax.numpy as jnp
from jax import lax
from jax.experimental import pallas as pl
from jax.experimental.pallas import tpu as pltpu

H = W = 28            # spatial size implied by fc1 = Linear(32*14*14, 128)
KH = KW = 3
C_OUT = 32
POOLED = 14
HALF = 512            # lanes per w-parity half (14*32 = 448 valid, padded to 512)
KPAD = 128            # kh-folded contraction depth (3*30 = 90 valid, padded to 128)
FC1_IN = C_OUT * POOLED * POOLED   # 6272
FC1_OUT = 128
FC2_OUT = 10
FC2_PAD = 128         # fc2 outputs padded to a full 128-lane block


# ------------------------------ fused kernel -------------------------------

def fused_kernel(xm_ref, m_ref, cbh_ref, w1_ref, b1_ref, w2_ref, b2_ref, o_ref, acc_ref):
    # xm_ref : (28*tb, 128) bf16  rows ordered (conv row h, batch-in-tile); lanes are the
    #                             3 kh-shifted padded input rows concatenated (K-fold)
    # m_ref  : (128, 1024) bf16   folded banded conv matrix (VMEM-resident)
    # cbh_ref: (1, 512)    f32    conv bias tiled over (pooled col, channel)
    # w1_ref : (14, 512, 128) bf16 fc1 weights regrouped per pooled row (resident)
    # b1_ref : (1, 128) f32 ; w2_ref : (128, 128) bf16 ; b2_ref : (1, 128) f32
    # o_ref  : (tb, 128) f32 ; acc_ref : (28*tb, 1024) f32 VMEM scratch
    tb = o_ref.shape[0]                      # batch rows in this tile (multiple of 16)

    # Whole conv tile as ONE full-height matmul (bf16 operands, f32 accumulate).
    acc_ref[...] = jnp.dot(xm_ref[...], m_ref[...], preferred_element_type=jnp.float32)

    cbh = cbh_ref[...]                                          # (1, 512)
    y1 = jnp.zeros((tb, FC1_OUT), jnp.float32)
    for i in range(POOLED):                                     # 14 pooled output rows
        r0 = acc_ref[(2 * i) * tb:(2 * i + 1) * tb, :]          # conv row 2i   (tb, 1024)
        r1 = acc_ref[(2 * i + 1) * tb:(2 * i + 2) * tb, :]      # conv row 2i+1 (tb, 1024)
        hmax = jnp.maximum(r0, r1)                              # pool over h-parity
        pooled = jnp.maximum(hmax[:, :HALF], hmax[:, HALF:])    # pool over w-parity (tb,512)
        # bias + ReLU AFTER pooling (exact: bias constant within each 2x2 window)
        pooled = jnp.maximum(pooled + cbh, 0.0)
        # fc1 partial product for this pooled row (padding lanes hit zero weights)
        y1 = y1 + jnp.dot(pooled.astype(jnp.bfloat16), w1_ref[i],
                          preferred_element_type=jnp.float32)

    y1 = jnp.maximum(y1 + b1_ref[...], 0.0)                     # fc1 bias + ReLU
    o_ref[...] = jnp.dot(y1.astype(jnp.bfloat16), w2_ref[...],
                         preferred_element_type=jnp.float32) + b2_ref[...]


# -------------------------- one-time weight prep ----------------------------

def prepare_params(params):
    """Host-side, one-time rearrangement of PyTorch-layout weights (no per-call cost)."""
    conv_w, conv_b, fc1_w, fc1_b, fc2_w, fc2_b = [np.asarray(p, np.float32) for p in params]

    # kh-folded banded conv matrix:
    #   m2[kh*30 + (2j+wp) + kw, wp*512 + j*32 + c] = conv_w[c, 0, kh, kw]
    # so that (3 kh-shifted input rows, lane-concatenated) @ m2 gives the conv output for
    # every (w, c), with the two w-parities of each 2x2 pool window in separate halves.
    m2 = np.zeros((KPAD, 2 * HALF), np.float32)
    cbh = np.zeros((1, HALF), np.float32)
    for j in range(POOLED):
        cbh[0, j * C_OUT:(j + 1) * C_OUT] = conv_b
        for wp in range(2):
            w_col = 2 * j + wp
            base = wp * HALF + j * C_OUT
            for kh in range(KH):
                for kw in range(KW):
                    m2[kh * (W + 2) + w_col + kw, base:base + C_OUT] = conv_w[:, 0, kh, kw]

    # fc1 weights regrouped per pooled row i with the kernel's (j*32 + c) lane order:
    #   w1p[i, j*32 + c, o] = fc1_w[o, c*14*14 + i*14 + j];  lanes 448..511 stay zero.
    w1p = np.zeros((POOLED, HALF, FC1_OUT), np.float32)
    fw = fc1_w.reshape(FC1_OUT, C_OUT, POOLED, POOLED)            # [o, c, i, j]
    w1p[:, :POOLED * C_OUT, :] = np.transpose(fw, (2, 3, 1, 0)).reshape(
        POOLED, POOLED * C_OUT, FC1_OUT)

    # fc2 padded to a lane-dense 128-column output block (wrapper slices [:, :10]).
    w2p = np.zeros((FC1_OUT, FC2_PAD), np.float32)
    w2p[:, :FC2_OUT] = fc2_w.T
    b2p = np.zeros((1, FC2_PAD), np.float32)
    b2p[0, :FC2_OUT] = fc2_b
    b1 = fc1_b.reshape(1, FC1_OUT)

    return (jnp.asarray(m2, jnp.bfloat16), jnp.asarray(cbh, jnp.float32),
            jnp.asarray(w1p, jnp.bfloat16), jnp.asarray(b1, jnp.float32),
            jnp.asarray(w2p, jnp.bfloat16), jnp.asarray(b2p, jnp.float32))


# ------------------------------ forward pass --------------------------------

def simple_nn_forward(x, prepared, tb=None):
    """x: (B, 1, 28, 28) float32 NCHW (like PyTorch). prepared = prepare_params(params).
    tb: batch rows per grid step (multiple of 16 for bf16 sublane packing)."""
    m2, cbh, w1p, b1, w2p, b2p = prepared
    B = x.shape[0]
    assert x.shape[1:] == (1, H, W), "SimpleNN expects (B, 1, 28, 28) inputs"
    if tb is None:
        tb = min(128, -(-B // 16) * 16)      # big tiles, but don't over-pad tiny batches
    assert tb % 16 == 0
    G = pl.cdiv(B, tb)
    Bp = G * tb

    # Pad spatially (conv padding=1) and pad batch to a multiple of tb.
    xp = jnp.pad(x[:, 0, :, :], ((0, Bp - B), (1, 1), (1, 1)))            # (Bp, 30, 30)
    # kh-fold: each conv output row carries its 3 input rows lane-concatenated (K=90->128)
    win = jnp.concatenate([xp[:, 0:H, :], xp[:, 1:H + 1, :], xp[:, 2:H + 2, :]], axis=-1)
    win = jnp.pad(win, ((0, 0), (0, 0), (0, KPAD - KH * (W + 2))))        # (Bp, 28, 128)
    # rows ordered (tile, conv row, batch-in-tile) so every in-kernel slice is tile-aligned
    xm = win.reshape(G, tb, H, KPAD).transpose(0, 2, 1, 3).reshape(G * H * tb, KPAD)
    xm = xm.astype(jnp.bfloat16)

    acc_bytes = H * tb * 2 * HALF * 4
    vmem_limit = min(48 * 1024 * 1024, acc_bytes + 16 * 1024 * 1024)

    out = pl.pallas_call(
        fused_kernel,
        grid=(G,),
        in_specs=[
            pl.BlockSpec((H * tb, KPAD), lambda g: (g, 0)),              # input tile
            pl.BlockSpec((KPAD, 2 * HALF), lambda g: (0, 0)),            # conv band matrix
            pl.BlockSpec((1, HALF), lambda g: (0, 0)),                   # conv bias (pooled)
            pl.BlockSpec((POOLED, HALF, FC1_OUT), lambda g: (0, 0, 0)),  # fc1 weights
            pl.BlockSpec((1, FC1_OUT), lambda g: (0, 0)),                # fc1 bias
            pl.BlockSpec((FC1_OUT, FC2_PAD), lambda g: (0, 0)),          # fc2 weights (padded)
            pl.BlockSpec((1, FC2_PAD), lambda g: (0, 0)),                # fc2 bias (padded)
        ],
        out_specs=pl.BlockSpec((tb, FC2_PAD), lambda g: (g, 0)),
        out_shape=jax.ShapeDtypeStruct((Bp, FC2_PAD), jnp.float32),
        scratch_shapes=[pltpu.VMEM((H * tb, 2 * HALF), jnp.float32)],    # conv acc
        compiler_params=pltpu.CompilerParams(
            dimension_semantics=("parallel",),
            vmem_limit_bytes=vmem_limit),
    )(xm, m2, cbh, w1p, b1, w2p, b2p)
    return out[:B, :FC2_OUT]


# --------------------------- reference (pure JAX) ----------------------------

def simple_nn_reference(x, params):
    conv_w, conv_b, fc1_w, fc1_b, fc2_w, fc2_b = params
    B = x.shape[0]
    y = lax.conv_general_dilated(
        x, conv_w, window_strides=(1, 1), padding="SAME",
        dimension_numbers=("NCHW", "OIHW", "NCHW"))
    y = jax.nn.relu(y + conv_b.reshape(1, C_OUT, 1, 1))
    y = lax.reduce_window(y, -jnp.inf, lax.max,
                          window_dimensions=(1, 1, 2, 2),
                          window_strides=(1, 1, 2, 2), padding="VALID")
    y = y.reshape(B, -1)
    y = jax.nn.relu(y @ fc1_w.T + fc1_b)
    return y @ fc2_w.T + fc2_b


# --------------------------------- params ------------------------------------

def init_params(key):
    k = jax.random.split(key, 6)
    conv_w = jax.random.normal(k[0], (C_OUT, 1, KH, KW), jnp.float32) / 3.0
    conv_b = jax.random.normal(k[1], (C_OUT,), jnp.float32) * 0.01
    fc1_w = jax.random.normal(k[2], (FC1_OUT, FC1_IN), jnp.float32) / jnp.sqrt(FC1_IN)
    fc1_b = jax.random.normal(k[3], (FC1_OUT,), jnp.float32) * 0.01
    fc2_w = jax.random.normal(k[4], (FC2_OUT, FC1_OUT), jnp.float32) / jnp.sqrt(FC1_OUT)
    fc2_b = jax.random.normal(k[5], (FC2_OUT,), jnp.float32) * 0.01
    return conv_w, conv_b, fc1_w, fc1_b, fc2_w, fc2_b


if __name__ == "__main__":
    key = jax.random.PRNGKey(0)
    kx, kp = jax.random.split(key)
    # batch=2; spatial must be 28x28 because fc1 expects 32*14*14 features
    x = jax.random.normal(kx, (2, 1, 28, 28), jnp.float32)
    params = init_params(kp)
    prepared = prepare_params(params)          # one-time weight rearrangement

    fwd = jax.jit(simple_nn_forward)
    out = jax.block_until_ready(fwd(x, prepared))
    assert out.shape == (2, FC2_OUT) and out.dtype == jnp.float32

    ref = jax.block_until_ready(simple_nn_reference(x, params))
    # bf16 MXU operands with f32 accumulation -> slightly looser tolerance than pure f32
    assert jnp.allclose(out, ref, rtol=2e-2, atol=2e-2), (
        "mismatch vs pure-JAX reference "
        f"(max abs err {float(jnp.max(jnp.abs(out - ref))):.3e})")

    # Multi-tile grid check (G=3, tb=16): exercises the batch-tiled index maps + padding.
    x2 = jax.random.normal(jax.random.PRNGKey(1), (40, 1, 28, 28), jnp.float32)
    out2 = jax.block_until_ready(
        jax.jit(functools.partial(simple_nn_forward, tb=16))(x2, prepared))
    ref2 = jax.block_until_ready(simple_nn_reference(x2, params))
    assert out2.shape == (40, FC2_OUT)
    assert jnp.allclose(out2, ref2, rtol=2e-2, atol=2e-2), "multi-tile mismatch"

    print("KERNEL_OK")
</pallas_src>

<mosaic_0001>
module attributes {stable_mosaic.version = 11 : i64} {
  func.func @fused_kernel(%arg0: i32, %arg1: memref<448x128xbf16, #tpu.memory_space<vmem>>, %arg2: memref<128x1024xbf16, #tpu.memory_space<vmem>>, %arg3: memref<1x512xf32, #tpu.memory_space<vmem>>, %arg4: memref<14x512x128xbf16, #tpu.memory_space<vmem>>, %arg5: memref<1x128xf32, #tpu.memory_space<vmem>>, %arg6: memref<128x128xbf16, #tpu.memory_space<vmem>>, %arg7: memref<1x128xf32, #tpu.memory_space<vmem>>, %arg8: memref<16x128xf32, #tpu.memory_space<vmem>>, %arg9: memref<448x1024xf32, #tpu.memory_space<vmem>>) attributes {dimension_semantics = [#tpu.dimension_semantics<parallel>], iteration_bounds = array<i64: 1>, scalar_prefetch = 0 : i64, scratch_operands = 1 : i64, tpu.core_type = #tpu.core_type<tc>, window_params = [{transform_indices = @transform_0, window_bounds = array<i64: 448, 128>}, {pipeline_mode = #tpu.pipeline_mode<synchronous>, transform_indices = @transform_1, window_bounds = array<i64: 128, 1024>}, {pipeline_mode = #tpu.pipeline_mode<synchronous>, transform_indices = @transform_2, window_bounds = array<i64: 1, 512>}, {pipeline_mode = #tpu.pipeline_mode<synchronous>, transform_indices = @transform_3, window_bounds = array<i64: 14, 512, 128>}, {pipeline_mode = #tpu.pipeline_mode<synchronous>, transform_indices = @transform_4, window_bounds = array<i64: 1, 128>}, {pipeline_mode = #tpu.pipeline_mode<synchronous>, transform_indices = @transform_5, window_bounds = array<i64: 128, 128>}, {pipeline_mode = #tpu.pipeline_mode<synchronous>, transform_indices = @transform_6, window_bounds = array<i64: 1, 128>}, {transform_indices = @transform_7, window_bounds = array<i64: 16, 128>}]} {
    %c0 = arith.constant 0 : index
    %c0_0 = arith.constant 0 : index
    %0 = vector.load %arg1[%c0, %c0_0] : memref<448x128xbf16, #tpu.memory_space<vmem>>, vector<448x128xbf16>
    %c0_1 = arith.constant 0 : index
    %c0_2 = arith.constant 0 : index
    %1 = vector.load %arg2[%c0_1, %c0_2] : memref<128x1024xbf16, #tpu.memory_space<vmem>>, vector<128x1024xbf16>
    %cst = arith.constant dense<0.000000e+00> : vector<448x1024xf32>
    %2 = tpu.matmul %0, %1, %cst {dimension_numbers = #tpu.dot_dimension_numbers<[1], [0], [0], [1], [0, 0, 1, 1], [], []>} : vector<448x128xbf16>, vector<128x1024xbf16>, vector<448x1024xf32> -> vector<448x1024xf32>
    %c0_3 = arith.constant 0 : index
    %c0_4 = arith.constant 0 : index
    %3 = vector.load %arg9[%c0_3, %c0_4] : memref<448x1024xf32, #tpu.memory_space<vmem>>, vector<448x1024xf32>
    tpu.vector_store %arg9[%c0_3, %c0_4], %2 {strides = array<i32>} : memref<448x1024xf32, #tpu.memory_space<vmem>>, vector<448x1024xf32>,
    %c0_5 = arith.constant 0 : index
    %c0_6 = arith.constant 0 : index
    %4 = vector.load %arg3[%c0_5, %c0_6] : memref<1x512xf32, #tpu.memory_space<vmem>>, vector<1x512xf32>
    %cst_7 = arith.constant 0.000000e+00 : f32
    %5 = vector.broadcast %cst_7 : f32 to vector<16x128xf32>
    %c0_8 = arith.constant 0 : index
    %c0_9 = arith.constant 0 : index
    %6 = vector.load %arg9[%c0_8, %c0_9] : memref<448x1024xf32, #tpu.memory_space<vmem>>, vector<16x1024xf32>
    %c16 = arith.constant 16 : index
    %c0_10 = arith.constant 0 : index
    %7 = vector.load %arg9[%c16, %c0_10] : memref<448x1024xf32, #tpu.memory_space<vmem>>, vector<16x1024xf32>
    %8 = arith.maximumf %6, %7 : vector<16x1024xf32>
    %9 = vector.extract_strided_slice %8 {offsets = [0, 0], sizes = [16, 512], strides = [1, 1]} : vector<16x1024xf32> to vector<16x512xf32>
    %10 = vector.extract_strided_slice %8 {offsets = [0, 512], sizes = [16, 512], strides = [1, 1]} : vector<16x1024xf32> to vector<16x512xf32>
    %11 = arith.maximumf %9, %10 : vector<16x512xf32>
    %12 = vector.broadcast %4 : vector<1x512xf32> to vector<16x512xf32>
    %13 = arith.addf %11, %12 : vector<16x512xf32>
    %cst_11 = arith.constant 0.000000e+00 : f32
    %14 = vector.broadcast %cst_11 : f32 to vector<16x512xf32>
    %15 = arith.maximumf %13, %14 : vector<16x512xf32>
    %16 = arith.truncf %15 : vector<16x512xf32> to vector<16x512xbf16>
    %c0_12 = arith.constant 0 : index
    %c0_13 = arith.constant 0 : index
    %c0_14 = arith.constant 0 : index
    %17 = vector.load %arg4[%c0_12, %c0_13, %c0_14] : memref<14x512x128xbf16, #tpu.memory_space<vmem>>, vector<1x512x128xbf16>
    %18 = vector.shape_cast %17 : vector<1x512x128xbf16> to vector<512x128xbf16>
    %cst_15 = arith.constant dense<0.000000e+00> : vector<16x128xf32>
    %19 = tpu.matmul %16, %18, %cst_15 {dimension_numbers = #tpu.dot_dimension_numbers<[1], [0], [0], [1], [0, 0, 1, 1], [], []>} : vector<16x512xbf16>, vector<512x128xbf16>, vector<16x128xf32> -> vector<16x128xf32>
    %20 = arith.addf %5, %19 : vector<16x128xf32>
    %c32 = arith.constant 32 : index
    %c0_16 = arith.constant 0 : index
    %21 = vector.load %arg9[%c32, %c0_16] : memref<448x1024xf32, #tpu.memory_space<vmem>>, vector<16x1024xf32>
    %c48 = arith.constant 48 : index
    %c0_17 = arith.constant 0 : index
    %22 = vector.load %arg9[%c48, %c0_17] : memref<448x1024xf32, #tpu.memory_space<vmem>>, vector<16x1024xf32>
    %23 = arith.maximumf %21, %22 : vector<16x1024xf32>
    %24 = vector.extract_strided_slice %23 {offsets = [0, 0], sizes = [16, 512], strides = [1, 1]} : vector<16x1024xf32> to vector<16x512xf32>
    %25 = vector.extract_strided_slice %23 {offsets = [0, 512], sizes = [16, 512], strides = [1, 1]} : vector<16x1024xf32> to vector<16x512xf32>
    %26 = arith.maximumf %24, %25 : vector<16x512xf32>
    %27 = vector.broadcast %4 : vector<1x512xf32> to vector<16x512xf32>
    %28 = arith.addf %26, %27 : vector<16x512xf32>
    %cst_18 = arith.constant 0.000000e+00 : f32
    %29 = vector.broadcast %cst_18 : f32 to vector<16x512xf32>
    %30 = arith.maximumf %28, %29 : vector<16x512xf32>
    %31 = arith.truncf %30 : vector<16x512xf32> to vector<16x512xbf16>
    %c1 = arith.constant 1 : index
    %c0_19 = arith.constant 0 : index
    %c0_20 = arith.constant 0 : index
    %32 = vector.load %arg4[%c1, %c0_19, %c0_20] : memref<14x512x128xbf16, #tpu.memory_space<vmem>>, vector<1x512x128xbf16>
    %33 = vector.shape_cast %32 : vector<1x512x128xbf16> to vector<512x128xbf16>
    %cst_21 = arith.constant dense<0.000000e+00> : vector<16x128xf32>
    %34 = tpu.matmul %31, %33, %cst_21 {dimension_numbers = #tpu.dot_dimension_numbers<[1], [0], [0], [1], [0, 0, 1, 1], [], []>} : vector<16x512xbf16>, vector<512x128xbf16>, vector<16x128xf32> -> vector<16x128xf32>
    %35 = arith.addf %20, %34 : vector<16x128xf32>
    %c64 = arith.constant 64 : index
    %c0_22 = arith.constant 0 : index
    %36 = vector.load %arg9[%c64, %c0_22] : memref<448x1024xf32, #tpu.memory_space<vmem>>, vector<16x1024xf32>
    %c80 = arith.constant 80 : index
    %c0_23 = arith.constant 0 : index
    %37 = vector.load %arg9[%c80, %c0_23] : memref<448x1024xf32, #tpu.memory_space<vmem>>, vector<16x1024xf32>
    %38 = arith.maximumf %36, %37 : vector<16x1024xf32>
    %39 = vector.extract_strided_slice %38 {offsets = [0, 0], sizes = [16, 512], strides = [1, 1]} : vector<16x1024xf32> to vector<16x512xf32>
    %40 = vector.extract_strided_slice %38 {offsets = [0, 512], sizes = [16, 512], strides = [1, 1]} : vector<16x1024xf32> to vector<16x512xf32>
    %41 = arith.maximumf %39, %40 : vector<16x512xf32>
    %42 = vector.broadcast %4 : vector<1x512xf32> to vector<16x512xf32>
    %43 = arith.addf %41, %42 : vector<16x512xf32>
    %cst_24 = arith.constant 0.000000e+00 : f32
    %44 = vector.broadcast %cst_24 : f32 to vector<16x512xf32>
    %45 = arith.maximumf %43, %44 : vector<16x512xf32>
    %46 = arith.truncf %45 : vector<16x512xf32> to vector<16x512xbf16>
    %c2 = arith.constant 2 : index
    %c0_25 = arith.constant 0 : index
    %c0_26 = arith.constant 0 : index
    %47 = vector.load %arg4[%c2, %c0_25, %c0_26] : memref<14x512x128xbf16, #tpu.memory_space<vmem>>, vector<1x512x128xbf16>
    %48 = vector.shape_cast %47 : vector<1x512x128xbf16> to vector<512x128xbf16>
    %cst_27 = arith.constant dense<0.000000e+00> : vector<16x128xf32>
    %49 = tpu.matmul %46, %48, %cst_27 {dimension_numbers = #tpu.dot_dimension_numbers<[1], [0], [0], [1], [0, 0, 1, 1], [], []>} : vector<16x512xbf16>, vector<512x128xbf16>, vector<16x128xf32> -> vector<16x128xf32>
    %50 = arith.addf %35, %49 : vector<16x128xf32>
    %c96 = arith.constant 96 : index
    %c0_28 = arith.constant 0 : index
    %51 = vector.load %arg9[%c96, %c0_28] : memref<448x1024xf32, #tpu.memory_space<vmem>>, vector<16x1024xf32>
    %c112 = arith.constant 112 : index
    %c0_29 = arith.constant 0 : index
    %52 = vector.load %arg9[%c112, %c0_29] : memref<448x1024xf32, #tpu.memory_space<vmem>>, vector<16x1024xf32>
    %53 = arith.maximumf %51, %52 : vector<16x1024xf32>
    %54 = vector.extract_strided_slice %53 {offsets = [0, 0], sizes = [16, 512], strides = [1, 1]} : vector<16x1024xf32> to vector<16x512xf32>
    %55 = vector.extract_strided_slice %53 {offsets = [0, 512], sizes = [16, 512], strides = [1, 1]} : vector<16x1024xf32> to vector<16x512xf32>
    %56 = arith.maximumf %54, %55 : vector<16x512xf32>
    %57 = vector.broadcast %4 : vector<1x512xf32> to vector<16x512xf32>
    %58 = arith.addf %56, %57 : vector<16x512xf32>
    %cst_30 = arith.constant 0.000000e+00 : f32
    %59 = vector.broadcast %cst_30 : f32 to vector<16x512xf32>
    %60 = arith.maximumf %58, %59 : vector<16x512xf32>
    %61 = arith.truncf %60 : vector<16x512xf32> to vector<16x512xbf16>
    %c3 = arith.constant 3 : index
    %c0_31 = arith.constant 0 : index
    %c0_32 = arith.constant 0 : index
    %62 = vector.load %arg4[%c3, %c0_31, %c0_32] : memref<14x512x128xbf16, #tpu.memory_space<vmem>>, vector<1x512x128xbf16>
    %63 = vector.shape_cast %62 : vector<1x512x128xbf16> to vector<512x128xbf16>
    %cst_33 = arith.constant dense<0.000000e+00> : vector<16x128xf32>
    %64 = tpu.matmul %61, %63, %cst_33 {dimension_numbers = #tpu.dot_dimension_numbers<[1], [0], [0], [1], [0, 0, 1, 1], [], []>} : vector<16x512xbf16>, vector<512x128xbf16>, vector<16x128xf32> -> vector<16x128xf32>
    %65 = arith.addf %50, %64 : vector<16x128xf32>
    %c128 = arith.constant 128 : index
    %c0_34 = arith.constant 0 : index
    %66 = vector.load %arg9[%c128, %c0_34] : memref<448x1024xf32, #tpu.memory_space<vmem>>, vector<16x1024xf32>
    %c144 = arith.constant 144 : index
    %c0_35 = arith.constant 0 : index
    %67 = vector.load %arg9[%c144, %c0_35] : memref<448x1024xf32, #tpu.memory_space<vmem>>, vector<16x1024xf32>
    %68 = arith.maximumf %66, %67 : vector<16x1024xf32>
    %69 = vector.extract_strided_slice %68 {offsets = [0, 0], sizes = [16, 512], strides = [1, 1]} : vector<16x1024xf32> to vector<16x512xf32>
    %70 = vector.extract_strided_slice %68 {offsets = [0, 512], sizes = [16, 512], strides = [1, 1]} : vector<16x1024xf32> to vector<16x512xf32>
    %71 = arith.maximumf %69, %70 : vector<16x512xf32>
    %72 = vector.broadcast %4 : vector<1x512xf32> to vector<16x512xf32>
    %73 = arith.addf %71, %72 : vector<16x512xf32>
    %cst_36 = arith.constant 0.000000e+00 : f32
    %74 = vector.broadcast %cst_36 : f32 to vector<16x512xf32>
    %75 = arith.maximumf %73, %74 : vector<16x512xf32>
    %76 = arith.truncf %75 : vector<16x512xf32> to vector<16x512xbf16>
    %c4 = arith.constant 4 : index
    %c0_37 = arith.constant 0 : index
    %c0_38 = arith.constant 0 : index
    %77 = vector.load %arg4[%c4, %c0_37, %c0_38] : memref<14x512x128xbf16, #tpu.memory_space<vmem>>, vector<1x512x128xbf16>
    %78 = vector.shape_cast %77 : vector<1x512x128xbf16> to vector<512x128xbf16>
    %cst_39 = arith.constant dense<0.000000e+00> : vector<16x128xf32>
    %79 = tpu.matmul %76, %78, %cst_39 {dimension_numbers = #tpu.dot_dimension_numbers<[1], [0], [0], [1], [0, 0, 1, 1], [], []>} : vector<16x512xbf16>, vector<512x128xbf16>, vector<16x128xf32> -> vector<16x128xf32>
    %80 = arith.addf %65, %79 : vector<16x128xf32>
    %c160 = arith.constant 160 : index
    %c0_40 = arith.constant 0 : index
    %81 = vector.load %arg9[%c160, %c0_40] : memref<448x1024xf32, #tpu.memory_space<vmem>>, vector<16x1024xf32>
    %c176 = arith.constant 176 : index
    %c0_41 = arith.constant 0 : index
    %82 = vector.load %arg9[%c176, %c0_41] : memref<448x1024xf32, #tpu.memory_space<vmem>>, vector<16x1024xf32>
    %83 = arith.maximumf %81, %82 : vector<16x1024xf32>
    %84 = vector.extract_strided_slice %83 {offsets = [0, 0], sizes = [16, 512], strides = [1, 1]} : vector<16x1024xf32> to vector<16x512xf32>
    %85 = vector.extract_strided_slice %83 {offsets = [0, 512], sizes = [16, 512], strides = [1, 1]} : vector<16x1024xf32> to vector<16x512xf32>
    %86 = arith.maximumf %84, %85 : vector<16x512xf32>
    %87 = vector.broadcast %4 : vector<1x512xf32> to vector<16x512xf32>
    %88 = arith.addf %86, %87 : vector<16x512xf32>
    %cst_42 = arith.constant 0.000000e+00 : f32
    %89 = vector.broadcast %cst_42 : f32 to vector<16x512xf32>
    %90 = arith.maximumf %88, %89 : vector<16x512xf32>
    %91 = arith.truncf %90 : vector<16x512xf32> to vector<16x512xbf16>
    %c5 = arith.constant 5 : index
    %c0_43 = arith.constant 0 : index
    %c0_44 = arith.constant 0 : index
    %92 = vector.load %arg4[%c5, %c0_43, %c0_44] : memref<14x512x128xbf16, #tpu.memory_space<vmem>>, vector<1x512x128xbf16>
    %93 = vector.shape_cast %92 : vector<1x512x128xbf16> to vector<512x128xbf16>
    %cst_45 = arith.constant dense<0.000000e+00> : vector<16x128xf32>
    %94 = tpu.matmul %91, %93, %cst_45 {dimension_numbers = #tpu.dot_dimension_numbers<[1], [0], [0], [1], [0, 0, 1, 1], [], []>} : vector<16x512xbf16>, vector<512x128xbf16>, vector<16x128xf32> -> vector<16x128xf32>
    %95 = arith.addf %80, %94 : vector<16x128xf32>
    %c192 = arith.constant 192 : index
    %c0_46 = arith.constant 0 : index
    %96 = vector.load %arg9[%c192, %c0_46] : memref<448x1024xf32, #tpu.memory_space<vmem>>, vector<16x1024xf32>
    %c208 = arith.constant 208 : index
    %c0_47 = arith.constant 0 : index
    %97 = vector.load %arg9[%c208, %c0_47] : memref<448x1024xf32, #tpu.memory_space<vmem>>, vector<16x1024xf32>
    %98 = arith.maximumf %96, %97 : vector<16x1024xf32>
    %99 = vector.extract_strided_slice %98 {offsets = [0, 0], sizes = [16, 512], strides = [1, 1]} : vector<16x1024xf32> to vector<16x512xf32>
    %100 = vector.extract_strided_slice %98 {offsets = [0, 512], sizes = [16, 512], strides = [1, 1]} : vector<16x1024xf32> to vector<16x512xf32>
    %101 = arith.maximumf %99, %100 : vector<16x512xf32>
    %102 = vector.broadcast %4 : vector<1x512xf32> to vector<16x512xf32>
    %103 = arith.addf %101, %102 : vector<16x512xf32>
    %cst_48 = arith.constant 0.000000e+00 : f32
    %104 = vector.broadcast %cst_48 : f32 to vector<16x512xf32>
    %105 = arith.maximumf %103, %104 : vector<16x512xf32>
    %106 = arith.truncf %105 : vector<16x512xf32> to vector<16x512xbf16>
    %c6 = arith.constant 6 : index
    %c0_49 = arith.constant 0 : index
    %c0_50 = arith.constant 0 : index
    %107 = vector.load %arg4[%c6, %c0_49, %c0_50] : memref<14x512x128xbf16, #tpu.memory_space<vmem>>, vector<1x512x128xbf16>
    %108 = vector.shape_cast %107 : vector<1x512x128xbf16> to vector<512x128xbf16>
    %cst_51 = arith.constant dense<0.000000e+00> : vector<16x128xf32>
    %109 = tpu.matmul %106, %108, %cst_51 {dimension_numbers = #tpu.dot_dimension_numbers<[1], [0], [0], [1], [0, 0, 1, 1], [], []>} : vector<16x512xbf16>, vector<512x128xbf16>, vector<16x128xf32> -> vector<16x128xf32>
    %110 = arith.addf %95, %109 : vector<16x128xf32>
    %c224 = arith.constant 224 : index
    %c0_52 = arith.constant 0 : index
    %111 = vector.load %arg9[%c224, %c0_52] : memref<448x1024xf32, #tpu.memory_space<vmem>>, vector<16x1024xf32>
    %c240 = arith.constant 240 : index
    %c0_53 = arith.constant 0 : index
    %112 = vector.load %arg9[%c240, %c0_53] : memref<448x1024xf32, #tpu.memory_space<vmem>>, vector<16x1024xf32>
    %113 = arith.maximumf %111, %112 : vector<16x1024xf32>
    %114 = vector.extract_strided_slice %113 {offsets = [0, 0], sizes = [16, 512], strides = [1, 1]} : vector<16x1024xf32> to vector<16x512xf32>
    %115 = vector.extract_strided_slice %113 {offsets = [0, 512], sizes = [16, 512], strides = [1, 1]} : vector<16x1024xf32> to vector<16x512xf32>
    %116 = arith.maximumf %114, %115 : vector<16x512xf32>
    %117 = vector.broadcast %4 : vector<1x512xf32> to vector<16x512xf32>
    %118 = arith.addf %116, %117 : vector<16x512xf32>
    %cst_54 = arith.constant 0.000000e+00 : f32
    %119 = vector.broadcast %cst_54 : f32 to vector<16x512xf32>
    %120 = arith.maximumf %118, %119 : vector<16x512xf32>
    %121 = arith.truncf %120 : vector<16x512xf32> to vector<16x512xbf16>
    %c7 = arith.constant 7 : index
    %c0_55 = arith.constant 0 : index
    %c0_56 = arith.constant 0 : index
    %122 = vector.load %arg4[%c7, %c0_55, %c0_56] : memref<14x512x128xbf16, #tpu.memory_space<vmem>>, vector<1x512x128xbf16>
    %123 = vector.shape_cast %122 : vector<1x512x128xbf16> to vector<512x128xbf16>
    %cst_57 = arith.constant dense<0.000000e+00> : vector<16x128xf32>
    %124 = tpu.matmul %121, %123, %cst_57 {dimension_numbers = #tpu.dot_dimension_numbers<[1], [0], [0], [1], [0, 0, 1, 1], [], []>} : vector<16x512xbf16>, vector<512x128xbf16>, vector<16x128xf32> -> vector<16x128xf32>
    %125 = arith.addf %110, %124 : vector<16x128xf32>
    %c256 = arith.constant 256 : index
    %c0_58 = arith.constant 0 : index
    %126 = vector.load %arg9[%c256, %c0_58] : memref<448x1024xf32, #tpu.memory_space<vmem>>, vector<16x1024xf32>
    %c272 = arith.constant 272 : index
    %c0_59 = arith.constant 0 : index
    %127 = vector.load %arg9[%c272, %c0_59] : memref<448x1024xf32, #tpu.memory_space<vmem>>, vector<16x1024xf32>
    %128 = arith.maximumf %126, %127 : vector<16x1024xf32>
    %129 = vector.extract_strided_slice %128 {offsets = [0, 0], sizes = [16, 512], strides = [1, 1]} : vector<16x1024xf32> to vector<16x512xf32>
    %130 = vector.extract_strided_slice %128 {offsets = [0, 512], sizes = [16, 512], strides = [1, 1]} : vector<16x1024xf32> to vector<16x512xf32>
    %131 = arith.maximumf %129, %130 : vector<16x512xf32>
    %132 = vector.broadcast %4 : vector<1x512xf32> to vector<16x512xf32>
    %133 = arith.addf %131, %132 : vector<16x512xf32>
    %cst_60 = arith.constant 0.000000e+00 : f32
    %134 = vector.broadcast %cst_60 : f32 to vector<16x512xf32>
    %135 = arith.maximumf %133, %134 : vector<16x512xf32>
    %136 = arith.truncf %135 : vector<16x512xf32> to vector<16x512xbf16>
    %c8 = arith.constant 8 : index
    %c0_61 = arith.constant 0 : index
    %c0_62 = arith.constant 0 : index
    %137 = vector.load %arg4[%c8, %c0_61, %c0_62] : memref<14x512x128xbf16, #tpu.memory_space<vmem>>, vector<1x512x128xbf16>
    %138 = vector.shape_cast %137 : vector<1x512x128xbf16> to vector<512x128xbf16>
    %cst_63 = arith.constant dense<0.000000e+00> : vector<16x128xf32>
    %139 = tpu.matmul %136, %138, %cst_63 {dimension_numbers = #tpu.dot_dimension_numbers<[1], [0], [0], [1], [0, 0, 1, 1], [], []>} : vector<16x512xbf16>, vector<512x128xbf16>, vector<16x128xf32> -> vector<16x128xf32>
    %140 = arith.addf %125, %139 : vector<16x128xf32>
    %c288 = arith.constant 288 : index
    %c0_64 = arith.constant 0 : index
    %141 = vector.load %arg9[%c288, %c0_64] : memref<448x1024xf32, #tpu.memory_space<vmem>>, vector<16x1024xf32>
    %c304 = arith.constant 304 : index
    %c0_65 = arith.constant 0 : index
    %142 = vector.load %arg9[%c304, %c0_65] : memref<448x1024xf32, #tpu.memory_space<vmem>>, vector<16x1024xf32>
    %143 = arith.maximumf %141, %142 : vector<16x1024xf32>
    %144 = vector.extract_strided_slice %143 {offsets = [0, 0], sizes = [16, 512], strides = [1, 1]} : vector<16x1024xf32> to vector<16x512xf32>
    %145 = vector.extract_strided_slice %143 {offsets = [0, 512], sizes = [16, 512], strides = [1, 1]} : vector<16x1024xf32> to vector<16x512xf32>
    %146 = arith.maximumf %144, %145 : vector<16x512xf32>
    %147 = vector.broadcast %4 : vector<1x512xf32> to vector<16x512xf32>
    %148 = arith.addf %146, %147 : vector<16x512xf32>
    %cst_66 = arith.constant 0.000000e+00 : f32
    %149 = vector.broadcast %cst_66 : f32 to vector<16x512xf32>
    %150 = arith.maximumf %148, %149 : vector<16x512xf32>
    %151 = arith.truncf %150 : vector<16x512xf32> to vector<16x512xbf16>
    %c9 = arith.constant 9 : index
    %c0_67 = arith.constant 0 : index
    %c0_68 = arith.constant 0 : index
    %152 = vector.load %arg4[%c9, %c0_67, %c0_68] : memref<14x512x128xbf16, #tpu.memory_space<vmem>>, vector<1x512x128xbf16>
    %153 = vector.shape_cast %152 : vector<1x512x128xbf16> to vector<512x128xbf16>
    %cst_69 = arith.constant dense<0.000000e+00> : vector<16x128xf32>
    %154 = tpu.matmul %151, %153, %cst_69 {dimension_numbers = #tpu.dot_dimension_numbers<[1], [0], [0], [1], [0, 0, 1, 1], [], []>} : vector<16x512xbf16>, vector<512x128xbf16>, vector<16x128xf32> -> vector<16x128xf32>
    %155 = arith.addf %140, %154 : vector<16x128xf32>
    %c320 = arith.constant 320 : index
    %c0_70 = arith.constant 0 : index
    %156 = vector.load %arg9[%c320, %c0_70] : memref<448x1024xf32, #tpu.memory_space<vmem>>, vector<16x1024xf32>
    %c336 = arith.constant 336 : index
    %c0_71 = arith.constant 0 : index
    %157 = vector.load %arg9[%c336, %c0_71] : memref<448x1024xf32, #tpu.memory_space<vmem>>, vector<16x1024xf32>
    %158 = arith.maximumf %156, %157 : vector<16x1024xf32>
    %159 = vector.extract_strided_slice %158 {offsets = [0, 0], sizes = [16, 512], strides = [1, 1]} : vector<16x1024xf32> to vector<16x512xf32>
    %160 = vector.extract_strided_slice %158 {offsets = [0, 512], sizes = [16, 512], strides = [1, 1]} : vector<16x1024xf32> to vector<16x512xf32>
    %161 = arith.maximumf %159, %160 : vector<16x512xf32>
    %162 = vector.broadcast %4 : vector<1x512xf32> to vector<16x512xf32>
    %163 = arith.addf %161, %162 : vector<16x512xf32>
    %cst_72 = arith.constant 0.000000e+00 : f32
    %164 = vector.broadcast %cst_72 : f32 to vector<16x512xf32>
    %165 = arith.maximumf %163, %164 : vector<16x512xf32>
    %166 = arith.truncf %165 : vector<16x512xf32> to vector<16x512xbf16>
    %c10 = arith.constant 10 : index
    %c0_73 = arith.constant 0 : index
    %c0_74 = arith.constant 0 : index
    %167 = vector.load %arg4[%c10, %c0_73, %c0_74] : memref<14x512x128xbf16, #tpu.memory_space<vmem>>, vector<1x512x128xbf16>
    %168 = vector.shape_cast %167 : vector<1x512x128xbf16> to vector<512x128xbf16>
    %cst_75 = arith.constant dense<0.000000e+00> : vector<16x128xf32>
    %169 = tpu.matmul %166, %168, %cst_75 {dimension_numbers = #tpu.dot_dimension_numbers<[1], [0], [0], [1], [0, 0, 1, 1], [], []>} : vector<16x512xbf16>, vector<512x128xbf16>, vector<16x128xf32> -> vector<16x128xf32>
    %170 = arith.addf %155, %169 : vector<16x128xf32>
    %c352 = arith.constant 352 : index
    %c0_76 = arith.constant 0 : index
    %171 = vector.load %arg9[%c352, %c0_76] : memref<448x1024xf32, #tpu.memory_space<vmem>>, vector<16x1024xf32>
    %c368 = arith.constant 368 : index
    %c0_77 = arith.constant 0 : index
    %172 = vector.load %arg9[%c368, %c0_77] : memref<448x1024xf32, #tpu.memory_space<vmem>>, vector<16x1024xf32>
    %173 = arith.maximumf %171, %172 : vector<16x1024xf32>
    %174 = vector.extract_strided_slice %173 {offsets = [0, 0], sizes = [16, 512], strides = [1, 1]} : vector<16x1024xf32> to vector<16x512xf32>
    %175 = vector.extract_strided_slice %173 {offsets = [0, 512], sizes = [16, 512], strides = [1, 1]} : vector<16x1024xf32> to vector<16x512xf32>
    %176 = arith.maximumf %174, %175 : vector<16x512xf32>
    %177 = vector.broadcast %4 : vector<1x512xf32> to vector<16x512xf32>
    %178 = arith.addf %176, %177 : vector<16x512xf32>
    %cst_78 = arith.constant 0.000000e+00 : f32
    %179 = vector.broadcast %cst_78 : f32 to vector<16x512xf32>
    %180 = arith.maximumf %178, %179 : vector<16x512xf32>
    %181 = arith.truncf %180 : vector<16x512xf32> to vector<16x512xbf16>
    %c11 = arith.constant 11 : index
    %c0_79 = arith.constant 0 : index
    %c0_80 = arith.constant 0 : index
    %182 = vector.load %arg4[%c11, %c0_79, %c0_80] : memref<14x512x128xbf16, #tpu.memory_space<vmem>>, vector<1x512x128xbf16>
    %183 = vector.shape_cast %182 : vector<1x512x128xbf16> to vector<512x128xbf16>
    %cst_81 = arith.constant dense<0.000000e+00> : vector<16x128xf32>
    %184 = tpu.matmul %181, %183, %cst_81 {dimension_numbers = #tpu.dot_dimension_numbers<[1], [0], [0], [1], [0, 0, 1, 1], [], []>} : vector<16x512xbf16>, vector<512x128xbf16>, vector<16x128xf32> -> vector<16x128xf32>
    %185 = arith.addf %170, %184 : vector<16x128xf32>
    %c384 = arith.constant 384 : index
    %c0_82 = arith.constant 0 : index
    %186 = vector.load %arg9[%c384, %c0_82] : memref<448x1024xf32, #tpu.memory_space<vmem>>, vector<16x1024xf32>
    %c400 = arith.constant 400 : index
    %c0_83 = arith.constant 0 : index
    %187 = vector.load %arg9[%c400, %c0_83] : memref<448x1024xf32, #tpu.memory_space<vmem>>, vector<16x1024xf32>
    %188 = arith.maximumf %186, %187 : vector<16x1024xf32>
    %189 = vector.extract_strided_slice %188 {offsets = [0, 0], sizes = [16, 512], strides = [1, 1]} : vector<16x1024xf32> to vector<16x512xf32>
    %190 = vector.extract_strided_slice %188 {offsets = [0, 512], sizes = [16, 512], strides = [1, 1]} : vector<16x1024xf32> to vector<16x512xf32>
    %191 = arith.maximumf %189, %190 : vector<16x512xf32>
    %192 = vector.broadcast %4 : vector<1x512xf32> to vector<16x512xf32>
    %193 = arith.addf %191, %192 : vector<16x512xf32>
    %cst_84 = arith.constant 0.000000e+00 : f32
    %194 = vector.broadcast %cst_84 : f32 to vector<16x512xf32>
    %195 = arith.maximumf %193, %194 : vector<16x512xf32>
    %196 = arith.truncf %195 : vector<16x512xf32> to vector<16x512xbf16>
    %c12 = arith.constant 12 : index
    %c0_85 = arith.constant 0 : index
    %c0_86 = arith.constant 0 : index
    %197 = vector.load %arg4[%c12, %c0_85, %c0_86] : memref<14x512x128xbf16, #tpu.memory_space<vmem>>, vector<1x512x128xbf16>
    %198 = vector.shape_cast %197 : vector<1x512x128xbf16> to vector<512x128xbf16>
    %cst_87 = arith.constant dense<0.000000e+00> : vector<16x128xf32>
    %199 = tpu.matmul %196, %198, %cst_87 {dimension_numbers = #tpu.dot_dimension_numbers<[1], [0], [0], [1], [0, 0, 1, 1], [], []>} : vector<16x512xbf16>, vector<512x128xbf16>, vector<16x128xf32> -> vector<16x128xf32>
    %200 = arith.addf %185, %199 : vector<16x128xf32>
    %c416 = arith.constant 416 : index
    %c0_88 = arith.constant 0 : index
    %201 = vector.load %arg9[%c416, %c0_88] : memref<448x1024xf32, #tpu.memory_space<vmem>>, vector<16x1024xf32>
    %c432 = arith.constant 432 : index
    %c0_89 = arith.constant 0 : index
    %202 = vector.load %arg9[%c432, %c0_89] : memref<448x1024xf32, #tpu.memory_space<vmem>>, vector<16x1024xf32>
    %203 = arith.maximumf %201, %202 : vector<16x1024xf32>
    %204 = vector.extract_strided_slice %203 {offsets = [0, 0], sizes = [16, 512], strides = [1, 1]} : vector<16x1024xf32> to vector<16x512xf32>
    %205 = vector.extract_strided_slice %203 {offsets = [0, 512], sizes = [16, 512], strides = [1, 1]} : vector<16x1024xf32> to vector<16x512xf32>
    %206 = arith.maximumf %204, %205 : vector<16x512xf32>
    %207 = vector.broadcast %4 : vector<1x512xf32> to vector<16x512xf32>
    %208 = arith.addf %206, %207 : vector<16x512xf32>
    %cst_90 = arith.constant 0.000000e+00 : f32
    %209 = vector.broadcast %cst_90 : f32 to vector<16x512xf32>
    %210 = arith.maximumf %208, %209 : vector<16x512xf32>
    %211 = arith.truncf %210 : vector<16x512xf32> to vector<16x512xbf16>
    %c13 = arith.constant 13 : index
    %c0_91 = arith.constant 0 : index
    %c0_92 = arith.constant 0 : index
    %212 = vector.load %arg4[%c13, %c0_91, %c0_92] : memref<14x512x128xbf16, #tpu.memory_space<vmem>>, vector<1x512x128xbf16>
    %213 = vector.shape_cast %212 : vector<1x512x128xbf16> to vector<512x128xbf16>
    %cst_93 = arith.constant dense<0.000000e+00> : vector<16x128xf32>
    %214 = tpu.matmul %211, %213, %cst_93 {dimension_numbers = #tpu.dot_dimension_numbers<[1], [0], [0], [1], [0, 0, 1, 1], [], []>} : vector<16x512xbf16>, vector<512x128xbf16>, vector<16x128xf32> -> vector<16x128xf32>
    %215 = arith.addf %200, %214 : vector<16x128xf32>
    %c0_94 = arith.constant 0 : index
    %c0_95 = arith.constant 0 : index
    %216 = vector.load %arg5[%c0_94, %c0_95] : memref<1x128xf32, #tpu.memory_space<vmem>>, vector<1x128xf32>
    %217 = vector.broadcast %216 : vector<1x128xf32> to vector<16x128xf32>
    %218 = arith.addf %215, %217 : vector<16x128xf32>
    %cst_96 = arith.constant 0.000000e+00 : f32
    %219 = vector.broadcast %cst_96 : f32 to vector<16x128xf32>
    %220 = arith.maximumf %218, %219 : vector<16x128xf32>
    %221 = arith.truncf %220 : vector<16x128xf32> to vector<16x128xbf16>
    %c0_97 = arith.constant 0 : index
    %c0_98 = arith.constant 0 : index
    %222 = vector.load %arg6[%c0_97, %c0_98] : memref<128x128xbf16, #tpu.memory_space<vmem>>, vector<128x128xbf16>
    %cst_99 = arith.constant dense<0.000000e+00> : vector<16x128xf32>
    %223 = tpu.matmul %221, %222, %cst_99 {dimension_numbers = #tpu.dot_dimension_numbers<[1], [0], [0], [1], [0, 0, 1, 1], [], []>} : vector<16x128xbf16>, vector<128x128xbf16>, vector<16x128xf32> -> vector<16x128xf32>
    %c0_100 = arith.constant 0 : index
    %c0_101 = arith.constant 0 : index
    %224 = vector.load %arg7[%c0_100, %c0_101] : memref<1x128xf32, #tpu.memory_space<vmem>>, vector<1x128xf32>
    %225 = vector.broadcast %224 : vector<1x128xf32> to vector<16x128xf32>
    %226 = arith.addf %223, %225 : vector<16x128xf32>
    %c0_102 = arith.constant 0 : index
    %c0_103 = arith.constant 0 : index
    %227 = vector.load %arg8[%c0_102, %c0_103] : memref<16x128xf32, #tpu.memory_space<vmem>>, vector<16x128xf32>
    tpu.vector_store %arg8[%c0_102, %c0_103], %226 {strides = array<i32>} : memref<16x128xf32, #tpu.memory_space<vmem>>, vector<16x128xf32>,
    return
  }
  func.func @transform_0(%arg0: i32) -> (i32, i32) {
    %c0_i32 = arith.constant 0 : i32
    %c0_i32_0 = arith.constant 0 : i32
    return %arg0, %c0_i32 : i32, i32
  }
  func.func @transform_1(%arg0: i32) -> (i32, i32) {
    %c0_i32 = arith.constant 0 : i32
    %c0_i32_0 = arith.constant 0 : i32
    %c0_i32_1 = arith.constant 0 : i32
    return %c0_i32, %c0_i32_0 : i32, i32
  }
  func.func @transform_2(%arg0: i32) -> (i32, i32) {
    %c0_i32 = arith.constant 0 : i32
    %c0_i32_0 = arith.constant 0 : i32
    %c0_i32_1 = arith.constant 0 : i32
    return %c0_i32, %c0_i32_0 : i32, i32
  }
  func.func @transform_3(%arg0: i32) -> (i32, i32, i32) {
    %c0_i32 = arith.constant 0 : i32
    %c0_i32_0 = arith.constant 0 : i32
    %c0_i32_1 = arith.constant 0 : i32
    %c0_i32_2 = arith.constant 0 : i32
    return %c0_i32, %c0_i32_0, %c0_i32_1 : i32, i32, i32
  }
  func.func @transform_4(%arg0: i32) -> (i32, i32) {
    %c0_i32 = arith.constant 0 : i32
    %c0_i32_0 = arith.constant 0 : i32
    %c0_i32_1 = arith.constant 0 : i32
    return %c0_i32, %c0_i32_0 : i32, i32
  }
  func.func @transform_5(%arg0: i32) -> (i32, i32) {
    %c0_i32 = arith.constant 0 : i32
    %c0_i32_0 = arith.constant 0 : i32
    %c0_i32_1 = arith.constant 0 : i32
    return %c0_i32, %c0_i32_0 : i32, i32
  }
  func.func @transform_6(%arg0: i32) -> (i32, i32) {
    %c0_i32 = arith.constant 0 : i32
    %c0_i32_0 = arith.constant 0 : i32
    %c0_i32_1 = arith.constant 0 : i32
    return %c0_i32, %c0_i32_0 : i32, i32
  }
  func.func @transform_7(%arg0: i32) -> (i32, i32) {
    %c0_i32 = arith.constant 0 : i32
    %c0_i32_0 = arith.constant 0 : i32
    return %arg0, %c0_i32 : i32, i32
  }
}

</mosaic_0001>

<llo_original>
// kernel: simple_nn_forward.1
$region0: #{simple_nn_forward.1}
  #allocation0 [shape = 'u32[]', space=smem, size = 0x4, offset = 0x4, fixed_abs, tag = 'smem constant byte address 0x4 - core index']
  #allocation1 [shape = 'u32[72,128]{1,0:T(1,128)}', space=vmem, size = 0x9000, scoped, tag = 'internal scratch']
  #allocation2 [shape = 'f32[448,1024]{1,0:T(8,128)}', space=vmem, size = 0x1c0000, scoped, tag = 'scratch operand']
  %s0 = inlined_call_operand.vmem [shape: bf16[448,128], index: 0, kind: input, shape index: {}]
  %s1 = inlined_call_operand.hbm [shape: bf16[128,1024], index: 1, kind: input, shape index: {}]
  %s2 = inlined_call_operand.hbm [shape: f32[1,512], index: 2, kind: input, shape index: {}]
  %s3 = inlined_call_operand.hbm [shape: bf16[14,512,128], index: 3, kind: input, shape index: {}]
  %s4 = inlined_call_operand.hbm [shape: f32[1,128], index: 4, kind: input, shape index: {}]
  %s5 = inlined_call_operand.hbm [shape: bf16[128,128], index: 5, kind: input, shape index: {}]
  %s6 = inlined_call_operand.hbm [shape: f32[1,128], index: 6, kind: input, shape index: {}]
  %s7 = inlined_call_operand.vmem [shape: f32[16,128], index: 7, kind: output, shape index: {}]
  %s8 = sld [smem:[#allocation0]]
  $region62: #{simple_nn_forward.1} parent=0
    _
  %s10 = ssub.s32 1, %s8
  %s11 = scalar_select 0, %s10, %s8
  $region1: #{simple_nn_forward.1} parent=0
    #allocation3 [shape = 'u8[262144]{0}', space=vmem, size = 0x40000, scoped, tag = 'input window, operand 1, single buffered']
    #allocation4 [shape = 's32[1]{0}', space=sflag, size = 0x4, scoped, tag = 'scoped memory for simple_nn_forward.1']
    #allocation5 [shape = 'u8[2048]{0}', space=vmem, size = 0x800, scoped, tag = 'input window, operand 2, single buffered']
    #allocation6 [shape = 's32[1]{0}', space=sflag, size = 0x4, scoped, tag = 'scoped memory for simple_nn_forward.1']
    #allocation7 [shape = 'u8[1835008]{0}', space=vmem, size = 0x1c0000, scoped, tag = 'input window, operand 3, single buffered']
    #allocation8 [shape = 'u8[512]{0}', space=vmem, size = 0x400, scoped, tag = 'input window, operand 4, single buffered']
    #allocation9 [shape = 's32[1]{0}', space=sflag, size = 0x4, scoped, tag = 'scoped memory for simple_nn_forward.1']
    #allocation10 [shape = 'u8[32768]{0}', space=vmem, size = 0x8000, scoped, tag = 'input window, operand 5, single buffered']
    #allocation11 [shape = 'u8[512]{0}', space=vmem, size = 0x400, scoped, tag = 'input window, operand 6, single buffered']
    #allocation12 [shape = 's32[1]{0}', space=sflag, size = 0x4, scoped, tag = 'scoped memory for simple_nn_forward.1']
    %12 = vsyncpa [#allocation4], 0
    %13 = vsyncpa [#allocation6], 0
    %14 = vsyncpa [#allocation9], 0
    %15 = vsyncpa [#allocation12], 0
    // Predicated region
    $region2: #{simple_nn_forward.1} parent=1 // pred_check
      _
    $region3: #{simple_nn_forward.1} parent=1 // pred_check_branch
      %17 = sbr.rel (0) target = $region5
    $region4: #{simple_nn_forward.1} parent=1 // pred_region
      _
    $region5: #{simple_nn_forward.1} parent=1 // pred_fallthru
      _
    // Predicated region
    $region6: #{simple_nn_forward.1} parent=1 // pred_check
      _
    $region7: #{simple_nn_forward.1} parent=1 // pred_check_branch
      %19 = sbr.rel (0) target = $region9
    $region8: #{simple_nn_forward.1} parent=1 // pred_region
      %21 = vsyncadd [#allocation4], 0
      %s22 = sshll.u32 %s1, 4
      %s23 = int_to_ptr.hbm [resolvable:$true] %s22
      %s24 = sshll.u32 [#allocation3], 4
      %s25 = int_to_ptr.vmem [resolvable:$true] %s24
      %30 = dma.hbm_to_vmem [thread:$0]  %s23, 8192, %s25, [#allocation4], 512, 512, 32
    $region9: #{simple_nn_forward.1} parent=1 // pred_fallthru
      _
    // Predicated region
    $region10: #{simple_nn_forward.1} parent=1 // pred_check
      _
    $region11: #{simple_nn_forward.1} parent=1 // pred_check_branch
      %32 = sbr.rel (0) target = $region13
    $region12: #{simple_nn_forward.1} parent=1 // pred_region
      %34 = vsyncadd [#allocation6], 0
      %s36 = sshll.u32 %s2, 4
      %s37 = int_to_ptr.hbm [resolvable:$true] %s36
      %s38 = sshll.u32 [#allocation5], 4
      %s39 = int_to_ptr.vmem [resolvable:$true] %s38
      %41 = dma.hbm_to_vmem [thread:$0]  %s37, 64, %s39, [#allocation6]
    $region13: #{simple_nn_forward.1} parent=1 // pred_fallthru
      _
    // Predicated region
    $region14: #{simple_nn_forward.1} parent=1 // pred_check
      _
    $region15: #{simple_nn_forward.1} parent=1 // pred_check_branch
      %43 = sbr.rel (0) target = $region17
    $region16: #{simple_nn_forward.1} parent=1 // pred_region
      %45 = vsyncadd [#allocation6], 0
      %s46 = sshll.u32 %s3, 4
      %s47 = int_to_ptr.hbm [resolvable:$true] %s46
      %s48 = sshll.u32 [#allocation7], 4
      %s49 = int_to_ptr.vmem [resolvable:$true] %s48
      %54 = dma.hbm_to_vmem [thread:$0]  %s47, 57344, %s49, [#allocation6], 64, 64, 4
    $region17: #{simple_nn_forward.1} parent=1 // pred_fallthru
      _
    // Predicated region
    $region18: #{simple_nn_forward.1} parent=1 // pred_check
      _
    $region19: #{simple_nn_forward.1} parent=1 // pred_check_branch
      %56 = sbr.rel (0) target = $region21
    $region20: #{simple_nn_forward.1} parent=1 // pred_region
      %58 = vsyncadd [#allocation9], 0
      %s60 = sshll.u32 %s4, 4
      %s61 = int_to_ptr.hbm [resolvable:$true] %s60
      %s62 = sshll.u32 [#allocation8], 4
      %s63 = int_to_ptr.vmem [resolvable:$true] %s62
      %65 = dma.hbm_to_vmem [thread:$0]  %s61, 16, %s63, [#allocation9]
    $region21: #{simple_nn_forward.1} parent=1 // pred_fallthru
      _
    // Predicated region
    $region22: #{simple_nn_forward.1} parent=1 // pred_check
      _
    $region23: #{simple_nn_forward.1} parent=1 // pred_check_branch
      %67 = sbr.rel (0) target = $region25
    $region24: #{simple_nn_forward.1} parent=1 // pred_region
      %69 = vsyncadd [#allocation9], 0
      %s70 = sshll.u32 %s5, 4
      %s71 = int_to_ptr.hbm [resolvable:$true] %s70
      %s72 = sshll.u32 [#allocation10], 4
      %s73 = int_to_ptr.vmem [resolvable:$true] %s72
      %78 = dma.hbm_to_vmem [thread:$0]  %s71, 1024, %s73, [#allocation9], 64, 64, 4
    $region25: #{simple_nn_forward.1} parent=1 // pred_fallthru
      _
    // Predicated region
    $region26: #{simple_nn_forward.1} parent=1 // pred_check
      _
    $region27: #{simple_nn_forward.1} parent=1 // pred_check_branch
      %80 = sbr.rel (0) target = $region29
    $region28: #{simple_nn_forward.1} parent=1 // pred_region
      %82 = vsyncadd [#allocation12], 0
      %s84 = sshll.u32 %s6, 4
      %s85 = int_to_ptr.hbm [resolvable:$true] %s84
      %s86 = sshll.u32 [#allocation11], 4
      %s87 = int_to_ptr.vmem [resolvable:$true] %s86
      %89 = dma.hbm_to_vmem [thread:$0]  %s85, 16, %s87, [#allocation12]
    $region29: #{simple_nn_forward.1} parent=1 // pred_fallthru
      _
    // Predicated region
    $region30: #{simple_nn_forward.1} parent=1 // pred_check
      _
    $region31: #{simple_nn_forward.1} parent=1 // pred_check_branch
      %91 = sbr.rel (0) target = $region33
    $region32: #{simple_nn_forward.1} parent=1 // pred_region
      %93 = dma.done [#allocation4], 8192
    $region33: #{simple_nn_forward.1} parent=1 // pred_fallthru
      _
    // Predicated region
    $region34: #{simple_nn_forward.1} parent=1 // pred_check
      _
    $region35: #{simple_nn_forward.1} parent=1 // pred_check_branch
      %95 = sbr.rel (0) target = $region37
    $region36: #{simple_nn_forward.1} parent=1 // pred_region
      %97 = dma.done [#allocation6], 64
    $region37: #{simple_nn_forward.1} parent=1 // pred_fallthru
      _
    // Predicated region
    $region38: #{simple_nn_forward.1} parent=1 // pred_check
      _
    $region39: #{simple_nn_forward.1} parent=1 // pred_check_branch
      %99 = sbr.rel (0) target = $region41
    $region40: #{simple_nn_forward.1} parent=1 // pred_region
      %101 = dma.done [#allocation6], 57344
    $region41: #{simple_nn_forward.1} parent=1 // pred_fallthru
      _
    // Predicated region
    $region42: #{simple_nn_forward.1} parent=1 // pred_check
      _
    $region43: #{simple_nn_forward.1} parent=1 // pred_check_branch
      %103 = sbr.rel (0) target = $region45
    $region44: #{simple_nn_forward.1} parent=1 // pred_region
      %105 = dma.done [#allocation9], 16
    $region45: #{simple_nn_forward.1} parent=1 // pred_fallthru
      _
    // Predicated region
    $region46: #{simple_nn_forward.1} parent=1 // pred_check
      _
    $region47: #{simple_nn_forward.1} parent=1 // pred_check_branch
      %107 = sbr.rel (0) target = $region49
    $region48: #{simple_nn_forward.1} parent=1 // pred_region
      %109 = dma.done [#allocation9], 1024
    $region49: #{simple_nn_forward.1} parent=1 // pred_fallthru
      _
    // Predicated region
    $region50: #{simple_nn_forward.1} parent=1 // pred_check
      _
    $region51: #{simple_nn_forward.1} parent=1 // pred_check_branch
      %111 = sbr.rel (0) target = $region53
    $region52: #{simple_nn_forward.1} parent=1 // pred_region
      %113 = dma.done [#allocation12], 16
    $region53: #{simple_nn_forward.1} parent=1 // pred_fallthru
      _
    %v114 = vld [vmem:[%s0] sm:$0xf]
    %v115 = vld [vmem:[%s0 + $0x4] sm:$0xf]
    %v116 = vld [vmem:[%s0 + $0x8] sm:$0xf]
    %v117 = vld [vmem:[%s0 + $0xc] sm:$0xf]
    %v118 = vld [vmem:[%s0 + $0x10] sm:$0xf]
    %v119 = vld [vmem:[%s0 + $0x14] sm:$0xf]
    %v120 = vld [vmem:[%s0 + $0x18] sm:$0xf]
    %v121 = vld [vmem:[%s0 + $0x1c] sm:$0xf]
    %v122 = vld [vmem:[%s0 + $0x20] sm:$0xf]
    %v123 = vld [vmem:[%s0 + $0x24] sm:$0xf]
    %v124 = vld [vmem:[%s0 + $0x28] sm:$0xf]
    %v125 = vld [vmem:[%s0 + $0x2c] sm:$0xf]
    %v126 = vld [vmem:[%s0 + $0x30] sm:$0xf]
    %v127 = vld [vmem:[%s0 + $0x34] sm:$0xf]
    %v128 = vld [vmem:[%s0 + $0x38] sm:$0xf]
    %v129 = vld [vmem:[%s0 + $0x3c] sm:$0xf]
    %v130 = vld [vmem:[%s0 + $0x40] sm:$0xf]
    %v131 = vld [vmem:[%s0 + $0x44] sm:$0xf]
    %v132 = vld [vmem:[%s0 + $0x48] sm:$0xf]
    %v133 = vld [vmem:[%s0 + $0x4c] sm:$0xf]
    %v134 = vld [vmem:[%s0 + $0x50] sm:$0xf]
    %v135 = vld [vmem:[%s0 + $0x54] sm:$0xf]
    %v136 = vld [vmem:[%s0 + $0x58] sm:$0xf]
    %v137 = vld [vmem:[%s0 + $0x5c] sm:$0xf]
    %v138 = vld [vmem:[%s0 + $0x60] sm:$0xf]
    %v139 = vld [vmem:[%s0 + $0x64] sm:$0xf]
    %v140 = vld [vmem:[%s0 + $0x68] sm:$0xf]
    %v141 = vld [vmem:[%s0 + $0x6c] sm:$0xf]
    %v142 = vld [vmem:[%s0 + $0x70] sm:$0xf]
    %v143 = vld [vmem:[%s0 + $0x74] sm:$0xf]
    %v144 = vld [vmem:[%s0 + $0x78] sm:$0xf]
    %v145 = vld [vmem:[%s0 + $0x7c] sm:$0xf]
    %v146 = vld [vmem:[%s0 + $0x80] sm:$0xf]
    %v147 = vld [vmem:[%s0 + $0x84] sm:$0xf]
    %v148 = vld [vmem:[%s0 + $0x88] sm:$0xf]
    %v149 = vld [vmem:[%s0 + $0x8c] sm:$0xf]
    %v150 = vld [vmem:[%s0 + $0x90] sm:$0xf]
    %v151 = vld [vmem:[%s0 + $0x94] sm:$0xf]
    %v152 = vld [vmem:[%s0 + $0x98] sm:$0xf]
    %v153 = vld [vmem:[%s0 + $0x9c] sm:$0xf]
    %v154 = vld [vmem:[%s0 + $0xa0] sm:$0xf]
    %v155 = vld [vmem:[%s0 + $0xa4] sm:$0xf]
    %v156 = vld [vmem:[%s0 + $0xa8] sm:$0xf]
    %v157 = vld [vmem:[%s0 + $0xac] sm:$0xf]
    %v158 = vld [vmem:[%s0 + $0xb0] sm:$0xf]
    %v159 = vld [vmem:[%s0 + $0xb4] sm:$0xf]
    %v160 = vld [vmem:[%s0 + $0xb8] sm:$0xf]
    %v161 = vld [vmem:[%s0 + $0xbc] sm:$0xf]
    %v162 = vld [vmem:[%s0 + $0xc0] sm:$0xf]
    %v163 = vld [vmem:[%s0 + $0xc4] sm:$0xf]
    %v164 = vld [vmem:[%s0 + $0xc8] sm:$0xf]
    %v165 = vld [vmem:[%s0 + $0xcc] sm:$0xf]
    %v166 = vld [vmem:[%s0 + $0xd0] sm:$0xf]
    %v167 = vld [vmem:[%s0 + $0xd4] sm:$0xf]
    %v168 = vld [vmem:[%s0 + $0xd8] sm:$0xf]
    %v169 = vld [vmem:[%s0 + $0xdc] sm:$0xf]
    %v170 = vld [vmem:[#allocation3] sm:$0xff]
    %v171 = vld [vmem:[#allocation3 + $0x8] sm:$0xff]
    %v172 = vld [vmem:[#allocation3 + $0x10] sm:$0xff]
    %v173 = vld [vmem:[#allocation3 + $0x18] sm:$0xff]
    %v174 = vld [vmem:[#allocation3 + $0x20] sm:$0xff]
    %v175 = vld [vmem:[#allocation3 + $0x28] sm:$0xff]
    %v176 = vld [vmem:[#allocation3 + $0x30] sm:$0xff]
    %v177 = vld [vmem:[#allocation3 + $0x38] sm:$0xff]
    %v178 = vld [vmem:[#allocation3 + $0x40] sm:$0xff]
    %v179 = vld [vmem:[#allocation3 + $0x48] sm:$0xff]
    %v180 = vld [vmem:[#allocation3 + $0x50] sm:$0xff]
    %v181 = vld [vmem:[#allocation3 + $0x58] sm:$0xff]
    %v182 = vld [vmem:[#allocation3 + $0x60] sm:$0xff]
    %v183 = vld [vmem:[#allocation3 + $0x68] sm:$0xff]
    %v184 = vld [vmem:[#allocation3 + $0x70] sm:$0xff]
    %v185 = vld [vmem:[#allocation3 + $0x78] sm:$0xff]
    %v186 = vld [vmem:[#allocation3 + $0x80] sm:$0xff]
    %v187 = vld [vmem:[#allocation3 + $0x88] sm:$0xff]
    %v188 = vld [vmem:[#allocation3 + $0x90] sm:$0xff]
    %v189 = vld [vmem:[#allocation3 + $0x98] sm:$0xff]
    %v190 = vld [vmem:[#allocation3 + $0xa0] sm:$0xff]
    %v191 = vld [vmem:[#allocation3 + $0xa8] sm:$0xff]
    %v192 = vld [vmem:[#allocation3 + $0xb0] sm:$0xff]
    %v193 = vld [vmem:[#allocation3 + $0xb8] sm:$0xff]
    %v194 = vld [vmem:[#allocation3 + $0xc0] sm:$0xff]
    %v195 = vld [vmem:[#allocation3 + $0xc8] sm:$0xff]
    %v196 = vld [vmem:[#allocation3 + $0xd0] sm:$0xff]
    %v197 = vld [vmem:[#allocation3 + $0xd8] sm:$0xff]
    %v198 = vld [vmem:[#allocation3 + $0xe0] sm:$0xff]
    %v199 = vld [vmem:[#allocation3 + $0xe8] sm:$0xff]
    %v200 = vld [vmem:[#allocation3 + $0xf0] sm:$0xff]
    %v201 = vld [vmem:[#allocation3 + $0xf8] sm:$0xff]
    %v202 = vld [vmem:[#allocation3 + $0x100] sm:$0xff]
    %v203 = vld [vmem:[#allocation3 + $0x108] sm:$0xff]
    %v204 = vld [vmem:[#allocation3 + $0x110] sm:$0xff]
    %v205 = vld [vmem:[#allocation3 + $0x118] sm:$0xff]
    %v206 = vld [vmem:[#allocation3 + $0x120] sm:$0xff]
    %v207 = vld [vmem:[#allocation3 + $0x128] sm:$0xff]
    %v208 = vld [vmem:[#allocation3 + $0x130] sm:$0xff]
    %v209 = vld [vmem:[#allocation3 + $0x138] sm:$0xff]
    %v210 = vld [vmem:[#allocation3 + $0x140] sm:$0xff]
    %v211 = vld [vmem:[#allocation3 + $0x148] sm:$0xff]
    %v212 = vld [vmem:[#allocation3 + $0x150] sm:$0xff]
    %v213 = vld [vmem:[#allocation3 + $0x158] sm:$0xff]
    %v214 = vld [vmem:[#allocation3 + $0x160] sm:$0xff]
    %v215 = vld [vmem:[#allocation3 + $0x168] sm:$0xff]
    %v216 = vld [vmem:[#allocation3 + $0x170] sm:$0xff]
    %v217 = vld [vmem:[#allocation3 + $0x178] sm:$0xff]
    %v218 = vld [vmem:[#allocation3 + $0x180] sm:$0xff]
    %v219 = vld [vmem:[#allocation3 + $0x188] sm:$0xff]
    %v220 = vld [vmem:[#allocation3 + $0x190] sm:$0xff]
    %v221 = vld [vmem:[#allocation3 + $0x198] sm:$0xff]
    %v222 = vld [vmem:[#allocation3 + $0x1a0] sm:$0xff]
    %v223 = vld [vmem:[#allocation3 + $0x1a8] sm:$0xff]
    %v224 = vld [vmem:[#allocation3 + $0x1b0] sm:$0xff]
    %v225 = vld [vmem:[#allocation3 + $0x1b8] sm:$0xff]
    %v226 = vld [vmem:[#allocation3 + $0x1c0] sm:$0xff]
    %v227 = vld [vmem:[#allocation3 + $0x1c8] sm:$0xff]
    %v228 = vld [vmem:[#allocation3 + $0x1d0] sm:$0xff]
    %v229 = vld [vmem:[#allocation3 + $0x1d8] sm:$0xff]
    %v230 = vld [vmem:[#allocation3 + $0x1e0] sm:$0xff]
    %v231 = vld [vmem:[#allocation3 + $0x1e8] sm:$0xff]
    %v232 = vld [vmem:[#allocation3 + $0x1f0] sm:$0xff]
    %v233 = vld [vmem:[#allocation3 + $0x1f8] sm:$0xff]
    %v290 = vunpack.c.l.b16 %v114
    %v291 = vunpack.c.l.b16 %v115
    %v292 = vunpack.c.l.b16 %v116
    %v293 = vunpack.c.l.b16 %v117
    %v294 = vunpack.c.l.b16 %v118
    %v295 = vunpack.c.l.b16 %v119
    %v296 = vunpack.c.l.b16 %v120
    %v297 = vunpack.c.l.b16 %v121
    %v298 = vunpack.c.l.b16 %v122
    %v299 = vunpack.c.l.b16 %v123
    %v300 = vunpack.c.l.b16 %v124
    %v301 = vunpack.c.l.b16 %v125
    %v302 = vunpack.c.l.b16 %v126
    %v303 = vunpack.c.l.b16 %v127
    %v304 = vunpack.c.l.b16 %v128
    %v305 = vunpack.c.l.b16 %v129
    %v306 = vunpack.c.l.b16 %v130
    %v307 = vunpack.c.l.b16 %v131
    %v308 = vunpack.c.l.b16 %v132
    %v309 = vunpack.c.l.b16 %v133
    %v310 = vunpack.c.l.b16 %v134
    %v311 = vunpack.c.l.b16 %v135
    %v312 = vunpack.c.l.b16 %v136
    %v313 = vunpack.c.l.b16 %v137
    %v314 = vunpack.c.l.b16 %v138
    %v315 = vunpack.c.l.b16 %v139
    %v316 = vunpack.c.l.b16 %v140
    %v317 = vunpack.c.l.b16 %v141
    %v318 = vunpack.c.l.b16 %v142
    %v319 = vunpack.c.l.b16 %v143
    %v320 = vunpack.c.l.b16 %v144
    %v321 = vunpack.c.l.b16 %v145
    %v322 = vunpack.c.l.b16 %v146
    %v323 = vunpack.c.l.b16 %v147
    %v324 = vunpack.c.l.b16 %v148
    %v325 = vunpack.c.l.b16 %v149
    %v326 = vunpack.c.l.b16 %v150
    %v327 = vunpack.c.l.b16 %v151
    %v328 = vunpack.c.l.b16 %v152
    %v329 = vunpack.c.l.b16 %v153
    %v330 = vunpack.c.l.b16 %v154
    %v331 = vunpack.c.l.b16 %v155
    %v332 = vunpack.c.l.b16 %v156
    %v333 = vunpack.c.l.b16 %v157
    %v334 = vunpack.c.l.b16 %v158
    %v335 = vunpack.c.l.b16 %v159
    %v336 = vunpack.c.l.b16 %v160
    %v337 = vunpack.c.l.b16 %v161
    %v338 = vunpack.c.l.b16 %v162
    %v339 = vunpack.c.l.b16 %v163
    %v340 = vunpack.c.l.b16 %v164
    %v341 = vunpack.c.l.b16 %v165
    %v342 = vunpack.c.l.b16 %v166
    %v343 = vunpack.c.l.b16 %v167
    %v344 = vunpack.c.l.b16 %v168
    %v345 = vunpack.c.l.b16 %v169
    %v346 = vpack.c.b16 %v291, %v290
    %v347 = vpack.c.b16 %v293, %v292
    %v348 = vpack.c.b16 %v295, %v294
    %v349 = vpack.c.b16 %v297, %v296
    %v350 = vpack.c.b16 %v299, %v298
    %v351 = vpack.c.b16 %v301, %v300
    %v352 = vpack.c.b16 %v303, %v302
    %v353 = vpack.c.b16 %v305, %v304
    %v354 = vpack.c.b16 %v307, %v306
    %v355 = vpack.c.b16 %v309, %v308
    %v356 = vpack.c.b16 %v311, %v310
    %v357 = vpack.c.b16 %v313, %v312
    %v358 = vpack.c.b16 %v315, %v314
    %v359 = vpack.c.b16 %v317, %v316
    %v360 = vpack.c.b16 %v319, %v318
    %v361 = vpack.c.b16 %v321, %v320
    %v362 = vpack.c.b16 %v323, %v322
    %v363 = vpack.c.b16 %v325, %v324
    %v364 = vpack.c.b16 %v327, %v326
    %v365 = vpack.c.b16 %v329, %v328
    %v366 = vpack.c.b16 %v331, %v330
    %v367 = vpack.c.b16 %v333, %v332
    %v368 = vpack.c.b16 %v335, %v334
    %v369 = vpack.c.b16 %v337, %v336
    %v370 = vpack.c.b16 %v339, %v338
    %v371 = vpack.c.b16 %v341, %v340
    %v372 = vpack.c.b16 %v343, %v342
    %v373 = vpack.c.b16 %v345, %v344
    %v466 = vunpack.c.l.b16 %v170
    %v467 = vunpack.c.h.b16 %v170
    %v468 = vunpack.c.l.b16 %v171
    %v469 = vunpack.c.h.b16 %v171
    %v470 = vunpack.c.l.b16 %v172
    %v471 = vunpack.c.h.b16 %v172
    %v472 = vunpack.c.l.b16 %v173
    %v473 = vunpack.c.h.b16 %v173
    %v474 = vunpack.c.l.b16 %v174
    %v475 = vunpack.c.h.b16 %v174
    %v476 = vunpack.c.l.b16 %v175
    %v477 = vunpack.c.h.b16 %v175
    %v478 = vunpack.c.l.b16 %v176
    %v479 = vunpack.c.h.b16 %v176
    %v480 = vunpack.c.l.b16 %v177
    %v481 = vunpack.c.h.b16 %v177
    %v482 = vunpack.c.l.b16 %v178
    %v483 = vunpack.c.h.b16 %v178
    %v484 = vunpack.c.l.b16 %v179
    %v485 = vunpack.c.h.b16 %v179
    %v486 = vunpack.c.l.b16 %v180
    %v487 = vunpack.c.h.b16 %v180
    %v488 = vunpack.c.l.b16 %v181
    %v489 = vunpack.c.h.b16 %v181
    %v490 = vunpack.c.l.b16 %v182
    %v491 = vunpack.c.h.b16 %v182
    %v492 = vunpack.c.l.b16 %v183
    %v493 = vunpack.c.h.b16 %v183
    %v494 = vunpack.c.l.b16 %v184
    %v495 = vunpack.c.h.b16 %v184
    %v496 = vunpack.c.l.b16 %v185
    %v497 = vunpack.c.h.b16 %v185
    %v498 = vunpack.c.l.b16 %v186
    %v499 = vunpack.c.h.b16 %v186
    %v500 = vunpack.c.l.b16 %v187
    %v501 = vunpack.c.h.b16 %v187
    %v502 = vunpack.c.l.b16 %v188
    %v503 = vunpack.c.h.b16 %v188
    %v504 = vunpack.c.l.b16 %v189
    %v505 = vunpack.c.h.b16 %v189
    %v506 = vunpack.c.l.b16 %v190
    %v507 = vunpack.c.h.b16 %v190
    %v508 = vunpack.c.l.b16 %v191
    %v509 = vunpack.c.h.b16 %v191
    %v510 = vunpack.c.l.b16 %v192
    %v511 = vunpack.c.h.b16 %v192
    %v512 = vunpack.c.l.b16 %v193
    %v513 = vunpack.c.h.b16 %v193
    %v514 = vunpack.c.l.b16 %v194
    %v515 = vunpack.c.h.b16 %v194
    %v516 = vunpack.c.l.b16 %v195
    %v517 = vunpack.c.h.b16 %v195
    %v518 = vunpack.c.l.b16 %v196
    %v519 = vunpack.c.h.b16 %v196
    %v520 = vunpack.c.l.b16 %v197
    %v521 = vunpack.c.h.b16 %v197
    %v522 = vunpack.c.l.b16 %v198
    %v523 = vunpack.c.h.b16 %v198
    %v524 = vunpack.c.l.b16 %v199
    %v525 = vunpack.c.h.b16 %v199
    %v526 = vunpack.c.l.b16 %v200
    %v527 = vunpack.c.h.b16 %v200
    %v528 = vunpack.c.l.b16 %v201
    %v529 = vunpack.c.h.b16 %v201
    %v530 = vunpack.c.l.b16 %v202
    %v531 = vunpack.c.h.b16 %v202
    %v532 = vunpack.c.l.b16 %v203
    %v533 = vunpack.c.h.b16 %v203
    %v534 = vunpack.c.l.b16 %v204
    %v535 = vunpack.c.h.b16 %v204
    %v536 = vunpack.c.l.b16 %v205
    %v537 = vunpack.c.h.b16 %v205
    %v538 = vunpack.c.l.b16 %v206
    %v539 = vunpack.c.h.b16 %v206
    %v540 = vunpack.c.l.b16 %v207
    %v541 = vunpack.c.h.b16 %v207
    %v542 = vunpack.c.l.b16 %v208
    %v543 = vunpack.c.h.b16 %v208
    %v544 = vunpack.c.l.b16 %v209
    %v545 = vunpack.c.h.b16 %v209
    %v546 = vunpack.c.l.b16 %v210
    %v547 = vunpack.c.h.b16 %v210
    %v548 = vunpack.c.l.b16 %v211
    %v549 = vunpack.c.h.b16 %v211
    %v550 = vunpack.c.l.b16 %v212
    %v551 = vunpack.c.h.b16 %v212
    %v552 = vunpack.c.l.b16 %v213
    %v553 = vunpack.c.h.b16 %v213
    %v554 = vunpack.c.l.b16 %v214
    %v555 = vunpack.c.h.b16 %v214
    %v556 = vunpack.c.l.b16 %v215
    %v557 = vunpack.c.h.b16 %v215
    %v558 = vunpack.c.l.b16 %v216
    %v559 = vunpack.c.h.b16 %v216
    %v560 = vunpack.c.l.b16 %v217
    %v561 = vunpack.c.h.b16 %v217
    %v562 = vunpack.c.l.b16 %v218
    %v563 = vunpack.c.h.b16 %v218
    %v564 = vunpack.c.l.b16 %v219
    %v565 = vunpack.c.h.b16 %v219
    %v566 = vunpack.c.l.b16 %v220
    %v567 = vunpack.c.h.b16 %v220
    %v568 = vunpack.c.l.b16 %v221
    %v569 = vunpack.c.h.b16 %v221
    %v570 = vunpack.c.l.b16 %v222
    %v571 = vunpack.c.h.b16 %v222
    %v572 = vunpack.c.l.b16 %v223
    %v573 = vunpack.c.h.b16 %v223
    %v574 = vunpack.c.l.b16 %v224
    %v575 = vunpack.c.h.b16 %v224
    %v576 = vunpack.c.l.b16 %v225
    %v577 = vunpack.c.h.b16 %v225
    %v578 = vunpack.c.l.b16 %v226
    %v579 = vunpack.c.h.b16 %v226
    %v580 = vunpack.c.l.b16 %v227
    %v581 = vunpack.c.h.b16 %v227
    %v582 = vunpack.c.l.b16 %v228
    %v583 = vunpack.c.h.b16 %v228
    %v584 = vunpack.c.l.b16 %v229
    %v585 = vunpack.c.h.b16 %v229
    %v586 = vunpack.c.l.b16 %v230
    %v587 = vunpack.c.h.b16 %v230
    %v588 = vunpack.c.l.b16 %v231
    %v589 = vunpack.c.h.b16 %v231
    %v590 = vunpack.c.l.b16 %v232
    %v591 = vunpack.c.h.b16 %v232
    %v592 = vunpack.c.l.b16 %v233
    %v593 = vunpack.c.h.b16 %v233
    %v594 = vpack.c.b16 %v474, %v466
    %v595 = vpack.c.b16 %v475, %v467
    %v596 = vpack.c.b16 %v476, %v468
    %v597 = vpack.c.b16 %v477, %v469
    %v598 = vpack.c.b16 %v478, %v470
    %v599 = vpack.c.b16 %v479, %v471
    %v600 = vpack.c.b16 %v480, %v472
    %v601 = vpack.c.b16 %v481, %v473
    %v602 = vpack.c.b16 %v490, %v482
    %v603 = vpack.c.b16 %v491, %v483
    %v604 = vpack.c.b16 %v492, %v484
    %v605 = vpack.c.b16 %v493, %v485
    %v606 = vpack.c.b16 %v494, %v486
    %v607 = vpack.c.b16 %v495, %v487
    %v608 = vpack.c.b16 %v496, %v488
    %v609 = vpack.c.b16 %v497, %v489
    %v610 = vpack.c.b16 %v506, %v498
    %v611 = vpack.c.b16 %v507, %v499
    %v612 = vpack.c.b16 %v508, %v500
    %v613 = vpack.c.b16 %v509, %v501
    %v614 = vpack.c.b16 %v510, %v502
    %v615 = vpack.c.b16 %v511, %v503
    %v616 = vpack.c.b16 %v512, %v504
    %v617 = vpack.c.b16 %v513, %v505
    %v618 = vpack.c.b16 %v522, %v514
    %v619 = vpack.c.b16 %v523, %v515
    %v620 = vpack.c.b16 %v524, %v516
    %v621 = vpack.c.b16 %v525, %v517
    %v622 = vpack.c.b16 %v526, %v518
    %v623 = vpack.c.b16 %v527, %v519
    %v624 = vpack.c.b16 %v528, %v520
    %v625 = vpack.c.b16 %v529, %v521
    %v626 = vpack.c.b16 %v538, %v530
    %v627 = vpack.c.b16 %v539, %v531
    %v628 = vpack.c.b16 %v540, %v532
    %v629 = vpack.c.b16 %v541, %v533
    %v630 = vpack.c.b16 %v542, %v534
    %v631 = vpack.c.b16 %v543, %v535
    %v632 = vpack.c.b16 %v544, %v536
    %v633 = vpack.c.b16 %v545, %v537
    %v634 = vpack.c.b16 %v554, %v546
    %v635 = vpack.c.b16 %v555, %v547
    %v636 = vpack.c.b16 %v556, %v548
    %v637 = vpack.c.b16 %v557, %v549
    %v638 = vpack.c.b16 %v558, %v550
    %v639 = vpack.c.b16 %v559, %v551
    %v640 = vpack.c.b16 %v560, %v552
    %v641 = vpack.c.b16 %v561, %v553
    %v642 = vpack.c.b16 %v570, %v562
    %v643 = vpack.c.b16 %v571, %v563
    %v644 = vpack.c.b16 %v572, %v564
    %v645 = vpack.c.b16 %v573, %v565
    %v646 = vpack.c.b16 %v574, %v566
    %v647 = vpack.c.b16 %v575, %v567
    %v648 = vpack.c.b16 %v576, %v568
    %v649 = vpack.c.b16 %v577, %v569
    %v650 = vpack.c.b16 %v586, %v578
    %v651 = vpack.c.b16 %v587, %v579
    %v652 = vpack.c.b16 %v588, %v580
    %v653 = vpack.c.b16 %v589, %v581
    %v654 = vpack.c.b16 %v590, %v582
    %v655 = vpack.c.b16 %v591, %v583
    %v656 = vpack.c.b16 %v592, %v584
    %v657 = vpack.c.b16 %v593, %v585
    %722 = vmatpush.bf16.msra.mxu0 %v650
    %723 = vmatpush.bf16.msra.mxu0 %v642
    %724 = vmatpush.bf16.msra.mxu0 %v634
    %725 = vmatpush.bf16.msra.mxu0 %v626
    %726 = vmatpush.bf16.msra.mxu0 %v618
    %727 = vmatpush.bf16.msra.mxu0 %v610
    %728 = vmatpush.bf16.msra.mxu0 %v602
    %729 = vmatpush.bf16.msra.mxu0 %v594
    %730 = vmatmul.bf16.gmra.mxu0 %v346
    %v731 = vpop.f32.mrf.mxu0
    %v732 = vadd.f32 0.0, %v731
    %v733 = vpop.f32.mrf.mxu0
    %v734 = vadd.f32 0.0, %v733
    %735 = vmatmul.bf16.gmra.mxu0 %v347
    %v736 = vpop.f32.mrf.mxu0
    %v737 = vadd.f32 0.0, %v736
    %v738 = vpop.f32.mrf.mxu0
    %v739 = vadd.f32 0.0, %v738
    %740 = vmatmul.bf16.gmra.mxu0 %v348
    %v741 = vpop.f32.mrf.mxu0
    %v742 = vadd.f32 0.0, %v741
    %v743 = vpop.f32.mrf.mxu0
    %v744 = vadd.f32 0.0, %v743
    %745 = vmatmul.bf16.gmra.mxu0 %v349
    %v746 = vpop.f32.mrf.mxu0
    %v747 = vadd.f32 0.0, %v746
    %v748 = vpop.f32.mrf.mxu0
    %v749 = vadd.f32 0.0, %v748
    %750 = vmatmul.bf16.gmra.mxu0 %v350
    %v751 = vpop.f32.mrf.mxu0
    %v752 = vadd.f32 0.0, %v751
    %v753 = vpop.f32.mrf.mxu0
    %v754 = vadd.f32 0.0, %v753
    %755 = vmatmul.bf16.gmra.mxu0 %v351
    %v756 = vpop.f32.mrf.mxu0
    %v757 = vadd.f32 0.0, %v756
    %v758 = vpop.f32.mrf.mxu0
    %v759 = vadd.f32 0.0, %v758
    %760 = vmatmul.bf16.gmra.mxu0 %v352
    %v761 = vpop.f32.mrf.mxu0
    %v762 = vadd.f32 0.0, %v761
    %v763 = vpop.f32.mrf.mxu0
    %v764 = vadd.f32 0.0, %v763
    %765 = vmatmul.bf16.gmra.mxu0 %v353
    %v766 = vpop.f32.mrf.mxu0
    %v767 = vadd.f32 0.0, %v766
    %v768 = vpop.f32.mrf.mxu0
    %v769 = vadd.f32 0.0, %v768
    %770 = vmatmul.bf16.gmra.mxu0 %v354
    %v771 = vpop.f32.mrf.mxu0
    %v772 = vadd.f32 0.0, %v771
    %v773 = vpop.f32.mrf.mxu0
    %v774 = vadd.f32 0.0, %v773
    %775 = vmatmul.bf16.gmra.mxu0 %v355
    %v776 = vpop.f32.mrf.mxu0
    %v777 = vadd.f32 0.0, %v776
    %v778 = vpop.f32.mrf.mxu0
    %v779 = vadd.f32 0.0, %v778
    %780 = vmatmul.bf16.gmra.mxu0 %v356
    %v781 = vpop.f32.mrf.mxu0
    %v782 = vadd.f32 0.0, %v781
    %v783 = vpop.f32.mrf.mxu0
    %v784 = vadd.f32 0.0, %v783
    %785 = vmatmul.bf16.gmra.mxu0 %v357
    %v786 = vpop.f32.mrf.mxu0
    %v787 = vadd.f32 0.0, %v786
    %v788 = vpop.f32.mrf.mxu0
    %v789 = vadd.f32 0.0, %v788
    %790 = vmatmul.bf16.gmra.mxu0 %v358
    %v791 = vpop.f32.mrf.mxu0
    %v792 = vadd.f32 0.0, %v791
    %v793 = vpop.f32.mrf.mxu0
    %v794 = vadd.f32 0.0, %v793
    %795 = vmatmul.bf16.gmra.mxu0 %v359
    %v796 = vpop.f32.mrf.mxu0
    %v797 = vadd.f32 0.0, %v796
    %v798 = vpop.f32.mrf.mxu0
    %v799 = vadd.f32 0.0, %v798
    %800 = vmatmul.bf16.gmra.mxu0 %v360
    %v801 = vpop.f32.mrf.mxu0
    %v802 = vadd.f32 0.0, %v801
    %v803 = vpop.f32.mrf.mxu0
    %v804 = vadd.f32 0.0, %v803
    %805 = vmatmul.bf16.gmra.mxu0 %v361
    %v806 = vpop.f32.mrf.mxu0
    %v807 = vadd.f32 0.0, %v806
    %v808 = vpop.f32.mrf.mxu0
    %v809 = vadd.f32 0.0, %v808
    %810 = vmatmul.bf16.gmra.mxu0 %v362
    %v811 = vpop.f32.mrf.mxu0
    %v812 = vadd.f32 0.0, %v811
    %v813 = vpop.f32.mrf.mxu0
    %v814 = vadd.f32 0.0, %v813
    %815 = vmatmul.bf16.gmra.mxu0 %v363
    %v816 = vpop.f32.mrf.mxu0
    %v817 = vadd.f32 0.0, %v816
    %v818 = vpop.f32.mrf.mxu0
    %v819 = vadd.f32 0.0, %v818
    %820 = vmatmul.bf16.gmra.mxu0 %v364
    %v821 = vpop.f32.mrf.mxu0
    %v822 = vadd.f32 0.0, %v821
    %v823 = vpop.f32.mrf.mxu0
    %v824 = vadd.f32 0.0, %v823
    %825 = vmatmul.bf16.gmra.mxu0 %v365
    %v826 = vpop.f32.mrf.mxu0
    %v827 = vadd.f32 0.0, %v826
    %v828 = vpop.f32.mrf.mxu0
    %v829 = vadd.f32 0.0, %v828
    %830 = vmatmul.bf16.gmra.mxu0 %v366
    %v831 = vpop.f32.mrf.mxu0
    %v832 = vadd.f32 0.0, %v831
    %v833 = vpop.f32.mrf.mxu0
    %v834 = vadd.f32 0.0, %v833
    %835 = vmatmul.bf16.gmra.mxu0 %v367
    %v836 = vpop.f32.mrf.mxu0
    %v837 = vadd.f32 0.0, %v836
    %v838 = vpop.f32.mrf.mxu0
    %v839 = vadd.f32 0.0, %v838
    %840 = vmatmul.bf16.gmra.mxu0 %v368
    %v841 = vpop.f32.mrf.mxu0
    %v842 = vadd.f32 0.0, %v841
    %v843 = vpop.f32.mrf.mxu0
    %v844 = vadd.f32 0.0, %v843
    %845 = vmatmul.bf16.gmra.mxu0 %v369
    %v846 = vpop.f32.mrf.mxu0
    %v847 = vadd.f32 0.0, %v846
    %v848 = vpop.f32.mrf.mxu0
    %v849 = vadd.f32 0.0, %v848
    %850 = vmatmul.bf16.gmra.mxu0 %v370
    %v851 = vpop.f32.mrf.mxu0
    %v852 = vadd.f32 0.0, %v851
    %v853 = vpop.f32.mrf.mxu0
    %v854 = vadd.f32 0.0, %v853
    %855 = vmatmul.bf16.gmra.mxu0 %v371
    %v856 = vpop.f32.mrf.mxu0
    %v857 = vadd.f32 0.0, %v856
    %v858 = vpop.f32.mrf.mxu0
    %v859 = vadd.f32 0.0, %v858
    %860 = vmatmul.bf16.gmra.mxu0 %v372
    %v861 = vpop.f32.mrf.mxu0
    %v862 = vadd.f32 0.0, %v861
    %v863 = vpop.f32.mrf.mxu0
    %v864 = vadd.f32 0.0, %v863
    %865 = vmatmul.bf16.gmra.mxu0 %v373
    %v866 = vpop.f32.mrf.mxu0
    %v867 = vadd.f32 0.0, %v866
    %v868 = vpop.f32.mrf.mxu0
    %v869 = vadd.f32 0.0, %v868
    %870 = vdwg.mxu0
    %871 = vmatpush.bf16.msra.mxu0 %v651
    %872 = vmatpush.bf16.msra.mxu0 %v643
    %873 = vmatpush.bf16.msra.mxu0 %v635
    %874 = vmatpush.bf16.msra.mxu0 %v627
    %875 = vmatpush.bf16.msra.mxu0 %v619
    %876 = vmatpush.bf16.msra.mxu0 %v611
    %877 = vmatpush.bf16.msra.mxu0 %v603
    %878 = vmatpush.bf16.msra.mxu0 %v595
    %879 = vmatmul.bf16.gmra.mxu0 %v346
    %v880 = vpop.f32.mrf.mxu0
    %v881 = vadd.f32 0.0, %v880
    %v882 = vpop.f32.mrf.mxu0
    %v883 = vadd.f32 0.0, %v882
    %884 = vmatmul.bf16.gmra.mxu0 %v347
    %v885 = vpop.f32.mrf.mxu0
    %v886 = vadd.f32 0.0, %v885
    %v887 = vpop.f32.mrf.mxu0
    %v888 = vadd.f32 0.0, %v887
    %889 = vmatmul.bf16.gmra.mxu0 %v348
    %v890 = vpop.f32.mrf.mxu0
    %v891 = vadd.f32 0.0, %v890
    %v892 = vpop.f32.mrf.mxu0
    %v893 = vadd.f32 0.0, %v892
    %894 = vmatmul.bf16.gmra.mxu0 %v349
    %v895 = vpop.f32.mrf.mxu0
    %v896 = vadd.f32 0.0, %v895
    %v897 = vpop.f32.mrf.mxu0
    %v898 = vadd.f32 0.0, %v897
    %899 = vmatmul.bf16.gmra.mxu0 %v350
    %v900 = vpop.f32.mrf.mxu0
    %v901 = vadd.f32 0.0, %v900
    %v902 = vpop.f32.mrf.mxu0
    %v903 = vadd.f32 0.0, %v902
    %904 = vmatmul.bf16.gmra.mxu0 %v351
    %v905 = vpop.f32.mrf.mxu0
    %v906 = vadd.f32 0.0, %v905
    %v907 = vpop.f32.mrf.mxu0
    %v908 = vadd.f32 0.0, %v907
    %909 = vmatmul.bf16.gmra.mxu0 %v352
    %v910 = vpop.f32.mrf.mxu0
    %v911 = vadd.f32 0.0, %v910
    %v912 = vpop.f32.mrf.mxu0
    %v913 = vadd.f32 0.0, %v912
    %914 = vmatmul.bf16.gmra.mxu0 %v353
    %v915 = vpop.f32.mrf.mxu0
    %v916 = vadd.f32 0.0, %v915
    %v917 = vpop.f32.mrf.mxu0
    %v918 = vadd.f32 0.0, %v917
    %919 = vmatmul.bf16.gmra.mxu0 %v354
    %v920 = vpop.f32.mrf.mxu0
    %v921 = vadd.f32 0.0, %v920
    %v922 = vpop.f32.mrf.mxu0
    %v923 = vadd.f32 0.0, %v922
    %924 = vmatmul.bf16.gmra.mxu0 %v355
    %v925 = vpop.f32.mrf.mxu0
    %v926 = vadd.f32 0.0, %v925
    %v927 = vpop.f32.mrf.mxu0
    %v928 = vadd.f32 0.0, %v927
    %929 = vmatmul.bf16.gmra.mxu0 %v356
    %v930 = vpop.f32.mrf.mxu0
    %v931 = vadd.f32 0.0, %v930
    %v932 = vpop.f32.mrf.mxu0
    %v933 = vadd.f32 0.0, %v932
    %934 = vmatmul.bf16.gmra.mxu0 %v357
    %v935 = vpop.f32.mrf.mxu0
    %v936 = vadd.f32 0.0, %v935
    %v937 = vpop.f32.mrf.mxu0
    %v938 = vadd.f32 0.0, %v937
    %939 = vmatmul.bf16.gmra.mxu0 %v358
    %v940 = vpop.f32.mrf.mxu0
    %v941 = vadd.f32 0.0, %v940
    %v942 = vpop.f32.mrf.mxu0
    %v943 = vadd.f32 0.0, %v942
    %944 = vmatmul.bf16.gmra.mxu0 %v359
    %v945 = vpop.f32.mrf.mxu0
    %v946 = vadd.f32 0.0, %v945
    %v947 = vpop.f32.mrf.mxu0
    %v948 = vadd.f32 0.0, %v947
    %949 = vmatmul.bf16.gmra.mxu0 %v360
    %v950 = vpop.f32.mrf.mxu0
    %v951 = vadd.f32 0.0, %v950
    %v952 = vpop.f32.mrf.mxu0
    %v953 = vadd.f32 0.0, %v952
    %954 = vmatmul.bf16.gmra.mxu0 %v361
    %v955 = vpop.f32.mrf.mxu0
    %v956 = vadd.f32 0.0, %v955
    %v957 = vpop.f32.mrf.mxu0
    %v958 = vadd.f32 0.0, %v957
    %959 = vmatmul.bf16.gmra.mxu0 %v362
    %v960 = vpop.f32.mrf.mxu0
    %v961 = vadd.f32 0.0, %v960
    %v962 = vpop.f32.mrf.mxu0
    %v963 = vadd.f32 0.0, %v962
    %964 = vmatmul.bf16.gmra.mxu0 %v363
    %v965 = vpop.f32.mrf.mxu0
    %v966 = vadd.f32 0.0, %v965
    %v967 = vpop.f32.mrf.mxu0
    %v968 = vadd.f32 0.0, %v967
    %969 = vmatmul.bf16.gmra.mxu0 %v364
    %v970 = vpop.f32.mrf.mxu0
    %v971 = vadd.f32 0.0, %v970
    %v972 = vpop.f32.mrf.mxu0
    %v973 = vadd.f32 0.0, %v972
    %974 = vmatmul.bf16.gmra.mxu0 %v365
    %v975 = vpop.f32.mrf.mxu0
    %v976 = vadd.f32 0.0, %v975
    %v977 = vpop.f32.mrf.mxu0
    %v978 = vadd.f32 0.0, %v977
    %979 = vmatmul.bf16.gmra.mxu0 %v366
    %v980 = vpop.f32.mrf.mxu0
    %v981 = vadd.f32 0.0, %v980
    %v982 = vpop.f32.mrf.mxu0
    %v983 = vadd.f32 0.0, %v982
    %984 = vmatmul.bf16.gmra.mxu0 %v367
    %v985 = vpop.f32.mrf.mxu0
    %v986 = vadd.f32 0.0, %v985
    %v987 = vpop.f32.mrf.mxu0
    %v988 = vadd.f32 0.0, %v987
    %989 = vmatmul.bf16.gmra.mxu0 %v368
    %v990 = vpop.f32.mrf.mxu0
    %v991 = vadd.f32 0.0, %v990
    %v992 = vpop.f32.mrf.mxu0
    %v993 = vadd.f32 0.0, %v992
    %994 = vmatmul.bf16.gmra.mxu0 %v369
    %v995 = vpop.f32.mrf.mxu0
    %v996 = vadd.f32 0.0, %v995
    %v997 = vpop.f32.mrf.mxu0
    %v998 = vadd.f32 0.0, %v997
    %999 = vmatmul.bf16.gmra.mxu0 %v370
    %v1000 = vpop.f32.mrf.mxu0
    %v1001 = vadd.f32 0.0, %v1000
    %v1002 = vpop.f32.mrf.mxu0
    %v1003 = vadd.f32 0.0, %v1002
    %1004 = vmatmul.bf16.gmra.mxu0 %v371
    %v1005 = vpop.f32.mrf.mxu0
    %v1006 = vadd.f32 0.0, %v1005
    %v1007 = vpop.f32.mrf.mxu0
    %v1008 = vadd.f32 0.0, %v1007
    %1009 = vmatmul.bf16.gmra.mxu0 %v372
    %v1010 = vpop.f32.mrf.mxu0
    %v1011 = vadd.f32 0.0, %v1010
    %v1012 = vpop.f32.mrf.mxu0
    %v1013 = vadd.f32 0.0, %v1012
    %1014 = vmatmul.bf16.gmra.mxu0 %v373
    %v1015 = vpop.f32.mrf.mxu0
    %v1016 = vadd.f32 0.0, %v1015
    %v1017 = vpop.f32.mrf.mxu0
    %v1018 = vadd.f32 0.0, %v1017
    %1019 = vdwg.mxu0
    %1020 = vmatpush.bf16.msra.mxu0 %v652
    %1021 = vmatpush.bf16.msra.mxu0 %v644
    %1022 = vmatpush.bf16.msra.mxu0 %v636
    %1023 = vmatpush.bf16.msra.mxu0 %v628
    %1024 = vmatpush.bf16.msra.mxu0 %v620
    %1025 = vmatpush.bf16.msra.mxu0 %v612
    %1026 = vmatpush.bf16.msra.mxu0 %v604
    %1027 = vmatpush.bf16.msra.mxu0 %v596
    %1028 = vmatmul.bf16.gmra.mxu0 %v346
    %v1029 = vpop.f32.mrf.mxu0
    %v1030 = vadd.f32 0.0, %v1029
    %v1031 = vpop.f32.mrf.mxu0
    %v1032 = vadd.f32 0.0, %v1031
    %1033 = vmatmul.bf16.gmra.mxu0 %v347
    %v1034 = vpop.f32.mrf.mxu0
    %v1035 = vadd.f32 0.0, %v1034
    %v1036 = vpop.f32.mrf.mxu0
    %v1037 = vadd.f32 0.0, %v1036
    %1038 = vmatmul.bf16.gmra.mxu0 %v348
    %v1039 = vpop.f32.mrf.mxu0
    %v1040 = vadd.f32 0.0, %v1039
    %v1041 = vpop.f32.mrf.mxu0
    %v1042 = vadd.f32 0.0, %v1041
    %1043 = vmatmul.bf16.gmra.mxu0 %v349
    %v1044 = vpop.f32.mrf.mxu0
    %v1045 = vadd.f32 0.0, %v1044
    %v1046 = vpop.f32.mrf.mxu0
    %v1047 = vadd.f32 0.0, %v1046
    %1048 = vmatmul.bf16.gmra.mxu0 %v350
    %v1049 = vpop.f32.mrf.mxu0
    %v1050 = vadd.f32 0.0, %v1049
    %v1051 = vpop.f32.mrf.mxu0
    %v1052 = vadd.f32 0.0, %v1051
    %1053 = vmatmul.bf16.gmra.mxu0 %v351
    %v1054 = vpop.f32.mrf.mxu0
    %v1055 = vadd.f32 0.0, %v1054
    %v1056 = vpop.f32.mrf.mxu0
    %v1057 = vadd.f32 0.0, %v1056
    %1058 = vmatmul.bf16.gmra.mxu0 %v352
    %v1059 = vpop.f32.mrf.mxu0
    %v1060 = vadd.f32 0.0, %v1059
    %v1061 = vpop.f32.mrf.mxu0
    %v1062 = vadd.f32 0.0, %v1061
    %1063 = vmatmul.bf16.gmra.mxu0 %v353
    %v1064 = vpop.f32.mrf.mxu0
    %v1065 = vadd.f32 0.0, %v1064
    %v1066 = vpop.f32.mrf.mxu0
    %v1067 = vadd.f32 0.0, %v1066
    %1068 = vmatmul.bf16.gmra.mxu0 %v354
    %v1069 = vpop.f32.mrf.mxu0
    %v1070 = vadd.f32 0.0, %v1069
    %v1071 = vpop.f32.mrf.mxu0
    %v1072 = vadd.f32 0.0, %v1071
    %1073 = vmatmul.bf16.gmra.mxu0 %v355
    %v1074 = vpop.f32.mrf.mxu0
    %v1075 = vadd.f32 0.0, %v1074
    %v1076 = vpop.f32.mrf.mxu0
    %v1077 = vadd.f32 0.0, %v1076
    %1078 = vmatmul.bf16.gmra.mxu0 %v356
    %v1079 = vpop.f32.mrf.mxu0
    %v1080 = vadd.f32 0.0, %v1079
    %v1081 = vpop.f32.mrf.mxu0
    %v1082 = vadd.f32 0.0, %v1081
    %1083 = vmatmul.bf16.gmra.mxu0 %v357
    %v1084 = vpop.f32.mrf.mxu0
    %v1085 = vadd.f32 0.0, %v1084
    %v1086 = vpop.f32.mrf.mxu0
    %v1087 = vadd.f32 0.0, %v1086
    %1088 = vmatmul.bf16.gmra.mxu0 %v358
    %v1089 = vpop.f32.mrf.mxu0
    %v1090 = vadd.f32 0.0, %v1089
    %v1091 = vpop.f32.mrf.mxu0
    %v1092 = vadd.f32 0.0, %v1091
    %1093 = vmatmul.bf16.gmra.mxu0 %v359
    %v1094 = vpop.f32.mrf.mxu0
    %v1095 = vadd.f32 0.0, %v1094
    %v1096 = vpop.f32.mrf.mxu0
    %v1097 = vadd.f32 0.0, %v1096
    %1098 = vmatmul.bf16.gmra.mxu0 %v360
    %v1099 = vpop.f32.mrf.mxu0
    %v1100 = vadd.f32 0.0, %v1099
    %v1101 = vpop.f32.mrf.mxu0
    %v1102 = vadd.f32 0.0, %v1101
    %1103 = vmatmul.bf16.gmra.mxu0 %v361
    %v1104 = vpop.f32.mrf.mxu0
    %v1105 = vadd.f32 0.0, %v1104
    %v1106 = vpop.f32.mrf.mxu0
    %v1107 = vadd.f32 0.0, %v1106
    %1108 = vmatmul.bf16.gmra.mxu0 %v362
    %v1109 = vpop.f32.mrf.mxu0
    %v1110 = vadd.f32 0.0, %v1109
    %v1111 = vpop.f32.mrf.mxu0
    %v1112 = vadd.f32 0.0, %v1111
    %1113 = vmatmul.bf16.gmra.mxu0 %v363
    %v1114 = vpop.f32.mrf.mxu0
    %v1115 = vadd.f32 0.0, %v1114
    %v1116 = vpop.f32.mrf.mxu0
    %v1117 = vadd.f32 0.0, %v1116
    %1118 = vmatmul.bf16.gmra.mxu0 %v364
    %v1119 = vpop.f32.mrf.mxu0
    %v1120 = vadd.f32 0.0, %v1119
    %v1121 = vpop.f32.mrf.mxu0
    %v1122 = vadd.f32 0.0, %v1121
    %1123 = vmatmul.bf16.gmra.mxu0 %v365
    %v1124 = vpop.f32.mrf.mxu0
    %v1125 = vadd.f32 0.0, %v1124
    %v1126 = vpop.f32.mrf.mxu0
    %v1127 = vadd.f32 0.0, %v1126
    %1128 = vmatmul.bf16.gmra.mxu0 %v366
    %v1129 = vpop.f32.mrf.mxu0
    %v1130 = vadd.f32 0.0, %v1129
    %v1131 = vpop.f32.mrf.mxu0
    %v1132 = vadd.f32 0.0, %v1131
    %1133 = vmatmul.bf16.gmra.mxu0 %v367
    %v1134 = vpop.f32.mrf.mxu0
    %v1135 = vadd.f32 0.0, %v1134
    %v1136 = vpop.f32.mrf.mxu0
    %v1137 = vadd.f32 0.0, %v1136
    %1138 = vmatmul.bf16.gmra.mxu0 %v368
    %v1139 = vpop.f32.mrf.mxu0
    %v1140 = vadd.f32 0.0, %v1139
    %v1141 = vpop.f32.mrf.mxu0
    %v1142 = vadd.f32 0.0, %v1141
    %1143 = vmatmul.bf16.gmra.mxu0 %v369
    %v1144 = vpop.f32.mrf.mxu0
    %v1145 = vadd.f32 0.0, %v1144
    %v1146 = vpop.f32.mrf.mxu0
    %v1147 = vadd.f32 0.0, %v1146
    %1148 = vmatmul.bf16.gmra.mxu0 %v370
    %v1149 = vpop.f32.mrf.mxu0
    %v1150 = vadd.f32 0.0, %v1149
    %v1151 = vpop.f32.mrf.mxu0
    %v1152 = vadd.f32 0.0, %v1151
    %1153 = vmatmul.bf16.gmra.mxu0 %v371
    %v1154 = vpop.f32.mrf.mxu0
    %v1155 = vadd.f32 0.0, %v1154
    %v1156 = vpop.f32.mrf.mxu0
    %v1157 = vadd.f32 0.0, %v1156
    %1158 = vmatmul.bf16.gmra.mxu0 %v372
    %v1159 = vpop.f32.mrf.mxu0
    %v1160 = vadd.f32 0.0, %v1159
    %v1161 = vpop.f32.mrf.mxu0
    %v1162 = vadd.f32 0.0, %v1161
    %1163 = vmatmul.bf16.gmra.mxu0 %v373
    %v1164 = vpop.f32.mrf.mxu0
    %v1165 = vadd.f32 0.0, %v1164
    %v1166 = vpop.f32.mrf.mxu0
    %v1167 = vadd.f32 0.0, %v1166
    %1168 = vdwg.mxu0
    %1169 = vmatpush.bf16.msra.mxu0 %v653
    %1170 = vmatpush.bf16.msra.mxu0 %v645
    %1171 = vmatpush.bf16.msra.mxu0 %v637
    %1172 = vmatpush.bf16.msra.mxu0 %v629
    %1173 = vmatpush.bf16.msra.mxu0 %v621
    %1174 = vmatpush.bf16.msra.mxu0 %v613
    %1175 = vmatpush.bf16.msra.mxu0 %v605
    %1176 = vmatpush.bf16.msra.mxu0 %v597
    %1177 = vmatmul.bf16.gmra.mxu0 %v346
    %v1178 = vpop.f32.mrf.mxu0
    %v1179 = vadd.f32 0.0, %v1178
    %v1180 = vpop.f32.mrf.mxu0
    %v1181 = vadd.f32 0.0, %v1180
    %1182 = vmatmul.bf16.gmra.mxu0 %v347
    %v1183 = vpop.f32.mrf.mxu0
    %v1184 = vadd.f32 0.0, %v1183
    %v1185 = vpop.f32.mrf.mxu0
    %v1186 = vadd.f32 0.0, %v1185
    %1187 = vmatmul.bf16.gmra.mxu0 %v348
    %v1188 = vpop.f32.mrf.mxu0
    %v1189 = vadd.f32 0.0, %v1188
    %v1190 = vpop.f32.mrf.mxu0
    %v1191 = vadd.f32 0.0, %v1190
    %1192 = vmatmul.bf16.gmra.mxu0 %v349
    %v1193 = vpop.f32.mrf.mxu0
    %v1194 = vadd.f32 0.0, %v1193
    %v1195 = vpop.f32.mrf.mxu0
    %v1196 = vadd.f32 0.0, %v1195
    %1197 = vmatmul.bf16.gmra.mxu0 %v350
    %v1198 = vpop.f32.mrf.mxu0
    %v1199 = vadd.f32 0.0, %v1198
    %v1200 = vpop.f32.mrf.mxu0
    %v1201 = vadd.f32 0.0, %v1200
    %1202 = vmatmul.bf16.gmra.mxu0 %v351
    %v1203 = vpop.f32.mrf.mxu0
    %v1204 = vadd.f32 0.0, %v1203
    %v1205 = vpop.f32.mrf.mxu0
    %v1206 = vadd.f32 0.0, %v1205
    %1207 = vmatmul.bf16.gmra.mxu0 %v352
    %v1208 = vpop.f32.mrf.mxu0
    %v1209 = vadd.f32 0.0, %v1208
    %v1210 = vpop.f32.mrf.mxu0
    %v1211 = vadd.f32 0.0, %v1210
    %1212 = vmatmul.bf16.gmra.mxu0 %v353
    %v1213 = vpop.f32.mrf.mxu0
    %v1214 = vadd.f32 0.0, %v1213
    %v1215 = vpop.f32.mrf.mxu0
    %v1216 = vadd.f32 0.0, %v1215
    %1217 = vmatmul.bf16.gmra.mxu0 %v354
    %v1218 = vpop.f32.mrf.mxu0
    %v1219 = vadd.f32 0.0, %v1218
    %v1220 = vpop.f32.mrf.mxu0
    %v1221 = vadd.f32 0.0, %v1220
    %1222 = vmatmul.bf16.gmra.mxu0 %v355
    %v1223 = vpop.f32.mrf.mxu0
    %v1224 = vadd.f32 0.0, %v1223
    %v1225 = vpop.f32.mrf.mxu0
    %v1226 = vadd.f32 0.0, %v1225
    %1227 = vmatmul.bf16.gmra.mxu0 %v356
    %v1228 = vpop.f32.mrf.mxu0
    %v1229 = vadd.f32 0.0, %v1228
    %v1230 = vpop.f32.mrf.mxu0
    %v1231 = vadd.f32 0.0, %v1230
    %1232 = vmatmul.bf16.gmra.mxu0 %v357
    %v1233 = vpop.f32.mrf.mxu0
    %v1234 = vadd.f32 0.0, %v1233
    %v1235 = vpop.f32.mrf.mxu0
    %v1236 = vadd.f32 0.0, %v1235
    %1237 = vmatmul.bf16.gmra.mxu0 %v358
    %v1238 = vpop.f32.mrf.mxu0
    %v1239 = vadd.f32 0.0, %v1238
    %v1240 = vpop.f32.mrf.mxu0
    %v1241 = vadd.f32 0.0, %v1240
    %1242 = vmatmul.bf16.gmra.mxu0 %v359
    %v1243 = vpop.f32.mrf.mxu0
    %v1244 = vadd.f32 0.0, %v1243
    %v1245 = vpop.f32.mrf.mxu0
    %v1246 = vadd.f32 0.0, %v1245
    %1247 = vmatmul.bf16.gmra.mxu0 %v360
    %v1248 = vpop.f32.mrf.mxu0
    %v1249 = vadd.f32 0.0, %v1248
    %v1250 = vpop.f32.mrf.mxu0
    %v1251 = vadd.f32 0.0, %v1250
    %1252 = vmatmul.bf16.gmra.mxu0 %v361
    %v1253 = vpop.f32.mrf.mxu0
    %v1254 = vadd.f32 0.0, %v1253
    %v1255 = vpop.f32.mrf.mxu0
    %v1256 = vadd.f32 0.0, %v1255
    %1257 = vmatmul.bf16.gmra.mxu0 %v362
    %v1258 = vpop.f32.mrf.mxu0
    %v1259 = vadd.f32 0.0, %v1258
    %v1260 = vpop.f32.mrf.mxu0
    %v1261 = vadd.f32 0.0, %v1260
    %1262 = vmatmul.bf16.gmra.mxu0 %v363
    %v1263 = vpop.f32.mrf.mxu0
    %v1264 = vadd.f32 0.0, %v1263
    %v1265 = vpop.f32.mrf.mxu0
    %v1266 = vadd.f32 0.0, %v1265
    %1267 = vmatmul.bf16.gmra.mxu0 %v364
    %v1268 = vpop.f32.mrf.mxu0
    %v1269 = vadd.f32 0.0, %v1268
    %v1270 = vpop.f32.mrf.mxu0
    %v1271 = vadd.f32 0.0, %v1270
    %1272 = vmatmul.bf16.gmra.mxu0 %v365
    %v1273 = vpop.f32.mrf.mxu0
    %v1274 = vadd.f32 0.0, %v1273
    %v1275 = vpop.f32.mrf.mxu0
    %v1276 = vadd.f32 0.0, %v1275
    %1277 = vmatmul.bf16.gmra.mxu0 %v366
    %v1278 = vpop.f32.mrf.mxu0
    %v1279 = vadd.f32 0.0, %v1278
    %v1280 = vpop.f32.mrf.mxu0
    %v1281 = vadd.f32 0.0, %v1280
    %1282 = vmatmul.bf16.gmra.mxu0 %v367
    %v1283 = vpop.f32.mrf.mxu0
    %v1284 = vadd.f32 0.0, %v1283
    %v1285 = vpop.f32.mrf.mxu0
    %v1286 = vadd.f32 0.0, %v1285
    %1287 = vmatmul.bf16.gmra.mxu0 %v368
    %v1288 = vpop.f32.mrf.mxu0
    %v1289 = vadd.f32 0.0, %v1288
    %v1290 = vpop.f32.mrf.mxu0
    %v1291 = vadd.f32 0.0, %v1290
    %1292 = vmatmul.bf16.gmra.mxu0 %v369
    %v1293 = vpop.f32.mrf.mxu0
    %v1294 = vadd.f32 0.0, %v1293
    %v1295 = vpop.f32.mrf.mxu0
    %v1296 = vadd.f32 0.0, %v1295
    %1297 = vmatmul.bf16.gmra.mxu0 %v370
    %v1298 = vpop.f32.mrf.mxu0
    %v1299 = vadd.f32 0.0, %v1298
    %v1300 = vpop.f32.mrf.mxu0
    %v1301 = vadd.f32 0.0, %v1300
    %1302 = vmatmul.bf16.gmra.mxu0 %v371
    %v1303 = vpop.f32.mrf.mxu0
    %v1304 = vadd.f32 0.0, %v1303
    %v1305 = vpop.f32.mrf.mxu0
    %v1306 = vadd.f32 0.0, %v1305
    %1307 = vmatmul.bf16.gmra.mxu0 %v372
    %v1308 = vpop.f32.mrf.mxu0
    %v1309 = vadd.f32 0.0, %v1308
    %v1310 = vpop.f32.mrf.mxu0
    %v1311 = vadd.f32 0.0, %v1310
    %1312 = vmatmul.bf16.gmra.mxu0 %v373
    %v1313 = vpop.f32.mrf.mxu0
    %v1314 = vadd.f32 0.0, %v1313
    %v1315 = vpop.f32.mrf.mxu0
    %v1316 = vadd.f32 0.0, %v1315
    %1317 = vdwg.mxu0
    %1318 = vmatpush.bf16.msra.mxu0 %v654
    %1319 = vmatpush.bf16.msra.mxu0 %v646
    %1320 = vmatpush.bf16.msra.mxu0 %v638
    %1321 = vmatpush.bf16.msra.mxu0 %v630
    %1322 = vmatpush.bf16.msra.mxu0 %v622
    %1323 = vmatpush.bf16.msra.mxu0 %v614
    %1324 = vmatpush.bf16.msra.mxu0 %v606
    %1325 = vmatpush.bf16.msra.mxu0 %v598
    %1326 = vmatmul.bf16.gmra.mxu0 %v346
    %v1327 = vpop.f32.mrf.mxu0
    %v1328 = vadd.f32 0.0, %v1327
    %v1329 = vpop.f32.mrf.mxu0
    %v1330 = vadd.f32 0.0, %v1329
    %1331 = vmatmul.bf16.gmra.mxu0 %v347
    %v1332 = vpop.f32.mrf.mxu0
    %v1333 = vadd.f32 0.0, %v1332
    %v1334 = vpop.f32.mrf.mxu0
    %v1335 = vadd.f32 0.0, %v1334
    %1336 = vmatmul.bf16.gmra.mxu0 %v348
    %v1337 = vpop.f32.mrf.mxu0
    %v1338 = vadd.f32 0.0, %v1337
    %v1339 = vpop.f32.mrf.mxu0
    %v1340 = vadd.f32 0.0, %v1339
    %1341 = vmatmul.bf16.gmra.mxu0 %v349
    %v1342 = vpop.f32.mrf.mxu0
    %v1343 = vadd.f32 0.0, %v1342
    %v1344 = vpop.f32.mrf.mxu0
    %v1345 = vadd.f32 0.0, %v1344
    %1346 = vmatmul.bf16.gmra.mxu0 %v350
    %v1347 = vpop.f32.mrf.mxu0
    %v1348 = vadd.f32 0.0, %v1347
    %v1349 = vpop.f32.mrf.mxu0
    %v1350 = vadd.f32 0.0, %v1349
    %1351 = vmatmul.bf16.gmra.mxu0 %v351
    %v1352 = vpop.f32.mrf.mxu0
    %v1353 = vadd.f32 0.0, %v1352
    %v1354 = vpop.f32.mrf.mxu0
    %v1355 = vadd.f32 0.0, %v1354
    %1356 = vmatmul.bf16.gmra.mxu0 %v352
    %v1357 = vpop.f32.mrf.mxu0
    %v1358 = vadd.f32 0.0, %v1357
    %v1359 = vpop.f32.mrf.mxu0
    %v1360 = vadd.f32 0.0, %v1359
    %1361 = vmatmul.bf16.gmra.mxu0 %v353
    %v1362 = vpop.f32.mrf.mxu0
    %v1363 = vadd.f32 0.0, %v1362
    %v1364 = vpop.f32.mrf.mxu0
    %v1365 = vadd.f32 0.0, %v1364
    %1366 = vmatmul.bf16.gmra.mxu0 %v354
    %v1367 = vpop.f32.mrf.mxu0
    %v1368 = vadd.f32 0.0, %v1367
    %v1369 = vpop.f32.mrf.mxu0
    %v1370 = vadd.f32 0.0, %v1369
    %1371 = vmatmul.bf16.gmra.mxu0 %v355
    %v1372 = vpop.f32.mrf.mxu0
    %v1373 = vadd.f32 0.0, %v1372
    %v1374 = vpop.f32.mrf.mxu0
    %v1375 = vadd.f32 0.0, %v1374
    %1376 = vmatmul.bf16.gmra.mxu0 %v356
    %v1377 = vpop.f32.mrf.mxu0
    %v1378 = vadd.f32 0.0, %v1377
    %v1379 = vpop.f32.mrf.mxu0
    %v1380 = vadd.f32 0.0, %v1379
    %1381 = vmatmul.bf16.gmra.mxu0 %v357
    %v1382 = vpop.f32.mrf.mxu0
    %v1383 = vadd.f32 0.0, %v1382
    %v1384 = vpop.f32.mrf.mxu0
    %v1385 = vadd.f32 0.0, %v1384
    %1386 = vmatmul.bf16.gmra.mxu0 %v358
    %v1387 = vpop.f32.mrf.mxu0
    %v1388 = vadd.f32 0.0, %v1387
    %v1389 = vpop.f32.mrf.mxu0
    %v1390 = vadd.f32 0.0, %v1389
    %1391 = vmatmul.bf16.gmra.mxu0 %v359
    %v1392 = vpop.f32.mrf.mxu0
    %v1393 = vadd.f32 0.0, %v1392
    %v1394 = vpop.f32.mrf.mxu0
    %v1395 = vadd.f32 0.0, %v1394
    %1396 = vmatmul.bf16.gmra.mxu0 %v360
    %v1397 = vpop.f32.mrf.mxu0
    %v1398 = vadd.f32 0.0, %v1397
    %v1399 = vpop.f32.mrf.mxu0
    %v1400 = vadd.f32 0.0, %v1399
    %1401 = vmatmul.bf16.gmra.mxu0 %v361
    %v1402 = vpop.f32.mrf.mxu0
    %v1403 = vadd.f32 0.0, %v1402
    %v1404 = vpop.f32.mrf.mxu0
    %v1405 = vadd.f32 0.0, %v1404
    %1406 = vmatmul.bf16.gmra.mxu0 %v362
    %v1407 = vpop.f32.mrf.mxu0
    %v1408 = vadd.f32 0.0, %v1407
    %v1409 = vpop.f32.mrf.mxu0
    %v1410 = vadd.f32 0.0, %v1409
    %1411 = vmatmul.bf16.gmra.mxu0 %v363
    %v1412 = vpop.f32.mrf.mxu0
    %v1413 = vadd.f32 0.0, %v1412
    %v1414 = vpop.f32.mrf.mxu0
    %v1415 = vadd.f32 0.0, %v1414
    %1416 = vmatmul.bf16.gmra.mxu0 %v364
    %v1417 = vpop.f32.mrf.mxu0
    %v1418 = vadd.f32 0.0, %v1417
    %v1419 = vpop.f32.mrf.mxu0
    %v1420 = vadd.f32 0.0, %v1419
    %1421 = vmatmul.bf16.gmra.mxu0 %v365
    %v1422 = vpop.f32.mrf.mxu0
    %v1423 = vadd.f32 0.0, %v1422
    %v1424 = vpop.f32.mrf.mxu0
    %v1425 = vadd.f32 0.0, %v1424
    %1426 = vmatmul.bf16.gmra.mxu0 %v366
    %v1427 = vpop.f32.mrf.mxu0
    %v1428 = vadd.f32 0.0, %v1427
    %v1429 = vpop.f32.mrf.mxu0
    %v1430 = vadd.f32 0.0, %v1429
    %1431 = vmatmul.bf16.gmra.mxu0 %v367
    %v1432 = vpop.f32.mrf.mxu0
    %v1433 = vadd.f32 0.0, %v1432
    %v1434 = vpop.f32.mrf.mxu0
    %v1435 = vadd.f32 0.0, %v1434
    %1436 = vmatmul.bf16.gmra.mxu0 %v368
    %v1437 = vpop.f32.mrf.mxu0
    %v1438 = vadd.f32 0.0, %v1437
    %v1439 = vpop.f32.mrf.mxu0
    %v1440 = vadd.f32 0.0, %v1439
    %1441 = vmatmul.bf16.gmra.mxu0 %v369
    %v1442 = vpop.f32.mrf.mxu0
    %v1443 = vadd.f32 0.0, %v1442
    %v1444 = vpop.f32.mrf.mxu0
    %v1445 = vadd.f32 0.0, %v1444
    %1446 = vmatmul.bf16.gmra.mxu0 %v370
    %v1447 = vpop.f32.mrf.mxu0
    %v1448 = vadd.f32 0.0, %v1447
    %v1449 = vpop.f32.mrf.mxu0
    %v1450 = vadd.f32 0.0, %v1449
    %1451 = vmatmul.bf16.gmra.mxu0 %v371
    %v1452 = vpop.f32.mrf.mxu0
    %v1453 = vadd.f32 0.0, %v1452
    %v1454 = vpop.f32.mrf.mxu0
    %v1455 = vadd.f32 0.0, %v1454
    %1456 = vmatmul.bf16.gmra.mxu0 %v372
    %v1457 = vpop.f32.mrf.mxu0
    %v1458 = vadd.f32 0.0, %v1457
    %v1459 = vpop.f32.mrf.mxu0
    %v1460 = vadd.f32 0.0, %v1459
    %1461 = vmatmul.bf16.gmra.mxu0 %v373
    %v1462 = vpop.f32.mrf.mxu0
    %v1463 = vadd.f32 0.0, %v1462
    %v1464 = vpop.f32.mrf.mxu0
    %v1465 = vadd.f32 0.0, %v1464
    %1466 = vdwg.mxu0
    %1467 = vmatpush.bf16.msra.mxu0 %v655
    %1468 = vmatpush.bf16.msra.mxu0 %v647
    %1469 = vmatpush.bf16.msra.mxu0 %v639
    %1470 = vmatpush.bf16.msra.mxu0 %v631
    %1471 = vmatpush.bf16.msra.mxu0 %v623
    %1472 = vmatpush.bf16.msra.mxu0 %v615
    %1473 = vmatpush.bf16.msra.mxu0 %v607
    %1474 = vmatpush.bf16.msra.mxu0 %v599
    %1475 = vmatmul.bf16.gmra.mxu0 %v346
    %v1476 = vpop.f32.mrf.mxu0
    %v1477 = vadd.f32 0.0, %v1476
    %v1478 = vpop.f32.mrf.mxu0
    %v1479 = vadd.f32 0.0, %v1478
    %1480 = vmatmul.bf16.gmra.mxu0 %v347
    %v1481 = vpop.f32.mrf.mxu0
    %v1482 = vadd.f32 0.0, %v1481
    %v1483 = vpop.f32.mrf.mxu0
    %v1484 = vadd.f32 0.0, %v1483
    %1485 = vmatmul.bf16.gmra.mxu0 %v348
    %v1486 = vpop.f32.mrf.mxu0
    %v1487 = vadd.f32 0.0, %v1486
    %v1488 = vpop.f32.mrf.mxu0
    %v1489 = vadd.f32 0.0, %v1488
    %1490 = vmatmul.bf16.gmra.mxu0 %v349
    %v1491 = vpop.f32.mrf.mxu0
    %v1492 = vadd.f32 0.0, %v1491
    %v1493 = vpop.f32.mrf.mxu0
    %v1494 = vadd.f32 0.0, %v1493
    %1495 = vmatmul.bf16.gmra.mxu0 %v350
    %v1496 = vpop.f32.mrf.mxu0
    %v1497 = vadd.f32 0.0, %v1496
    %v1498 = vpop.f32.mrf.mxu0
    %v1499 = vadd.f32 0.0, %v1498
    %1500 = vmatmul.bf16.gmra.mxu0 %v351
    %v1501 = vpop.f32.mrf.mxu0
    %v1502 = vadd.f32 0.0, %v1501
    %v1503 = vpop.f32.mrf.mxu0
    %v1504 = vadd.f32 0.0, %v1503
    %1505 = vmatmul.bf16.gmra.mxu0 %v352
    %v1506 = vpop.f32.mrf.mxu0
    %v1507 = vadd.f32 0.0, %v1506
    %v1508 = vpop.f32.mrf.mxu0
    %v1509 = vadd.f32 0.0, %v1508
    %1510 = vmatmul.bf16.gmra.mxu0 %v353
    %v1511 = vpop.f32.mrf.mxu0
    %v1512 = vadd.f32 0.0, %v1511
    %v1513 = vpop.f32.mrf.mxu0
    %v1514 = vadd.f32 0.0, %v1513
    %1515 = vmatmul.bf16.gmra.mxu0 %v354
    %v1516 = vpop.f32.mrf.mxu0
    %v1517 = vadd.f32 0.0, %v1516
    %v1518 = vpop.f32.mrf.mxu0
    %v1519 = vadd.f32 0.0, %v1518
    %1520 = vmatmul.bf16.gmra.mxu0 %v355
    %v1521 = vpop.f32.mrf.mxu0
    %v1522 = vadd.f32 0.0, %v1521
    %v1523 = vpop.f32.mrf.mxu0
    %v1524 = vadd.f32 0.0, %v1523
    %1525 = vmatmul.bf16.gmra.mxu0 %v356
    %v1526 = vpop.f32.mrf.mxu0
    %v1527 = vadd.f32 0.0, %v1526
    %v1528 = vpop.f32.mrf.mxu0
    %v1529 = vadd.f32 0.0, %v1528
    %1530 = vmatmul.bf16.gmra.mxu0 %v357
    %v1531 = vpop.f32.mrf.mxu0
    %v1532 = vadd.f32 0.0, %v1531
    %v1533 = vpop.f32.mrf.mxu0
    %v1534 = vadd.f32 0.0, %v1533
    %1535 = vmatmul.bf16.gmra.mxu0 %v358
    %v1536 = vpop.f32.mrf.mxu0
    %v1537 = vadd.f32 0.0, %v1536
    %v1538 = vpop.f32.mrf.mxu0
    %v1539 = vadd.f32 0.0, %v1538
    %1540 = vmatmul.bf16.gmra.mxu0 %v359
    %v1541 = vpop.f32.mrf.mxu0
    %v1542 = vadd.f32 0.0, %v1541
    %v1543 = vpop.f32.mrf.mxu0
    %v1544 = vadd.f32 0.0, %v1543
    %1545 = vmatmul.bf16.gmra.mxu0 %v360
    %v1546 = vpop.f32.mrf.mxu0
    %v1547 = vadd.f32 0.0, %v1546
    %v1548 = vpop.f32.mrf.mxu0
    %v1549 = vadd.f32 0.0, %v1548
    %1550 = vmatmul.bf16.gmra.mxu0 %v361
    %v1551 = vpop.f32.mrf.mxu0
    %v1552 = vadd.f32 0.0, %v1551
    %v1553 = vpop.f32.mrf.mxu0
    %v1554 = vadd.f32 0.0, %v1553
    %1555 = vmatmul.bf16.gmra.mxu0 %v362
    %v1556 = vpop.f32.mrf.mxu0
    %v1557 = vadd.f32 0.0, %v1556
    %v1558 = vpop.f32.mrf.mxu0
    %v1559 = vadd.f32 0.0, %v1558
    %1560 = vmatmul.bf16.gmra.mxu0 %v363
    %v1561 = vpop.f32.mrf.mxu0
    %v1562 = vadd.f32 0.0, %v1561
    %v1563 = vpop.f32.mrf.mxu0
    %v1564 = vadd.f32 0.0, %v1563
    %1565 = vmatmul.bf16.gmra.mxu0 %v364
    %v1566 = vpop.f32.mrf.mxu0
    %v1567 = vadd.f32 0.0, %v1566
    %v1568 = vpop.f32.mrf.mxu0
    %v1569 = vadd.f32 0.0, %v1568
    %1570 = vmatmul.bf16.gmra.mxu0 %v365
    %v1571 = vpop.f32.mrf.mxu0
    %v1572 = vadd.f32 0.0, %v1571
    %v1573 = vpop.f32.mrf.mxu0
    %v1574 = vadd.f32 0.0, %v1573
    %1575 = vmatmul.bf16.gmra.mxu0 %v366
    %v1576 = vpop.f32.mrf.mxu0
    %v1577 = vadd.f32 0.0, %v1576
    %v1578 = vpop.f32.mrf.mxu0
    %v1579 = vadd.f32 0.0, %v1578
    %1580 = vmatmul.bf16.gmra.mxu0 %v367
    %v1581 = vpop.f32.mrf.mxu0
    %v1582 = vadd.f32 0.0, %v1581
    %v1583 = vpop.f32.mrf.mxu0
    %v1584 = vadd.f32 0.0, %v1583
    %1585 = vmatmul.bf16.gmra.mxu0 %v368
    %v1586 = vpop.f32.mrf.mxu0
    %v1587 = vadd.f32 0.0, %v1586
    %v1588 = vpop.f32.mrf.mxu0
    %v1589 = vadd.f32 0.0, %v1588
    %1590 = vmatmul.bf16.gmra.mxu0 %v369
    %v1591 = vpop.f32.mrf.mxu0
    %v1592 = vadd.f32 0.0, %v1591
    %v1593 = vpop.f32.mrf.mxu0
    %v1594 = vadd.f32 0.0, %v1593
    %1595 = vmatmul.bf16.gmra.mxu0 %v370
    %v1596 = vpop.f32.mrf.mxu0
    %v1597 = vadd.f32 0.0, %v1596
    %v1598 = vpop.f32.mrf.mxu0
    %v1599 = vadd.f32 0.0, %v1598
    %1600 = vmatmul.bf16.gmra.mxu0 %v371
    %v1601 = vpop.f32.mrf.mxu0
    %v1602 = vadd.f32 0.0, %v1601
    %v1603 = vpop.f32.mrf.mxu0
    %v1604 = vadd.f32 0.0, %v1603
    %1605 = vmatmul.bf16.gmra.mxu0 %v372
    %v1606 = vpop.f32.mrf.mxu0
    %v1607 = vadd.f32 0.0, %v1606
    %v1608 = vpop.f32.mrf.mxu0
    %v1609 = vadd.f32 0.0, %v1608
    %1610 = vmatmul.bf16.gmra.mxu0 %v373
    %v1611 = vpop.f32.mrf.mxu0
    %v1612 = vadd.f32 0.0, %v1611
    %v1613 = vpop.f32.mrf.mxu0
    %v1614 = vadd.f32 0.0, %v1613
    %1615 = vdwg.mxu0
    %1616 = vmatpush.bf16.msra.mxu0 %v656
    %1617 = vmatpush.bf16.msra.mxu0 %v648
    %1618 = vmatpush.bf16.msra.mxu0 %v640
    %1619 = vmatpush.bf16.msra.mxu0 %v632
    %1620 = vmatpush.bf16.msra.mxu0 %v624
    %1621 = vmatpush.bf16.msra.mxu0 %v616
    %1622 = vmatpush.bf16.msra.mxu0 %v608
    %1623 = vmatpush.bf16.msra.mxu0 %v600
    %1624 = vmatmul.bf16.gmra.mxu0 %v346
    %v1625 = vpop.f32.mrf.mxu0
    %v1626 = vadd.f32 0.0, %v1625
    %v1627 = vpop.f32.mrf.mxu0
    %v1628 = vadd.f32 0.0, %v1627
    %1629 = vmatmul.bf16.gmra.mxu0 %v347
    %v1630 = vpop.f32.mrf.mxu0
    %v1631 = vadd.f32 0.0, %v1630
    %v1632 = vpop.f32.mrf.mxu0
    %v1633 = vadd.f32 0.0, %v1632
    %1634 = vmatmul.bf16.gmra.mxu0 %v348
    %v1635 = vpop.f32.mrf.mxu0
    %v1636 = vadd.f32 0.0, %v1635
    %v1637 = vpop.f32.mrf.mxu0
    %v1638 = vadd.f32 0.0, %v1637
    %1639 = vmatmul.bf16.gmra.mxu0 %v349
    %v1640 = vpop.f32.mrf.mxu0
    %v1641 = vadd.f32 0.0, %v1640
    %v1642 = vpop.f32.mrf.mxu0
    %v1643 = vadd.f32 0.0, %v1642
    %1644 = vmatmul.bf16.gmra.mxu0 %v350
    %v1645 = vpop.f32.mrf.mxu0
    %v1646 = vadd.f32 0.0, %v1645
    %v1647 = vpop.f32.mrf.mxu0
    %v1648 = vadd.f32 0.0, %v1647
    %1649 = vmatmul.bf16.gmra.mxu0 %v351
    %v1650 = vpop.f32.mrf.mxu0
    %v1651 = vadd.f32 0.0, %v1650
    %v1652 = vpop.f32.mrf.mxu0
    %v1653 = vadd.f32 0.0, %v1652
    %1654 = vmatmul.bf16.gmra.mxu0 %v352
    %v1655 = vpop.f32.mrf.mxu0
    %v1656 = vadd.f32 0.0, %v1655
    %v1657 = vpop.f32.mrf.mxu0
    %v1658 = vadd.f32 0.0, %v1657
    %1659 = vmatmul.bf16.gmra.mxu0 %v353
    %v1660 = vpop.f32.mrf.mxu0
    %v1661 = vadd.f32 0.0, %v1660
    %v1662 = vpop.f32.mrf.mxu0
    %v1663 = vadd.f32 0.0, %v1662
    %1664 = vmatmul.bf16.gmra.mxu0 %v354
    %v1665 = vpop.f32.mrf.mxu0
    %v1666 = vadd.f32 0.0, %v1665
    %v1667 = vpop.f32.mrf.mxu0
    %v1668 = vadd.f32 0.0, %v1667
    %1669 = vmatmul.bf16.gmra.mxu0 %v355
    %v1670 = vpop.f32.mrf.mxu0
    %v1671 = vadd.f32 0.0, %v1670
    %v1672 = vpop.f32.mrf.mxu0
    %v1673 = vadd.f32 0.0, %v1672
    %1674 = vmatmul.bf16.gmra.mxu0 %v356
    %v1675 = vpop.f32.mrf.mxu0
    %v1676 = vadd.f32 0.0, %v1675
    %v1677 = vpop.f32.mrf.mxu0
    %v1678 = vadd.f32 0.0, %v1677
    %1679 = vmatmul.bf16.gmra.mxu0 %v357
    %v1680 = vpop.f32.mrf.mxu0
    %v1681 = vadd.f32 0.0, %v1680
    %v1682 = vpop.f32.mrf.mxu0
    %v1683 = vadd.f32 0.0, %v1682
    %1684 = vmatmul.bf16.gmra.mxu0 %v358
    %v1685 = vpop.f32.mrf.mxu0
    %v1686 = vadd.f32 0.0, %v1685
    %v1687 = vpop.f32.mrf.mxu0
    %v1688 = vadd.f32 0.0, %v1687
    %1689 = vmatmul.bf16.gmra.mxu0 %v359
    %v1690 = vpop.f32.mrf.mxu0
    %v1691 = vadd.f32 0.0, %v1690
    %v1692 = vpop.f32.mrf.mxu0
    %v1693 = vadd.f32 0.0, %v1692
    %1694 = vmatmul.bf16.gmra.mxu0 %v360
    %v1695 = vpop.f32.mrf.mxu0
    %v1696 = vadd.f32 0.0, %v1695
    %v1697 = vpop.f32.mrf.mxu0
    %v1698 = vadd.f32 0.0, %v1697
    %1699 = vmatmul.bf16.gmra.mxu0 %v361
    %v1700 = vpop.f32.mrf.mxu0
    %v1701 = vadd.f32 0.0, %v1700
    %v1702 = vpop.f32.mrf.mxu0
    %v1703 = vadd.f32 0.0, %v1702
    %1704 = vmatmul.bf16.gmra.mxu0 %v362
    %v1705 = vpop.f32.mrf.mxu0
    %v1706 = vadd.f32 0.0, %v1705
    %v1707 = vpop.f32.mrf.mxu0
    %v1708 = vadd.f32 0.0, %v1707
    %1709 = vmatmul.bf16.gmra.mxu0 %v363
    %v1710 = vpop.f32.mrf.mxu0
    %v1711 = vadd.f32 0.0, %v1710
    %v1712 = vpop.f32.mrf.mxu0
    %v1713 = vadd.f32 0.0, %v1712
    %1714 = vmatmul.bf16.gmra.mxu0 %v364
    %v1715 = vpop.f32.mrf.mxu0
    %v1716 = vadd.f32 0.0, %v1715
    %v1717 = vpop.f32.mrf.mxu0
    %v1718 = vadd.f32 0.0, %v1717
    %1719 = vmatmul.bf16.gmra.mxu0 %v365
    %v1720 = vpop.f32.mrf.mxu0
    %v1721 = vadd.f32 0.0, %v1720
    %v1722 = vpop.f32.mrf.mxu0
    %v1723 = vadd.f32 0.0, %v1722
    %1724 = vmatmul.bf16.gmra.mxu0 %v366
    %v1725 = vpop.f32.mrf.mxu0
    %v1726 = vadd.f32 0.0, %v1725
    %v1727 = vpop.f32.mrf.mxu0
    %v1728 = vadd.f32 0.0, %v1727
    %1729 = vmatmul.bf16.gmra.mxu0 %v367
    %v1730 = vpop.f32.mrf.mxu0
    %v1731 = vadd.f32 0.0, %v1730
    %v1732 = vpop.f32.mrf.mxu0
    %v1733 = vadd.f32 0.0, %v1732
    %1734 = vmatmul.bf16.gmra.mxu0 %v368
    %v1735 = vpop.f32.mrf.mxu0
    %v1736 = vadd.f32 0.0, %v1735
    %v1737 = vpop.f32.mrf.mxu0
    %v1738 = vadd.f32 0.0, %v1737
    %1739 = vmatmul.bf16.gmra.mxu0 %v369
    %v1740 = vpop.f32.mrf.mxu0
    %v1741 = vadd.f32 0.0, %v1740
    %v1742 = vpop.f32.mrf.mxu0
    %v1743 = vadd.f32 0.0, %v1742
    %1744 = vmatmul.bf16.gmra.mxu0 %v370
    %v1745 = vpop.f32.mrf.mxu0
    %v1746 = vadd.f32 0.0, %v1745
    %v1747 = vpop.f32.mrf.mxu0
    %v1748 = vadd.f32 0.0, %v1747
    %1749 = vmatmul.bf16.gmra.mxu0 %v371
    %v1750 = vpop.f32.mrf.mxu0
    %v1751 = vadd.f32 0.0, %v1750
    %v1752 = vpop.f32.mrf.mxu0
    %v1753 = vadd.f32 0.0, %v1752
    %1754 = vmatmul.bf16.gmra.mxu0 %v372
    %v1755 = vpop.f32.mrf.mxu0
    %v1756 = vadd.f32 0.0, %v1755
    %v1757 = vpop.f32.mrf.mxu0
    %v1758 = vadd.f32 0.0, %v1757
    %1759 = vmatmul.bf16.gmra.mxu0 %v373
    %v1760 = vpop.f32.mrf.mxu0
    %v1761 = vadd.f32 0.0, %v1760
    %v1762 = vpop.f32.mrf.mxu0
    %v1763 = vadd.f32 0.0, %v1762
    %1764 = vdwg.mxu0
    %1765 = vmatpush.bf16.msra.mxu0 %v657
    %1766 = vmatpush.bf16.msra.mxu0 %v649
    %1767 = vmatpush.bf16.msra.mxu0 %v641
    %1768 = vmatpush.bf16.msra.mxu0 %v633
    %1769 = vmatpush.bf16.msra.mxu0 %v625
    %1770 = vmatpush.bf16.msra.mxu0 %v617
    %1771 = vmatpush.bf16.msra.mxu0 %v609
    %1772 = vmatpush.bf16.msra.mxu0 %v601
    %1773 = vmatmul.bf16.gmra.mxu0 %v346
    %v1774 = vpop.f32.mrf.mxu0
    %v1775 = vadd.f32 0.0, %v1774
    %v1776 = vpop.f32.mrf.mxu0
    %v1777 = vadd.f32 0.0, %v1776
    %1778 = vmatmul.bf16.gmra.mxu0 %v347
    %v1779 = vpop.f32.mrf.mxu0
    %v1780 = vadd.f32 0.0, %v1779
    %v1781 = vpop.f32.mrf.mxu0
    %v1782 = vadd.f32 0.0, %v1781
    %1783 = vmatmul.bf16.gmra.mxu0 %v348
    %v1784 = vpop.f32.mrf.mxu0
    %v1785 = vadd.f32 0.0, %v1784
    %v1786 = vpop.f32.mrf.mxu0
    %v1787 = vadd.f32 0.0, %v1786
    %1788 = vmatmul.bf16.gmra.mxu0 %v349
    %v1789 = vpop.f32.mrf.mxu0
    %v1790 = vadd.f32 0.0, %v1789
    %v1791 = vpop.f32.mrf.mxu0
    %v1792 = vadd.f32 0.0, %v1791
    %1793 = vmatmul.bf16.gmra.mxu0 %v350
    %v1794 = vpop.f32.mrf.mxu0
    %v1795 = vadd.f32 0.0, %v1794
    %v1796 = vpop.f32.mrf.mxu0
    %v1797 = vadd.f32 0.0, %v1796
    %1798 = vmatmul.bf16.gmra.mxu0 %v351
    %v1799 = vpop.f32.mrf.mxu0
    %v1800 = vadd.f32 0.0, %v1799
    %v1801 = vpop.f32.mrf.mxu0
    %v1802 = vadd.f32 0.0, %v1801
    %1803 = vmatmul.bf16.gmra.mxu0 %v352
    %v1804 = vpop.f32.mrf.mxu0
    %v1805 = vadd.f32 0.0, %v1804
    %v1806 = vpop.f32.mrf.mxu0
    %v1807 = vadd.f32 0.0, %v1806
    %1808 = vmatmul.bf16.gmra.mxu0 %v353
    %v1809 = vpop.f32.mrf.mxu0
    %v1810 = vadd.f32 0.0, %v1809
    %v1811 = vpop.f32.mrf.mxu0
    %v1812 = vadd.f32 0.0, %v1811
    %1813 = vmatmul.bf16.gmra.mxu0 %v354
    %v1814 = vpop.f32.mrf.mxu0
    %v1815 = vadd.f32 0.0, %v1814
    %v1816 = vpop.f32.mrf.mxu0
    %v1817 = vadd.f32 0.0, %v1816
    %1818 = vmatmul.bf16.gmra.mxu0 %v355
    %v1819 = vpop.f32.mrf.mxu0
    %v1820 = vadd.f32 0.0, %v1819
    %v1821 = vpop.f32.mrf.mxu0
    %v1822 = vadd.f32 0.0, %v1821
    %1823 = vmatmul.bf16.gmra.mxu0 %v356
    %v1824 = vpop.f32.mrf.mxu0
    %v1825 = vadd.f32 0.0, %v1824
    %v1826 = vpop.f32.mrf.mxu0
    %v1827 = vadd.f32 0.0, %v1826
    %1828 = vmatmul.bf16.gmra.mxu0 %v357
    %v1829 = vpop.f32.mrf.mxu0
    %v1830 = vadd.f32 0.0, %v1829
    %v1831 = vpop.f32.mrf.mxu0
    %v1832 = vadd.f32 0.0, %v1831
    %1833 = vmatmul.bf16.gmra.mxu0 %v358
    %v1834 = vpop.f32.mrf.mxu0
    %v1835 = vadd.f32 0.0, %v1834
    %v1836 = vpop.f32.mrf.mxu0
    %v1837 = vadd.f32 0.0, %v1836
    %1838 = vmatmul.bf16.gmra.mxu0 %v359
    %v1839 = vpop.f32.mrf.mxu0
    %v1840 = vadd.f32 0.0, %v1839
    %v1841 = vpop.f32.mrf.mxu0
    %v1842 = vadd.f32 0.0, %v1841
    %1843 = vmatmul.bf16.gmra.mxu0 %v360
    %v1844 = vpop.f32.mrf.mxu0
    %v1845 = vadd.f32 0.0, %v1844
    %v1846 = vpop.f32.mrf.mxu0
    %v1847 = vadd.f32 0.0, %v1846
    %1848 = vmatmul.bf16.gmra.mxu0 %v361
    %v1849 = vpop.f32.mrf.mxu0
    %v1850 = vadd.f32 0.0, %v1849
    %v1851 = vpop.f32.mrf.mxu0
    %v1852 = vadd.f32 0.0, %v1851
    %1853 = vmatmul.bf16.gmra.mxu0 %v362
    %v1854 = vpop.f32.mrf.mxu0
    %v1855 = vadd.f32 0.0, %v1854
    %v1856 = vpop.f32.mrf.mxu0
    %v1857 = vadd.f32 0.0, %v1856
    %1858 = vmatmul.bf16.gmra.mxu0 %v363
    %v1859 = vpop.f32.mrf.mxu0
    %v1860 = vadd.f32 0.0, %v1859
    %v1861 = vpop.f32.mrf.mxu0
    %v1862 = vadd.f32 0.0, %v1861
    %1863 = vmatmul.bf16.gmra.mxu0 %v364
    %v1864 = vpop.f32.mrf.mxu0
    %v1865 = vadd.f32 0.0, %v1864
    %v1866 = vpop.f32.mrf.mxu0
    %v1867 = vadd.f32 0.0, %v1866
    %1868 = vmatmul.bf16.gmra.mxu0 %v365
    %v1869 = vpop.f32.mrf.mxu0
    %v1870 = vadd.f32 0.0, %v1869
    %v1871 = vpop.f32.mrf.mxu0
    %v1872 = vadd.f32 0.0, %v1871
    %1873 = vmatmul.bf16.gmra.mxu0 %v366
    %v1874 = vpop.f32.mrf.mxu0
    %v1875 = vadd.f32 0.0, %v1874
    %v1876 = vpop.f32.mrf.mxu0
    %v1877 = vadd.f32 0.0, %v1876
    %1878 = vmatmul.bf16.gmra.mxu0 %v367
    %v1879 = vpop.f32.mrf.mxu0
    %v1880 = vadd.f32 0.0, %v1879
    %v1881 = vpop.f32.mrf.mxu0
    %v1882 = vadd.f32 0.0, %v1881
    %1883 = vmatmul.bf16.gmra.mxu0 %v368
    %v1884 = vpop.f32.mrf.mxu0
    %v1885 = vadd.f32 0.0, %v1884
    %v1886 = vpop.f32.mrf.mxu0
    %v1887 = vadd.f32 0.0, %v1886
    %1888 = vmatmul.bf16.gmra.mxu0 %v369
    %v1889 = vpop.f32.mrf.mxu0
    %v1890 = vadd.f32 0.0, %v1889
    %v1891 = vpop.f32.mrf.mxu0
    %v1892 = vadd.f32 0.0, %v1891
    %1893 = vmatmul.bf16.gmra.mxu0 %v370
    %v1894 = vpop.f32.mrf.mxu0
    %v1895 = vadd.f32 0.0, %v1894
    %v1896 = vpop.f32.mrf.mxu0
    %v1897 = vadd.f32 0.0, %v1896
    %1898 = vmatmul.bf16.gmra.mxu0 %v371
    %v1899 = vpop.f32.mrf.mxu0
    %v1900 = vadd.f32 0.0, %v1899
    %v1901 = vpop.f32.mrf.mxu0
    %v1902 = vadd.f32 0.0, %v1901
    %1903 = vmatmul.bf16.gmra.mxu0 %v372
    %v1904 = vpop.f32.mrf.mxu0
    %v1905 = vadd.f32 0.0, %v1904
    %v1906 = vpop.f32.mrf.mxu0
    %v1907 = vadd.f32 0.0, %v1906
    %1908 = vmatmul.bf16.gmra.mxu0 %v373
    %v1909 = vpop.f32.mrf.mxu0
    %v1910 = vadd.f32 0.0, %v1909
    %v1911 = vpop.f32.mrf.mxu0
    %v1912 = vadd.f32 0.0, %v1911
    %1913 = vdwg.mxu0
    %1914 = vst [vmem:[#allocation2] sm:$0xff] %v732
    %1915 = vst [vmem:[#allocation2 + $0x8] sm:$0xff] %v881
    %1916 = vst [vmem:[#allocation2 + $0x10] sm:$0xff] %v1030
    %1917 = vst [vmem:[#allocation2 + $0x18] sm:$0xff] %v1179
    %1918 = vst [vmem:[#allocation2 + $0x20] sm:$0xff] %v1328
    %1919 = vst [vmem:[#allocation2 + $0x28] sm:$0xff] %v1477
    %1920 = vst [vmem:[#allocation2 + $0x30] sm:$0xff] %v1626
    %1921 = vst [vmem:[#allocation2 + $0x38] sm:$0xff] %v1775
    %1922 = vst [vmem:[#allocation2 + $0x40] sm:$0xff] %v734
    %1923 = vst [vmem:[#allocation2 + $0x48] sm:$0xff] %v883
    %1924 = vst [vmem:[#allocation2 + $0x50] sm:$0xff] %v1032
    %1925 = vst [vmem:[#allocation2 + $0x58] sm:$0xff] %v1181
    %1926 = vst [vmem:[#allocation2 + $0x60] sm:$0xff] %v1330
    %1927 = vst [vmem:[#allocation2 + $0x68] sm:$0xff] %v1479
    %1928 = vst [vmem:[#allocation2 + $0x70] sm:$0xff] %v1628
    %1929 = vst [vmem:[#allocation2 + $0x78] sm:$0xff] %v1777
    %1930 = vst [vmem:[#allocation2 + $0x80] sm:$0xff] %v737
    %1931 = vst [vmem:[#allocation2 + $0x88] sm:$0xff] %v886
    %1932 = vst [vmem:[#allocation2 + $0x90] sm:$0xff] %v1035
    %1933 = vst [vmem:[#allocation2 + $0x98] sm:$0xff] %v1184
    %1934 = vst [vmem:[#allocation2 + $0xa0] sm:$0xff] %v1333
    %1935 = vst [vmem:[#allocation2 + $0xa8] sm:$0xff] %v1482
    %1936 = vst [vmem:[#allocation2 + $0xb0] sm:$0xff] %v1631
    %1937 = vst [vmem:[#allocation2 + $0xb8] sm:$0xff] %v1780
    %1938 = vst [vmem:[#allocation2 + $0xc0] sm:$0xff] %v739
    %1939 = vst [vmem:[#allocation2 + $0xc8] sm:$0xff] %v888
    %1940 = vst [vmem:[#allocation2 + $0xd0] sm:$0xff] %v1037
    %1941 = vst [vmem:[#allocation2 + $0xd8] sm:$0xff] %v1186
    %1942 = vst [vmem:[#allocation2 + $0xe0] sm:$0xff] %v1335
    %1943 = vst [vmem:[#allocation2 + $0xe8] sm:$0xff] %v1484
    %1944 = vst [vmem:[#allocation2 + $0xf0] sm:$0xff] %v1633
    %1945 = vst [vmem:[#allocation2 + $0xf8] sm:$0xff] %v1782
    %1946 = vst [vmem:[#allocation2 + $0x100] sm:$0xff] %v742
    %1947 = vst [vmem:[#allocation2 + $0x108] sm:$0xff] %v891
    %1948 = vst [vmem:[#allocation2 + $0x110] sm:$0xff] %v1040
    %1949 = vst [vmem:[#allocation2 + $0x118] sm:$0xff] %v1189
    %1950 = vst [vmem:[#allocation2 + $0x120] sm:$0xff] %v1338
    %1951 = vst [vmem:[#allocation2 + $0x128] sm:$0xff] %v1487
    %1952 = vst [vmem:[#allocation2 + $0x130] sm:$0xff] %v1636
    %1953 = vst [vmem:[#allocation2 + $0x138] sm:$0xff] %v1785
    %1954 = vst [vmem:[#allocation2 + $0x140] sm:$0xff] %v744
    %1955 = vst [vmem:[#allocation2 + $0x148] sm:$0xff] %v893
    %1956 = vst [vmem:[#allocation2 + $0x150] sm:$0xff] %v1042
    %1957 = vst [vmem:[#allocation2 + $0x158] sm:$0xff] %v1191
    %1958 = vst [vmem:[#allocation2 + $0x160] sm:$0xff] %v1340
    %1959 = vst [vmem:[#allocation2 + $0x168] sm:$0xff] %v1489
    %1960 = vst [vmem:[#allocation2 + $0x170] sm:$0xff] %v1638
    %1961 = vst [vmem:[#allocation2 + $0x178] sm:$0xff] %v1787
    %1962 = vst [vmem:[#allocation2 + $0x180] sm:$0xff] %v747
    %1963 = vst [vmem:[#allocation2 + $0x188] sm:$0xff] %v896
    %1964 = vst [vmem:[#allocation2 + $0x190] sm:$0xff] %v1045
    %1965 = vst [vmem:[#allocation2 + $0x198] sm:$0xff] %v1194
    %1966 = vst [vmem:[#allocation2 + $0x1a0] sm:$0xff] %v1343
    %1967 = vst [vmem:[#allocation2 + $0x1a8] sm:$0xff] %v1492
    %1968 = vst [vmem:[#allocation2 + $0x1b0] sm:$0xff] %v1641
    %1969 = vst [vmem:[#allocation2 + $0x1b8] sm:$0xff] %v1790
    %1970 = vst [vmem:[#allocation2 + $0x1c0] sm:$0xff] %v749
    %1971 = vst [vmem:[#allocation2 + $0x1c8] sm:$0xff] %v898
    %1972 = vst [vmem:[#allocation2 + $0x1d0] sm:$0xff] %v1047
    %1973 = vst [vmem:[#allocation2 + $0x1d8] sm:$0xff] %v1196
    %1974 = vst [vmem:[#allocation2 + $0x1e0] sm:$0xff] %v1345
    %1975 = vst [vmem:[#allocation2 + $0x1e8] sm:$0xff] %v1494
    %1976 = vst [vmem:[#allocation2 + $0x1f0] sm:$0xff] %v1643
    %1977 = vst [vmem:[#allocation2 + $0x1f8] sm:$0xff] %v1792
    %1978 = vst [vmem:[#allocation2 + $0x200] sm:$0xff] %v752
    %1979 = vst [vmem:[#allocation2 + $0x208] sm:$0xff] %v901
    %1980 = vst [vmem:[#allocation2 + $0x210] sm:$0xff] %v1050
    %1981 = vst [vmem:[#allocation2 + $0x218] sm:$0xff] %v1199
    %1982 = vst [vmem:[#allocation2 + $0x220] sm:$0xff] %v1348
    %1983 = vst [vmem:[#allocation2 + $0x228] sm:$0xff] %v1497
    %1984 = vst [vmem:[#allocation2 + $0x230] sm:$0xff] %v1646
    %1985 = vst [vmem:[#allocation2 + $0x238] sm:$0xff] %v1795
    %1986 = vst [vmem:[#allocation2 + $0x240] sm:$0xff] %v754
    %1987 = vst [vmem:[#allocation2 + $0x248] sm:$0xff] %v903
    %1988 = vst [vmem:[#allocation2 + $0x250] sm:$0xff] %v1052
    %1989 = vst [vmem:[#allocation2 + $0x258] sm:$0xff] %v1201
    %1990 = vst [vmem:[#allocation2 + $0x260] sm:$0xff] %v1350
    %1991 = vst [vmem:[#allocation2 + $0x268] sm:$0xff] %v1499
    %1992 = vst [vmem:[#allocation2 + $0x270] sm:$0xff] %v1648
    %1993 = vst [vmem:[#allocation2 + $0x278] sm:$0xff] %v1797
    %1994 = vst [vmem:[#allocation2 + $0x280] sm:$0xff] %v757
    %1995 = vst [vmem:[#allocation2 + $0x288] sm:$0xff] %v906
    %1996 = vst [vmem:[#allocation2 + $0x290] sm:$0xff] %v1055
    %1997 = vst [vmem:[#allocation2 + $0x298] sm:$0xff] %v1204
    %1998 = vst [vmem:[#allocation2 + $0x2a0] sm:$0xff] %v1353
    %1999 = vst [vmem:[#allocation2 + $0x2a8] sm:$0xff] %v1502
    %2000 = vst [vmem:[#allocation2 + $0x2b0] sm:$0xff] %v1651
    %2001 = vst [vmem:[#allocation2 + $0x2b8] sm:$0xff] %v1800
    %2002 = vst [vmem:[#allocation2 + $0x2c0] sm:$0xff] %v759
    %2003 = vst [vmem:[#allocation2 + $0x2c8] sm:$0xff] %v908
    %2004 = vst [vmem:[#allocation2 + $0x2d0] sm:$0xff] %v1057
    %2005 = vst [vmem:[#allocation2 + $0x2d8] sm:$0xff] %v1206
    %2006 = vst [vmem:[#allocation2 + $0x2e0] sm:$0xff] %v1355
    %2007 = vst [vmem:[#allocation2 + $0x2e8] sm:$0xff] %v1504
    %2008 = vst [vmem:[#allocation2 + $0x2f0] sm:$0xff] %v1653
    %2009 = vst [vmem:[#allocation2 + $0x2f8] sm:$0xff] %v1802
    %2010 = vst [vmem:[#allocation2 + $0x300] sm:$0xff] %v762
    %2011 = vst [vmem:[#allocation2 + $0x308] sm:$0xff] %v911
    %2012 = vst [vmem:[#allocation2 + $0x310] sm:$0xff] %v1060
    %2013 = vst [vmem:[#allocation2 + $0x318] sm:$0xff] %v1209
    %2014 = vst [vmem:[#allocation2 + $0x320] sm:$0xff] %v1358
    %2015 = vst [vmem:[#allocation2 + $0x328] sm:$0xff] %v1507
    %2016 = vst [vmem:[#allocation2 + $0x330] sm:$0xff] %v1656
    %2017 = vst [vmem:[#allocation2 + $0x338] sm:$0xff] %v1805
    %2018 = vst [vmem:[#allocation2 + $0x340] sm:$0xff] %v764
    %2019 = vst [vmem:[#allocation2 + $0x348] sm:$0xff] %v913
    %2020 = vst [vmem:[#allocation2 + $0x350] sm:$0xff] %v1062
    %2021 = vst [vmem:[#allocation2 + $0x358] sm:$0xff] %v1211
    %2022 = vst [vmem:[#allocation2 + $0x360] sm:$0xff] %v1360
    %2023 = vst [vmem:[#allocation2 + $0x368] sm:$0xff] %v1509
    %2024 = vst [vmem:[#allocation2 + $0x370] sm:$0xff] %v1658
    %2025 = vst [vmem:[#allocation2 + $0x378] sm:$0xff] %v1807
    %2026 = vst [vmem:[#allocation2 + $0x380] sm:$0xff] %v767
    %2027 = vst [vmem:[#allocation2 + $0x388] sm:$0xff] %v916
    %2028 = vst [vmem:[#allocation2 + $0x390] sm:$0xff] %v1065
    %2029 = vst [vmem:[#allocation2 + $0x398] sm:$0xff] %v1214
    %2030 = vst [vmem:[#allocation2 + $0x3a0] sm:$0xff] %v1363
    %2031 = vst [vmem:[#allocation2 + $0x3a8] sm:$0xff] %v1512
    %2032 = vst [vmem:[#allocation2 + $0x3b0] sm:$0xff] %v1661
    %2033 = vst [vmem:[#allocation2 + $0x3b8] sm:$0xff] %v1810
    %2034 = vst [vmem:[#allocation2 + $0x3c0] sm:$0xff] %v769
    %2035 = vst [vmem:[#allocation2 + $0x3c8] sm:$0xff] %v918
    %2036 = vst [vmem:[#allocation2 + $0x3d0] sm:$0xff] %v1067
    %2037 = vst [vmem:[#allocation2 + $0x3d8] sm:$0xff] %v1216
    %2038 = vst [vmem:[#allocation2 + $0x3e0] sm:$0xff] %v1365
    %2039 = vst [vmem:[#allocation2 + $0x3e8] sm:$0xff] %v1514
    %2040 = vst [vmem:[#allocation2 + $0x3f0] sm:$0xff] %v1663
    %2041 = vst [vmem:[#allocation2 + $0x3f8] sm:$0xff] %v1812
    %2042 = vst [vmem:[#allocation2 + $0x400] sm:$0xff] %v772
    %2043 = vst [vmem:[#allocation2 + $0x408] sm:$0xff] %v921
    %2044 = vst [vmem:[#allocation2 + $0x410] sm:$0xff] %v1070
    %2045 = vst [vmem:[#allocation2 + $0x418] sm:$0xff] %v1219
    %2046 = vst [vmem:[#allocation2 + $0x420] sm:$0xff] %v1368
    %2047 = vst [vmem:[#allocation2 + $0x428] sm:$0xff] %v1517
    %2048 = vst [vmem:[#allocation2 + $0x430] sm:$0xff] %v1666
    %2049 = vst [vmem:[#allocation2 + $0x438] sm:$0xff] %v1815
    %2050 = vst [vmem:[#allocation2 + $0x440] sm:$0xff] %v774
    %2051 = vst [vmem:[#allocation2 + $0x448] sm:$0xff] %v923
    %2052 = vst [vmem:[#allocation2 + $0x450] sm:$0xff] %v1072
    %2053 = vst [vmem:[#allocation2 + $0x458] sm:$0xff] %v1221
    %2054 = vst [vmem:[#allocation2 + $0x460] sm:$0xff] %v1370
    %2055 = vst [vmem:[#allocation2 + $0x468] sm:$0xff] %v1519
    %2056 = vst [vmem:[#allocation2 + $0x470] sm:$0xff] %v1668
    %2057 = vst [vmem:[#allocation2 + $0x478] sm:$0xff] %v1817
    %2058 = vst [vmem:[#allocation2 + $0x480] sm:$0xff] %v777
    %2059 = vst [vmem:[#allocation2 + $0x488] sm:$0xff] %v926
    %2060 = vst [vmem:[#allocation2 + $0x490] sm:$0xff] %v1075
    %2061 = vst [vmem:[#allocation2 + $0x498] sm:$0xff] %v1224
    %2062 = vst [vmem:[#allocation2 + $0x4a0] sm:$0xff] %v1373
    %2063 = vst [vmem:[#allocation2 + $0x4a8] sm:$0xff] %v1522
    %2064 = vst [vmem:[#allocation2 + $0x4b0] sm:$0xff] %v1671
    %2065 = vst [vmem:[#allocation2 + $0x4b8] sm:$0xff] %v1820
    %2066 = vst [vmem:[#allocation2 + $0x4c0] sm:$0xff] %v779
    %2067 = vst [vmem:[#allocation2 + $0x4c8] sm:$0xff] %v928
    %2068 = vst [vmem:[#allocation2 + $0x4d0] sm:$0xff] %v1077
    %2069 = vst [vmem:[#allocation2 + $0x4d8] sm:$0xff] %v1226
    %2070 = vst [vmem:[#allocation2 + $0x4e0] sm:$0xff] %v1375
    %2071 = vst [vmem:[#allocation2 + $0x4e8] sm:$0xff] %v1524
    %2072 = vst [vmem:[#allocation2 + $0x4f0] sm:$0xff] %v1673
    %2073 = vst [vmem:[#allocation2 + $0x4f8] sm:$0xff] %v1822
    %2074 = vst [vmem:[#allocation2 + $0x500] sm:$0xff] %v782
    %2075 = vst [vmem:[#allocation2 + $0x508] sm:$0xff] %v931
    %2076 = vst [vmem:[#allocation2 + $0x510] sm:$0xff] %v1080
    %2077 = vst [vmem:[#allocation2 + $0x518] sm:$0xff] %v1229
    %2078 = vst [vmem:[#allocation2 + $0x520] sm:$0xff] %v1378
    %2079 = vst [vmem:[#allocation2 + $0x528] sm:$0xff] %v1527
    %2080 = vst [vmem:[#allocation2 + $0x530] sm:$0xff] %v1676
    %2081 = vst [vmem:[#allocation2 + $0x538] sm:$0xff] %v1825
    %2082 = vst [vmem:[#allocation2 + $0x540] sm:$0xff] %v784
    %2083 = vst [vmem:[#allocation2 + $0x548] sm:$0xff] %v933
    %2084 = vst [vmem:[#allocation2 + $0x550] sm:$0xff] %v1082
    %2085 = vst [vmem:[#allocation2 + $0x558] sm:$0xff] %v1231
    %2086 = vst [vmem:[#allocation2 + $0x560] sm:$0xff] %v1380
    %2087 = vst [vmem:[#allocation2 + $0x568] sm:$0xff] %v1529
    %2088 = vst [vmem:[#allocation2 + $0x570] sm:$0xff] %v1678
    %2089 = vst [vmem:[#allocation2 + $0x578] sm:$0xff] %v1827
    %2090 = vst [vmem:[#allocation2 + $0x580] sm:$0xff] %v787
    %2091 = vst [vmem:[#allocation2 + $0x588] sm:$0xff] %v936
    %2092 = vst [vmem:[#allocation2 + $0x590] sm:$0xff] %v1085
    %2093 = vst [vmem:[#allocation2 + $0x598] sm:$0xff] %v1234
    %2094 = vst [vmem:[#allocation2 + $0x5a0] sm:$0xff] %v1383
    %2095 = vst [vmem:[#allocation2 + $0x5a8] sm:$0xff] %v1532
    %2096 = vst [vmem:[#allocation2 + $0x5b0] sm:$0xff] %v1681
    %2097 = vst [vmem:[#allocation2 + $0x5b8] sm:$0xff] %v1830
    %2098 = vst [vmem:[#allocation2 + $0x5c0] sm:$0xff] %v789
    %2099 = vst [vmem:[#allocation2 + $0x5c8] sm:$0xff] %v938
    %2100 = vst [vmem:[#allocation2 + $0x5d0] sm:$0xff] %v1087
    %2101 = vst [vmem:[#allocation2 + $0x5d8] sm:$0xff] %v1236
    %2102 = vst [vmem:[#allocation2 + $0x5e0] sm:$0xff] %v1385
    %2103 = vst [vmem:[#allocation2 + $0x5e8] sm:$0xff] %v1534
    %2104 = vst [vmem:[#allocation2 + $0x5f0] sm:$0xff] %v1683
    %2105 = vst [vmem:[#allocation2 + $0x5f8] sm:$0xff] %v1832
    %2106 = vst [vmem:[#allocation2 + $0x600] sm:$0xff] %v792
    %2107 = vst [vmem:[#allocation2 + $0x608] sm:$0xff] %v941
    %2108 = vst [vmem:[#allocation2 + $0x610] sm:$0xff] %v1090
    %2109 = vst [vmem:[#allocation2 + $0x618] sm:$0xff] %v1239
    %2110 = vst [vmem:[#allocation2 + $0x620] sm:$0xff] %v1388
    %2111 = vst [vmem:[#allocation2 + $0x628] sm:$0xff] %v1537
    %2112 = vst [vmem:[#allocation2 + $0x630] sm:$0xff] %v1686
    %2113 = vst [vmem:[#allocation2 + $0x638] sm:$0xff] %v1835
    %2114 = vst [vmem:[#allocation2 + $0x640] sm:$0xff] %v794
    %2115 = vst [vmem:[#allocation2 + $0x648] sm:$0xff] %v943
    %2116 = vst [vmem:[#allocation2 + $0x650] sm:$0xff] %v1092
    %2117 = vst [vmem:[#allocation2 + $0x658] sm:$0xff] %v1241
    %2118 = vst [vmem:[#allocation2 + $0x660] sm:$0xff] %v1390
    %2119 = vst [vmem:[#allocation2 + $0x668] sm:$0xff] %v1539
    %2120 = vst [vmem:[#allocation2 + $0x670] sm:$0xff] %v1688
    %2121 = vst [vmem:[#allocation2 + $0x678] sm:$0xff] %v1837
    %2122 = vst [vmem:[#allocation2 + $0x680] sm:$0xff] %v797
    %2123 = vst [vmem:[#allocation2 + $0x688] sm:$0xff] %v946
    %2124 = vst [vmem:[#allocation2 + $0x690] sm:$0xff] %v1095
    %2125 = vst [vmem:[#allocation2 + $0x698] sm:$0xff] %v1244
    %2126 = vst [vmem:[#allocation2 + $0x6a0] sm:$0xff] %v1393
    %2127 = vst [vmem:[#allocation2 + $0x6a8] sm:$0xff] %v1542
    %2128 = vst [vmem:[#allocation2 + $0x6b0] sm:$0xff] %v1691
    %2129 = vst [vmem:[#allocation2 + $0x6b8] sm:$0xff] %v1840
    %2130 = vst [vmem:[#allocation2 + $0x6c0] sm:$0xff] %v799
    %2131 = vst [vmem:[#allocation2 + $0x6c8] sm:$0xff] %v948
    %2132 = vst [vmem:[#allocation2 + $0x6d0] sm:$0xff] %v1097
    %2133 = vst [vmem:[#allocation2 + $0x6d8] sm:$0xff] %v1246
    %2134 = vst [vmem:[#allocation2 + $0x6e0] sm:$0xff] %v1395
    %2135 = vst [vmem:[#allocation2 + $0x6e8] sm:$0xff] %v1544
    %2136 = vst [vmem:[#allocation2 + $0x6f0] sm:$0xff] %v1693
    %2137 = vst [vmem:[#allocation2 + $0x6f8] sm:$0xff] %v1842
    %2138 = vst [vmem:[#allocation2 + $0x700] sm:$0xff] %v802
    %2139 = vst [vmem:[#allocation2 + $0x708] sm:$0xff] %v951
    %2140 = vst [vmem:[#allocation2 + $0x710] sm:$0xff] %v1100
    %2141 = vst [vmem:[#allocation2 + $0x718] sm:$0xff] %v1249
    %2142 = vst [vmem:[#allocation2 + $0x720] sm:$0xff] %v1398
    %2143 = vst [vmem:[#allocation2 + $0x728] sm:$0xff] %v1547
    %2144 = vst [vmem:[#allocation2 + $0x730] sm:$0xff] %v1696
    %2145 = vst [vmem:[#allocation2 + $0x738] sm:$0xff] %v1845
    %2146 = vst [vmem:[#allocation2 + $0x740] sm:$0xff] %v804
    %2147 = vst [vmem:[#allocation2 + $0x748] sm:$0xff] %v953
    %2148 = vst [vmem:[#allocation2 + $0x750] sm:$0xff] %v1102
    %2149 = vst [vmem:[#allocation2 + $0x758] sm:$0xff] %v1251
    %2150 = vst [vmem:[#allocation2 + $0x760] sm:$0xff] %v1400
    %2151 = vst [vmem:[#allocation2 + $0x768] sm:$0xff] %v1549
    %2152 = vst [vmem:[#allocation2 + $0x770] sm:$0xff] %v1698
    %2153 = vst [vmem:[#allocation2 + $0x778] sm:$0xff] %v1847
    %2154 = vst [vmem:[#allocation2 + $0x780] sm:$0xff] %v807
    %2155 = vst [vmem:[#allocation2 + $0x788] sm:$0xff] %v956
    %2156 = vst [vmem:[#allocation2 + $0x790] sm:$0xff] %v1105
    %2157 = vst [vmem:[#allocation2 + $0x798] sm:$0xff] %v1254
    %2158 = vst [vmem:[#allocation2 + $0x7a0] sm:$0xff] %v1403
    %2159 = vst [vmem:[#allocation2 + $0x7a8] sm:$0xff] %v1552
    %2160 = vst [vmem:[#allocation2 + $0x7b0] sm:$0xff] %v1701
    %2161 = vst [vmem:[#allocation2 + $0x7b8] sm:$0xff] %v1850
    %2162 = vst [vmem:[#allocation2 + $0x7c0] sm:$0xff] %v809
    %2163 = vst [vmem:[#allocation2 + $0x7c8] sm:$0xff] %v958
    %2164 = vst [vmem:[#allocation2 + $0x7d0] sm:$0xff] %v1107
    %2165 = vst [vmem:[#allocation2 + $0x7d8] sm:$0xff] %v1256
    %2166 = vst [vmem:[#allocation2 + $0x7e0] sm:$0xff] %v1405
    %2167 = vst [vmem:[#allocation2 + $0x7e8] sm:$0xff] %v1554
    %2168 = vst [vmem:[#allocation2 + $0x7f0] sm:$0xff] %v1703
    %2169 = vst [vmem:[#allocation2 + $0x7f8] sm:$0xff] %v1852
    %2170 = vst [vmem:[#allocation2 + $0x800] sm:$0xff] %v812
    %2171 = vst [vmem:[#allocation2 + $0x808] sm:$0xff] %v961
    %2172 = vst [vmem:[#allocation2 + $0x810] sm:$0xff] %v1110
    %2173 = vst [vmem:[#allocation2 + $0x818] sm:$0xff] %v1259
    %2174 = vst [vmem:[#allocation2 + $0x820] sm:$0xff] %v1408
    %2175 = vst [vmem:[#allocation2 + $0x828] sm:$0xff] %v1557
    %2176 = vst [vmem:[#allocation2 + $0x830] sm:$0xff] %v1706
    %2177 = vst [vmem:[#allocation2 + $0x838] sm:$0xff] %v1855
    %2178 = vst [vmem:[#allocation2 + $0x840] sm:$0xff] %v814
    %2179 = vst [vmem:[#allocation2 + $0x848] sm:$0xff] %v963
    %2180 = vst [vmem:[#allocation2 + $0x850] sm:$0xff] %v1112
    %2181 = vst [vmem:[#allocation2 + $0x858] sm:$0xff] %v1261
    %2182 = vst [vmem:[#allocation2 + $0x860] sm:$0xff] %v1410
    %2183 = vst [vmem:[#allocation2 + $0x868] sm:$0xff] %v1559
    %2184 = vst [vmem:[#allocation2 + $0x870] sm:$0xff] %v1708
    %2185 = vst [vmem:[#allocation2 + $0x878] sm:$0xff] %v1857
    %2186 = vst [vmem:[#allocation2 + $0x880] sm:$0xff] %v817
    %2187 = vst [vmem:[#allocation2 + $0x888] sm:$0xff] %v966
    %2188 = vst [vmem:[#allocation2 + $0x890] sm:$0xff] %v1115
    %2189 = vst [vmem:[#allocation2 + $0x898] sm:$0xff] %v1264
    %2190 = vst [vmem:[#allocation2 + $0x8a0] sm:$0xff] %v1413
    %2191 = vst [vmem:[#allocation2 + $0x8a8] sm:$0xff] %v1562
    %2192 = vst [vmem:[#allocation2 + $0x8b0] sm:$0xff] %v1711
    %2193 = vst [vmem:[#allocation2 + $0x8b8] sm:$0xff] %v1860
    %2194 = vst [vmem:[#allocation2 + $0x8c0] sm:$0xff] %v819
    %2195 = vst [vmem:[#allocation2 + $0x8c8] sm:$0xff] %v968
    %2196 = vst [vmem:[#allocation2 + $0x8d0] sm:$0xff] %v1117
    %2197 = vst [vmem:[#allocation2 + $0x8d8] sm:$0xff] %v1266
    %2198 = vst [vmem:[#allocation2 + $0x8e0] sm:$0xff] %v1415
    %2199 = vst [vmem:[#allocation2 + $0x8e8] sm:$0xff] %v1564
    %2200 = vst [vmem:[#allocation2 + $0x8f0] sm:$0xff] %v1713
    %2201 = vst [vmem:[#allocation2 + $0x8f8] sm:$0xff] %v1862
    %2202 = vst [vmem:[#allocation2 + $0x900] sm:$0xff] %v822
    %2203 = vst [vmem:[#allocation2 + $0x908] sm:$0xff] %v971
    %2204 = vst [vmem:[#allocation2 + $0x910] sm:$0xff] %v1120
    %2205 = vst [vmem:[#allocation2 + $0x918] sm:$0xff] %v1269
    %2206 = vst [vmem:[#allocation2 + $0x920] sm:$0xff] %v1418
    %2207 = vst [vmem:[#allocation2 + $0x928] sm:$0xff] %v1567
    %2208 = vst [vmem:[#allocation2 + $0x930] sm:$0xff] %v1716
    %2209 = vst [vmem:[#allocation2 + $0x938] sm:$0xff] %v1865
    %2210 = vst [vmem:[#allocation2 + $0x940] sm:$0xff] %v824
    %2211 = vst [vmem:[#allocation2 + $0x948] sm:$0xff] %v973
    %2212 = vst [vmem:[#allocation2 + $0x950] sm:$0xff] %v1122
    %2213 = vst [vmem:[#allocation2 + $0x958] sm:$0xff] %v1271
    %2214 = vst [vmem:[#allocation2 + $0x960] sm:$0xff] %v1420
    %2215 = vst [vmem:[#allocation2 + $0x968] sm:$0xff] %v1569
    %2216 = vst [vmem:[#allocation2 + $0x970] sm:$0xff] %v1718
    %2217 = vst [vmem:[#allocation2 + $0x978] sm:$0xff] %v1867
    %2218 = vst [vmem:[#allocation2 + $0x980] sm:$0xff] %v827
    %2219 = vst [vmem:[#allocation2 + $0x988] sm:$0xff] %v976
    %2220 = vst [vmem:[#allocation2 + $0x990] sm:$0xff] %v1125
    %2221 = vst [vmem:[#allocation2 + $0x998] sm:$0xff] %v1274
    %2222 = vst [vmem:[#allocation2 + $0x9a0] sm:$0xff] %v1423
    %2223 = vst [vmem:[#allocation2 + $0x9a8] sm:$0xff] %v1572
    %2224 = vst [vmem:[#allocation2 + $0x9b0] sm:$0xff] %v1721
    %2225 = vst [vmem:[#allocation2 + $0x9b8] sm:$0xff] %v1870
    %2226 = vst [vmem:[#allocation2 + $0x9c0] sm:$0xff] %v829
    %2227 = vst [vmem:[#allocation2 + $0x9c8] sm:$0xff] %v978
    %2228 = vst [vmem:[#allocation2 + $0x9d0] sm:$0xff] %v1127
    %2229 = vst [vmem:[#allocation2 + $0x9d8] sm:$0xff] %v1276
    %2230 = vst [vmem:[#allocation2 + $0x9e0] sm:$0xff] %v1425
    %2231 = vst [vmem:[#allocation2 + $0x9e8] sm:$0xff] %v1574
    %2232 = vst [vmem:[#allocation2 + $0x9f0] sm:$0xff] %v1723
    %2233 = vst [vmem:[#allocation2 + $0x9f8] sm:$0xff] %v1872
    %2234 = vst [vmem:[#allocation2 + $0xa00] sm:$0xff] %v832
    %2235 = vst [vmem:[#allocation2 + $0xa08] sm:$0xff] %v981
    %2236 = vst [vmem:[#allocation2 + $0xa10] sm:$0xff] %v1130
    %2237 = vst [vmem:[#allocation2 + $0xa18] sm:$0xff] %v1279
    %2238 = vst [vmem:[#allocation2 + $0xa20] sm:$0xff] %v1428
    %2239 = vst [vmem:[#allocation2 + $0xa28] sm:$0xff] %v1577
    %2240 = vst [vmem:[#allocation2 + $0xa30] sm:$0xff] %v1726
    %2241 = vst [vmem:[#allocation2 + $0xa38] sm:$0xff] %v1875
    %2242 = vst [vmem:[#allocation2 + $0xa40] sm:$0xff] %v834
    %2243 = vst [vmem:[#allocation2 + $0xa48] sm:$0xff] %v983
    %2244 = vst [vmem:[#allocation2 + $0xa50] sm:$0xff] %v1132
    %2245 = vst [vmem:[#allocation2 + $0xa58] sm:$0xff] %v1281
    %2246 = vst [vmem:[#allocation2 + $0xa60] sm:$0xff] %v1430
    %2247 = vst [vmem:[#allocation2 + $0xa68] sm:$0xff] %v1579
    %2248 = vst [vmem:[#allocation2 + $0xa70] sm:$0xff] %v1728
    %2249 = vst [vmem:[#allocation2 + $0xa78] sm:$0xff] %v1877
    %2250 = vst [vmem:[#allocation2 + $0xa80] sm:$0xff] %v837
    %2251 = vst [vmem:[#allocation2 + $0xa88] sm:$0xff] %v986
    %2252 = vst [vmem:[#allocation2 + $0xa90] sm:$0xff] %v1135
    %2253 = vst [vmem:[#allocation2 + $0xa98] sm:$0xff] %v1284
    %2254 = vst [vmem:[#allocation2 + $0xaa0] sm:$0xff] %v1433
    %2255 = vst [vmem:[#allocation2 + $0xaa8] sm:$0xff] %v1582
    %2256 = vst [vmem:[#allocation2 + $0xab0] sm:$0xff] %v1731
    %2257 = vst [vmem:[#allocation2 + $0xab8] sm:$0xff] %v1880
    %2258 = vst [vmem:[#allocation2 + $0xac0] sm:$0xff] %v839
    %2259 = vst [vmem:[#allocation2 + $0xac8] sm:$0xff] %v988
    %2260 = vst [vmem:[#allocation2 + $0xad0] sm:$0xff] %v1137
    %2261 = vst [vmem:[#allocation2 + $0xad8] sm:$0xff] %v1286
    %2262 = vst [vmem:[#allocation2 + $0xae0] sm:$0xff] %v1435
    %2263 = vst [vmem:[#allocation2 + $0xae8] sm:$0xff] %v1584
    %2264 = vst [vmem:[#allocation2 + $0xaf0] sm:$0xff] %v1733
    %2265 = vst [vmem:[#allocation2 + $0xaf8] sm:$0xff] %v1882
    %2266 = vst [vmem:[#allocation2 + $0xb00] sm:$0xff] %v842
    %2267 = vst [vmem:[#allocation2 + $0xb08] sm:$0xff] %v991
    %2268 = vst [vmem:[#allocation2 + $0xb10] sm:$0xff] %v1140
    %2269 = vst [vmem:[#allocation2 + $0xb18] sm:$0xff] %v1289
    %2270 = vst [vmem:[#allocation2 + $0xb20] sm:$0xff] %v1438
    %2271 = vst [vmem:[#allocation2 + $0xb28] sm:$0xff] %v1587
    %2272 = vst [vmem:[#allocation2 + $0xb30] sm:$0xff] %v1736
    %2273 = vst [vmem:[#allocation2 + $0xb38] sm:$0xff] %v1885
    %2274 = vst [vmem:[#allocation2 + $0xb40] sm:$0xff] %v844
    %2275 = vst [vmem:[#allocation2 + $0xb48] sm:$0xff] %v993
    %2276 = vst [vmem:[#allocation2 + $0xb50] sm:$0xff] %v1142
    %2277 = vst [vmem:[#allocation2 + $0xb58] sm:$0xff] %v1291
    %2278 = vst [vmem:[#allocation2 + $0xb60] sm:$0xff] %v1440
    %2279 = vst [vmem:[#allocation2 + $0xb68] sm:$0xff] %v1589
    %2280 = vst [vmem:[#allocation2 + $0xb70] sm:$0xff] %v1738
    %2281 = vst [vmem:[#allocation2 + $0xb78] sm:$0xff] %v1887
    %2282 = vst [vmem:[#allocation2 + $0xb80] sm:$0xff] %v847
    %2283 = vst [vmem:[#allocation2 + $0xb88] sm:$0xff] %v996
    %2284 = vst [vmem:[#allocation2 + $0xb90] sm:$0xff] %v1145
    %2285 = vst [vmem:[#allocation2 + $0xb98] sm:$0xff] %v1294
    %2286 = vst [vmem:[#allocation2 + $0xba0] sm:$0xff] %v1443
    %2287 = vst [vmem:[#allocation2 + $0xba8] sm:$0xff] %v1592
    %2288 = vst [vmem:[#allocation2 + $0xbb0] sm:$0xff] %v1741
    %2289 = vst [vmem:[#allocation2 + $0xbb8] sm:$0xff] %v1890
    %2290 = vst [vmem:[#allocation2 + $0xbc0] sm:$0xff] %v849
    %2291 = vst [vmem:[#allocation2 + $0xbc8] sm:$0xff] %v998
    %2292 = vst [vmem:[#allocation2 + $0xbd0] sm:$0xff] %v1147
    %2293 = vst [vmem:[#allocation2 + $0xbd8] sm:$0xff] %v1296
    %2294 = vst [vmem:[#allocation2 + $0xbe0] sm:$0xff] %v1445
    %2295 = vst [vmem:[#allocation2 + $0xbe8] sm:$0xff] %v1594
    %2296 = vst [vmem:[#allocation2 + $0xbf0] sm:$0xff] %v1743
    %2297 = vst [vmem:[#allocation2 + $0xbf8] sm:$0xff] %v1892
    %2298 = vst [vmem:[#allocation2 + $0xc00] sm:$0xff] %v852
    %2299 = vst [vmem:[#allocation2 + $0xc08] sm:$0xff] %v1001
    %2300 = vst [vmem:[#allocation2 + $0xc10] sm:$0xff] %v1150
    %2301 = vst [vmem:[#allocation2 + $0xc18] sm:$0xff] %v1299
    %2302 = vst [vmem:[#allocation2 + $0xc20] sm:$0xff] %v1448
    %2303 = vst [vmem:[#allocation2 + $0xc28] sm:$0xff] %v1597
    %2304 = vst [vmem:[#allocation2 + $0xc30] sm:$0xff] %v1746
    %2305 = vst [vmem:[#allocation2 + $0xc38] sm:$0xff] %v1895
    %2306 = vst [vmem:[#allocation2 + $0xc40] sm:$0xff] %v854
    %2307 = vst [vmem:[#allocation2 + $0xc48] sm:$0xff] %v1003
    %2308 = vst [vmem:[#allocation2 + $0xc50] sm:$0xff] %v1152
    %2309 = vst [vmem:[#allocation2 + $0xc58] sm:$0xff] %v1301
    %2310 = vst [vmem:[#allocation2 + $0xc60] sm:$0xff] %v1450
    %2311 = vst [vmem:[#allocation2 + $0xc68] sm:$0xff] %v1599
    %2312 = vst [vmem:[#allocation2 + $0xc70] sm:$0xff] %v1748
    %2313 = vst [vmem:[#allocation2 + $0xc78] sm:$0xff] %v1897
    %2314 = vst [vmem:[#allocation2 + $0xc80] sm:$0xff] %v857
    %2315 = vst [vmem:[#allocation2 + $0xc88] sm:$0xff] %v1006
    %2316 = vst [vmem:[#allocation2 + $0xc90] sm:$0xff] %v1155
    %2317 = vst [vmem:[#allocation2 + $0xc98] sm:$0xff] %v1304
    %2318 = vst [vmem:[#allocation2 + $0xca0] sm:$0xff] %v1453
    %2319 = vst [vmem:[#allocation2 + $0xca8] sm:$0xff] %v1602
    %2320 = vst [vmem:[#allocation2 + $0xcb0] sm:$0xff] %v1751
    %2321 = vst [vmem:[#allocation2 + $0xcb8] sm:$0xff] %v1900
    %2322 = vst [vmem:[#allocation2 + $0xcc0] sm:$0xff] %v859
    %2323 = vst [vmem:[#allocation2 + $0xcc8] sm:$0xff] %v1008
    %2324 = vst [vmem:[#allocation2 + $0xcd0] sm:$0xff] %v1157
    %2325 = vst [vmem:[#allocation2 + $0xcd8] sm:$0xff] %v1306
    %2326 = vst [vmem:[#allocation2 + $0xce0] sm:$0xff] %v1455
    %2327 = vst [vmem:[#allocation2 + $0xce8] sm:$0xff] %v1604
    %2328 = vst [vmem:[#allocation2 + $0xcf0] sm:$0xff] %v1753
    %2329 = vst [vmem:[#allocation2 + $0xcf8] sm:$0xff] %v1902
    %2330 = vst [vmem:[#allocation2 + $0xd00] sm:$0xff] %v862
    %2331 = vst [vmem:[#allocation2 + $0xd08] sm:$0xff] %v1011
    %2332 = vst [vmem:[#allocation2 + $0xd10] sm:$0xff] %v1160
    %2333 = vst [vmem:[#allocation2 + $0xd18] sm:$0xff] %v1309
    %2334 = vst [vmem:[#allocation2 + $0xd20] sm:$0xff] %v1458
    %2335 = vst [vmem:[#allocation2 + $0xd28] sm:$0xff] %v1607
    %2336 = vst [vmem:[#allocation2 + $0xd30] sm:$0xff] %v1756
    %2337 = vst [vmem:[#allocation2 + $0xd38] sm:$0xff] %v1905
    %2338 = vst [vmem:[#allocation2 + $0xd40] sm:$0xff] %v864
    %2339 = vst [vmem:[#allocation2 + $0xd48] sm:$0xff] %v1013
    %2340 = vst [vmem:[#allocation2 + $0xd50] sm:$0xff] %v1162
    %2341 = vst [vmem:[#allocation2 + $0xd58] sm:$0xff] %v1311
    %2342 = vst [vmem:[#allocation2 + $0xd60] sm:$0xff] %v1460
    %2343 = vst [vmem:[#allocation2 + $0xd68] sm:$0xff] %v1609
    %2344 = vst [vmem:[#allocation2 + $0xd70] sm:$0xff] %v1758
    %2345 = vst [vmem:[#allocation2 + $0xd78] sm:$0xff] %v1907
    %2346 = vst [vmem:[#allocation2 + $0xd80] sm:$0xff] %v867
    %2347 = vst [vmem:[#allocation2 + $0xd88] sm:$0xff] %v1016
    %2348 = vst [vmem:[#allocation2 + $0xd90] sm:$0xff] %v1165
    %2349 = vst [vmem:[#allocation2 + $0xd98] sm:$0xff] %v1314
    %2350 = vst [vmem:[#allocation2 + $0xda0] sm:$0xff] %v1463
    %2351 = vst [vmem:[#allocation2 + $0xda8] sm:$0xff] %v1612
    %2352 = vst [vmem:[#allocation2 + $0xdb0] sm:$0xff] %v1761
    %2353 = vst [vmem:[#allocation2 + $0xdb8] sm:$0xff] %v1910
    %2354 = vst [vmem:[#allocation2 + $0xdc0] sm:$0xff] %v869
    %2355 = vst [vmem:[#allocation2 + $0xdc8] sm:$0xff] %v1018
    %2356 = vst [vmem:[#allocation2 + $0xdd0] sm:$0xff] %v1167
    %2357 = vst [vmem:[#allocation2 + $0xdd8] sm:$0xff] %v1316
    %2358 = vst [vmem:[#allocation2 + $0xde0] sm:$0xff] %v1465
    %2359 = vst [vmem:[#allocation2 + $0xde8] sm:$0xff] %v1614
    %2360 = vst [vmem:[#allocation2 + $0xdf0] sm:$0xff] %v1763
    %2361 = vst [vmem:[#allocation2 + $0xdf8] sm:$0xff] %v1912
    %v2362 = vld [vmem:[#allocation5] sm:$0xf]
    %v2363 = vld [vmem:[#allocation2] sm:$0xff]
    %v2364 = vld [vmem:[#allocation2 + $0x8] sm:$0xff]
    %v2365 = vld [vmem:[#allocation2 + $0x10] sm:$0xff]
    %v2366 = vld [vmem:[#allocation2 + $0x18] sm:$0xff]
    %v2367 = vld [vmem:[#allocation2 + $0x20] sm:$0xff]
    %v2368 = vld [vmem:[#allocation2 + $0x28] sm:$0xff]
    %v2369 = vld [vmem:[#allocation2 + $0x30] sm:$0xff]
    %v2370 = vld [vmem:[#allocation2 + $0x38] sm:$0xff]
    %v2371 = vld [vmem:[#allocation2 + $0x40] sm:$0xff]
    %v2372 = vld [vmem:[#allocation2 + $0x48] sm:$0xff]
    %v2373 = vld [vmem:[#allocation2 + $0x50] sm:$0xff]
    %v2374 = vld [vmem:[#allocation2 + $0x58] sm:$0xff]
    %v2375 = vld [vmem:[#allocation2 + $0x60] sm:$0xff]
    %v2376 = vld [vmem:[#allocation2 + $0x68] sm:$0xff]
    %v2377 = vld [vmem:[#allocation2 + $0x70] sm:$0xff]
    %v2378 = vld [vmem:[#allocation2 + $0x78] sm:$0xff]
    %v2379 = vld [vmem:[#allocation2 + $0x80] sm:$0xff]
    %v2380 = vld [vmem:[#allocation2 + $0x88] sm:$0xff]
    %v2381 = vld [vmem:[#allocation2 + $0x90] sm:$0xff]
    %v2382 = vld [vmem:[#allocation2 + $0x98] sm:$0xff]
    %v2383 = vld [vmem:[#allocation2 + $0xa0] sm:$0xff]
    %v2384 = vld [vmem:[#allocation2 + $0xa8] sm:$0xff]
    %v2385 = vld [vmem:[#allocation2 + $0xb0] sm:$0xff]
    %v2386 = vld [vmem:[#allocation2 + $0xb8] sm:$0xff]
    %v2387 = vld [vmem:[#allocation2 + $0xc0] sm:$0xff]
    %v2388 = vld [vmem:[#allocation2 + $0xc8] sm:$0xff]
    %v2389 = vld [vmem:[#allocation2 + $0xd0] sm:$0xff]
    %v2390 = vld [vmem:[#allocation2 + $0xd8] sm:$0xff]
    %v2391 = vld [vmem:[#allocation2 + $0xe0] sm:$0xff]
    %v2392 = vld [vmem:[#allocation2 + $0xe8] sm:$0xff]
    %v2393 = vld [vmem:[#allocation2 + $0xf0] sm:$0xff]
    %v2394 = vld [vmem:[#allocation2 + $0xf8] sm:$0xff]
    %v2395 = vmax.f32 %v2363, %v2379
    %v2396 = vmax.f32 %v2364, %v2380
    %v2397 = vmax.f32 %v2365, %v2381
    %v2398 = vmax.f32 %v2366, %v2382
    %v2399 = vmax.f32 %v2367, %v2383
    %v2400 = vmax.f32 %v2368, %v2384
    %v2401 = vmax.f32 %v2369, %v2385
    %v2402 = vmax.f32 %v2370, %v2386
    %v2403 = vmax.f32 %v2371, %v2387
    %v2404 = vmax.f32 %v2372, %v2388
    %v2405 = vmax.f32 %v2373, %v2389
    %v2406 = vmax.f32 %v2374, %v2390
    %v2407 = vmax.f32 %v2375, %v2391
    %v2408 = vmax.f32 %v2376, %v2392
    %v2409 = vmax.f32 %v2377, %v2393
    %v2410 = vmax.f32 %v2378, %v2394
    %v2411 = vmax.f32 %v2395, %v2399
    %v2412 = vmax.f32 %v2396, %v2400
    %v2413 = vmax.f32 %v2397, %v2401
    %v2414 = vmax.f32 %v2398, %v2402
    %v2415 = vmax.f32 %v2403, %v2407
    %v2416 = vmax.f32 %v2404, %v2408
    %v2417 = vmax.f32 %v2405, %v2409
    %v2418 = vmax.f32 %v2406, %v2410
    %v2420 = vperm.slane %v2362, 0
    %v2421 = vperm.slane %v2362, 1
    %v2422 = vperm.slane %v2362, 2
    %v2423 = vperm.slane %v2362, 3
    %v2428 = vadd.f32 %v2411, %v2420
    %v2429 = vadd.f32 %v2412, %v2421
    %v2430 = vadd.f32 %v2413, %v2422
    %v2431 = vadd.f32 %v2414, %v2423
    %v2432 = vadd.f32 %v2415, %v2420
    %v2433 = vadd.f32 %v2416, %v2421
    %v2434 = vadd.f32 %v2417, %v2422
    %v2435 = vadd.f32 %v2418, %v2423
    %v2436 = vmax.f32 %v2428, 0.0
    %v2437 = vmax.f32 %v2429, 0.0
    %v2438 = vmax.f32 %v2430, 0.0
    %v2439 = vmax.f32 %v2431, 0.0
    %v2440 = vmax.f32 %v2432, 0.0
    %v2441 = vmax.f32 %v2433, 0.0
    %v2442 = vmax.f32 %v2434, 0.0
    %v2443 = vmax.f32 %v2435, 0.0
    %v2444 = vpack.c.bf16 %v2440, %v2436
    %v2445 = vpack.c.bf16 %v2441, %v2437
    %v2446 = vpack.c.bf16 %v2442, %v2438
    %v2447 = vpack.c.bf16 %v2443, %v2439
    %v2448 = vld [vmem:[#allocation7] sm:$0xf]
    %v2449 = vld [vmem:[#allocation7 + $0x4] sm:$0xf]
    %v2450 = vld [vmem:[#allocation7 + $0x8] sm:$0xf]
    %v2451 = vld [vmem:[#allocation7 + $0xc] sm:$0xf]
    %v2452 = vld [vmem:[#allocation7 + $0x10] sm:$0xf]
    %v2453 = vld [vmem:[#allocation7 + $0x14] sm:$0xf]
    %v2454 = vld [vmem:[#allocation7 + $0x18] sm:$0xf]
    %v2455 = vld [vmem:[#allocation7 + $0x1c] sm:$0xf]
    %v2456 = vld [vmem:[#allocation7 + $0x20] sm:$0xf]
    %v2457 = vld [vmem:[#allocation7 + $0x24] sm:$0xf]
    %v2458 = vld [vmem:[#allocation7 + $0x28] sm:$0xf]
    %v2459 = vld [vmem:[#allocation7 + $0x2c] sm:$0xf]
    %v2460 = vld [vmem:[#allocation7 + $0x30] sm:$0xf]
    %v2461 = vld [vmem:[#allocation7 + $0x34] sm:$0xf]
    %v2462 = vld [vmem:[#allocation7 + $0x38] sm:$0xf]
    %v2463 = vld [vmem:[#allocation7 + $0x3c] sm:$0xf]
    %v2464 = vld [vmem:[#allocation7 + $0x40] sm:$0xf]
    %v2465 = vld [vmem:[#allocation7 + $0x44] sm:$0xf]
    %v2466 = vld [vmem:[#allocation7 + $0x48] sm:$0xf]
    %v2467 = vld [vmem:[#allocation7 + $0x4c] sm:$0xf]
    %v2468 = vld [vmem:[#allocation7 + $0x50] sm:$0xf]
    %v2469 = vld [vmem:[#allocation7 + $0x54] sm:$0xf]
    %v2470 = vld [vmem:[#allocation7 + $0x58] sm:$0xf]
    %v2471 = vld [vmem:[#allocation7 + $0x5c] sm:$0xf]
    %v2472 = vld [vmem:[#allocation7 + $0x60] sm:$0xf]
    %v2473 = vld [vmem:[#allocation7 + $0x64] sm:$0xf]
    %v2474 = vld [vmem:[#allocation7 + $0x68] sm:$0xf]
    %v2475 = vld [vmem:[#allocation7 + $0x6c] sm:$0xf]
    %v2476 = vld [vmem:[#allocation7 + $0x70] sm:$0xf]
    %v2477 = vld [vmem:[#allocation7 + $0x74] sm:$0xf]
    %v2478 = vld [vmem:[#allocation7 + $0x78] sm:$0xf]
    %v2479 = vld [vmem:[#allocation7 + $0x7c] sm:$0xf]
    %v2480 = vld [vmem:[#allocation7 + $0x80] sm:$0xf]
    %v2481 = vld [vmem:[#allocation7 + $0x84] sm:$0xf]
    %v2482 = vld [vmem:[#allocation7 + $0x88] sm:$0xf]
    %v2483 = vld [vmem:[#allocation7 + $0x8c] sm:$0xf]
    %v2484 = vld [vmem:[#allocation7 + $0x90] sm:$0xf]
    %v2485 = vld [vmem:[#allocation7 + $0x94] sm:$0xf]
    %v2486 = vld [vmem:[#allocation7 + $0x98] sm:$0xf]
    %v2487 = vld [vmem:[#allocation7 + $0x9c] sm:$0xf]
    %v2488 = vld [vmem:[#allocation7 + $0xa0] sm:$0xf]
    %v2489 = vld [vmem:[#allocation7 + $0xa4] sm:$0xf]
    %v2490 = vld [vmem:[#allocation7 + $0xa8] sm:$0xf]
    %v2491 = vld [vmem:[#allocation7 + $0xac] sm:$0xf]
    %v2492 = vld [vmem:[#allocation7 + $0xb0] sm:$0xf]
    %v2493 = vld [vmem:[#allocation7 + $0xb4] sm:$0xf]
    %v2494 = vld [vmem:[#allocation7 + $0xb8] sm:$0xf]
    %v2495 = vld [vmem:[#allocation7 + $0xbc] sm:$0xf]
    %v2496 = vld [vmem:[#allocation7 + $0xc0] sm:$0xf]
    %v2497 = vld [vmem:[#allocation7 + $0xc4] sm:$0xf]
    %v2498 = vld [vmem:[#allocation7 + $0xc8] sm:$0xf]
    %v2499 = vld [vmem:[#allocation7 + $0xcc] sm:$0xf]
    %v2500 = vld [vmem:[#allocation7 + $0xd0] sm:$0xf]
    %v2501 = vld [vmem:[#allocation7 + $0xd4] sm:$0xf]
    %v2502 = vld [vmem:[#allocation7 + $0xd8] sm:$0xf]
    %v2503 = vld [vmem:[#allocation7 + $0xdc] sm:$0xf]
    %v2504 = vld [vmem:[#allocation7 + $0xe0] sm:$0xf]
    %v2505 = vld [vmem:[#allocation7 + $0xe4] sm:$0xf]
    %v2506 = vld [vmem:[#allocation7 + $0xe8] sm:$0xf]
    %v2507 = vld [vmem:[#allocation7 + $0xec] sm:$0xf]
    %v2508 = vld [vmem:[#allocation7 + $0xf0] sm:$0xf]
    %v2509 = vld [vmem:[#allocation7 + $0xf4] sm:$0xf]
    %v2510 = vld [vmem:[#allocation7 + $0xf8] sm:$0xf]
    %v2511 = vld [vmem:[#allocation7 + $0xfc] sm:$0xf]
    %v2512 = vld [vmem:[#allocation2 + $0x100] sm:$0xff]
    %v2513 = vld [vmem:[#allocation2 + $0x108] sm:$0xff]
    %v2514 = vld [vmem:[#allocation2 + $0x110] sm:$0xff]
    %v2515 = vld [vmem:[#allocation2 + $0x118] sm:$0xff]
    %v2516 = vld [vmem:[#allocation2 + $0x120] sm:$0xff]
    %v2517 = vld [vmem:[#allocation2 + $0x128] sm:$0xff]
    %v2518 = vld [vmem:[#allocation2 + $0x130] sm:$0xff]
    %v2519 = vld [vmem:[#allocation2 + $0x138] sm:$0xff]
    %v2520 = vld [vmem:[#allocation2 + $0x140] sm:$0xff]
    %v2521 = vld [vmem:[#allocation2 + $0x148] sm:$0xff]
    %v2522 = vld [vmem:[#allocation2 + $0x150] sm:$0xff]
    %v2523 = vld [vmem:[#allocation2 + $0x158] sm:$0xff]
    %v2524 = vld [vmem:[#allocation2 + $0x160] sm:$0xff]
    %v2525 = vld [vmem:[#allocation2 + $0x168] sm:$0xff]
    %v2526 = vld [vmem:[#allocation2 + $0x170] sm:$0xff]
    %v2527 = vld [vmem:[#allocation2 + $0x178] sm:$0xff]
    %v2528 = vld [vmem:[#allocation2 + $0x180] sm:$0xff]
    %v2529 = vld [vmem:[#allocation2 + $0x188] sm:$0xff]
    %v2530 = vld [vmem:[#allocation2 + $0x190] sm:$0xff]
    %v2531 = vld [vmem:[#allocation2 + $0x198] sm:$0xff]
    %v2532 = vld [vmem:[#allocation2 + $0x1a0] sm:$0xff]
    %v2533 = vld [vmem:[#allocation2 + $0x1a8] sm:$0xff]
    %v2534 = vld [vmem:[#allocation2 + $0x1b0] sm:$0xff]
    %v2535 = vld [vmem:[#allocation2 + $0x1b8] sm:$0xff]
    %v2536 = vld [vmem:[#allocation2 + $0x1c0] sm:$0xff]
    %v2537 = vld [vmem:[#allocation2 + $0x1c8] sm:$0xff]
    %v2538 = vld [vmem:[#allocation2 + $0x1d0] sm:$0xff]
    %v2539 = vld [vmem:[#allocation2 + $0x1d8] sm:$0xff]
    %v2540 = vld [vmem:[#allocation2 + $0x1e0] sm:$0xff]
    %v2541 = vld [vmem:[#allocation2 + $0x1e8] sm:$0xff]
    %v2542 = vld [vmem:[#allocation2 + $0x1f0] sm:$0xff]
    %v2543 = vld [vmem:[#allocation2 + $0x1f8] sm:$0xff]
    %v2544 = vmax.f32 %v2512, %v2528
    %v2545 = vmax.f32 %v2513, %v2529
    %v2546 = vmax.f32 %v2514, %v2530
    %v2547 = vmax.f32 %v2515, %v2531
    %v2548 = vmax.f32 %v2516, %v2532
    %v2549 = vmax.f32 %v2517, %v2533
    %v2550 = vmax.f32 %v2518, %v2534
    %v2551 = vmax.f32 %v2519, %v2535
    %v2552 = vmax.f32 %v2520, %v2536
    %v2553 = vmax.f32 %v2521, %v2537
    %v2554 = vmax.f32 %v2522, %v2538
    %v2555 = vmax.f32 %v2523, %v2539
    %v2556 = vmax.f32 %v2524, %v2540
    %v2557 = vmax.f32 %v2525, %v2541
    %v2558 = vmax.f32 %v2526, %v2542
    %v2559 = vmax.f32 %v2527, %v2543
    %v2560 = vmax.f32 %v2544, %v2548
    %v2561 = vmax.f32 %v2545, %v2549
    %v2562 = vmax.f32 %v2546, %v2550
    %v2563 = vmax.f32 %v2547, %v2551
    %v2564 = vmax.f32 %v2552, %v2556
    %v2565 = vmax.f32 %v2553, %v2557
    %v2566 = vmax.f32 %v2554, %v2558
    %v2567 = vmax.f32 %v2555, %v2559
    %v2568 = vadd.f32 %v2560, %v2420
    %v2569 = vadd.f32 %v2561, %v2421
    %v2570 = vadd.f32 %v2562, %v2422
    %v2571 = vadd.f32 %v2563, %v2423
    %v2572 = vadd.f32 %v2564, %v2420
    %v2573 = vadd.f32 %v2565, %v2421
    %v2574 = vadd.f32 %v2566, %v2422
    %v2575 = vadd.f32 %v2567, %v2423
    %v2576 = vmax.f32 %v2568, 0.0
    %v2577 = vmax.f32 %v2569, 0.0
    %v2578 = vmax.f32 %v2570, 0.0
    %v2579 = vmax.f32 %v2571, 0.0
    %v2580 = vmax.f32 %v2572, 0.0
    %v2581 = vmax.f32 %v2573, 0.0
    %v2582 = vmax.f32 %v2574, 0.0
    %v2583 = vmax.f32 %v2575, 0.0
    %v2584 = vpack.c.bf16 %v2580, %v2576
    %v2585 = vpack.c.bf16 %v2581, %v2577
    %v2586 = vpack.c.bf16 %v2582, %v2578
    %v2587 = vpack.c.bf16 %v2583, %v2579
    %s2588 = scalar_lea.vmem [#allocation7], 256
    %v2589 = vld [vmem:[%s2588] sm:$0xf]
    %v2590 = vld [vmem:[%s2588 + $0x4] sm:$0xf]
    %v2591 = vld [vmem:[%s2588 + $0x8] sm:$0xf]
    %v2592 = vld [vmem:[%s2588 + $0xc] sm:$0xf]
    %v2593 = vld [vmem:[%s2588 + $0x10] sm:$0xf]
    %v2594 = vld [vmem:[%s2588 + $0x14] sm:$0xf]
    %v2595 = vld [vmem:[%s2588 + $0x18] sm:$0xf]
    %v2596 = vld [vmem:[%s2588 + $0x1c] sm:$0xf]
    %v2597 = vld [vmem:[%s2588 + $0x20] sm:$0xf]
    %v2598 = vld [vmem:[%s2588 + $0x24] sm:$0xf]
    %v2599 = vld [vmem:[%s2588 + $0x28] sm:$0xf]
    %v2600 = vld [vmem:[%s2588 + $0x2c] sm:$0xf]
    %v2601 = vld [vmem:[%s2588 + $0x30] sm:$0xf]
    %v2602 = vld [vmem:[%s2588 + $0x34] sm:$0xf]
    %v2603 = vld [vmem:[%s2588 + $0x38] sm:$0xf]
    %v2604 = vld [vmem:[%s2588 + $0x3c] sm:$0xf]
    %v2605 = vld [vmem:[%s2588 + $0x40] sm:$0xf]
    %v2606 = vld [vmem:[%s2588 + $0x44] sm:$0xf]
    %v2607 = vld [vmem:[%s2588 + $0x48] sm:$0xf]
    %v2608 = vld [vmem:[%s2588 + $0x4c] sm:$0xf]
    %v2609 = vld [vmem:[%s2588 + $0x50] sm:$0xf]
    %v2610 = vld [vmem:[%s2588 + $0x54] sm:$0xf]
    %v2611 = vld [vmem:[%s2588 + $0x58] sm:$0xf]
    %v2612 = vld [vmem:[%s2588 + $0x5c] sm:$0xf]
    %v2613 = vld [vmem:[%s2588 + $0x60] sm:$0xf]
    %v2614 = vld [vmem:[%s2588 + $0x64] sm:$0xf]
    %v2615 = vld [vmem:[%s2588 + $0x68] sm:$0xf]
    %v2616 = vld [vmem:[%s2588 + $0x6c] sm:$0xf]
    %v2617 = vld [vmem:[%s2588 + $0x70] sm:$0xf]
    %v2618 = vld [vmem:[%s2588 + $0x74] sm:$0xf]
    %v2619 = vld [vmem:[%s2588 + $0x78] sm:$0xf]
    %v2620 = vld [vmem:[%s2588 + $0x7c] sm:$0xf]
    %v2621 = vld [vmem:[%s2588 + $0x80] sm:$0xf]
    %v2622 = vld [vmem:[%s2588 + $0x84] sm:$0xf]
    %v2623 = vld [vmem:[%s2588 + $0x88] sm:$0xf]
    %v2624 = vld [vmem:[%s2588 + $0x8c] sm:$0xf]
    %v2625 = vld [vmem:[%s2588 + $0x90] sm:$0xf]
    %v2626 = vld [vmem:[%s2588 + $0x94] sm:$0xf]
    %v2627 = vld [vmem:[%s2588 + $0x98] sm:$0xf]
    %v2628 = vld [vmem:[%s2588 + $0x9c] sm:$0xf]
    %v2629 = vld [vmem:[%s2588 + $0xa0] sm:$0xf]
    %v2630 = vld [vmem:[%s2588 + $0xa4] sm:$0xf]
    %v2631 = vld [vmem:[%s2588 + $0xa8] sm:$0xf]
    %v2632 = vld [vmem:[%s2588 + $0xac] sm:$0xf]
    %v2633 = vld [vmem:[%s2588 + $0xb0] sm:$0xf]
    %v2634 = vld [vmem:[%s2588 + $0xb4] sm:$0xf]
    %v2635 = vld [vmem:[%s2588 + $0xb8] sm:$0xf]
    %v2636 = vld [vmem:[%s2588 + $0xbc] sm:$0xf]
    %v2637 = vld [vmem:[%s2588 + $0xc0] sm:$0xf]
    %v2638 = vld [vmem:[%s2588 + $0xc4] sm:$0xf]
    %v2639 = vld [vmem:[%s2588 + $0xc8] sm:$0xf]
    %v2640 = vld [vmem:[%s2588 + $0xcc] sm:$0xf]
    %v2641 = vld [vmem:[%s2588 + $0xd0] sm:$0xf]
    %v2642 = vld [vmem:[%s2588 + $0xd4] sm:$0xf]
    %v2643 = vld [vmem:[%s2588 + $0xd8] sm:$0xf]
    %v2644 = vld [vmem:[%s2588 + $0xdc] sm:$0xf]
    %v2645 = vld [vmem:[%s2588 + $0xe0] sm:$0xf]
    %v2646 = vld [vmem:[%s2588 + $0xe4] sm:$0xf]
    %v2647 = vld [vmem:[%s2588 + $0xe8] sm:$0xf]
    %v2648 = vld [vmem:[%s2588 + $0xec] sm:$0xf]
    %v2649 = vld [vmem:[%s2588 + $0xf0] sm:$0xf]
    %v2650 = vld [vmem:[%s2588 + $0xf4] sm:$0xf]
    %v2651 = vld [vmem:[%s2588 + $0xf8] sm:$0xf]
    %v2652 = vld [vmem:[%s2588 + $0xfc] sm:$0xf]
    %v2717 = vunpack.c.l.b16 %v2589
    %v2718 = vunpack.c.l.b16 %v2590
    %v2719 = vunpack.c.l.b16 %v2591
    %v2720 = vunpack.c.l.b16 %v2592
    %v2721 = vunpack.c.l.b16 %v2593
    %v2722 = vunpack.c.l.b16 %v2594
    %v2723 = vunpack.c.l.b16 %v2595
    %v2724 = vunpack.c.l.b16 %v2596
    %v2725 = vunpack.c.l.b16 %v2597
    %v2726 = vunpack.c.l.b16 %v2598
    %v2727 = vunpack.c.l.b16 %v2599
    %v2728 = vunpack.c.l.b16 %v2600
    %v2729 = vunpack.c.l.b16 %v2601
    %v2730 = vunpack.c.l.b16 %v2602
    %v2731 = vunpack.c.l.b16 %v2603
    %v2732 = vunpack.c.l.b16 %v2604
    %v2733 = vunpack.c.l.b16 %v2605
    %v2734 = vunpack.c.l.b16 %v2606
    %v2735 = vunpack.c.l.b16 %v2607
    %v2736 = vunpack.c.l.b16 %v2608
    %v2737 = vunpack.c.l.b16 %v2609
    %v2738 = vunpack.c.l.b16 %v2610
    %v2739 = vunpack.c.l.b16 %v2611
    %v2740 = vunpack.c.l.b16 %v2612
    %v2741 = vunpack.c.l.b16 %v2613
    %v2742 = vunpack.c.l.b16 %v2614
    %v2743 = vunpack.c.l.b16 %v2615
    %v2744 = vunpack.c.l.b16 %v2616
    %v2745 = vunpack.c.l.b16 %v2617
    %v2746 = vunpack.c.l.b16 %v2618
    %v2747 = vunpack.c.l.b16 %v2619
    %v2748 = vunpack.c.l.b16 %v2620
    %v2749 = vunpack.c.l.b16 %v2621
    %v2750 = vunpack.c.l.b16 %v2622
    %v2751 = vunpack.c.l.b16 %v2623
    %v2752 = vunpack.c.l.b16 %v2624
    %v2753 = vunpack.c.l.b16 %v2625
    %v2754 = vunpack.c.l.b16 %v2626
    %v2755 = vunpack.c.l.b16 %v2627
    %v2756 = vunpack.c.l.b16 %v2628
    %v2757 = vunpack.c.l.b16 %v2629
    %v2758 = vunpack.c.l.b16 %v2630
    %v2759 = vunpack.c.l.b16 %v2631
    %v2760 = vunpack.c.l.b16 %v2632
    %v2761 = vunpack.c.l.b16 %v2633
    %v2762 = vunpack.c.l.b16 %v2634
    %v2763 = vunpack.c.l.b16 %v2635
    %v2764 = vunpack.c.l.b16 %v2636
    %v2765 = vunpack.c.l.b16 %v2637
    %v2766 = vunpack.c.l.b16 %v2638
    %v2767 = vunpack.c.l.b16 %v2639
    %v2768 = vunpack.c.l.b16 %v2640
    %v2769 = vunpack.c.l.b16 %v2641
    %v2770 = vunpack.c.l.b16 %v2642
    %v2771 = vunpack.c.l.b16 %v2643
    %v2772 = vunpack.c.l.b16 %v2644
    %v2773 = vunpack.c.l.b16 %v2645
    %v2774 = vunpack.c.l.b16 %v2646
    %v2775 = vunpack.c.l.b16 %v2647
    %v2776 = vunpack.c.l.b16 %v2648
    %v2777 = vunpack.c.l.b16 %v2649
    %v2778 = vunpack.c.l.b16 %v2650
    %v2779 = vunpack.c.l.b16 %v2651
    %v2780 = vunpack.c.l.b16 %v2652
    %v2781 = vpack.c.b16 %v2718, %v2717
    %v2782 = vpack.c.b16 %v2720, %v2719
    %v2783 = vpack.c.b16 %v2722, %v2721
    %v2784 = vpack.c.b16 %v2724, %v2723
    %v2785 = vpack.c.b16 %v2726, %v2725
    %v2786 = vpack.c.b16 %v2728, %v2727
    %v2787 = vpack.c.b16 %v2730, %v2729
    %v2788 = vpack.c.b16 %v2732, %v2731
    %v2789 = vpack.c.b16 %v2734, %v2733
    %v2790 = vpack.c.b16 %v2736, %v2735
    %v2791 = vpack.c.b16 %v2738, %v2737
    %v2792 = vpack.c.b16 %v2740, %v2739
    %v2793 = vpack.c.b16 %v2742, %v2741
    %v2794 = vpack.c.b16 %v2744, %v2743
    %v2795 = vpack.c.b16 %v2746, %v2745
    %v2796 = vpack.c.b16 %v2748, %v2747
    %v2797 = vpack.c.b16 %v2750, %v2749
    %v2798 = vpack.c.b16 %v2752, %v2751
    %v2799 = vpack.c.b16 %v2754, %v2753
    %v2800 = vpack.c.b16 %v2756, %v2755
    %v2801 = vpack.c.b16 %v2758, %v2757
    %v2802 = vpack.c.b16 %v2760, %v2759
    %v2803 = vpack.c.b16 %v2762, %v2761
    %v2804 = vpack.c.b16 %v2764, %v2763
    %v2805 = vpack.c.b16 %v2766, %v2765
    %v2806 = vpack.c.b16 %v2768, %v2767
    %v2807 = vpack.c.b16 %v2770, %v2769
    %v2808 = vpack.c.b16 %v2772, %v2771
    %v2809 = vpack.c.b16 %v2774, %v2773
    %v2810 = vpack.c.b16 %v2776, %v2775
    %v2811 = vpack.c.b16 %v2778, %v2777
    %v2812 = vpack.c.b16 %v2780, %v2779
    %2845 = vmatpush.bf16.msra.mxu0 %v2788
    %2846 = vmatpush.bf16.msra.mxu0 %v2787
    %2847 = vmatpush.bf16.msra.mxu0 %v2786
    %2848 = vmatpush.bf16.msra.mxu0 %v2785
    %2849 = vmatpush.bf16.msra.mxu0 %v2784
    %2850 = vmatpush.bf16.msra.mxu0 %v2783
    %2851 = vmatpush.bf16.msra.mxu0 %v2782
    %2852 = vmatpush.bf16.msra.mxu0 %v2781
    %2853 = vmatmul.bf16.gmra.mxu0 %v2584
    %v2854 = vpop.f32.mrf.mxu0
    %v2855 = vadd.f32 0.0, %v2854
    %v2856 = vpop.f32.mrf.mxu0
    %v2857 = vadd.f32 0.0, %v2856
    %2858 = vdwg.mxu0
    %2859 = vmatpush.bf16.msra.mxu0 %v2796
    %2860 = vmatpush.bf16.msra.mxu0 %v2795
    %2861 = vmatpush.bf16.msra.mxu0 %v2794
    %2862 = vmatpush.bf16.msra.mxu0 %v2793
    %2863 = vmatpush.bf16.msra.mxu0 %v2792
    %2864 = vmatpush.bf16.msra.mxu0 %v2791
    %2865 = vmatpush.bf16.msra.mxu0 %v2790
    %2866 = vmatpush.bf16.msra.mxu0 %v2789
    %2867 = vmatmul.bf16.gmra.mxu0 %v2585
    %v2868 = vpop.f32.mrf.mxu0
    %v2869 = vadd.f32 %v2855, %v2868
    %v2870 = vpop.f32.mrf.mxu0
    %v2871 = vadd.f32 %v2857, %v2870
    %2872 = vdwg.mxu0
    %2873 = vmatpush.bf16.msra.mxu0 %v2804
    %2874 = vmatpush.bf16.msra.mxu0 %v2803
    %2875 = vmatpush.bf16.msra.mxu0 %v2802
    %2876 = vmatpush.bf16.msra.mxu0 %v2801
    %2877 = vmatpush.bf16.msra.mxu0 %v2800
    %2878 = vmatpush.bf16.msra.mxu0 %v2799
    %2879 = vmatpush.bf16.msra.mxu0 %v2798
    %2880 = vmatpush.bf16.msra.mxu0 %v2797
    %2881 = vmatmul.bf16.gmra.mxu0 %v2586
    %v2882 = vpop.f32.mrf.mxu0
    %v2883 = vadd.f32 %v2869, %v2882
    %v2884 = vpop.f32.mrf.mxu0
    %v2885 = vadd.f32 %v2871, %v2884
    %2886 = vdwg.mxu0
    %2887 = vmatpush.bf16.msra.mxu0 %v2812
    %2888 = vmatpush.bf16.msra.mxu0 %v2811
    %2889 = vmatpush.bf16.msra.mxu0 %v2810
    %2890 = vmatpush.bf16.msra.mxu0 %v2809
    %2891 = vmatpush.bf16.msra.mxu0 %v2808
    %2892 = vmatpush.bf16.msra.mxu0 %v2807
    %2893 = vmatpush.bf16.msra.mxu0 %v2806
    %2894 = vmatpush.bf16.msra.mxu0 %v2805
    %2895 = vmatmul.bf16.gmra.mxu0 %v2587
    %v2896 = vpop.f32.mrf.mxu0
    %v2897 = vadd.f32 %v2883, %v2896
    %v2898 = vpop.f32.mrf.mxu0
    %v2899 = vadd.f32 %v2885, %v2898
    %2900 = vdwg.mxu0
    %v2965 = vunpack.c.l.b16 %v2448
    %v2966 = vunpack.c.l.b16 %v2449
    %v2967 = vunpack.c.l.b16 %v2450
    %v2968 = vunpack.c.l.b16 %v2451
    %v2969 = vunpack.c.l.b16 %v2452
    %v2970 = vunpack.c.l.b16 %v2453
    %v2971 = vunpack.c.l.b16 %v2454
    %v2972 = vunpack.c.l.b16 %v2455
    %v2973 = vunpack.c.l.b16 %v2456
    %v2974 = vunpack.c.l.b16 %v2457
    %v2975 = vunpack.c.l.b16 %v2458
    %v2976 = vunpack.c.l.b16 %v2459
    %v2977 = vunpack.c.l.b16 %v2460
    %v2978 = vunpack.c.l.b16 %v2461
    %v2979 = vunpack.c.l.b16 %v2462
    %v2980 = vunpack.c.l.b16 %v2463
    %v2981 = vunpack.c.l.b16 %v2464
    %v2982 = vunpack.c.l.b16 %v2465
    %v2983 = vunpack.c.l.b16 %v2466
    %v2984 = vunpack.c.l.b16 %v2467
    %v2985 = vunpack.c.l.b16 %v2468
    %v2986 = vunpack.c.l.b16 %v2469
    %v2987 = vunpack.c.l.b16 %v2470
    %v2988 = vunpack.c.l.b16 %v2471
    %v2989 = vunpack.c.l.b16 %v2472
    %v2990 = vunpack.c.l.b16 %v2473
    %v2991 = vunpack.c.l.b16 %v2474
    %v2992 = vunpack.c.l.b16 %v2475
    %v2993 = vunpack.c.l.b16 %v2476
    %v2994 = vunpack.c.l.b16 %v2477
    %v2995 = vunpack.c.l.b16 %v2478
    %v2996 = vunpack.c.l.b16 %v2479
    %v2997 = vunpack.c.l.b16 %v2480
    %v2998 = vunpack.c.l.b16 %v2481
    %v2999 = vunpack.c.l.b16 %v2482
    %v3000 = vunpack.c.l.b16 %v2483
    %v3001 = vunpack.c.l.b16 %v2484
    %v3002 = vunpack.c.l.b16 %v2485
    %v3003 = vunpack.c.l.b16 %v2486
    %v3004 = vunpack.c.l.b16 %v2487
    %v3005 = vunpack.c.l.b16 %v2488
    %v3006 = vunpack.c.l.b16 %v2489
    %v3007 = vunpack.c.l.b16 %v2490
    %v3008 = vunpack.c.l.b16 %v2491
    %v3009 = vunpack.c.l.b16 %v2492
    %v3010 = vunpack.c.l.b16 %v2493
    %v3011 = vunpack.c.l.b16 %v2494
    %v3012 = vunpack.c.l.b16 %v2495
    %v3013 = vunpack.c.l.b16 %v2496
    %v3014 = vunpack.c.l.b16 %v2497
    %v3015 = vunpack.c.l.b16 %v2498
    %v3016 = vunpack.c.l.b16 %v2499
    %v3017 = vunpack.c.l.b16 %v2500
    %v3018 = vunpack.c.l.b16 %v2501
    %v3019 = vunpack.c.l.b16 %v2502
    %v3020 = vunpack.c.l.b16 %v2503
    %v3021 = vunpack.c.l.b16 %v2504
    %v3022 = vunpack.c.l.b16 %v2505
    %v3023 = vunpack.c.l.b16 %v2506
    %v3024 = vunpack.c.l.b16 %v2507
    %v3025 = vunpack.c.l.b16 %v2508
    %v3026 = vunpack.c.l.b16 %v2509
    %v3027 = vunpack.c.l.b16 %v2510
    %v3028 = vunpack.c.l.b16 %v2511
    %v3029 = vpack.c.b16 %v2966, %v2965
    %v3030 = vpack.c.b16 %v2968, %v2967
    %v3031 = vpack.c.b16 %v2970, %v2969
    %v3032 = vpack.c.b16 %v2972, %v2971
    %v3033 = vpack.c.b16 %v2974, %v2973
    %v3034 = vpack.c.b16 %v2976, %v2975
    %v3035 = vpack.c.b16 %v2978, %v2977
    %v3036 = vpack.c.b16 %v2980, %v2979
    %v3037 = vpack.c.b16 %v2982, %v2981
    %v3038 = vpack.c.b16 %v2984, %v2983
    %v3039 = vpack.c.b16 %v2986, %v2985
    %v3040 = vpack.c.b16 %v2988, %v2987
    %v3041 = vpack.c.b16 %v2990, %v2989
    %v3042 = vpack.c.b16 %v2992, %v2991
    %v3043 = vpack.c.b16 %v2994, %v2993
    %v3044 = vpack.c.b16 %v2996, %v2995
    %v3045 = vpack.c.b16 %v2998, %v2997
    %v3046 = vpack.c.b16 %v3000, %v2999
    %v3047 = vpack.c.b16 %v3002, %v3001
    %v3048 = vpack.c.b16 %v3004, %v3003
    %v3049 = vpack.c.b16 %v3006, %v3005
    %v3050 = vpack.c.b16 %v3008, %v3007
    %v3051 = vpack.c.b16 %v3010, %v3009
    %v3052 = vpack.c.b16 %v3012, %v3011
    %v3053 = vpack.c.b16 %v3014, %v3013
    %v3054 = vpack.c.b16 %v3016, %v3015
    %v3055 = vpack.c.b16 %v3018, %v3017
    %v3056 = vpack.c.b16 %v3020, %v3019
    %v3057 = vpack.c.b16 %v3022, %v3021
    %v3058 = vpack.c.b16 %v3024, %v3023
    %v3059 = vpack.c.b16 %v3026, %v3025
    %v3060 = vpack.c.b16 %v3028, %v3027
    %3093 = vmatpush.bf16.msra.mxu0 %v3036
    %3094 = vmatpush.bf16.msra.mxu0 %v3035
    %3095 = vmatpush.bf16.msra.mxu0 %v3034
    %3096 = vmatpush.bf16.msra.mxu0 %v3033
    %3097 = vmatpush.bf16.msra.mxu0 %v3032
    %3098 = vmatpush.bf16.msra.mxu0 %v3031
    %3099 = vmatpush.bf16.msra.mxu0 %v3030
    %3100 = vmatpush.bf16.msra.mxu0 %v3029
    %3101 = vmatmul.bf16.gmra.mxu0 %v2444
    %v3102 = vpop.f32.mrf.mxu0
    %v3103 = vadd.f32 %v2897, %v3102
    %v3104 = vpop.f32.mrf.mxu0
    %v3105 = vadd.f32 %v2899, %v3104
    %3106 = vdwg.mxu0
    %3107 = vmatpush.bf16.msra.mxu0 %v3044
    %3108 = vmatpush.bf16.msra.mxu0 %v3043
    %3109 = vmatpush.bf16.msra.mxu0 %v3042
    %3110 = vmatpush.bf16.msra.mxu0 %v3041
    %3111 = vmatpush.bf16.msra.mxu0 %v3040
    %3112 = vmatpush.bf16.msra.mxu0 %v3039
    %3113 = vmatpush.bf16.msra.mxu0 %v3038
    %3114 = vmatpush.bf16.msra.mxu0 %v3037
    %3115 = vmatmul.bf16.gmra.mxu0 %v2445
    %v3116 = vpop.f32.mrf.mxu0
    %v3117 = vadd.f32 %v3103, %v3116
    %v3118 = vpop.f32.mrf.mxu0
    %v3119 = vadd.f32 %v3105, %v3118
    %3120 = vdwg.mxu0
    %3121 = vmatpush.bf16.msra.mxu0 %v3052
    %3122 = vmatpush.bf16.msra.mxu0 %v3051
    %3123 = vmatpush.bf16.msra.mxu0 %v3050
    %3124 = vmatpush.bf16.msra.mxu0 %v3049
    %3125 = vmatpush.bf16.msra.mxu0 %v3048
    %3126 = vmatpush.bf16.msra.mxu0 %v3047
    %3127 = vmatpush.bf16.msra.mxu0 %v3046
    %3128 = vmatpush.bf16.msra.mxu0 %v3045
    %3129 = vmatmul.bf16.gmra.mxu0 %v2446
    %v3130 = vpop.f32.mrf.mxu0
    %v3131 = vadd.f32 %v3117, %v3130
    %v3132 = vpop.f32.mrf.mxu0
    %v3133 = vadd.f32 %v3119, %v3132
    %3134 = vdwg.mxu0
    %3135 = vmatpush.bf16.msra.mxu0 %v3060
    %3136 = vmatpush.bf16.msra.mxu0 %v3059
    %3137 = vmatpush.bf16.msra.mxu0 %v3058
    %3138 = vmatpush.bf16.msra.mxu0 %v3057
    %3139 = vmatpush.bf16.msra.mxu0 %v3056
    %3140 = vmatpush.bf16.msra.mxu0 %v3055
    %3141 = vmatpush.bf16.msra.mxu0 %v3054
    %3142 = vmatpush.bf16.msra.mxu0 %v3053
    %3143 = vmatmul.bf16.gmra.mxu0 %v2447
    %v3144 = vpop.f32.mrf.mxu0
    %v3145 = vadd.f32 %v3131, %v3144
    %v3146 = vpop.f32.mrf.mxu0
    %v3147 = vadd.f32 %v3133, %v3146
    %3148 = vdwg.mxu0
    %v3149 = vld [vmem:[#allocation2 + $0x200] sm:$0xff]
    %v3150 = vld [vmem:[#allocation2 + $0x208] sm:$0xff]
    %v3151 = vld [vmem:[#allocation2 + $0x210] sm:$0xff]
    %v3152 = vld [vmem:[#allocation2 + $0x218] sm:$0xff]
    %v3153 = vld [vmem:[#allocation2 + $0x220] sm:$0xff]
    %v3154 = vld [vmem:[#allocation2 + $0x228] sm:$0xff]
    %v3155 = vld [vmem:[#allocation2 + $0x230] sm:$0xff]
    %v3156 = vld [vmem:[#allocation2 + $0x238] sm:$0xff]
    %v3157 = vld [vmem:[#allocation2 + $0x240] sm:$0xff]
    %v3158 = vld [vmem:[#allocation2 + $0x248] sm:$0xff]
    %v3159 = vld [vmem:[#allocation2 + $0x250] sm:$0xff]
    %v3160 = vld [vmem:[#allocation2 + $0x258] sm:$0xff]
    %v3161 = vld [vmem:[#allocation2 + $0x260] sm:$0xff]
    %v3162 = vld [vmem:[#allocation2 + $0x268] sm:$0xff]
    %v3163 = vld [vmem:[#allocation2 + $0x270] sm:$0xff]
    %v3164 = vld [vmem:[#allocation2 + $0x278] sm:$0xff]
    %v3165 = vld [vmem:[#allocation2 + $0x280] sm:$0xff]
    %v3166 = vld [vmem:[#allocation2 + $0x288] sm:$0xff]
    %v3167 = vld [vmem:[#allocation2 + $0x290] sm:$0xff]
    %v3168 = vld [vmem:[#allocation2 + $0x298] sm:$0xff]
    %v3169 = vld [vmem:[#allocation2 + $0x2a0] sm:$0xff]
    %v3170 = vld [vmem:[#allocation2 + $0x2a8] sm:$0xff]
    %v3171 = vld [vmem:[#allocation2 + $0x2b0] sm:$0xff]
    %v3172 = vld [vmem:[#allocation2 + $0x2b8] sm:$0xff]
    %v3173 = vld [vmem:[#allocation2 + $0x2c0] sm:$0xff]
    %v3174 = vld [vmem:[#allocation2 + $0x2c8] sm:$0xff]
    %v3175 = vld [vmem:[#allocation2 + $0x2d0] sm:$0xff]
    %v3176 = vld [vmem:[#allocation2 + $0x2d8] sm:$0xff]
    %v3177 = vld [vmem:[#allocation2 + $0x2e0] sm:$0xff]
    %v3178 = vld [vmem:[#allocation2 + $0x2e8] sm:$0xff]
    %v3179 = vld [vmem:[#allocation2 + $0x2f0] sm:$0xff]
    %v3180 = vld [vmem:[#allocation2 + $0x2f8] sm:$0xff]
    %v3181 = vmax.f32 %v3149, %v3165
    %v3182 = vmax.f32 %v3150, %v3166
    %v3183 = vmax.f32 %v3151, %v3167
    %v3184 = vmax.f32 %v3152, %v3168
    %v3185 = vmax.f32 %v3153, %v3169
    %v3186 = vmax.f32 %v3154, %v3170
    %v3187 = vmax.f32 %v3155, %v3171
    %v3188 = vmax.f32 %v3156, %v3172
    %v3189 = vmax.f32 %v3157, %v3173
    %v3190 = vmax.f32 %v3158, %v3174
    %v3191 = vmax.f32 %v3159, %v3175
    %v3192 = vmax.f32 %v3160, %v3176
    %v3193 = vmax.f32 %v3161, %v3177
    %v3194 = vmax.f32 %v3162, %v3178
    %v3195 = vmax.f32 %v3163, %v3179
    %v3196 = vmax.f32 %v3164, %v3180
    %v3197 = vmax.f32 %v3181, %v3185
    %v3198 = vmax.f32 %v3182, %v3186
    %v3199 = vmax.f32 %v3183, %v3187
    %v3200 = vmax.f32 %v3184, %v3188
    %v3201 = vmax.f32 %v3189, %v3193
    %v3202 = vmax.f32 %v3190, %v3194
    %v3203 = vmax.f32 %v3191, %v3195
    %v3204 = vmax.f32 %v3192, %v3196
    %v3205 = vadd.f32 %v3197, %v2420
    %v3206 = vadd.f32 %v3198, %v2421
    %v3207 = vadd.f32 %v3199, %v2422
    %v3208 = vadd.f32 %v3200, %v2423
    %v3209 = vadd.f32 %v3201, %v2420
    %v3210 = vadd.f32 %v3202, %v2421
    %v3211 = vadd.f32 %v3203, %v2422
    %v3212 = vadd.f32 %v3204, %v2423
    %v3213 = vmax.f32 %v3205, 0.0
    %v3214 = vmax.f32 %v3206, 0.0
    %v3215 = vmax.f32 %v3207, 0.0
    %v3216 = vmax.f32 %v3208, 0.0
    %v3217 = vmax.f32 %v3209, 0.0
    %v3218 = vmax.f32 %v3210, 0.0
    %v3219 = vmax.f32 %v3211, 0.0
    %v3220 = vmax.f32 %v3212, 0.0
    %v3221 = vpack.c.bf16 %v3217, %v3213
    %v3222 = vpack.c.bf16 %v3218, %v3214
    %v3223 = vpack.c.bf16 %v3219, %v3215
    %v3224 = vpack.c.bf16 %v3220, %v3216
    %s3225 = scalar_lea.vmem [#allocation7], 512
    %v3226 = vld [vmem:[%s3225] sm:$0xf]
    %v3227 = vld [vmem:[%s3225 + $0x4] sm:$0xf]
    %v3228 = vld [vmem:[%s3225 + $0x8] sm:$0xf]
    %v3229 = vld [vmem:[%s3225 + $0xc] sm:$0xf]
    %v3230 = vld [vmem:[%s3225 + $0x10] sm:$0xf]
    %v3231 = vld [vmem:[%s3225 + $0x14] sm:$0xf]
    %v3232 = vld [vmem:[%s3225 + $0x18] sm:$0xf]
    %v3233 = vld [vmem:[%s3225 + $0x1c] sm:$0xf]
    %v3234 = vld [vmem:[%s3225 + $0x20] sm:$0xf]
    %v3235 = vld [vmem:[%s3225 + $0x24] sm:$0xf]
    %v3236 = vld [vmem:[%s3225 + $0x28] sm:$0xf]
    %v3237 = vld [vmem:[%s3225 + $0x2c] sm:$0xf]
    %v3238 = vld [vmem:[%s3225 + $0x30] sm:$0xf]
    %v3239 = vld [vmem:[%s3225 + $0x34] sm:$0xf]
    %v3240 = vld [vmem:[%s3225 + $0x38] sm:$0xf]
    %v3241 = vld [vmem:[%s3225 + $0x3c] sm:$0xf]
    %v3242 = vld [vmem:[%s3225 + $0x40] sm:$0xf]
    %v3243 = vld [vmem:[%s3225 + $0x44] sm:$0xf]
    %v3244 = vld [vmem:[%s3225 + $0x48] sm:$0xf]
    %v3245 = vld [vmem:[%s3225 + $0x4c] sm:$0xf]
    %v3246 = vld [vmem:[%s3225 + $0x50] sm:$0xf]
    %v3247 = vld [vmem:[%s3225 + $0x54] sm:$0xf]
    %v3248 = vld [vmem:[%s3225 + $0x58] sm:$0xf]
    %v3249 = vld [vmem:[%s3225 + $0x5c] sm:$0xf]
    %v3250 = vld [vmem:[%s3225 + $0x60] sm:$0xf]
    %v3251 = vld [vmem:[%s3225 + $0x64] sm:$0xf]
    %v3252 = vld [vmem:[%s3225 + $0x68] sm:$0xf]
    %v3253 = vld [vmem:[%s3225 + $0x6c] sm:$0xf]
    %v3254 = vld [vmem:[%s3225 + $0x70] sm:$0xf]
    %v3255 = vld [vmem:[%s3225 + $0x74] sm:$0xf]
    %v3256 = vld [vmem:[%s3225 + $0x78] sm:$0xf]
    %v3257 = vld [vmem:[%s3225 + $0x7c] sm:$0xf]
    %v3258 = vld [vmem:[%s3225 + $0x80] sm:$0xf]
    %v3259 = vld [vmem:[%s3225 + $0x84] sm:$0xf]
    %v3260 = vld [vmem:[%s3225 + $0x88] sm:$0xf]
    %v3261 = vld [vmem:[%s3225 + $0x8c] sm:$0xf]
    %v3262 = vld [vmem:[%s3225 + $0x90] sm:$0xf]
    %v3263 = vld [vmem:[%s3225 + $0x94] sm:$0xf]
    %v3264 = vld [vmem:[%s3225 + $0x98] sm:$0xf]
    %v3265 = vld [vmem:[%s3225 + $0x9c] sm:$0xf]
    %v3266 = vld [vmem:[%s3225 + $0xa0] sm:$0xf]
    %v3267 = vld [vmem:[%s3225 + $0xa4] sm:$0xf]
    %v3268 = vld [vmem:[%s3225 + $0xa8] sm:$0xf]
    %v3269 = vld [vmem:[%s3225 + $0xac] sm:$0xf]
    %v3270 = vld [vmem:[%s3225 + $0xb0] sm:$0xf]
    %v3271 = vld [vmem:[%s3225 + $0xb4] sm:$0xf]
    %v3272 = vld [vmem:[%s3225 + $0xb8] sm:$0xf]
    %v3273 = vld [vmem:[%s3225 + $0xbc] sm:$0xf]
    %v3274 = vld [vmem:[%s3225 + $0xc0] sm:$0xf]
    %v3275 = vld [vmem:[%s3225 + $0xc4] sm:$0xf]
    %v3276 = vld [vmem:[%s3225 + $0xc8] sm:$0xf]
    %v3277 = vld [vmem:[%s3225 + $0xcc] sm:$0xf]
    %v3278 = vld [vmem:[%s3225 + $0xd0] sm:$0xf]
    %v3279 = vld [vmem:[%s3225 + $0xd4] sm:$0xf]
    %v3280 = vld [vmem:[%s3225 + $0xd8] sm:$0xf]
    %v3281 = vld [vmem:[%s3225 + $0xdc] sm:$0xf]
    %v3282 = vld [vmem:[%s3225 + $0xe0] sm:$0xf]
    %v3283 = vld [vmem:[%s3225 + $0xe4] sm:$0xf]
    %v3284 = vld [vmem:[%s3225 + $0xe8] sm:$0xf]
    %v3285 = vld [vmem:[%s3225 + $0xec] sm:$0xf]
    %v3286 = vld [vmem:[%s3225 + $0xf0] sm:$0xf]
    %v3287 = vld [vmem:[%s3225 + $0xf4] sm:$0xf]
    %v3288 = vld [vmem:[%s3225 + $0xf8] sm:$0xf]
    %v3289 = vld [vmem:[%s3225 + $0xfc] sm:$0xf]
    %v3354 = vunpack.c.l.b16 %v3226
    %v3355 = vunpack.c.l.b16 %v3227
    %v3356 = vunpack.c.l.b16 %v3228
    %v3357 = vunpack.c.l.b16 %v3229
    %v3358 = vunpack.c.l.b16 %v3230
    %v3359 = vunpack.c.l.b16 %v3231
    %v3360 = vunpack.c.l.b16 %v3232
    %v3361 = vunpack.c.l.b16 %v3233
    %v3362 = vunpack.c.l.b16 %v3234
    %v3363 = vunpack.c.l.b16 %v3235
    %v3364 = vunpack.c.l.b16 %v3236
    %v3365 = vunpack.c.l.b16 %v3237
    %v3366 = vunpack.c.l.b16 %v3238
    %v3367 = vunpack.c.l.b16 %v3239
    %v3368 = vunpack.c.l.b16 %v3240
    %v3369 = vunpack.c.l.b16 %v3241
    %v3370 = vunpack.c.l.b16 %v3242
    %v3371 = vunpack.c.l.b16 %v3243
    %v3372 = vunpack.c.l.b16 %v3244
    %v3373 = vunpack.c.l.b16 %v3245
    %v3374 = vunpack.c.l.b16 %v3246
    %v3375 = vunpack.c.l.b16 %v3247
    %v3376 = vunpack.c.l.b16 %v3248
    %v3377 = vunpack.c.l.b16 %v3249
    %v3378 = vunpack.c.l.b16 %v3250
    %v3379 = vunpack.c.l.b16 %v3251
    %v3380 = vunpack.c.l.b16 %v3252
    %v3381 = vunpack.c.l.b16 %v3253
    %v3382 = vunpack.c.l.b16 %v3254
    %v3383 = vunpack.c.l.b16 %v3255
    %v3384 = vunpack.c.l.b16 %v3256
    %v3385 = vunpack.c.l.b16 %v3257
    %v3386 = vunpack.c.l.b16 %v3258
    %v3387 = vunpack.c.l.b16 %v3259
    %v3388 = vunpack.c.l.b16 %v3260
    %v3389 = vunpack.c.l.b16 %v3261
    %v3390 = vunpack.c.l.b16 %v3262
    %v3391 = vunpack.c.l.b16 %v3263
    %v3392 = vunpack.c.l.b16 %v3264
    %v3393 = vunpack.c.l.b16 %v3265
    %v3394 = vunpack.c.l.b16 %v3266
    %v3395 = vunpack.c.l.b16 %v3267
    %v3396 = vunpack.c.l.b16 %v3268
    %v3397 = vunpack.c.l.b16 %v3269
    %v3398 = vunpack.c.l.b16 %v3270
    %v3399 = vunpack.c.l.b16 %v3271
    %v3400 = vunpack.c.l.b16 %v3272
    %v3401 = vunpack.c.l.b16 %v3273
    %v3402 = vunpack.c.l.b16 %v3274
    %v3403 = vunpack.c.l.b16 %v3275
    %v3404 = vunpack.c.l.b16 %v3276
    %v3405 = vunpack.c.l.b16 %v3277
    %v3406 = vunpack.c.l.b16 %v3278
    %v3407 = vunpack.c.l.b16 %v3279
    %v3408 = vunpack.c.l.b16 %v3280
    %v3409 = vunpack.c.l.b16 %v3281
    %v3410 = vunpack.c.l.b16 %v3282
    %v3411 = vunpack.c.l.b16 %v3283
    %v3412 = vunpack.c.l.b16 %v3284
    %v3413 = vunpack.c.l.b16 %v3285
    %v3414 = vunpack.c.l.b16 %v3286
    %v3415 = vunpack.c.l.b16 %v3287
    %v3416 = vunpack.c.l.b16 %v3288
    %v3417 = vunpack.c.l.b16 %v3289
    %v3418 = vpack.c.b16 %v3355, %v3354
    %v3419 = vpack.c.b16 %v3357, %v3356
    %v3420 = vpack.c.b16 %v3359, %v3358
    %v3421 = vpack.c.b16 %v3361, %v3360
    %v3422 = vpack.c.b16 %v3363, %v3362
    %v3423 = vpack.c.b16 %v3365, %v3364
    %v3424 = vpack.c.b16 %v3367, %v3366
    %v3425 = vpack.c.b16 %v3369, %v3368
    %v3426 = vpack.c.b16 %v3371, %v3370
    %v3427 = vpack.c.b16 %v3373, %v3372
    %v3428 = vpack.c.b16 %v3375, %v3374
    %v3429 = vpack.c.b16 %v3377, %v3376
    %v3430 = vpack.c.b16 %v3379, %v3378
    %v3431 = vpack.c.b16 %v3381, %v3380
    %v3432 = vpack.c.b16 %v3383, %v3382
    %v3433 = vpack.c.b16 %v3385, %v3384
    %v3434 = vpack.c.b16 %v3387, %v3386
    %v3435 = vpack.c.b16 %v3389, %v3388
    %v3436 = vpack.c.b16 %v3391, %v3390
    %v3437 = vpack.c.b16 %v3393, %v3392
    %v3438 = vpack.c.b16 %v3395, %v3394
    %v3439 = vpack.c.b16 %v3397, %v3396
    %v3440 = vpack.c.b16 %v3399, %v3398
    %v3441 = vpack.c.b16 %v3401, %v3400
    %v3442 = vpack.c.b16 %v3403, %v3402
    %v3443 = vpack.c.b16 %v3405, %v3404
    %v3444 = vpack.c.b16 %v3407, %v3406
    %v3445 = vpack.c.b16 %v3409, %v3408
    %v3446 = vpack.c.b16 %v3411, %v3410
    %v3447 = vpack.c.b16 %v3413, %v3412
    %v3448 = vpack.c.b16 %v3415, %v3414
    %v3449 = vpack.c.b16 %v3417, %v3416
    %3482 = vmatpush.bf16.msra.mxu0 %v3425
    %3483 = vmatpush.bf16.msra.mxu0 %v3424
    %3484 = vmatpush.bf16.msra.mxu0 %v3423
    %3485 = vmatpush.bf16.msra.mxu0 %v3422
    %3486 = vmatpush.bf16.msra.mxu0 %v3421
    %3487 = vmatpush.bf16.msra.mxu0 %v3420
    %3488 = vmatpush.bf16.msra.mxu0 %v3419
    %3489 = vmatpush.bf16.msra.mxu0 %v3418
    %3490 = vmatmul.bf16.gmra.mxu0 %v3221
    %v3491 = vpop.f32.mrf.mxu0
    %v3492 = vadd.f32 0.0, %v3491
    %v3493 = vpop.f32.mrf.mxu0
    %v3494 = vadd.f32 0.0, %v3493
    %3495 = vdwg.mxu0
    %3496 = vmatpush.bf16.msra.mxu0 %v3433
    %3497 = vmatpush.bf16.msra.mxu0 %v3432
    %3498 = vmatpush.bf16.msra.mxu0 %v3431
    %3499 = vmatpush.bf16.msra.mxu0 %v3430
    %3500 = vmatpush.bf16.msra.mxu0 %v3429
    %3501 = vmatpush.bf16.msra.mxu0 %v3428
    %3502 = vmatpush.bf16.msra.mxu0 %v3427
    %3503 = vmatpush.bf16.msra.mxu0 %v3426
    %3504 = vmatmul.bf16.gmra.mxu0 %v3222
    %v3505 = vpop.f32.mrf.mxu0
    %v3506 = vadd.f32 %v3492, %v3505
    %v3507 = vpop.f32.mrf.mxu0
    %v3508 = vadd.f32 %v3494, %v3507
    %3509 = vdwg.mxu0
    %3510 = vmatpush.bf16.msra.mxu0 %v3441
    %3511 = vmatpush.bf16.msra.mxu0 %v3440
    %3512 = vmatpush.bf16.msra.mxu0 %v3439
    %3513 = vmatpush.bf16.msra.mxu0 %v3438
    %3514 = vmatpush.bf16.msra.mxu0 %v3437
    %3515 = vmatpush.bf16.msra.mxu0 %v3436
    %3516 = vmatpush.bf16.msra.mxu0 %v3435
    %3517 = vmatpush.bf16.msra.mxu0 %v3434
    %3518 = vmatmul.bf16.gmra.mxu0 %v3223
    %v3519 = vpop.f32.mrf.mxu0
    %v3520 = vadd.f32 %v3506, %v3519
    %v3521 = vpop.f32.mrf.mxu0
    %v3522 = vadd.f32 %v3508, %v3521
    %3523 = vdwg.mxu0
    %3524 = vmatpush.bf16.msra.mxu0 %v3449
    %3525 = vmatpush.bf16.msra.mxu0 %v3448
    %3526 = vmatpush.bf16.msra.mxu0 %v3447
    %3527 = vmatpush.bf16.msra.mxu0 %v3446
    %3528 = vmatpush.bf16.msra.mxu0 %v3445
    %3529 = vmatpush.bf16.msra.mxu0 %v3444
    %3530 = vmatpush.bf16.msra.mxu0 %v3443
    %3531 = vmatpush.bf16.msra.mxu0 %v3442
    %3532 = vmatmul.bf16.gmra.mxu0 %v3224
    %v3533 = vpop.f32.mrf.mxu0
    %v3534 = vadd.f32 %v3520, %v3533
    %v3535 = vpop.f32.mrf.mxu0
    %v3536 = vadd.f32 %v3522, %v3535
    %3537 = vdwg.mxu0
    %v3538 = vadd.f32 %v3145, %v3534
    %v3539 = vadd.f32 %v3147, %v3536
    %v3540 = vld [vmem:[#allocation2 + $0x300] sm:$0xff]
    %v3541 = vld [vmem:[#allocation2 + $0x308] sm:$0xff]
    %v3542 = vld [vmem:[#allocation2 + $0x310] sm:$0xff]
    %v3543 = vld [vmem:[#allocation2 + $0x318] sm:$0xff]
    %v3544 = vld [vmem:[#allocation2 + $0x320] sm:$0xff]
    %v3545 = vld [vmem:[#allocation2 + $0x328] sm:$0xff]
    %v3546 = vld [vmem:[#allocation2 + $0x330] sm:$0xff]
    %v3547 = vld [vmem:[#allocation2 + $0x338] sm:$0xff]
    %v3548 = vld [vmem:[#allocation2 + $0x340] sm:$0xff]
    %v3549 = vld [vmem:[#allocation2 + $0x348] sm:$0xff]
    %v3550 = vld [vmem:[#allocation2 + $0x350] sm:$0xff]
    %v3551 = vld [vmem:[#allocation2 + $0x358] sm:$0xff]
    %v3552 = vld [vmem:[#allocation2 + $0x360] sm:$0xff]
    %v3553 = vld [vmem:[#allocation2 + $0x368] sm:$0xff]
    %v3554 = vld [vmem:[#allocation2 + $0x370] sm:$0xff]
    %v3555 = vld [vmem:[#allocation2 + $0x378] sm:$0xff]
    %v3556 = vld [vmem:[#allocation2 + $0x380] sm:$0xff]
    %v3557 = vld [vmem:[#allocation2 + $0x388] sm:$0xff]
    %v3558 = vld [vmem:[#allocation2 + $0x390] sm:$0xff]
    %v3559 = vld [vmem:[#allocation2 + $0x398] sm:$0xff]
    %v3560 = vld [vmem:[#allocation2 + $0x3a0] sm:$0xff]
    %v3561 = vld [vmem:[#allocation2 + $0x3a8] sm:$0xff]
    %v3562 = vld [vmem:[#allocation2 + $0x3b0] sm:$0xff]
    %v3563 = vld [vmem:[#allocation2 + $0x3b8] sm:$0xff]
    %v3564 = vld [vmem:[#allocation2 + $0x3c0] sm:$0xff]
    %v3565 = vld [vmem:[#allocation2 + $0x3c8] sm:$0xff]
    %v3566 = vld [vmem:[#allocation2 + $0x3d0] sm:$0xff]
    %v3567 = vld [vmem:[#allocation2 + $0x3d8] sm:$0xff]
    %v3568 = vld [vmem:[#allocation2 + $0x3e0] sm:$0xff]
    %v3569 = vld [vmem:[#allocation2 + $0x3e8] sm:$0xff]
    %v3570 = vld [vmem:[#allocation2 + $0x3f0] sm:$0xff]
    %v3571 = vld [vmem:[#allocation2 + $0x3f8] sm:$0xff]
    %v3572 = vmax.f32 %v3540, %v3556
    %v3573 = vmax.f32 %v3541, %v3557
    %v3574 = vmax.f32 %v3542, %v3558
    %v3575 = vmax.f32 %v3543, %v3559
    %v3576 = vmax.f32 %v3544, %v3560
    %v3577 = vmax.f32 %v3545, %v3561
    %v3578 = vmax.f32 %v3546, %v3562
    %v3579 = vmax.f32 %v3547, %v3563
    %v3580 = vmax.f32 %v3548, %v3564
    %v3581 = vmax.f32 %v3549, %v3565
    %v3582 = vmax.f32 %v3550, %v3566
    %v3583 = vmax.f32 %v3551, %v3567
    %v3584 = vmax.f32 %v3552, %v3568
    %v3585 = vmax.f32 %v3553, %v3569
    %v3586 = vmax.f32 %v3554, %v3570
    %v3587 = vmax.f32 %v3555, %v3571
    %v3588 = vmax.f32 %v3572, %v3576
    %v3589 = vmax.f32 %v3573, %v3577
    %v3590 = vmax.f32 %v3574, %v3578
    %v3591 = vmax.f32 %v3575, %v3579
    %v3592 = vmax.f32 %v3580, %v3584
    %v3593 = vmax.f32 %v3581, %v3585
    %v3594 = vmax.f32 %v3582, %v3586
    %v3595 = vmax.f32 %v3583, %v3587
    %v3596 = vadd.f32 %v3588, %v2420
    %v3597 = vadd.f32 %v3589, %v2421
    %v3598 = vadd.f32 %v3590, %v2422
    %v3599 = vadd.f32 %v3591, %v2423
    %v3600 = vadd.f32 %v3592, %v2420
    %v3601 = vadd.f32 %v3593, %v2421
    %v3602 = vadd.f32 %v3594, %v2422
    %v3603 = vadd.f32 %v3595, %v2423
    %v3604 = vmax.f32 %v3596, 0.0
    %v3605 = vmax.f32 %v3597, 0.0
    %v3606 = vmax.f32 %v3598, 0.0
    %v3607 = vmax.f32 %v3599, 0.0
    %v3608 = vmax.f32 %v3600, 0.0
    %v3609 = vmax.f32 %v3601, 0.0
    %v3610 = vmax.f32 %v3602, 0.0
    %v3611 = vmax.f32 %v3603, 0.0
    %v3612 = vpack.c.bf16 %v3608, %v3604
    %v3613 = vpack.c.bf16 %v3609, %v3605
    %v3614 = vpack.c.bf16 %v3610, %v3606
    %v3615 = vpack.c.bf16 %v3611, %v3607
    %s3616 = scalar_lea.vmem [#allocation7], 768
    %v3617 = vld [vmem:[%s3616] sm:$0xf]
    %v3618 = vld [vmem:[%s3616 + $0x4] sm:$0xf]
    %v3619 = vld [vmem:[%s3616 + $0x8] sm:$0xf]
    %v3620 = vld [vmem:[%s3616 + $0xc] sm:$0xf]
    %v3621 = vld [vmem:[%s3616 + $0x10] sm:$0xf]
    %v3622 = vld [vmem:[%s3616 + $0x14] sm:$0xf]
    %v3623 = vld [vmem:[%s3616 + $0x18] sm:$0xf]
    %v3624 = vld [vmem:[%s3616 + $0x1c] sm:$0xf]
    %v3625 = vld [vmem:[%s3616 + $0x20] sm:$0xf]
    %v3626 = vld [vmem:[%s3616 + $0x24] sm:$0xf]
    %v3627 = vld [vmem:[%s3616 + $0x28] sm:$0xf]
    %v3628 = vld [vmem:[%s3616 + $0x2c] sm:$0xf]
    %v3629 = vld [vmem:[%s3616 + $0x30] sm:$0xf]
    %v3630 = vld [vmem:[%s3616 + $0x34] sm:$0xf]
    %v3631 = vld [vmem:[%s3616 + $0x38] sm:$0xf]
    %v3632 = vld [vmem:[%s3616 + $0x3c] sm:$0xf]
    %v3633 = vld [vmem:[%s3616 + $0x40] sm:$0xf]
    %v3634 = vld [vmem:[%s3616 + $0x44] sm:$0xf]
    %v3635 = vld [vmem:[%s3616 + $0x48] sm:$0xf]
    %v3636 = vld [vmem:[%s3616 + $0x4c] sm:$0xf]
    %v3637 = vld [vmem:[%s3616 + $0x50] sm:$0xf]
    %v3638 = vld [vmem:[%s3616 + $0x54] sm:$0xf]
    %v3639 = vld [vmem:[%s3616 + $0x58] sm:$0xf]
    %v3640 = vld [vmem:[%s3616 + $0x5c] sm:$0xf]
    %v3641 = vld [vmem:[%s3616 + $0x60] sm:$0xf]
    %v3642 = vld [vmem:[%s3616 + $0x64] sm:$0xf]
    %v3643 = vld [vmem:[%s3616 + $0x68] sm:$0xf]
    %v3644 = vld [vmem:[%s3616 + $0x6c] sm:$0xf]
    %v3645 = vld [vmem:[%s3616 + $0x70] sm:$0xf]
    %v3646 = vld [vmem:[%s3616 + $0x74] sm:$0xf]
    %v3647 = vld [vmem:[%s3616 + $0x78] sm:$0xf]
    %v3648 = vld [vmem:[%s3616 + $0x7c] sm:$0xf]
    %v3649 = vld [vmem:[%s3616 + $0x80] sm:$0xf]
    %v3650 = vld [vmem:[%s3616 + $0x84] sm:$0xf]
    %v3651 = vld [vmem:[%s3616 + $0x88] sm:$0xf]
    %v3652 = vld [vmem:[%s3616 + $0x8c] sm:$0xf]
    %v3653 = vld [vmem:[%s3616 + $0x90] sm:$0xf]
    %v3654 = vld [vmem:[%s3616 + $0x94] sm:$0xf]
    %v3655 = vld [vmem:[%s3616 + $0x98] sm:$0xf]
    %v3656 = vld [vmem:[%s3616 + $0x9c] sm:$0xf]
    %v3657 = vld [vmem:[%s3616 + $0xa0] sm:$0xf]
    %v3658 = vld [vmem:[%s3616 + $0xa4] sm:$0xf]
    %v3659 = vld [vmem:[%s3616 + $0xa8] sm:$0xf]
    %v3660 = vld [vmem:[%s3616 + $0xac] sm:$0xf]
    %v3661 = vld [vmem:[%s3616 + $0xb0] sm:$0xf]
    %v3662 = vld [vmem:[%s3616 + $0xb4] sm:$0xf]
    %v3663 = vld [vmem:[%s3616 + $0xb8] sm:$0xf]
    %v3664 = vld [vmem:[%s3616 + $0xbc] sm:$0xf]
    %v3665 = vld [vmem:[%s3616 + $0xc0] sm:$0xf]
    %v3666 = vld [vmem:[%s3616 + $0xc4] sm:$0xf]
    %v3667 = vld [vmem:[%s3616 + $0xc8] sm:$0xf]
    %v3668 = vld [vmem:[%s3616 + $0xcc] sm:$0xf]
    %v3669 = vld [vmem:[%s3616 + $0xd0] sm:$0xf]
    %v3670 = vld [vmem:[%s3616 + $0xd4] sm:$0xf]
    %v3671 = vld [vmem:[%s3616 + $0xd8] sm:$0xf]
    %v3672 = vld [vmem:[%s3616 + $0xdc] sm:$0xf]
    %v3673 = vld [vmem:[%s3616 + $0xe0] sm:$0xf]
    %v3674 = vld [vmem:[%s3616 + $0xe4] sm:$0xf]
    %v3675 = vld [vmem:[%s3616 + $0xe8] sm:$0xf]
    %v3676 = vld [vmem:[%s3616 + $0xec] sm:$0xf]
    %v3677 = vld [vmem:[%s3616 + $0xf0] sm:$0xf]
    %v3678 = vld [vmem:[%s3616 + $0xf4] sm:$0xf]
    %v3679 = vld [vmem:[%s3616 + $0xf8] sm:$0xf]
    %v3680 = vld [vmem:[%s3616 + $0xfc] sm:$0xf]
    %v3745 = vunpack.c.l.b16 %v3617
    %v3746 = vunpack.c.l.b16 %v3618
    %v3747 = vunpack.c.l.b16 %v3619
    %v3748 = vunpack.c.l.b16 %v3620
    %v3749 = vunpack.c.l.b16 %v3621
    %v3750 = vunpack.c.l.b16 %v3622
    %v3751 = vunpack.c.l.b16 %v3623
    %v3752 = vunpack.c.l.b16 %v3624
    %v3753 = vunpack.c.l.b16 %v3625
    %v3754 = vunpack.c.l.b16 %v3626
    %v3755 = vunpack.c.l.b16 %v3627
    %v3756 = vunpack.c.l.b16 %v3628
    %v3757 = vunpack.c.l.b16 %v3629
    %v3758 = vunpack.c.l.b16 %v3630
    %v3759 = vunpack.c.l.b16 %v3631
    %v3760 = vunpack.c.l.b16 %v3632
    %v3761 = vunpack.c.l.b16 %v3633
    %v3762 = vunpack.c.l.b16 %v3634
    %v3763 = vunpack.c.l.b16 %v3635
    %v3764 = vunpack.c.l.b16 %v3636
    %v3765 = vunpack.c.l.b16 %v3637
    %v3766 = vunpack.c.l.b16 %v3638
    %v3767 = vunpack.c.l.b16 %v3639
    %v3768 = vunpack.c.l.b16 %v3640
    %v3769 = vunpack.c.l.b16 %v3641
    %v3770 = vunpack.c.l.b16 %v3642
    %v3771 = vunpack.c.l.b16 %v3643
    %v3772 = vunpack.c.l.b16 %v3644
    %v3773 = vunpack.c.l.b16 %v3645
    %v3774 = vunpack.c.l.b16 %v3646
    %v3775 = vunpack.c.l.b16 %v3647
    %v3776 = vunpack.c.l.b16 %v3648
    %v3777 = vunpack.c.l.b16 %v3649
    %v3778 = vunpack.c.l.b16 %v3650
    %v3779 = vunpack.c.l.b16 %v3651
    %v3780 = vunpack.c.l.b16 %v3652
    %v3781 = vunpack.c.l.b16 %v3653
    %v3782 = vunpack.c.l.b16 %v3654
    %v3783 = vunpack.c.l.b16 %v3655
    %v3784 = vunpack.c.l.b16 %v3656
    %v3785 = vunpack.c.l.b16 %v3657
    %v3786 = vunpack.c.l.b16 %v3658
    %v3787 = vunpack.c.l.b16 %v3659
    %v3788 = vunpack.c.l.b16 %v3660
    %v3789 = vunpack.c.l.b16 %v3661
    %v3790 = vunpack.c.l.b16 %v3662
    %v3791 = vunpack.c.l.b16 %v3663
    %v3792 = vunpack.c.l.b16 %v3664
    %v3793 = vunpack.c.l.b16 %v3665
    %v3794 = vunpack.c.l.b16 %v3666
    %v3795 = vunpack.c.l.b16 %v3667
    %v3796 = vunpack.c.l.b16 %v3668
    %v3797 = vunpack.c.l.b16 %v3669
    %v3798 = vunpack.c.l.b16 %v3670
    %v3799 = vunpack.c.l.b16 %v3671
    %v3800 = vunpack.c.l.b16 %v3672
    %v3801 = vunpack.c.l.b16 %v3673
    %v3802 = vunpack.c.l.b16 %v3674
    %v3803 = vunpack.c.l.b16 %v3675
    %v3804 = vunpack.c.l.b16 %v3676
    %v3805 = vunpack.c.l.b16 %v3677
    %v3806 = vunpack.c.l.b16 %v3678
    %v3807 = vunpack.c.l.b16 %v3679
    %v3808 = vunpack.c.l.b16 %v3680
    %v3809 = vpack.c.b16 %v3746, %v3745
    %v3810 = vpack.c.b16 %v3748, %v3747
    %v3811 = vpack.c.b16 %v3750, %v3749
    %v3812 = vpack.c.b16 %v3752, %v3751
    %v3813 = vpack.c.b16 %v3754, %v3753
    %v3814 = vpack.c.b16 %v3756, %v3755
    %v3815 = vpack.c.b16 %v3758, %v3757
    %v3816 = vpack.c.b16 %v3760, %v3759
    %v3817 = vpack.c.b16 %v3762, %v3761
    %v3818 = vpack.c.b16 %v3764, %v3763
    %v3819 = vpack.c.b16 %v3766, %v3765
    %v3820 = vpack.c.b16 %v3768, %v3767
    %v3821 = vpack.c.b16 %v3770, %v3769
    %v3822 = vpack.c.b16 %v3772, %v3771
    %v3823 = vpack.c.b16 %v3774, %v3773
    %v3824 = vpack.c.b16 %v3776, %v3775
    %v3825 = vpack.c.b16 %v3778, %v3777
    %v3826 = vpack.c.b16 %v3780, %v3779
    %v3827 = vpack.c.b16 %v3782, %v3781
    %v3828 = vpack.c.b16 %v3784, %v3783
    %v3829 = vpack.c.b16 %v3786, %v3785
    %v3830 = vpack.c.b16 %v3788, %v3787
    %v3831 = vpack.c.b16 %v3790, %v3789
    %v3832 = vpack.c.b16 %v3792, %v3791
    %v3833 = vpack.c.b16 %v3794, %v3793
    %v3834 = vpack.c.b16 %v3796, %v3795
    %v3835 = vpack.c.b16 %v3798, %v3797
    %v3836 = vpack.c.b16 %v3800, %v3799
    %v3837 = vpack.c.b16 %v3802, %v3801
    %v3838 = vpack.c.b16 %v3804, %v3803
    %v3839 = vpack.c.b16 %v3806, %v3805
    %v3840 = vpack.c.b16 %v3808, %v3807
    %3873 = vmatpush.bf16.msra.mxu0 %v3816
    %3874 = vmatpush.bf16.msra.mxu0 %v3815
    %3875 = vmatpush.bf16.msra.mxu0 %v3814
    %3876 = vmatpush.bf16.msra.mxu0 %v3813
    %3877 = vmatpush.bf16.msra.mxu0 %v3812
    %3878 = vmatpush.bf16.msra.mxu0 %v3811
    %3879 = vmatpush.bf16.msra.mxu0 %v3810
    %3880 = vmatpush.bf16.msra.mxu0 %v3809
    %3881 = vmatmul.bf16.gmra.mxu0 %v3612
    %v3882 = vpop.f32.mrf.mxu0
    %v3883 = vadd.f32 0.0, %v3882
    %v3884 = vpop.f32.mrf.mxu0
    %v3885 = vadd.f32 0.0, %v3884
    %3886 = vdwg.mxu0
    %3887 = vmatpush.bf16.msra.mxu0 %v3824
    %3888 = vmatpush.bf16.msra.mxu0 %v3823
    %3889 = vmatpush.bf16.msra.mxu0 %v3822
    %3890 = vmatpush.bf16.msra.mxu0 %v3821
    %3891 = vmatpush.bf16.msra.mxu0 %v3820
    %3892 = vmatpush.bf16.msra.mxu0 %v3819
    %3893 = vmatpush.bf16.msra.mxu0 %v3818
    %3894 = vmatpush.bf16.msra.mxu0 %v3817
    %3895 = vmatmul.bf16.gmra.mxu0 %v3613
    %v3896 = vpop.f32.mrf.mxu0
    %v3897 = vadd.f32 %v3883, %v3896
    %v3898 = vpop.f32.mrf.mxu0
    %v3899 = vadd.f32 %v3885, %v3898
    %3900 = vdwg.mxu0
    %3901 = vmatpush.bf16.msra.mxu0 %v3832
    %3902 = vmatpush.bf16.msra.mxu0 %v3831
    %3903 = vmatpush.bf16.msra.mxu0 %v3830
    %3904 = vmatpush.bf16.msra.mxu0 %v3829
    %3905 = vmatpush.bf16.msra.mxu0 %v3828
    %3906 = vmatpush.bf16.msra.mxu0 %v3827
    %3907 = vmatpush.bf16.msra.mxu0 %v3826
    %3908 = vmatpush.bf16.msra.mxu0 %v3825
    %3909 = vmatmul.bf16.gmra.mxu0 %v3614
    %v3910 = vpop.f32.mrf.mxu0
    %v3911 = vadd.f32 %v3897, %v3910
    %v3912 = vpop.f32.mrf.mxu0
    %v3913 = vadd.f32 %v3899, %v3912
    %3914 = vdwg.mxu0
    %3915 = vmatpush.bf16.msra.mxu0 %v3840
    %3916 = vmatpush.bf16.msra.mxu0 %v3839
    %3917 = vmatpush.bf16.msra.mxu0 %v3838
    %3918 = vmatpush.bf16.msra.mxu0 %v3837
    %3919 = vmatpush.bf16.msra.mxu0 %v3836
    %3920 = vmatpush.bf16.msra.mxu0 %v3835
    %3921 = vmatpush.bf16.msra.mxu0 %v3834
    %3922 = vmatpush.bf16.msra.mxu0 %v3833
    %3923 = vmatmul.bf16.gmra.mxu0 %v3615
    %v3924 = vpop.f32.mrf.mxu0
    %v3925 = vadd.f32 %v3911, %v3924
    %v3926 = vpop.f32.mrf.mxu0
    %v3927 = vadd.f32 %v3913, %v3926
    %3928 = vdwg.mxu0
    %v3929 = vadd.f32 %v3538, %v3925
    %v3930 = vadd.f32 %v3539, %v3927
    %v3931 = vld [vmem:[#allocation2 + $0x400] sm:$0xff]
    %v3932 = vld [vmem:[#allocation2 + $0x408] sm:$0xff]
    %v3933 = vld [vmem:[#allocation2 + $0x410] sm:$0xff]
    %v3934 = vld [vmem:[#allocation2 + $0x418] sm:$0xff]
    %v3935 = vld [vmem:[#allocation2 + $0x420] sm:$0xff]
    %v3936 = vld [vmem:[#allocation2 + $0x428] sm:$0xff]
    %v3937 = vld [vmem:[#allocation2 + $0x430] sm:$0xff]
    %v3938 = vld [vmem:[#allocation2 + $0x438] sm:$0xff]
    %v3939 = vld [vmem:[#allocation2 + $0x440] sm:$0xff]
    %v3940 = vld [vmem:[#allocation2 + $0x448] sm:$0xff]
    %v3941 = vld [vmem:[#allocation2 + $0x450] sm:$0xff]
    %v3942 = vld [vmem:[#allocation2 + $0x458] sm:$0xff]
    %v3943 = vld [vmem:[#allocation2 + $0x460] sm:$0xff]
    %v3944 = vld [vmem:[#allocation2 + $0x468] sm:$0xff]
    %v3945 = vld [vmem:[#allocation2 + $0x470] sm:$0xff]
    %v3946 = vld [vmem:[#allocation2 + $0x478] sm:$0xff]
    %v3947 = vld [vmem:[#allocation2 + $0x480] sm:$0xff]
    %v3948 = vld [vmem:[#allocation2 + $0x488] sm:$0xff]
    %v3949 = vld [vmem:[#allocation2 + $0x490] sm:$0xff]
    %v3950 = vld [vmem:[#allocation2 + $0x498] sm:$0xff]
    %v3951 = vld [vmem:[#allocation2 + $0x4a0] sm:$0xff]
    %v3952 = vld [vmem:[#allocation2 + $0x4a8] sm:$0xff]
    %v3953 = vld [vmem:[#allocation2 + $0x4b0] sm:$0xff]
    %v3954 = vld [vmem:[#allocation2 + $0x4b8] sm:$0xff]
    %v3955 = vld [vmem:[#allocation2 + $0x4c0] sm:$0xff]
    %v3956 = vld [vmem:[#allocation2 + $0x4c8] sm:$0xff]
    %v3957 = vld [vmem:[#allocation2 + $0x4d0] sm:$0xff]
    %v3958 = vld [vmem:[#allocation2 + $0x4d8] sm:$0xff]
    %v3959 = vld [vmem:[#allocation2 + $0x4e0] sm:$0xff]
    %v3960 = vld [vmem:[#allocation2 + $0x4e8] sm:$0xff]
    %v3961 = vld [vmem:[#allocation2 + $0x4f0] sm:$0xff]
    %v3962 = vld [vmem:[#allocation2 + $0x4f8] sm:$0xff]
    %v3963 = vmax.f32 %v3931, %v3947
    %v3964 = vmax.f32 %v3932, %v3948
    %v3965 = vmax.f32 %v3933, %v3949
    %v3966 = vmax.f32 %v3934, %v3950
    %v3967 = vmax.f32 %v3935, %v3951
    %v3968 = vmax.f32 %v3936, %v3952
    %v3969 = vmax.f32 %v3937, %v3953
    %v3970 = vmax.f32 %v3938, %v3954
    %v3971 = vmax.f32 %v3939, %v3955
    %v3972 = vmax.f32 %v3940, %v3956
    %v3973 = vmax.f32 %v3941, %v3957
    %v3974 = vmax.f32 %v3942, %v3958
    %v3975 = vmax.f32 %v3943, %v3959
    %v3976 = vmax.f32 %v3944, %v3960
    %v3977 = vmax.f32 %v3945, %v3961
    %v3978 = vmax.f32 %v3946, %v3962
    %v3979 = vmax.f32 %v3963, %v3967
    %v3980 = vmax.f32 %v3964, %v3968
    %v3981 = vmax.f32 %v3965, %v3969
    %v3982 = vmax.f32 %v3966, %v3970
    %v3983 = vmax.f32 %v3971, %v3975
    %v3984 = vmax.f32 %v3972, %v3976
    %v3985 = vmax.f32 %v3973, %v3977
    %v3986 = vmax.f32 %v3974, %v3978
    %v3987 = vadd.f32 %v3979, %v2420
    %v3988 = vadd.f32 %v3980, %v2421
    %v3989 = vadd.f32 %v3981, %v2422
    %v3990 = vadd.f32 %v3982, %v2423
    %v3991 = vadd.f32 %v3983, %v2420
    %v3992 = vadd.f32 %v3984, %v2421
    %v3993 = vadd.f32 %v3985, %v2422
    %v3994 = vadd.f32 %v3986, %v2423
    %v3995 = vmax.f32 %v3987, 0.0
    %v3996 = vmax.f32 %v3988, 0.0
    %v3997 = vmax.f32 %v3989, 0.0
    %v3998 = vmax.f32 %v3990, 0.0
    %v3999 = vmax.f32 %v3991, 0.0
    %v4000 = vmax.f32 %v3992, 0.0
    %v4001 = vmax.f32 %v3993, 0.0
    %v4002 = vmax.f32 %v3994, 0.0
    %v4003 = vpack.c.bf16 %v3999, %v3995
    %v4004 = vpack.c.bf16 %v4000, %v3996
    %v4005 = vpack.c.bf16 %v4001, %v3997
    %v4006 = vpack.c.bf16 %v4002, %v3998
    %s4007 = scalar_lea.vmem [#allocation7], 1024
    %v4008 = vld [vmem:[%s4007] sm:$0xf]
    %v4009 = vld [vmem:[%s4007 + $0x4] sm:$0xf]
    %v4010 = vld [vmem:[%s4007 + $0x8] sm:$0xf]
    %v4011 = vld [vmem:[%s4007 + $0xc] sm:$0xf]
    %v4012 = vld [vmem:[%s4007 + $0x10] sm:$0xf]
    %v4013 = vld [vmem:[%s4007 + $0x14] sm:$0xf]
    %v4014 = vld [vmem:[%s4007 + $0x18] sm:$0xf]
    %v4015 = vld [vmem:[%s4007 + $0x1c] sm:$0xf]
    %v4016 = vld [vmem:[%s4007 + $0x20] sm:$0xf]
    %v4017 = vld [vmem:[%s4007 + $0x24] sm:$0xf]
    %v4018 = vld [vmem:[%s4007 + $0x28] sm:$0xf]
    %v4019 = vld [vmem:[%s4007 + $0x2c] sm:$0xf]
    %v4020 = vld [vmem:[%s4007 + $0x30] sm:$0xf]
    %v4021 = vld [vmem:[%s4007 + $0x34] sm:$0xf]
    %v4022 = vld [vmem:[%s4007 + $0x38] sm:$0xf]
    %v4023 = vld [vmem:[%s4007 + $0x3c] sm:$0xf]
    %v4024 = vld [vmem:[%s4007 + $0x40] sm:$0xf]
    %v4025 = vld [vmem:[%s4007 + $0x44] sm:$0xf]
    %v4026 = vld [vmem:[%s4007 + $0x48] sm:$0xf]
    %v4027 = vld [vmem:[%s4007 + $0x4c] sm:$0xf]
    %v4028 = vld [vmem:[%s4007 + $0x50] sm:$0xf]
    %v4029 = vld [vmem:[%s4007 + $0x54] sm:$0xf]
    %v4030 = vld [vmem:[%s4007 + $0x58] sm:$0xf]
    %v4031 = vld [vmem:[%s4007 + $0x5c] sm:$0xf]
    %v4032 = vld [vmem:[%s4007 + $0x60] sm:$0xf]
    %v4033 = vld [vmem:[%s4007 + $0x64] sm:$0xf]
    %v4034 = vld [vmem:[%s4007 + $0x68] sm:$0xf]
    %v4035 = vld [vmem:[%s4007 + $0x6c] sm:$0xf]
    %v4036 = vld [vmem:[%s4007 + $0x70] sm:$0xf]
    %v4037 = vld [vmem:[%s4007 + $0x74] sm:$0xf]
    %v4038 = vld [vmem:[%s4007 + $0x78] sm:$0xf]
    %v4039 = vld [vmem:[%s4007 + $0x7c] sm:$0xf]
    %v4040 = vld [vmem:[%s4007 + $0x80] sm:$0xf]
    %v4041 = vld [vmem:[%s4007 + $0x84] sm:$0xf]
    %v4042 = vld [vmem:[%s4007 + $0x88] sm:$0xf]
    %v4043 = vld [vmem:[%s4007 + $0x8c] sm:$0xf]
    %v4044 = vld [vmem:[%s4007 + $0x90] sm:$0xf]
    %v4045 = vld [vmem:[%s4007 + $0x94] sm:$0xf]
    %v4046 = vld [vmem:[%s4007 + $0x98] sm:$0xf]
    %v4047 = vld [vmem:[%s4007 + $0x9c] sm:$0xf]
    %v4048 = vld [vmem:[%s4007 + $0xa0] sm:$0xf]
    %v4049 = vld [vmem:[%s4007 + $0xa4] sm:$0xf]
    %v4050 = vld [vmem:[%s4007 + $0xa8] sm:$0xf]
    %v4051 = vld [vmem:[%s4007 + $0xac] sm:$0xf]
    %v4052 = vld [vmem:[%s4007 + $0xb0] sm:$0xf]
    %v4053 = vld [vmem:[%s4007 + $0xb4] sm:$0xf]
    %v4054 = vld [vmem:[%s4007 + $0xb8] sm:$0xf]
    %v4055 = vld [vmem:[%s4007 + $0xbc] sm:$0xf]
    %v4056 = vld [vmem:[%s4007 + $0xc0] sm:$0xf]
    %v4057 = vld [vmem:[%s4007 + $0xc4] sm:$0xf]
    %v4058 = vld [vmem:[%s4007 + $0xc8] sm:$0xf]
    %v4059 = vld [vmem:[%s4007 + $0xcc] sm:$0xf]
    %v4060 = vld [vmem:[%s4007 + $0xd0] sm:$0xf]
    %v4061 = vld [vmem:[%s4007 + $0xd4] sm:$0xf]
    %v4062 = vld [vmem:[%s4007 + $0xd8] sm:$0xf]
    %v4063 = vld [vmem:[%s4007 + $0xdc] sm:$0xf]
    %v4064 = vld [vmem:[%s4007 + $0xe0] sm:$0xf]
    %v4065 = vld [vmem:[%s4007 + $0xe4] sm:$0xf]
    %v4066 = vld [vmem:[%s4007 + $0xe8] sm:$0xf]
    %v4067 = vld [vmem:[%s4007 + $0xec] sm:$0xf]
    %v4068 = vld [vmem:[%s4007 + $0xf0] sm:$0xf]
    %v4069 = vld [vmem:[%s4007 + $0xf4] sm:$0xf]
    %v4070 = vld [vmem:[%s4007 + $0xf8] sm:$0xf]
    %v4071 = vld [vmem:[%s4007 + $0xfc] sm:$0xf]
    %v4136 = vunpack.c.l.b16 %v4008
    %v4137 = vunpack.c.l.b16 %v4009
    %v4138 = vunpack.c.l.b16 %v4010
    %v4139 = vunpack.c.l.b16 %v4011
    %v4140 = vunpack.c.l.b16 %v4012
    %v4141 = vunpack.c.l.b16 %v4013
    %v4142 = vunpack.c.l.b16 %v4014
    %v4143 = vunpack.c.l.b16 %v4015
    %v4144 = vunpack.c.l.b16 %v4016
    %v4145 = vunpack.c.l.b16 %v4017
    %v4146 = vunpack.c.l.b16 %v4018
    %v4147 = vunpack.c.l.b16 %v4019
    %v4148 = vunpack.c.l.b16 %v4020
    %v4149 = vunpack.c.l.b16 %v4021
    %v4150 = vunpack.c.l.b16 %v4022
    %v4151 = vunpack.c.l.b16 %v4023
    %v4152 = vunpack.c.l.b16 %v4024
    %v4153 = vunpack.c.l.b16 %v4025
    %v4154 = vunpack.c.l.b16 %v4026
    %v4155 = vunpack.c.l.b16 %v4027
    %v4156 = vunpack.c.l.b16 %v4028
    %v4157 = vunpack.c.l.b16 %v4029
    %v4158 = vunpack.c.l.b16 %v4030
    %v4159 = vunpack.c.l.b16 %v4031
    %v4160 = vunpack.c.l.b16 %v4032
    %v4161 = vunpack.c.l.b16 %v4033
    %v4162 = vunpack.c.l.b16 %v4034
    %v4163 = vunpack.c.l.b16 %v4035
    %v4164 = vunpack.c.l.b16 %v4036
    %v4165 = vunpack.c.l.b16 %v4037
    %v4166 = vunpack.c.l.b16 %v4038
    %v4167 = vunpack.c.l.b16 %v4039
    %v4168 = vunpack.c.l.b16 %v4040
    %v4169 = vunpack.c.l.b16 %v4041
    %v4170 = vunpack.c.l.b16 %v4042
    %v4171 = vunpack.c.l.b16 %v4043
    %v4172 = vunpack.c.l.b16 %v4044
    %v4173 = vunpack.c.l.b16 %v4045
    %v4174 = vunpack.c.l.b16 %v4046
    %v4175 = vunpack.c.l.b16 %v4047
    %v4176 = vunpack.c.l.b16 %v4048
    %v4177 = vunpack.c.l.b16 %v4049
    %v4178 = vunpack.c.l.b16 %v4050
    %v4179 = vunpack.c.l.b16 %v4051
    %v4180 = vunpack.c.l.b16 %v4052
    %v4181 = vunpack.c.l.b16 %v4053
    %v4182 = vunpack.c.l.b16 %v4054
    %v4183 = vunpack.c.l.b16 %v4055
    %v4184 = vunpack.c.l.b16 %v4056
    %v4185 = vunpack.c.l.b16 %v4057
    %v4186 = vunpack.c.l.b16 %v4058
    %v4187 = vunpack.c.l.b16 %v4059
    %v4188 = vunpack.c.l.b16 %v4060
    %v4189 = vunpack.c.l.b16 %v4061
    %v4190 = vunpack.c.l.b16 %v4062
    %v4191 = vunpack.c.l.b16 %v4063
    %v4192 = vunpack.c.l.b16 %v4064
    %v4193 = vunpack.c.l.b16 %v4065
    %v4194 = vunpack.c.l.b16 %v4066
    %v4195 = vunpack.c.l.b16 %v4067
    %v4196 = vunpack.c.l.b16 %v4068
    %v4197 = vunpack.c.l.b16 %v4069
    %v4198 = vunpack.c.l.b16 %v4070
    %v4199 = vunpack.c.l.b16 %v4071
    %v4200 = vpack.c.b16 %v4137, %v4136
    %v4201 = vpack.c.b16 %v4139, %v4138
    %v4202 = vpack.c.b16 %v4141, %v4140
    %v4203 = vpack.c.b16 %v4143, %v4142
    %v4204 = vpack.c.b16 %v4145, %v4144
    %v4205 = vpack.c.b16 %v4147, %v4146
    %v4206 = vpack.c.b16 %v4149, %v4148
    %v4207 = vpack.c.b16 %v4151, %v4150
    %v4208 = vpack.c.b16 %v4153, %v4152
    %v4209 = vpack.c.b16 %v4155, %v4154
    %v4210 = vpack.c.b16 %v4157, %v4156
    %v4211 = vpack.c.b16 %v4159, %v4158
    %v4212 = vpack.c.b16 %v4161, %v4160
    %v4213 = vpack.c.b16 %v4163, %v4162
    %v4214 = vpack.c.b16 %v4165, %v4164
    %v4215 = vpack.c.b16 %v4167, %v4166
    %v4216 = vpack.c.b16 %v4169, %v4168
    %v4217 = vpack.c.b16 %v4171, %v4170
    %v4218 = vpack.c.b16 %v4173, %v4172
    %v4219 = vpack.c.b16 %v4175, %v4174
    %v4220 = vpack.c.b16 %v4177, %v4176
    %v4221 = vpack.c.b16 %v4179, %v4178
    %v4222 = vpack.c.b16 %v4181, %v4180
    %v4223 = vpack.c.b16 %v4183, %v4182
    %v4224 = vpack.c.b16 %v4185, %v4184
    %v4225 = vpack.c.b16 %v4187, %v4186
    %v4226 = vpack.c.b16 %v4189, %v4188
    %v4227 = vpack.c.b16 %v4191, %v4190
    %v4228 = vpack.c.b16 %v4193, %v4192
    %v4229 = vpack.c.b16 %v4195, %v4194
    %v4230 = vpack.c.b16 %v4197, %v4196
    %v4231 = vpack.c.b16 %v4199, %v4198
    %4264 = vmatpush.bf16.msra.mxu0 %v4207
    %4265 = vmatpush.bf16.msra.mxu0 %v4206
    %4266 = vmatpush.bf16.msra.mxu0 %v4205
    %4267 = vmatpush.bf16.msra.mxu0 %v4204
    %4268 = vmatpush.bf16.msra.mxu0 %v4203
    %4269 = vmatpush.bf16.msra.mxu0 %v4202
    %4270 = vmatpush.bf16.msra.mxu0 %v4201
    %4271 = vmatpush.bf16.msra.mxu0 %v4200
    %4272 = vmatmul.bf16.gmra.mxu0 %v4003
    %v4273 = vpop.f32.mrf.mxu0
    %v4274 = vadd.f32 0.0, %v4273
    %v4275 = vpop.f32.mrf.mxu0
    %v4276 = vadd.f32 0.0, %v4275
    %4277 = vdwg.mxu0
    %4278 = vmatpush.bf16.msra.mxu0 %v4215
    %4279 = vmatpush.bf16.msra.mxu0 %v4214
    %4280 = vmatpush.bf16.msra.mxu0 %v4213
    %4281 = vmatpush.bf16.msra.mxu0 %v4212
    %4282 = vmatpush.bf16.msra.mxu0 %v4211
    %4283 = vmatpush.bf16.msra.mxu0 %v4210
    %4284 = vmatpush.bf16.msra.mxu0 %v4209
    %4285 = vmatpush.bf16.msra.mxu0 %v4208
    %4286 = vmatmul.bf16.gmra.mxu0 %v4004
    %v4287 = vpop.f32.mrf.mxu0
    %v4288 = vadd.f32 %v4274, %v4287
    %v4289 = vpop.f32.mrf.mxu0
    %v4290 = vadd.f32 %v4276, %v4289
    %4291 = vdwg.mxu0
    %4292 = vmatpush.bf16.msra.mxu0 %v4223
    %4293 = vmatpush.bf16.msra.mxu0 %v4222
    %4294 = vmatpush.bf16.msra.mxu0 %v4221
    %4295 = vmatpush.bf16.msra.mxu0 %v4220
    %4296 = vmatpush.bf16.msra.mxu0 %v4219
    %4297 = vmatpush.bf16.msra.mxu0 %v4218
    %4298 = vmatpush.bf16.msra.mxu0 %v4217
    %4299 = vmatpush.bf16.msra.mxu0 %v4216
    %4300 = vmatmul.bf16.gmra.mxu0 %v4005
    %v4301 = vpop.f32.mrf.mxu0
    %v4302 = vadd.f32 %v4288, %v4301
    %v4303 = vpop.f32.mrf.mxu0
    %v4304 = vadd.f32 %v4290, %v4303
    %4305 = vdwg.mxu0
    %4306 = vmatpush.bf16.msra.mxu0 %v4231
    %4307 = vmatpush.bf16.msra.mxu0 %v4230
    %4308 = vmatpush.bf16.msra.mxu0 %v4229
    %4309 = vmatpush.bf16.msra.mxu0 %v4228
    %4310 = vmatpush.bf16.msra.mxu0 %v4227
    %4311 = vmatpush.bf16.msra.mxu0 %v4226
    %4312 = vmatpush.bf16.msra.mxu0 %v4225
    %4313 = vmatpush.bf16.msra.mxu0 %v4224
    %4314 = vmatmul.bf16.gmra.mxu0 %v4006
    %v4315 = vpop.f32.mrf.mxu0
    %v4316 = vadd.f32 %v4302, %v4315
    %v4317 = vpop.f32.mrf.mxu0
    %v4318 = vadd.f32 %v4304, %v4317
    %4319 = vdwg.mxu0
    %v4320 = vadd.f32 %v3929, %v4316
    %v4321 = vadd.f32 %v3930, %v4318
    %v4322 = vld [vmem:[#allocation2 + $0x500] sm:$0xff]
    %v4323 = vld [vmem:[#allocation2 + $0x508] sm:$0xff]
    %v4324 = vld [vmem:[#allocation2 + $0x510] sm:$0xff]
    %v4325 = vld [vmem:[#allocation2 + $0x518] sm:$0xff]
    %v4326 = vld [vmem:[#allocation2 + $0x520] sm:$0xff]
    %v4327 = vld [vmem:[#allocation2 + $0x528] sm:$0xff]
    %v4328 = vld [vmem:[#allocation2 + $0x530] sm:$0xff]
    %v4329 = vld [vmem:[#allocation2 + $0x538] sm:$0xff]
    %v4330 = vld [vmem:[#allocation2 + $0x540] sm:$0xff]
    %v4331 = vld [vmem:[#allocation2 + $0x548] sm:$0xff]
    %v4332 = vld [vmem:[#allocation2 + $0x550] sm:$0xff]
    %v4333 = vld [vmem:[#allocation2 + $0x558] sm:$0xff]
    %v4334 = vld [vmem:[#allocation2 + $0x560] sm:$0xff]
    %v4335 = vld [vmem:[#allocation2 + $0x568] sm:$0xff]
    %v4336 = vld [vmem:[#allocation2 + $0x570] sm:$0xff]
    %v4337 = vld [vmem:[#allocation2 + $0x578] sm:$0xff]
    %v4338 = vld [vmem:[#allocation2 + $0x580] sm:$0xff]
    %v4339 = vld [vmem:[#allocation2 + $0x588] sm:$0xff]
    %v4340 = vld [vmem:[#allocation2 + $0x590] sm:$0xff]
    %v4341 = vld [vmem:[#allocation2 + $0x598] sm:$0xff]
    %v4342 = vld [vmem:[#allocation2 + $0x5a0] sm:$0xff]
    %v4343 = vld [vmem:[#allocation2 + $0x5a8] sm:$0xff]
    %v4344 = vld [vmem:[#allocation2 + $0x5b0] sm:$0xff]
    %v4345 = vld [vmem:[#allocation2 + $0x5b8] sm:$0xff]
    %v4346 = vld [vmem:[#allocation2 + $0x5c0] sm:$0xff]
    %v4347 = vld [vmem:[#allocation2 + $0x5c8] sm:$0xff]
    %v4348 = vld [vmem:[#allocation2 + $0x5d0] sm:$0xff]
    %v4349 = vld [vmem:[#allocation2 + $0x5d8] sm:$0xff]
    %v4350 = vld [vmem:[#allocation2 + $0x5e0] sm:$0xff]
    %v4351 = vld [vmem:[#allocation2 + $0x5e8] sm:$0xff]
    %v4352 = vld [vmem:[#allocation2 + $0x5f0] sm:$0xff]
    %v4353 = vld [vmem:[#allocation2 + $0x5f8] sm:$0xff]
    %v4354 = vmax.f32 %v4322, %v4338
    %v4355 = vmax.f32 %v4323, %v4339
    %v4356 = vmax.f32 %v4324, %v4340
    %v4357 = vmax.f32 %v4325, %v4341
    %v4358 = vmax.f32 %v4326, %v4342
    %v4359 = vmax.f32 %v4327, %v4343
    %v4360 = vmax.f32 %v4328, %v4344
    %v4361 = vmax.f32 %v4329, %v4345
    %v4362 = vmax.f32 %v4330, %v4346
    %v4363 = vmax.f32 %v4331, %v4347
    %v4364 = vmax.f32 %v4332, %v4348
    %v4365 = vmax.f32 %v4333, %v4349
    %v4366 = vmax.f32 %v4334, %v4350
    %v4367 = vmax.f32 %v4335, %v4351
    %v4368 = vmax.f32 %v4336, %v4352
    %v4369 = vmax.f32 %v4337, %v4353
    %v4370 = vmax.f32 %v4354, %v4358
    %v4371 = vmax.f32 %v4355, %v4359
    %v4372 = vmax.f32 %v4356, %v4360
    %v4373 = vmax.f32 %v4357, %v4361
    %v4374 = vmax.f32 %v4362, %v4366
    %v4375 = vmax.f32 %v4363, %v4367
    %v4376 = vmax.f32 %v4364, %v4368
    %v4377 = vmax.f32 %v4365, %v4369
    %v4378 = vadd.f32 %v4370, %v2420
    %v4379 = vadd.f32 %v4371, %v2421
    %v4380 = vadd.f32 %v4372, %v2422
    %v4381 = vadd.f32 %v4373, %v2423
    %v4382 = vadd.f32 %v4374, %v2420
    %v4383 = vadd.f32 %v4375, %v2421
    %v4384 = vadd.f32 %v4376, %v2422
    %v4385 = vadd.f32 %v4377, %v2423
    %v4386 = vmax.f32 %v4378, 0.0
    %v4387 = vmax.f32 %v4379, 0.0
    %v4388 = vmax.f32 %v4380, 0.0
    %v4389 = vmax.f32 %v4381, 0.0
    %v4390 = vmax.f32 %v4382, 0.0
    %v4391 = vmax.f32 %v4383, 0.0
    %v4392 = vmax.f32 %v4384, 0.0
    %v4393 = vmax.f32 %v4385, 0.0
    %v4394 = vpack.c.bf16 %v4390, %v4386
    %v4395 = vpack.c.bf16 %v4391, %v4387
    %v4396 = vpack.c.bf16 %v4392, %v4388
    %v4397 = vpack.c.bf16 %v4393, %v4389
    %s4398 = scalar_lea.vmem [#allocation7], 1280
    %v4399 = vld [vmem:[%s4398] sm:$0xf]
    %v4400 = vld [vmem:[%s4398 + $0x4] sm:$0xf]
    %v4401 = vld [vmem:[%s4398 + $0x8] sm:$0xf]
    %v4402 = vld [vmem:[%s4398 + $0xc] sm:$0xf]
    %v4403 = vld [vmem:[%s4398 + $0x10] sm:$0xf]
    %v4404 = vld [vmem:[%s4398 + $0x14] sm:$0xf]
    %v4405 = vld [vmem:[%s4398 + $0x18] sm:$0xf]
    %v4406 = vld [vmem:[%s4398 + $0x1c] sm:$0xf]
    %v4407 = vld [vmem:[%s4398 + $0x20] sm:$0xf]
    %v4408 = vld [vmem:[%s4398 + $0x24] sm:$0xf]
    %v4409 = vld [vmem:[%s4398 + $0x28] sm:$0xf]
    %v4410 = vld [vmem:[%s4398 + $0x2c] sm:$0xf]
    %v4411 = vld [vmem:[%s4398 + $0x30] sm:$0xf]
    %v4412 = vld [vmem:[%s4398 + $0x34] sm:$0xf]
    %v4413 = vld [vmem:[%s4398 + $0x38] sm:$0xf]
    %v4414 = vld [vmem:[%s4398 + $0x3c] sm:$0xf]
    %v4415 = vld [vmem:[%s4398 + $0x40] sm:$0xf]
    %v4416 = vld [vmem:[%s4398 + $0x44] sm:$0xf]
    %v4417 = vld [vmem:[%s4398 + $0x48] sm:$0xf]
    %v4418 = vld [vmem:[%s4398 + $0x4c] sm:$0xf]
    %v4419 = vld [vmem:[%s4398 + $0x50] sm:$0xf]
    %v4420 = vld [vmem:[%s4398 + $0x54] sm:$0xf]
    %v4421 = vld [vmem:[%s4398 + $0x58] sm:$0xf]
    %v4422 = vld [vmem:[%s4398 + $0x5c] sm:$0xf]
    %v4423 = vld [vmem:[%s4398 + $0x60] sm:$0xf]
    %v4424 = vld [vmem:[%s4398 + $0x64] sm:$0xf]
    %v4425 = vld [vmem:[%s4398 + $0x68] sm:$0xf]
    %v4426 = vld [vmem:[%s4398 + $0x6c] sm:$0xf]
    %v4427 = vld [vmem:[%s4398 + $0x70] sm:$0xf]
    %v4428 = vld [vmem:[%s4398 + $0x74] sm:$0xf]
    %v4429 = vld [vmem:[%s4398 + $0x78] sm:$0xf]
    %v4430 = vld [vmem:[%s4398 + $0x7c] sm:$0xf]
    %v4431 = vld [vmem:[%s4398 + $0x80] sm:$0xf]
    %v4432 = vld [vmem:[%s4398 + $0x84] sm:$0xf]
    %v4433 = vld [vmem:[%s4398 + $0x88] sm:$0xf]
    %v4434 = vld [vmem:[%s4398 + $0x8c] sm:$0xf]
    %v4435 = vld [vmem:[%s4398 + $0x90] sm:$0xf]
    %v4436 = vld [vmem:[%s4398 + $0x94] sm:$0xf]
    %v4437 = vld [vmem:[%s4398 + $0x98] sm:$0xf]
    %v4438 = vld [vmem:[%s4398 + $0x9c] sm:$0xf]
    %v4439 = vld [vmem:[%s4398 + $0xa0] sm:$0xf]
    %v4440 = vld [vmem:[%s4398 + $0xa4] sm:$0xf]
    %v4441 = vld [vmem:[%s4398 + $0xa8] sm:$0xf]
    %v4442 = vld [vmem:[%s4398 + $0xac] sm:$0xf]
    %v4443 = vld [vmem:[%s4398 + $0xb0] sm:$0xf]
    %v4444 = vld [vmem:[%s4398 + $0xb4] sm:$0xf]
    %v4445 = vld [vmem:[%s4398 + $0xb8] sm:$0xf]
    %v4446 = vld [vmem:[%s4398 + $0xbc] sm:$0xf]
    %v4447 = vld [vmem:[%s4398 + $0xc0] sm:$0xf]
    %v4448 = vld [vmem:[%s4398 + $0xc4] sm:$0xf]
    %v4449 = vld [vmem:[%s4398 + $0xc8] sm:$0xf]
    %v4450 = vld [vmem:[%s4398 + $0xcc] sm:$0xf]
    %v4451 = vld [vmem:[%s4398 + $0xd0] sm:$0xf]
    %v4452 = vld [vmem:[%s4398 + $0xd4] sm:$0xf]
    %v4453 = vld [vmem:[%s4398 + $0xd8] sm:$0xf]
    %v4454 = vld [vmem:[%s4398 + $0xdc] sm:$0xf]
    %v4455 = vld [vmem:[%s4398 + $0xe0] sm:$0xf]
    %v4456 = vld [vmem:[%s4398 + $0xe4] sm:$0xf]
    %v4457 = vld [vmem:[%s4398 + $0xe8] sm:$0xf]
    %v4458 = vld [vmem:[%s4398 + $0xec] sm:$0xf]
    %v4459 = vld [vmem:[%s4398 + $0xf0] sm:$0xf]
    %v4460 = vld [vmem:[%s4398 + $0xf4] sm:$0xf]
    %v4461 = vld [vmem:[%s4398 + $0xf8] sm:$0xf]
    %v4462 = vld [vmem:[%s4398 + $0xfc] sm:$0xf]
    %v4527 = vunpack.c.l.b16 %v4399
    %v4528 = vunpack.c.l.b16 %v4400
    %v4529 = vunpack.c.l.b16 %v4401
    %v4530 = vunpack.c.l.b16 %v4402
    %v4531 = vunpack.c.l.b16 %v4403
    %v4532 = vunpack.c.l.b16 %v4404
    %v4533 = vunpack.c.l.b16 %v4405
    %v4534 = vunpack.c.l.b16 %v4406
    %v4535 = vunpack.c.l.b16 %v4407
    %v4536 = vunpack.c.l.b16 %v4408
    %v4537 = vunpack.c.l.b16 %v4409
    %v4538 = vunpack.c.l.b16 %v4410
    %v4539 = vunpack.c.l.b16 %v4411
    %v4540 = vunpack.c.l.b16 %v4412
    %v4541 = vunpack.c.l.b16 %v4413
    %v4542 = vunpack.c.l.b16 %v4414
    %v4543 = vunpack.c.l.b16 %v4415
    %v4544 = vunpack.c.l.b16 %v4416
    %v4545 = vunpack.c.l.b16 %v4417
    %v4546 = vunpack.c.l.b16 %v4418
    %v4547 = vunpack.c.l.b16 %v4419
    %v4548 = vunpack.c.l.b16 %v4420
    %v4549 = vunpack.c.l.b16 %v4421
    %v4550 = vunpack.c.l.b16 %v4422
    %v4551 = vunpack.c.l.b16 %v4423
    %v4552 = vunpack.c.l.b16 %v4424
    %v4553 = vunpack.c.l.b16 %v4425
    %v4554 = vunpack.c.l.b16 %v4426
    %v4555 = vunpack.c.l.b16 %v4427
    %v4556 = vunpack.c.l.b16 %v4428
    %v4557 = vunpack.c.l.b16 %v4429
    %v4558 = vunpack.c.l.b16 %v4430
    %v4559 = vunpack.c.l.b16 %v4431
    %v4560 = vunpack.c.l.b16 %v4432
    %v4561 = vunpack.c.l.b16 %v4433
    %v4562 = vunpack.c.l.b16 %v4434
    %v4563 = vunpack.c.l.b16 %v4435
    %v4564 = vunpack.c.l.b16 %v4436
    %v4565 = vunpack.c.l.b16 %v4437
    %v4566 = vunpack.c.l.b16 %v4438
    %v4567 = vunpack.c.l.b16 %v4439
    %v4568 = vunpack.c.l.b16 %v4440
    %v4569 = vunpack.c.l.b16 %v4441
    %v4570 = vunpack.c.l.b16 %v4442
    %v4571 = vunpack.c.l.b16 %v4443
    %v4572 = vunpack.c.l.b16 %v4444
    %v4573 = vunpack.c.l.b16 %v4445
    %v4574 = vunpack.c.l.b16 %v4446
    %v4575 = vunpack.c.l.b16 %v4447
    %v4576 = vunpack.c.l.b16 %v4448
    %v4577 = vunpack.c.l.b16 %v4449
    %v4578 = vunpack.c.l.b16 %v4450
    %v4579 = vunpack.c.l.b16 %v4451
    %v4580 = vunpack.c.l.b16 %v4452
    %v4581 = vunpack.c.l.b16 %v4453
    %v4582 = vunpack.c.l.b16 %v4454
    %v4583 = vunpack.c.l.b16 %v4455
    %v4584 = vunpack.c.l.b16 %v4456
    %v4585 = vunpack.c.l.b16 %v4457
    %v4586 = vunpack.c.l.b16 %v4458
    %v4587 = vunpack.c.l.b16 %v4459
    %v4588 = vunpack.c.l.b16 %v4460
    %v4589 = vunpack.c.l.b16 %v4461
    %v4590 = vunpack.c.l.b16 %v4462
    %v4591 = vpack.c.b16 %v4528, %v4527
    %v4592 = vpack.c.b16 %v4530, %v4529
    %v4593 = vpack.c.b16 %v4532, %v4531
    %v4594 = vpack.c.b16 %v4534, %v4533
    %v4595 = vpack.c.b16 %v4536, %v4535
    %v4596 = vpack.c.b16 %v4538, %v4537
    %v4597 = vpack.c.b16 %v4540, %v4539
    %v4598 = vpack.c.b16 %v4542, %v4541
    %v4599 = vpack.c.b16 %v4544, %v4543
    %v4600 = vpack.c.b16 %v4546, %v4545
    %v4601 = vpack.c.b16 %v4548, %v4547
    %v4602 = vpack.c.b16 %v4550, %v4549
    %v4603 = vpack.c.b16 %v4552, %v4551
    %v4604 = vpack.c.b16 %v4554, %v4553
    %v4605 = vpack.c.b16 %v4556, %v4555
    %v4606 = vpack.c.b16 %v4558, %v4557
    %v4607 = vpack.c.b16 %v4560, %v4559
    %v4608 = vpack.c.b16 %v4562, %v4561
    %v4609 = vpack.c.b16 %v4564, %v4563
    %v4610 = vpack.c.b16 %v4566, %v4565
    %v4611 = vpack.c.b16 %v4568, %v4567
    %v4612 = vpack.c.b16 %v4570, %v4569
    %v4613 = vpack.c.b16 %v4572, %v4571
    %v4614 = vpack.c.b16 %v4574, %v4573
    %v4615 = vpack.c.b16 %v4576, %v4575
    %v4616 = vpack.c.b16 %v4578, %v4577
    %v4617 = vpack.c.b16 %v4580, %v4579
    %v4618 = vpack.c.b16 %v4582, %v4581
    %v4619 = vpack.c.b16 %v4584, %v4583
    %v4620 = vpack.c.b16 %v4586, %v4585
    %v4621 = vpack.c.b16 %v4588, %v4587
    %v4622 = vpack.c.b16 %v4590, %v4589
    %4655 = vmatpush.bf16.msra.mxu0 %v4598
    %4656 = vmatpush.bf16.msra.mxu0 %v4597
    %4657 = vmatpush.bf16.msra.mxu0 %v4596
    %4658 = vmatpush.bf16.msra.mxu0 %v4595
    %4659 = vmatpush.bf16.msra.mxu0 %v4594
    %4660 = vmatpush.bf16.msra.mxu0 %v4593
    %4661 = vmatpush.bf16.msra.mxu0 %v4592
    %4662 = vmatpush.bf16.msra.mxu0 %v4591
    %4663 = vmatmul.bf16.gmra.mxu0 %v4394
    %v4664 = vpop.f32.mrf.mxu0
    %v4665 = vadd.f32 0.0, %v4664
    %v4666 = vpop.f32.mrf.mxu0
    %v4667 = vadd.f32 0.0, %v4666
    %4668 = vdwg.mxu0
    %4669 = vmatpush.bf16.msra.mxu0 %v4606
    %4670 = vmatpush.bf16.msra.mxu0 %v4605
    %4671 = vmatpush.bf16.msra.mxu0 %v4604
    %4672 = vmatpush.bf16.msra.mxu0 %v4603
    %4673 = vmatpush.bf16.msra.mxu0 %v4602
    %4674 = vmatpush.bf16.msra.mxu0 %v4601
    %4675 = vmatpush.bf16.msra.mxu0 %v4600
    %4676 = vmatpush.bf16.msra.mxu0 %v4599
    %4677 = vmatmul.bf16.gmra.mxu0 %v4395
    %v4678 = vpop.f32.mrf.mxu0
    %v4679 = vadd.f32 %v4665, %v4678
    %v4680 = vpop.f32.mrf.mxu0
    %v4681 = vadd.f32 %v4667, %v4680
    %4682 = vdwg.mxu0
    %4683 = vmatpush.bf16.msra.mxu0 %v4614
    %4684 = vmatpush.bf16.msra.mxu0 %v4613
    %4685 = vmatpush.bf16.msra.mxu0 %v4612
    %4686 = vmatpush.bf16.msra.mxu0 %v4611
    %4687 = vmatpush.bf16.msra.mxu0 %v4610
    %4688 = vmatpush.bf16.msra.mxu0 %v4609
    %4689 = vmatpush.bf16.msra.mxu0 %v4608
    %4690 = vmatpush.bf16.msra.mxu0 %v4607
    %4691 = vmatmul.bf16.gmra.mxu0 %v4396
    %v4692 = vpop.f32.mrf.mxu0
    %v4693 = vadd.f32 %v4679, %v4692
    %v4694 = vpop.f32.mrf.mxu0
    %v4695 = vadd.f32 %v4681, %v4694
    %4696 = vdwg.mxu0
    %4697 = vmatpush.bf16.msra.mxu0 %v4622
    %4698 = vmatpush.bf16.msra.mxu0 %v4621
    %4699 = vmatpush.bf16.msra.mxu0 %v4620
    %4700 = vmatpush.bf16.msra.mxu0 %v4619
    %4701 = vmatpush.bf16.msra.mxu0 %v4618
    %4702 = vmatpush.bf16.msra.mxu0 %v4617
    %4703 = vmatpush.bf16.msra.mxu0 %v4616
    %4704 = vmatpush.bf16.msra.mxu0 %v4615
    %4705 = vmatmul.bf16.gmra.mxu0 %v4397
    %v4706 = vpop.f32.mrf.mxu0
    %v4707 = vadd.f32 %v4693, %v4706
    %v4708 = vpop.f32.mrf.mxu0
    %v4709 = vadd.f32 %v4695, %v4708
    %4710 = vdwg.mxu0
    %v4711 = vadd.f32 %v4320, %v4707
    %v4712 = vadd.f32 %v4321, %v4709
    %v4713 = vld [vmem:[#allocation2 + $0x600] sm:$0xff]
    %v4714 = vld [vmem:[#allocation2 + $0x608] sm:$0xff]
    %v4715 = vld [vmem:[#allocation2 + $0x610] sm:$0xff]
    %v4716 = vld [vmem:[#allocation2 + $0x618] sm:$0xff]
    %v4717 = vld [vmem:[#allocation2 + $0x620] sm:$0xff]
    %v4718 = vld [vmem:[#allocation2 + $0x628] sm:$0xff]
    %v4719 = vld [vmem:[#allocation2 + $0x630] sm:$0xff]
    %v4720 = vld [vmem:[#allocation2 + $0x638] sm:$0xff]
    %v4721 = vld [vmem:[#allocation2 + $0x640] sm:$0xff]
    %v4722 = vld [vmem:[#allocation2 + $0x648] sm:$0xff]
    %v4723 = vld [vmem:[#allocation2 + $0x650] sm:$0xff]
    %v4724 = vld [vmem:[#allocation2 + $0x658] sm:$0xff]
    %v4725 = vld [vmem:[#allocation2 + $0x660] sm:$0xff]
    %v4726 = vld [vmem:[#allocation2 + $0x668] sm:$0xff]
    %v4727 = vld [vmem:[#allocation2 + $0x670] sm:$0xff]
    %v4728 = vld [vmem:[#allocation2 + $0x678] sm:$0xff]
    %v4729 = vld [vmem:[#allocation2 + $0x680] sm:$0xff]
    %v4730 = vld [vmem:[#allocation2 + $0x688] sm:$0xff]
    %v4731 = vld [vmem:[#allocation2 + $0x690] sm:$0xff]
    %v4732 = vld [vmem:[#allocation2 + $0x698] sm:$0xff]
    %v4733 = vld [vmem:[#allocation2 + $0x6a0] sm:$0xff]
    %v4734 = vld [vmem:[#allocation2 + $0x6a8] sm:$0xff]
    %v4735 = vld [vmem:[#allocation2 + $0x6b0] sm:$0xff]
    %v4736 = vld [vmem:[#allocation2 + $0x6b8] sm:$0xff]
    %v4737 = vld [vmem:[#allocation2 + $0x6c0] sm:$0xff]
    %v4738 = vld [vmem:[#allocation2 + $0x6c8] sm:$0xff]
    %v4739 = vld [vmem:[#allocation2 + $0x6d0] sm:$0xff]
    %v4740 = vld [vmem:[#allocation2 + $0x6d8] sm:$0xff]
    %v4741 = vld [vmem:[#allocation2 + $0x6e0] sm:$0xff]
    %v4742 = vld [vmem:[#allocation2 + $0x6e8] sm:$0xff]
    %v4743 = vld [vmem:[#allocation2 + $0x6f0] sm:$0xff]
    %v4744 = vld [vmem:[#allocation2 + $0x6f8] sm:$0xff]
    %v4745 = vmax.f32 %v4713, %v4729
    %v4746 = vmax.f32 %v4714, %v4730
    %v4747 = vmax.f32 %v4715, %v4731
    %v4748 = vmax.f32 %v4716, %v4732
    %v4749 = vmax.f32 %v4717, %v4733
    %v4750 = vmax.f32 %v4718, %v4734
    %v4751 = vmax.f32 %v4719, %v4735
    %v4752 = vmax.f32 %v4720, %v4736
    %v4753 = vmax.f32 %v4721, %v4737
    %v4754 = vmax.f32 %v4722, %v4738
    %v4755 = vmax.f32 %v4723, %v4739
    %v4756 = vmax.f32 %v4724, %v4740
    %v4757 = vmax.f32 %v4725, %v4741
    %v4758 = vmax.f32 %v4726, %v4742
    %v4759 = vmax.f32 %v4727, %v4743
    %v4760 = vmax.f32 %v4728, %v4744
    %v4761 = vmax.f32 %v4745, %v4749
    %v4762 = vmax.f32 %v4746, %v4750
    %v4763 = vmax.f32 %v4747, %v4751
    %v4764 = vmax.f32 %v4748, %v4752
    %v4765 = vmax.f32 %v4753, %v4757
    %v4766 = vmax.f32 %v4754, %v4758
    %v4767 = vmax.f32 %v4755, %v4759
    %v4768 = vmax.f32 %v4756, %v4760
    %v4769 = vadd.f32 %v4761, %v2420
    %v4770 = vadd.f32 %v4762, %v2421
    %v4771 = vadd.f32 %v4763, %v2422
    %v4772 = vadd.f32 %v4764, %v2423
    %v4773 = vadd.f32 %v4765, %v2420
    %v4774 = vadd.f32 %v4766, %v2421
    %v4775 = vadd.f32 %v4767, %v2422
    %v4776 = vadd.f32 %v4768, %v2423
    %v4777 = vmax.f32 %v4769, 0.0
    %v4778 = vmax.f32 %v4770, 0.0
    %v4779 = vmax.f32 %v4771, 0.0
    %v4780 = vmax.f32 %v4772, 0.0
    %v4781 = vmax.f32 %v4773, 0.0
    %v4782 = vmax.f32 %v4774, 0.0
    %v4783 = vmax.f32 %v4775, 0.0
    %v4784 = vmax.f32 %v4776, 0.0
    %v4785 = vpack.c.bf16 %v4781, %v4777
    %v4786 = vpack.c.bf16 %v4782, %v4778
    %v4787 = vpack.c.bf16 %v4783, %v4779
    %v4788 = vpack.c.bf16 %v4784, %v4780
    %s4789 = scalar_lea.vmem [#allocation7], 1536
    %v4790 = vld [vmem:[%s4789] sm:$0xf]
    %v4791 = vld [vmem:[%s4789 + $0x4] sm:$0xf]
    %v4792 = vld [vmem:[%s4789 + $0x8] sm:$0xf]
    %v4793 = vld [vmem:[%s4789 + $0xc] sm:$0xf]
    %v4794 = vld [vmem:[%s4789 + $0x10] sm:$0xf]
    %v4795 = vld [vmem:[%s4789 + $0x14] sm:$0xf]
    %v4796 = vld [vmem:[%s4789 + $0x18] sm:$0xf]
    %v4797 = vld [vmem:[%s4789 + $0x1c] sm:$0xf]
    %v4798 = vld [vmem:[%s4789 + $0x20] sm:$0xf]
    %v4799 = vld [vmem:[%s4789 + $0x24] sm:$0xf]
    %v4800 = vld [vmem:[%s4789 + $0x28] sm:$0xf]
    %v4801 = vld [vmem:[%s4789 + $0x2c] sm:$0xf]
    %v4802 = vld [vmem:[%s4789 + $0x30] sm:$0xf]
    %v4803 = vld [vmem:[%s4789 + $0x34] sm:$0xf]
    %v4804 = vld [vmem:[%s4789 + $0x38] sm:$0xf]
    %v4805 = vld [vmem:[%s4789 + $0x3c] sm:$0xf]
    %v4806 = vld [vmem:[%s4789 + $0x40] sm:$0xf]
    %v4807 = vld [vmem:[%s4789 + $0x44] sm:$0xf]
    %v4808 = vld [vmem:[%s4789 + $0x48] sm:$0xf]
    %v4809 = vld [vmem:[%s4789 + $0x4c] sm:$0xf]
    %v4810 = vld [vmem:[%s4789 + $0x50] sm:$0xf]
    %v4811 = vld [vmem:[%s4789 + $0x54] sm:$0xf]
    %v4812 = vld [vmem:[%s4789 + $0x58] sm:$0xf]
    %v4813 = vld [vmem:[%s4789 + $0x5c] sm:$0xf]
    %v4814 = vld [vmem:[%s4789 + $0x60] sm:$0xf]
    %v4815 = vld [vmem:[%s4789 + $0x64] sm:$0xf]
    %v4816 = vld [vmem:[%s4789 + $0x68] sm:$0xf]
    %v4817 = vld [vmem:[%s4789 + $0x6c] sm:$0xf]
    %v4818 = vld [vmem:[%s4789 + $0x70] sm:$0xf]
    %v4819 = vld [vmem:[%s4789 + $0x74] sm:$0xf]
    %v4820 = vld [vmem:[%s4789 + $0x78] sm:$0xf]
    %v4821 = vld [vmem:[%s4789 + $0x7c] sm:$0xf]
    %v4822 = vld [vmem:[%s4789 + $0x80] sm:$0xf]
    %v4823 = vld [vmem:[%s4789 + $0x84] sm:$0xf]
    %v4824 = vld [vmem:[%s4789 + $0x88] sm:$0xf]
    %v4825 = vld [vmem:[%s4789 + $0x8c] sm:$0xf]
    %v4826 = vld [vmem:[%s4789 + $0x90] sm:$0xf]
    %v4827 = vld [vmem:[%s4789 + $0x94] sm:$0xf]
    %v4828 = vld [vmem:[%s4789 + $0x98] sm:$0xf]
    %v4829 = vld [vmem:[%s4789 + $0x9c] sm:$0xf]
    %v4830 = vld [vmem:[%s4789 + $0xa0] sm:$0xf]
    %v4831 = vld [vmem:[%s4789 + $0xa4] sm:$0xf]
    %v4832 = vld [vmem:[%s4789 + $0xa8] sm:$0xf]
    %v4833 = vld [vmem:[%s4789 + $0xac] sm:$0xf]
    %v4834 = vld [vmem:[%s4789 + $0xb0] sm:$0xf]
    %v4835 = vld [vmem:[%s4789 + $0xb4] sm:$0xf]
    %v4836 = vld [vmem:[%s4789 + $0xb8] sm:$0xf]
    %v4837 = vld [vmem:[%s4789 + $0xbc] sm:$0xf]
    %v4838 = vld [vmem:[%s4789 + $0xc0] sm:$0xf]
    %v4839 = vld [vmem:[%s4789 + $0xc4] sm:$0xf]
    %v4840 = vld [vmem:[%s4789 + $0xc8] sm:$0xf]
    %v4841 = vld [vmem:[%s4789 + $0xcc] sm:$0xf]
    %v4842 = vld [vmem:[%s4789 + $0xd0] sm:$0xf]
    %v4843 = vld [vmem:[%s4789 + $0xd4] sm:$0xf]
    %v4844 = vld [vmem:[%s4789 + $0xd8] sm:$0xf]
    %v4845 = vld [vmem:[%s4789 + $0xdc] sm:$0xf]
    %v4846 = vld [vmem:[%s4789 + $0xe0] sm:$0xf]
    %v4847 = vld [vmem:[%s4789 + $0xe4] sm:$0xf]
    %v4848 = vld [vmem:[%s4789 + $0xe8] sm:$0xf]
    %v4849 = vld [vmem:[%s4789 + $0xec] sm:$0xf]
    %v4850 = vld [vmem:[%s4789 + $0xf0] sm:$0xf]
    %v4851 = vld [vmem:[%s4789 + $0xf4] sm:$0xf]
    %v4852 = vld [vmem:[%s4789 + $0xf8] sm:$0xf]
    %v4853 = vld [vmem:[%s4789 + $0xfc] sm:$0xf]
    %v4918 = vunpack.c.l.b16 %v4790
    %v4919 = vunpack.c.l.b16 %v4791
    %v4920 = vunpack.c.l.b16 %v4792
    %v4921 = vunpack.c.l.b16 %v4793
    %v4922 = vunpack.c.l.b16 %v4794
    %v4923 = vunpack.c.l.b16 %v4795
    %v4924 = vunpack.c.l.b16 %v4796
    %v4925 = vunpack.c.l.b16 %v4797
    %v4926 = vunpack.c.l.b16 %v4798
    %v4927 = vunpack.c.l.b16 %v4799
    %v4928 = vunpack.c.l.b16 %v4800
    %v4929 = vunpack.c.l.b16 %v4801
    %v4930 = vunpack.c.l.b16 %v4802
    %v4931 = vunpack.c.l.b16 %v4803
    %v4932 = vunpack.c.l.b16 %v4804
    %v4933 = vunpack.c.l.b16 %v4805
    %v4934 = vunpack.c.l.b16 %v4806
    %v4935 = vunpack.c.l.b16 %v4807
    %v4936 = vunpack.c.l.b16 %v4808
    %v4937 = vunpack.c.l.b16 %v4809
    %v4938 = vunpack.c.l.b16 %v4810
    %v4939 = vunpack.c.l.b16 %v4811
    %v4940 = vunpack.c.l.b16 %v4812
    %v4941 = vunpack.c.l.b16 %v4813
    %v4942 = vunpack.c.l.b16 %v4814
    %v4943 = vunpack.c.l.b16 %v4815
    %v4944 = vunpack.c.l.b16 %v4816
    %v4945 = vunpack.c.l.b16 %v4817
    %v4946 = vunpack.c.l.b16 %v4818
    %v4947 = vunpack.c.l.b16 %v4819
    %v4948 = vunpack.c.l.b16 %v4820
    %v4949 = vunpack.c.l.b16 %v4821
    %v4950 = vunpack.c.l.b16 %v4822
    %v4951 = vunpack.c.l.b16 %v4823
    %v4952 = vunpack.c.l.b16 %v4824
    %v4953 = vunpack.c.l.b16 %v4825
    %v4954 = vunpack.c.l.b16 %v4826
    %v4955 = vunpack.c.l.b16 %v4827
    %v4956 = vunpack.c.l.b16 %v4828
    %v4957 = vunpack.c.l.b16 %v4829
    %v4958 = vunpack.c.l.b16 %v4830
    %v4959 = vunpack.c.l.b16 %v4831
    %v4960 = vunpack.c.l.b16 %v4832
    %v4961 = vunpack.c.l.b16 %v4833
    %v4962 = vunpack.c.l.b16 %v4834
    %v4963 = vunpack.c.l.b16 %v4835
    %v4964 = vunpack.c.l.b16 %v4836
    %v4965 = vunpack.c.l.b16 %v4837
    %v4966 = vunpack.c.l.b16 %v4838
    %v4967 = vunpack.c.l.b16 %v4839
    %v4968 = vunpack.c.l.b16 %v4840
    %v4969 = vunpack.c.l.b16 %v4841
    %v4970 = vunpack.c.l.b16 %v4842
    %v4971 = vunpack.c.l.b16 %v4843
    %v4972 = vunpack.c.l.b16 %v4844
    %v4973 = vunpack.c.l.b16 %v4845
    %v4974 = vunpack.c.l.b16 %v4846
    %v4975 = vunpack.c.l.b16 %v4847
    %v4976 = vunpack.c.l.b16 %v4848
    %v4977 = vunpack.c.l.b16 %v4849
    %v4978 = vunpack.c.l.b16 %v4850
    %v4979 = vunpack.c.l.b16 %v4851
    %v4980 = vunpack.c.l.b16 %v4852
    %v4981 = vunpack.c.l.b16 %v4853
    %v4982 = vpack.c.b16 %v4919, %v4918
    %v4983 = vpack.c.b16 %v4921, %v4920
    %v4984 = vpack.c.b16 %v4923, %v4922
    %v4985 = vpack.c.b16 %v4925, %v4924
    %v4986 = vpack.c.b16 %v4927, %v4926
    %v4987 = vpack.c.b16 %v4929, %v4928
    %v4988 = vpack.c.b16 %v4931, %v4930
    %v4989 = vpack.c.b16 %v4933, %v4932
    %v4990 = vpack.c.b16 %v4935, %v4934
    %v4991 = vpack.c.b16 %v4937, %v4936
    %v4992 = vpack.c.b16 %v4939, %v4938
    %v4993 = vpack.c.b16 %v4941, %v4940
    %v4994 = vpack.c.b16 %v4943, %v4942
    %v4995 = vpack.c.b16 %v4945, %v4944
    %v4996 = vpack.c.b16 %v4947, %v4946
    %v4997 = vpack.c.b16 %v4949, %v4948
    %v4998 = vpack.c.b16 %v4951, %v4950
    %v4999 = vpack.c.b16 %v4953, %v4952
    %v5000 = vpack.c.b16 %v4955, %v4954
    %v5001 = vpack.c.b16 %v4957, %v4956
    %v5002 = vpack.c.b16 %v4959, %v4958
    %v5003 = vpack.c.b16 %v4961, %v4960
    %v5004 = vpack.c.b16 %v4963, %v4962
    %v5005 = vpack.c.b16 %v4965, %v4964
    %v5006 = vpack.c.b16 %v4967, %v4966
    %v5007 = vpack.c.b16 %v4969, %v4968
    %v5008 = vpack.c.b16 %v4971, %v4970
    %v5009 = vpack.c.b16 %v4973, %v4972
    %v5010 = vpack.c.b16 %v4975, %v4974
    %v5011 = vpack.c.b16 %v4977, %v4976
    %v5012 = vpack.c.b16 %v4979, %v4978
    %v5013 = vpack.c.b16 %v4981, %v4980
    %5046 = vmatpush.bf16.msra.mxu0 %v4989
    %5047 = vmatpush.bf16.msra.mxu0 %v4988
    %5048 = vmatpush.bf16.msra.mxu0 %v4987
    %5049 = vmatpush.bf16.msra.mxu0 %v4986
    %5050 = vmatpush.bf16.msra.mxu0 %v4985
    %5051 = vmatpush.bf16.msra.mxu0 %v4984
    %5052 = vmatpush.bf16.msra.mxu0 %v4983
    %5053 = vmatpush.bf16.msra.mxu0 %v4982
    %5054 = vmatmul.bf16.gmra.mxu0 %v4785
    %v5055 = vpop.f32.mrf.mxu0
    %v5056 = vadd.f32 0.0, %v5055
    %v5057 = vpop.f32.mrf.mxu0
    %v5058 = vadd.f32 0.0, %v5057
    %5059 = vdwg.mxu0
    %5060 = vmatpush.bf16.msra.mxu0 %v4997
    %5061 = vmatpush.bf16.msra.mxu0 %v4996
    %5062 = vmatpush.bf16.msra.mxu0 %v4995
    %5063 = vmatpush.bf16.msra.mxu0 %v4994
    %5064 = vmatpush.bf16.msra.mxu0 %v4993
    %5065 = vmatpush.bf16.msra.mxu0 %v4992
    %5066 = vmatpush.bf16.msra.mxu0 %v4991
    %5067 = vmatpush.bf16.msra.mxu0 %v4990
    %5068 = vmatmul.bf16.gmra.mxu0 %v4786
    %v5069 = vpop.f32.mrf.mxu0
    %v5070 = vadd.f32 %v5056, %v5069
    %v5071 = vpop.f32.mrf.mxu0
    %v5072 = vadd.f32 %v5058, %v5071
    %5073 = vdwg.mxu0
    %5074 = vmatpush.bf16.msra.mxu0 %v5005
    %5075 = vmatpush.bf16.msra.mxu0 %v5004
    %5076 = vmatpush.bf16.msra.mxu0 %v5003
    %5077 = vmatpush.bf16.msra.mxu0 %v5002
    %5078 = vmatpush.bf16.msra.mxu0 %v5001
    %5079 = vmatpush.bf16.msra.mxu0 %v5000
    %5080 = vmatpush.bf16.msra.mxu0 %v4999
    %5081 = vmatpush.bf16.msra.mxu0 %v4998
    %5082 = vmatmul.bf16.gmra.mxu0 %v4787
    %v5083 = vpop.f32.mrf.mxu0
    %v5084 = vadd.f32 %v5070, %v5083
    %v5085 = vpop.f32.mrf.mxu0
    %v5086 = vadd.f32 %v5072, %v5085
    %5087 = vdwg.mxu0
    %5088 = vmatpush.bf16.msra.mxu0 %v5013
    %5089 = vmatpush.bf16.msra.mxu0 %v5012
    %5090 = vmatpush.bf16.msra.mxu0 %v5011
    %5091 = vmatpush.bf16.msra.mxu0 %v5010
    %5092 = vmatpush.bf16.msra.mxu0 %v5009
    %5093 = vmatpush.bf16.msra.mxu0 %v5008
    %5094 = vmatpush.bf16.msra.mxu0 %v5007
    %5095 = vmatpush.bf16.msra.mxu0 %v5006
    %5096 = vmatmul.bf16.gmra.mxu0 %v4788
    %v5097 = vpop.f32.mrf.mxu0
    %v5098 = vadd.f32 %v5084, %v5097
    %v5099 = vpop.f32.mrf.mxu0
    %v5100 = vadd.f32 %v5086, %v5099
    %5101 = vdwg.mxu0
    %v5102 = vadd.f32 %v4711, %v5098
    %v5103 = vadd.f32 %v4712, %v5100
    %v5104 = vld [vmem:[#allocation2 + $0x700] sm:$0xff]
    %v5105 = vld [vmem:[#allocation2 + $0x708] sm:$0xff]
    %v5106 = vld [vmem:[#allocation2 + $0x710] sm:$0xff]
    %v5107 = vld [vmem:[#allocation2 + $0x718] sm:$0xff]
    %v5108 = vld [vmem:[#allocation2 + $0x720] sm:$0xff]
    %v5109 = vld [vmem:[#allocation2 + $0x728] sm:$0xff]
    %v5110 = vld [vmem:[#allocation2 + $0x730] sm:$0xff]
    %v5111 = vld [vmem:[#allocation2 + $0x738] sm:$0xff]
    %v5112 = vld [vmem:[#allocation2 + $0x740] sm:$0xff]
    %v5113 = vld [vmem:[#allocation2 + $0x748] sm:$0xff]
    %v5114 = vld [vmem:[#allocation2 + $0x750] sm:$0xff]
    %v5115 = vld [vmem:[#allocation2 + $0x758] sm:$0xff]
    %v5116 = vld [vmem:[#allocation2 + $0x760] sm:$0xff]
    %v5117 = vld [vmem:[#allocation2 + $0x768] sm:$0xff]
    %v5118 = vld [vmem:[#allocation2 + $0x770] sm:$0xff]
    %v5119 = vld [vmem:[#allocation2 + $0x778] sm:$0xff]
    %v5120 = vld [vmem:[#allocation2 + $0x780] sm:$0xff]
    %v5121 = vld [vmem:[#allocation2 + $0x788] sm:$0xff]
    %v5122 = vld [vmem:[#allocation2 + $0x790] sm:$0xff]
    %v5123 = vld [vmem:[#allocation2 + $0x798] sm:$0xff]
    %v5124 = vld [vmem:[#allocation2 + $0x7a0] sm:$0xff]
    %v5125 = vld [vmem:[#allocation2 + $0x7a8] sm:$0xff]
    %v5126 = vld [vmem:[#allocation2 + $0x7b0] sm:$0xff]
    %v5127 = vld [vmem:[#allocation2 + $0x7b8] sm:$0xff]
    %v5128 = vld [vmem:[#allocation2 + $0x7c0] sm:$0xff]
    %v5129 = vld [vmem:[#allocation2 + $0x7c8] sm:$0xff]
    %v5130 = vld [vmem:[#allocation2 + $0x7d0] sm:$0xff]
    %v5131 = vld [vmem:[#allocation2 + $0x7d8] sm:$0xff]
    %v5132 = vld [vmem:[#allocation2 + $0x7e0] sm:$0xff]
    %v5133 = vld [vmem:[#allocation2 + $0x7e8] sm:$0xff]
    %v5134 = vld [vmem:[#allocation2 + $0x7f0] sm:$0xff]
    %v5135 = vld [vmem:[#allocation2 + $0x7f8] sm:$0xff]
    %v5136 = vmax.f32 %v5104, %v5120
    %v5137 = vmax.f32 %v5105, %v5121
    %v5138 = vmax.f32 %v5106, %v5122
    %v5139 = vmax.f32 %v5107, %v5123
    %v5140 = vmax.f32 %v5108, %v5124
    %v5141 = vmax.f32 %v5109, %v5125
    %v5142 = vmax.f32 %v5110, %v5126
    %v5143 = vmax.f32 %v5111, %v5127
    %v5144 = vmax.f32 %v5112, %v5128
    %v5145 = vmax.f32 %v5113, %v5129
    %v5146 = vmax.f32 %v5114, %v5130
    %v5147 = vmax.f32 %v5115, %v5131
    %v5148 = vmax.f32 %v5116, %v5132
    %v5149 = vmax.f32 %v5117, %v5133
    %v5150 = vmax.f32 %v5118, %v5134
    %v5151 = vmax.f32 %v5119, %v5135
    %v5152 = vmax.f32 %v5136, %v5140
    %v5153 = vmax.f32 %v5137, %v5141
    %v5154 = vmax.f32 %v5138, %v5142
    %v5155 = vmax.f32 %v5139, %v5143
    %v5156 = vmax.f32 %v5144, %v5148
    %v5157 = vmax.f32 %v5145, %v5149
    %v5158 = vmax.f32 %v5146, %v5150
    %v5159 = vmax.f32 %v5147, %v5151
    %v5160 = vadd.f32 %v5152, %v2420
    %v5161 = vadd.f32 %v5153, %v2421
    %v5162 = vadd.f32 %v5154, %v2422
    %v5163 = vadd.f32 %v5155, %v2423
    %v5164 = vadd.f32 %v5156, %v2420
    %v5165 = vadd.f32 %v5157, %v2421
    %v5166 = vadd.f32 %v5158, %v2422
    %v5167 = vadd.f32 %v5159, %v2423
    %v5168 = vmax.f32 %v5160, 0.0
    %v5169 = vmax.f32 %v5161, 0.0
    %v5170 = vmax.f32 %v5162, 0.0
    %v5171 = vmax.f32 %v5163, 0.0
    %v5172 = vmax.f32 %v5164, 0.0
    %v5173 = vmax.f32 %v5165, 0.0
    %v5174 = vmax.f32 %v5166, 0.0
    %v5175 = vmax.f32 %v5167, 0.0
    %v5176 = vpack.c.bf16 %v5172, %v5168
    %v5177 = vpack.c.bf16 %v5173, %v5169
    %v5178 = vpack.c.bf16 %v5174, %v5170
    %v5179 = vpack.c.bf16 %v5175, %v5171
    %s5180 = scalar_lea.vmem [#allocation7], 1792
    %v5181 = vld [vmem:[%s5180] sm:$0xf]
    %v5182 = vld [vmem:[%s5180 + $0x4] sm:$0xf]
    %v5183 = vld [vmem:[%s5180 + $0x8] sm:$0xf]
    %v5184 = vld [vmem:[%s5180 + $0xc] sm:$0xf]
    %v5185 = vld [vmem:[%s5180 + $0x10] sm:$0xf]
    %v5186 = vld [vmem:[%s5180 + $0x14] sm:$0xf]
    %v5187 = vld [vmem:[%s5180 + $0x18] sm:$0xf]
    %v5188 = vld [vmem:[%s5180 + $0x1c] sm:$0xf]
    %v5189 = vld [vmem:[%s5180 + $0x20] sm:$0xf]
    %v5190 = vld [vmem:[%s5180 + $0x24] sm:$0xf]
    %v5191 = vld [vmem:[%s5180 + $0x28] sm:$0xf]
    %v5192 = vld [vmem:[%s5180 + $0x2c] sm:$0xf]
    %v5193 = vld [vmem:[%s5180 + $0x30] sm:$0xf]
    %v5194 = vld [vmem:[%s5180 + $0x34] sm:$0xf]
    %v5195 = vld [vmem:[%s5180 + $0x38] sm:$0xf]
    %v5196 = vld [vmem:[%s5180 + $0x3c] sm:$0xf]
    %v5197 = vld [vmem:[%s5180 + $0x40] sm:$0xf]
    %v5198 = vld [vmem:[%s5180 + $0x44] sm:$0xf]
    %v5199 = vld [vmem:[%s5180 + $0x48] sm:$0xf]
    %v5200 = vld [vmem:[%s5180 + $0x4c] sm:$0xf]
    %v5201 = vld [vmem:[%s5180 + $0x50] sm:$0xf]
    %v5202 = vld [vmem:[%s5180 + $0x54] sm:$0xf]
    %v5203 = vld [vmem:[%s5180 + $0x58] sm:$0xf]
    %v5204 = vld [vmem:[%s5180 + $0x5c] sm:$0xf]
    %v5205 = vld [vmem:[%s5180 + $0x60] sm:$0xf]
    %v5206 = vld [vmem:[%s5180 + $0x64] sm:$0xf]
    %v5207 = vld [vmem:[%s5180 + $0x68] sm:$0xf]
    %v5208 = vld [vmem:[%s5180 + $0x6c] sm:$0xf]
    %v5209 = vld [vmem:[%s5180 + $0x70] sm:$0xf]
    %v5210 = vld [vmem:[%s5180 + $0x74] sm:$0xf]
    %v5211 = vld [vmem:[%s5180 + $0x78] sm:$0xf]
    %v5212 = vld [vmem:[%s5180 + $0x7c] sm:$0xf]
    %v5213 = vld [vmem:[%s5180 + $0x80] sm:$0xf]
    %v5214 = vld [vmem:[%s5180 + $0x84] sm:$0xf]
    %v5215 = vld [vmem:[%s5180 + $0x88] sm:$0xf]
    %v5216 = vld [vmem:[%s5180 + $0x8c] sm:$0xf]
    %v5217 = vld [vmem:[%s5180 + $0x90] sm:$0xf]
    %v5218 = vld [vmem:[%s5180 + $0x94] sm:$0xf]
    %v5219 = vld [vmem:[%s5180 + $0x98] sm:$0xf]
    %v5220 = vld [vmem:[%s5180 + $0x9c] sm:$0xf]
    %v5221 = vld [vmem:[%s5180 + $0xa0] sm:$0xf]
    %v5222 = vld [vmem:[%s5180 + $0xa4] sm:$0xf]
    %v5223 = vld [vmem:[%s5180 + $0xa8] sm:$0xf]
    %v5224 = vld [vmem:[%s5180 + $0xac] sm:$0xf]
    %v5225 = vld [vmem:[%s5180 + $0xb0] sm:$0xf]
    %v5226 = vld [vmem:[%s5180 + $0xb4] sm:$0xf]
    %v5227 = vld [vmem:[%s5180 + $0xb8] sm:$0xf]
    %v5228 = vld [vmem:[%s5180 + $0xbc] sm:$0xf]
    %v5229 = vld [vmem:[%s5180 + $0xc0] sm:$0xf]
    %v5230 = vld [vmem:[%s5180 + $0xc4] sm:$0xf]
    %v5231 = vld [vmem:[%s5180 + $0xc8] sm:$0xf]
    %v5232 = vld [vmem:[%s5180 + $0xcc] sm:$0xf]
    %v5233 = vld [vmem:[%s5180 + $0xd0] sm:$0xf]
    %v5234 = vld [vmem:[%s5180 + $0xd4] sm:$0xf]
    %v5235 = vld [vmem:[%s5180 + $0xd8] sm:$0xf]
    %v5236 = vld [vmem:[%s5180 + $0xdc] sm:$0xf]
    %v5237 = vld [vmem:[%s5180 + $0xe0] sm:$0xf]
    %v5238 = vld [vmem:[%s5180 + $0xe4] sm:$0xf]
    %v5239 = vld [vmem:[%s5180 + $0xe8] sm:$0xf]
    %v5240 = vld [vmem:[%s5180 + $0xec] sm:$0xf]
    %v5241 = vld [vmem:[%s5180 + $0xf0] sm:$0xf]
    %v5242 = vld [vmem:[%s5180 + $0xf4] sm:$0xf]
    %v5243 = vld [vmem:[%s5180 + $0xf8] sm:$0xf]
    %v5244 = vld [vmem:[%s5180 + $0xfc] sm:$0xf]
    %v5309 = vunpack.c.l.b16 %v5181
    %v5310 = vunpack.c.l.b16 %v5182
    %v5311 = vunpack.c.l.b16 %v5183
    %v5312 = vunpack.c.l.b16 %v5184
    %v5313 = vunpack.c.l.b16 %v5185
    %v5314 = vunpack.c.l.b16 %v5186
    %v5315 = vunpack.c.l.b16 %v5187
    %v5316 = vunpack.c.l.b16 %v5188
    %v5317 = vunpack.c.l.b16 %v5189
    %v5318 = vunpack.c.l.b16 %v5190
    %v5319 = vunpack.c.l.b16 %v5191
    %v5320 = vunpack.c.l.b16 %v5192
    %v5321 = vunpack.c.l.b16 %v5193
    %v5322 = vunpack.c.l.b16 %v5194
    %v5323 = vunpack.c.l.b16 %v5195
    %v5324 = vunpack.c.l.b16 %v5196
    %v5325 = vunpack.c.l.b16 %v5197
    %v5326 = vunpack.c.l.b16 %v5198
    %v5327 = vunpack.c.l.b16 %v5199
    %v5328 = vunpack.c.l.b16 %v5200
    %v5329 = vunpack.c.l.b16 %v5201
    %v5330 = vunpack.c.l.b16 %v5202
    %v5331 = vunpack.c.l.b16 %v5203
    %v5332 = vunpack.c.l.b16 %v5204
    %v5333 = vunpack.c.l.b16 %v5205
    %v5334 = vunpack.c.l.b16 %v5206
    %v5335 = vunpack.c.l.b16 %v5207
    %v5336 = vunpack.c.l.b16 %v5208
    %v5337 = vunpack.c.l.b16 %v5209
    %v5338 = vunpack.c.l.b16 %v5210
    %v5339 = vunpack.c.l.b16 %v5211
    %v5340 = vunpack.c.l.b16 %v5212
    %v5341 = vunpack.c.l.b16 %v5213
    %v5342 = vunpack.c.l.b16 %v5214
    %v5343 = vunpack.c.l.b16 %v5215
    %v5344 = vunpack.c.l.b16 %v5216
    %v5345 = vunpack.c.l.b16 %v5217
    %v5346 = vunpack.c.l.b16 %v5218
    %v5347 = vunpack.c.l.b16 %v5219
    %v5348 = vunpack.c.l.b16 %v5220
    %v5349 = vunpack.c.l.b16 %v5221
    %v5350 = vunpack.c.l.b16 %v5222
    %v5351 = vunpack.c.l.b16 %v5223
    %v5352 = vunpack.c.l.b16 %v5224
    %v5353 = vunpack.c.l.b16 %v5225
    %v5354 = vunpack.c.l.b16 %v5226
    %v5355 = vunpack.c.l.b16 %v5227
    %v5356 = vunpack.c.l.b16 %v5228
    %v5357 = vunpack.c.l.b16 %v5229
    %v5358 = vunpack.c.l.b16 %v5230
    %v5359 = vunpack.c.l.b16 %v5231
    %v5360 = vunpack.c.l.b16 %v5232
    %v5361 = vunpack.c.l.b16 %v5233
    %v5362 = vunpack.c.l.b16 %v5234
    %v5363 = vunpack.c.l.b16 %v5235
    %v5364 = vunpack.c.l.b16 %v5236
    %v5365 = vunpack.c.l.b16 %v5237
    %v5366 = vunpack.c.l.b16 %v5238
    %v5367 = vunpack.c.l.b16 %v5239
    %v5368 = vunpack.c.l.b16 %v5240
    %v5369 = vunpack.c.l.b16 %v5241
    %v5370 = vunpack.c.l.b16 %v5242
    %v5371 = vunpack.c.l.b16 %v5243
    %v5372 = vunpack.c.l.b16 %v5244
    %v5373 = vpack.c.b16 %v5310, %v5309
    %v5374 = vpack.c.b16 %v5312, %v5311
    %v5375 = vpack.c.b16 %v5314, %v5313
    %v5376 = vpack.c.b16 %v5316, %v5315
    %v5377 = vpack.c.b16 %v5318, %v5317
    %v5378 = vpack.c.b16 %v5320, %v5319
    %v5379 = vpack.c.b16 %v5322, %v5321
    %v5380 = vpack.c.b16 %v5324, %v5323
    %v5381 = vpack.c.b16 %v5326, %v5325
    %v5382 = vpack.c.b16 %v5328, %v5327
    %v5383 = vpack.c.b16 %v5330, %v5329
    %v5384 = vpack.c.b16 %v5332, %v5331
    %v5385 = vpack.c.b16 %v5334, %v5333
    %v5386 = vpack.c.b16 %v5336, %v5335
    %v5387 = vpack.c.b16 %v5338, %v5337
    %v5388 = vpack.c.b16 %v5340, %v5339
    %v5389 = vpack.c.b16 %v5342, %v5341
    %v5390 = vpack.c.b16 %v5344, %v5343
    %v5391 = vpack.c.b16 %v5346, %v5345
    %v5392 = vpack.c.b16 %v5348, %v5347
    %v5393 = vpack.c.b16 %v5350, %v5349
    %v5394 = vpack.c.b16 %v5352, %v5351
    %v5395 = vpack.c.b16 %v5354, %v5353
    %v5396 = vpack.c.b16 %v5356, %v5355
    %v5397 = vpack.c.b16 %v5358, %v5357
    %v5398 = vpack.c.b16 %v5360, %v5359
    %v5399 = vpack.c.b16 %v5362, %v5361
    %v5400 = vpack.c.b16 %v5364, %v5363
    %v5401 = vpack.c.b16 %v5366, %v5365
    %v5402 = vpack.c.b16 %v5368, %v5367
    %v5403 = vpack.c.b16 %v5370, %v5369
    %v5404 = vpack.c.b16 %v5372, %v5371
    %5437 = vmatpush.bf16.msra.mxu0 %v5380
    %5438 = vmatpush.bf16.msra.mxu0 %v5379
    %5439 = vmatpush.bf16.msra.mxu0 %v5378
    %5440 = vmatpush.bf16.msra.mxu0 %v5377
    %5441 = vmatpush.bf16.msra.mxu0 %v5376
    %5442 = vmatpush.bf16.msra.mxu0 %v5375
    %5443 = vmatpush.bf16.msra.mxu0 %v5374
    %5444 = vmatpush.bf16.msra.mxu0 %v5373
    %5445 = vmatmul.bf16.gmra.mxu0 %v5176
    %v5446 = vpop.f32.mrf.mxu0
    %v5447 = vadd.f32 0.0, %v5446
    %v5448 = vpop.f32.mrf.mxu0
    %v5449 = vadd.f32 0.0, %v5448
    %5450 = vdwg.mxu0
    %5451 = vmatpush.bf16.msra.mxu0 %v5388
    %5452 = vmatpush.bf16.msra.mxu0 %v5387
    %5453 = vmatpush.bf16.msra.mxu0 %v5386
    %5454 = vmatpush.bf16.msra.mxu0 %v5385
    %5455 = vmatpush.bf16.msra.mxu0 %v5384
    %5456 = vmatpush.bf16.msra.mxu0 %v5383
    %5457 = vmatpush.bf16.msra.mxu0 %v5382
    %5458 = vmatpush.bf16.msra.mxu0 %v5381
    %5459 = vmatmul.bf16.gmra.mxu0 %v5177
    %v5460 = vpop.f32.mrf.mxu0
    %v5461 = vadd.f32 %v5447, %v5460
    %v5462 = vpop.f32.mrf.mxu0
    %v5463 = vadd.f32 %v5449, %v5462
    %5464 = vdwg.mxu0
    %5465 = vmatpush.bf16.msra.mxu0 %v5396
    %5466 = vmatpush.bf16.msra.mxu0 %v5395
    %5467 = vmatpush.bf16.msra.mxu0 %v5394
    %5468 = vmatpush.bf16.msra.mxu0 %v5393
    %5469 = vmatpush.bf16.msra.mxu0 %v5392
    %5470 = vmatpush.bf16.msra.mxu0 %v5391
    %5471 = vmatpush.bf16.msra.mxu0 %v5390
    %5472 = vmatpush.bf16.msra.mxu0 %v5389
    %5473 = vmatmul.bf16.gmra.mxu0 %v5178
    %v5474 = vpop.f32.mrf.mxu0
    %v5475 = vadd.f32 %v5461, %v5474
    %v5476 = vpop.f32.mrf.mxu0
    %v5477 = vadd.f32 %v5463, %v5476
    %5478 = vdwg.mxu0
    %5479 = vmatpush.bf16.msra.mxu0 %v5404
    %5480 = vmatpush.bf16.msra.mxu0 %v5403
    %5481 = vmatpush.bf16.msra.mxu0 %v5402
    %5482 = vmatpush.bf16.msra.mxu0 %v5401
    %5483 = vmatpush.bf16.msra.mxu0 %v5400
    %5484 = vmatpush.bf16.msra.mxu0 %v5399
    %5485 = vmatpush.bf16.msra.mxu0 %v5398
    %5486 = vmatpush.bf16.msra.mxu0 %v5397
    %5487 = vmatmul.bf16.gmra.mxu0 %v5179
    %v5488 = vpop.f32.mrf.mxu0
    %v5489 = vadd.f32 %v5475, %v5488
    %v5490 = vpop.f32.mrf.mxu0
    %v5491 = vadd.f32 %v5477, %v5490
    %5492 = vdwg.mxu0
    %v5493 = vadd.f32 %v5102, %v5489
    %v5494 = vadd.f32 %v5103, %v5491
    %v5495 = vld [vmem:[#allocation2 + $0x800] sm:$0xff]
    %v5496 = vld [vmem:[#allocation2 + $0x808] sm:$0xff]
    %v5497 = vld [vmem:[#allocation2 + $0x810] sm:$0xff]
    %v5498 = vld [vmem:[#allocation2 + $0x818] sm:$0xff]
    %v5499 = vld [vmem:[#allocation2 + $0x820] sm:$0xff]
    %v5500 = vld [vmem:[#allocation2 + $0x828] sm:$0xff]
    %v5501 = vld [vmem:[#allocation2 + $0x830] sm:$0xff]
    %v5502 = vld [vmem:[#allocation2 + $0x838] sm:$0xff]
    %v5503 = vld [vmem:[#allocation2 + $0x840] sm:$0xff]
    %v5504 = vld [vmem:[#allocation2 + $0x848] sm:$0xff]
    %v5505 = vld [vmem:[#allocation2 + $0x850] sm:$0xff]
    %v5506 = vld [vmem:[#allocation2 + $0x858] sm:$0xff]
    %v5507 = vld [vmem:[#allocation2 + $0x860] sm:$0xff]
    %v5508 = vld [vmem:[#allocation2 + $0x868] sm:$0xff]
    %v5509 = vld [vmem:[#allocation2 + $0x870] sm:$0xff]
    %v5510 = vld [vmem:[#allocation2 + $0x878] sm:$0xff]
    %v5511 = vld [vmem:[#allocation2 + $0x880] sm:$0xff]
    %v5512 = vld [vmem:[#allocation2 + $0x888] sm:$0xff]
    %v5513 = vld [vmem:[#allocation2 + $0x890] sm:$0xff]
    %v5514 = vld [vmem:[#allocation2 + $0x898] sm:$0xff]
    %v5515 = vld [vmem:[#allocation2 + $0x8a0] sm:$0xff]
    %v5516 = vld [vmem:[#allocation2 + $0x8a8] sm:$0xff]
    %v5517 = vld [vmem:[#allocation2 + $0x8b0] sm:$0xff]
    %v5518 = vld [vmem:[#allocation2 + $0x8b8] sm:$0xff]
    %v5519 = vld [vmem:[#allocation2 + $0x8c0] sm:$0xff]
    %v5520 = vld [vmem:[#allocation2 + $0x8c8] sm:$0xff]
    %v5521 = vld [vmem:[#allocation2 + $0x8d0] sm:$0xff]
    %v5522 = vld [vmem:[#allocation2 + $0x8d8] sm:$0xff]
    %v5523 = vld [vmem:[#allocation2 + $0x8e0] sm:$0xff]
    %v5524 = vld [vmem:[#allocation2 + $0x8e8] sm:$0xff]
    %v5525 = vld [vmem:[#allocation2 + $0x8f0] sm:$0xff]
    %v5526 = vld [vmem:[#allocation2 + $0x8f8] sm:$0xff]
    %v5527 = vmax.f32 %v5495, %v5511
    %v5528 = vmax.f32 %v5496, %v5512
    %v5529 = vmax.f32 %v5497, %v5513
    %v5530 = vmax.f32 %v5498, %v5514
    %v5531 = vmax.f32 %v5499, %v5515
    %v5532 = vmax.f32 %v5500, %v5516
    %v5533 = vmax.f32 %v5501, %v5517
    %v5534 = vmax.f32 %v5502, %v5518
    %v5535 = vmax.f32 %v5503, %v5519
    %v5536 = vmax.f32 %v5504, %v5520
    %v5537 = vmax.f32 %v5505, %v5521
    %v5538 = vmax.f32 %v5506, %v5522
    %v5539 = vmax.f32 %v5507, %v5523
    %v5540 = vmax.f32 %v5508, %v5524
    %v5541 = vmax.f32 %v5509, %v5525
    %v5542 = vmax.f32 %v5510, %v5526
    %v5543 = vmax.f32 %v5527, %v5531
    %v5544 = vmax.f32 %v5528, %v5532
    %v5545 = vmax.f32 %v5529, %v5533
    %v5546 = vmax.f32 %v5530, %v5534
    %v5547 = vmax.f32 %v5535, %v5539
    %v5548 = vmax.f32 %v5536, %v5540
    %v5549 = vmax.f32 %v5537, %v5541
    %v5550 = vmax.f32 %v5538, %v5542
    %v5551 = vadd.f32 %v5543, %v2420
    %v5552 = vadd.f32 %v5544, %v2421
    %v5553 = vadd.f32 %v5545, %v2422
    %v5554 = vadd.f32 %v5546, %v2423
    %v5555 = vadd.f32 %v5547, %v2420
    %v5556 = vadd.f32 %v5548, %v2421
    %v5557 = vadd.f32 %v5549, %v2422
    %v5558 = vadd.f32 %v5550, %v2423
    %v5559 = vmax.f32 %v5551, 0.0
    %v5560 = vmax.f32 %v5552, 0.0
    %v5561 = vmax.f32 %v5553, 0.0
    %v5562 = vmax.f32 %v5554, 0.0
    %v5563 = vmax.f32 %v5555, 0.0
    %v5564 = vmax.f32 %v5556, 0.0
    %v5565 = vmax.f32 %v5557, 0.0
    %v5566 = vmax.f32 %v5558, 0.0
    %v5567 = vpack.c.bf16 %v5563, %v5559
    %v5568 = vpack.c.bf16 %v5564, %v5560
    %v5569 = vpack.c.bf16 %v5565, %v5561
    %v5570 = vpack.c.bf16 %v5566, %v5562
    %s5571 = scalar_lea.vmem [#allocation7], 2048
    %v5572 = vld [vmem:[%s5571] sm:$0xf]
    %v5573 = vld [vmem:[%s5571 + $0x4] sm:$0xf]
    %v5574 = vld [vmem:[%s5571 + $0x8] sm:$0xf]
    %v5575 = vld [vmem:[%s5571 + $0xc] sm:$0xf]
    %v5576 = vld [vmem:[%s5571 + $0x10] sm:$0xf]
    %v5577 = vld [vmem:[%s5571 + $0x14] sm:$0xf]
    %v5578 = vld [vmem:[%s5571 + $0x18] sm:$0xf]
    %v5579 = vld [vmem:[%s5571 + $0x1c] sm:$0xf]
    %v5580 = vld [vmem:[%s5571 + $0x20] sm:$0xf]
    %v5581 = vld [vmem:[%s5571 + $0x24] sm:$0xf]
    %v5582 = vld [vmem:[%s5571 + $0x28] sm:$0xf]
    %v5583 = vld [vmem:[%s5571 + $0x2c] sm:$0xf]
    %v5584 = vld [vmem:[%s5571 + $0x30] sm:$0xf]
    %v5585 = vld [vmem:[%s5571 + $0x34] sm:$0xf]
    %v5586 = vld [vmem:[%s5571 + $0x38] sm:$0xf]
    %v5587 = vld [vmem:[%s5571 + $0x3c] sm:$0xf]
    %v5588 = vld [vmem:[%s5571 + $0x40] sm:$0xf]
    %v5589 = vld [vmem:[%s5571 + $0x44] sm:$0xf]
    %v5590 = vld [vmem:[%s5571 + $0x48] sm:$0xf]
    %v5591 = vld [vmem:[%s5571 + $0x4c] sm:$0xf]
    %v5592 = vld [vmem:[%s5571 + $0x50] sm:$0xf]
    %v5593 = vld [vmem:[%s5571 + $0x54] sm:$0xf]
    %v5594 = vld [vmem:[%s5571 + $0x58] sm:$0xf]
    %v5595 = vld [vmem:[%s5571 + $0x5c] sm:$0xf]
    %v5596 = vld [vmem:[%s5571 + $0x60] sm:$0xf]
    %v5597 = vld [vmem:[%s5571 + $0x64] sm:$0xf]
    %v5598 = vld [vmem:[%s5571 + $0x68] sm:$0xf]
    %v5599 = vld [vmem:[%s5571 + $0x6c] sm:$0xf]
    %v5600 = vld [vmem:[%s5571 + $0x70] sm:$0xf]
    %v5601 = vld [vmem:[%s5571 + $0x74] sm:$0xf]
    %v5602 = vld [vmem:[%s5571 + $0x78] sm:$0xf]
    %v5603 = vld [vmem:[%s5571 + $0x7c] sm:$0xf]
    %v5604 = vld [vmem:[%s5571 + $0x80] sm:$0xf]
    %v5605 = vld [vmem:[%s5571 + $0x84] sm:$0xf]
    %v5606 = vld [vmem:[%s5571 + $0x88] sm:$0xf]
    %v5607 = vld [vmem:[%s5571 + $0x8c] sm:$0xf]
    %v5608 = vld [vmem:[%s5571 + $0x90] sm:$0xf]
    %v5609 = vld [vmem:[%s5571 + $0x94] sm:$0xf]
    %v5610 = vld [vmem:[%s5571 + $0x98] sm:$0xf]
    %v5611 = vld [vmem:[%s5571 + $0x9c] sm:$0xf]
    %v5612 = vld [vmem:[%s5571 + $0xa0] sm:$0xf]
    %v5613 = vld [vmem:[%s5571 + $0xa4] sm:$0xf]
    %v5614 = vld [vmem:[%s5571 + $0xa8] sm:$0xf]
    %v5615 = vld [vmem:[%s5571 + $0xac] sm:$0xf]
    %v5616 = vld [vmem:[%s5571 + $0xb0] sm:$0xf]
    %v5617 = vld [vmem:[%s5571 + $0xb4] sm:$0xf]
    %v5618 = vld [vmem:[%s5571 + $0xb8] sm:$0xf]
    %v5619 = vld [vmem:[%s5571 + $0xbc] sm:$0xf]
    %v5620 = vld [vmem:[%s5571 + $0xc0] sm:$0xf]
    %v5621 = vld [vmem:[%s5571 + $0xc4] sm:$0xf]
    %v5622 = vld [vmem:[%s5571 + $0xc8] sm:$0xf]
    %v5623 = vld [vmem:[%s5571 + $0xcc] sm:$0xf]
    %v5624 = vld [vmem:[%s5571 + $0xd0] sm:$0xf]
    %v5625 = vld [vmem:[%s5571 + $0xd4] sm:$0xf]
    %v5626 = vld [vmem:[%s5571 + $0xd8] sm:$0xf]
    %v5627 = vld [vmem:[%s5571 + $0xdc] sm:$0xf]
    %v5628 = vld [vmem:[%s5571 + $0xe0] sm:$0xf]
    %v5629 = vld [vmem:[%s5571 + $0xe4] sm:$0xf]
    %v5630 = vld [vmem:[%s5571 + $0xe8] sm:$0xf]
    %v5631 = vld [vmem:[%s5571 + $0xec] sm:$0xf]
    %v5632 = vld [vmem:[%s5571 + $0xf0] sm:$0xf]
    %v5633 = vld [vmem:[%s5571 + $0xf4] sm:$0xf]
    %v5634 = vld [vmem:[%s5571 + $0xf8] sm:$0xf]
    %v5635 = vld [vmem:[%s5571 + $0xfc] sm:$0xf]
    %v5700 = vunpack.c.l.b16 %v5572
    %v5701 = vunpack.c.l.b16 %v5573
    %v5702 = vunpack.c.l.b16 %v5574
    %v5703 = vunpack.c.l.b16 %v5575
    %v5704 = vunpack.c.l.b16 %v5576
    %v5705 = vunpack.c.l.b16 %v5577
    %v5706 = vunpack.c.l.b16 %v5578
    %v5707 = vunpack.c.l.b16 %v5579
    %v5708 = vunpack.c.l.b16 %v5580
    %v5709 = vunpack.c.l.b16 %v5581
    %v5710 = vunpack.c.l.b16 %v5582
    %v5711 = vunpack.c.l.b16 %v5583
    %v5712 = vunpack.c.l.b16 %v5584
    %v5713 = vunpack.c.l.b16 %v5585
    %v5714 = vunpack.c.l.b16 %v5586
    %v5715 = vunpack.c.l.b16 %v5587
    %v5716 = vunpack.c.l.b16 %v5588
    %v5717 = vunpack.c.l.b16 %v5589
    %v5718 = vunpack.c.l.b16 %v5590
    %v5719 = vunpack.c.l.b16 %v5591
    %v5720 = vunpack.c.l.b16 %v5592
    %v5721 = vunpack.c.l.b16 %v5593
    %v5722 = vunpack.c.l.b16 %v5594
    %v5723 = vunpack.c.l.b16 %v5595
    %v5724 = vunpack.c.l.b16 %v5596
    %v5725 = vunpack.c.l.b16 %v5597
    %v5726 = vunpack.c.l.b16 %v5598
    %v5727 = vunpack.c.l.b16 %v5599
    %v5728 = vunpack.c.l.b16 %v5600
    %v5729 = vunpack.c.l.b16 %v5601
    %v5730 = vunpack.c.l.b16 %v5602
    %v5731 = vunpack.c.l.b16 %v5603
    %v5732 = vunpack.c.l.b16 %v5604
    %v5733 = vunpack.c.l.b16 %v5605
    %v5734 = vunpack.c.l.b16 %v5606
    %v5735 = vunpack.c.l.b16 %v5607
    %v5736 = vunpack.c.l.b16 %v5608
    %v5737 = vunpack.c.l.b16 %v5609
    %v5738 = vunpack.c.l.b16 %v5610
    %v5739 = vunpack.c.l.b16 %v5611
    %v5740 = vunpack.c.l.b16 %v5612
    %v5741 = vunpack.c.l.b16 %v5613
    %v5742 = vunpack.c.l.b16 %v5614
    %v5743 = vunpack.c.l.b16 %v5615
    %v5744 = vunpack.c.l.b16 %v5616
    %v5745 = vunpack.c.l.b16 %v5617
    %v5746 = vunpack.c.l.b16 %v5618
    %v5747 = vunpack.c.l.b16 %v5619
    %v5748 = vunpack.c.l.b16 %v5620
    %v5749 = vunpack.c.l.b16 %v5621
    %v5750 = vunpack.c.l.b16 %v5622
    %v5751 = vunpack.c.l.b16 %v5623
    %v5752 = vunpack.c.l.b16 %v5624
    %v5753 = vunpack.c.l.b16 %v5625
    %v5754 = vunpack.c.l.b16 %v5626
    %v5755 = vunpack.c.l.b16 %v5627
    %v5756 = vunpack.c.l.b16 %v5628
    %v5757 = vunpack.c.l.b16 %v5629
    %v5758 = vunpack.c.l.b16 %v5630
    %v5759 = vunpack.c.l.b16 %v5631
    %v5760 = vunpack.c.l.b16 %v5632
    %v5761 = vunpack.c.l.b16 %v5633
    %v5762 = vunpack.c.l.b16 %v5634
    %v5763 = vunpack.c.l.b16 %v5635
    %v5764 = vpack.c.b16 %v5701, %v5700
    %v5765 = vpack.c.b16 %v5703, %v5702
    %v5766 = vpack.c.b16 %v5705, %v5704
    %v5767 = vpack.c.b16 %v5707, %v5706
    %v5768 = vpack.c.b16 %v5709, %v5708
    %v5769 = vpack.c.b16 %v5711, %v5710
    %v5770 = vpack.c.b16 %v5713, %v5712
    %v5771 = vpack.c.b16 %v5715, %v5714
    %v5772 = vpack.c.b16 %v5717, %v5716
    %v5773 = vpack.c.b16 %v5719, %v5718
    %v5774 = vpack.c.b16 %v5721, %v5720
    %v5775 = vpack.c.b16 %v5723, %v5722
    %v5776 = vpack.c.b16 %v5725, %v5724
    %v5777 = vpack.c.b16 %v5727, %v5726
    %v5778 = vpack.c.b16 %v5729, %v5728
    %v5779 = vpack.c.b16 %v5731, %v5730
    %v5780 = vpack.c.b16 %v5733, %v5732
    %v5781 = vpack.c.b16 %v5735, %v5734
    %v5782 = vpack.c.b16 %v5737, %v5736
    %v5783 = vpack.c.b16 %v5739, %v5738
    %v5784 = vpack.c.b16 %v5741, %v5740
    %v5785 = vpack.c.b16 %v5743, %v5742
    %v5786 = vpack.c.b16 %v5745, %v5744
    %v5787 = vpack.c.b16 %v5747, %v5746
    %v5788 = vpack.c.b16 %v5749, %v5748
    %v5789 = vpack.c.b16 %v5751, %v5750
    %v5790 = vpack.c.b16 %v5753, %v5752
    %v5791 = vpack.c.b16 %v5755, %v5754
    %v5792 = vpack.c.b16 %v5757, %v5756
    %v5793 = vpack.c.b16 %v5759, %v5758
    %v5794 = vpack.c.b16 %v5761, %v5760
    %v5795 = vpack.c.b16 %v5763, %v5762
    %5828 = vmatpush.bf16.msra.mxu0 %v5771
    %5829 = vmatpush.bf16.msra.mxu0 %v5770
    %5830 = vmatpush.bf16.msra.mxu0 %v5769
    %5831 = vmatpush.bf16.msra.mxu0 %v5768
    %5832 = vmatpush.bf16.msra.mxu0 %v5767
    %5833 = vmatpush.bf16.msra.mxu0 %v5766
    %5834 = vmatpush.bf16.msra.mxu0 %v5765
    %5835 = vmatpush.bf16.msra.mxu0 %v5764
    %5836 = vmatmul.bf16.gmra.mxu0 %v5567
    %v5837 = vpop.f32.mrf.mxu0
    %v5838 = vadd.f32 0.0, %v5837
    %v5839 = vpop.f32.mrf.mxu0
    %v5840 = vadd.f32 0.0, %v5839
    %5841 = vdwg.mxu0
    %5842 = vmatpush.bf16.msra.mxu0 %v5779
    %5843 = vmatpush.bf16.msra.mxu0 %v5778
    %5844 = vmatpush.bf16.msra.mxu0 %v5777
    %5845 = vmatpush.bf16.msra.mxu0 %v5776
    %5846 = vmatpush.bf16.msra.mxu0 %v5775
    %5847 = vmatpush.bf16.msra.mxu0 %v5774
    %5848 = vmatpush.bf16.msra.mxu0 %v5773
    %5849 = vmatpush.bf16.msra.mxu0 %v5772
    %5850 = vmatmul.bf16.gmra.mxu0 %v5568
    %v5851 = vpop.f32.mrf.mxu0
    %v5852 = vadd.f32 %v5838, %v5851
    %v5853 = vpop.f32.mrf.mxu0
    %v5854 = vadd.f32 %v5840, %v5853
    %5855 = vdwg.mxu0
    %5856 = vmatpush.bf16.msra.mxu0 %v5787
    %5857 = vmatpush.bf16.msra.mxu0 %v5786
    %5858 = vmatpush.bf16.msra.mxu0 %v5785
    %5859 = vmatpush.bf16.msra.mxu0 %v5784
    %5860 = vmatpush.bf16.msra.mxu0 %v5783
    %5861 = vmatpush.bf16.msra.mxu0 %v5782
    %5862 = vmatpush.bf16.msra.mxu0 %v5781
    %5863 = vmatpush.bf16.msra.mxu0 %v5780
    %5864 = vmatmul.bf16.gmra.mxu0 %v5569
    %v5865 = vpop.f32.mrf.mxu0
    %v5866 = vadd.f32 %v5852, %v5865
    %v5867 = vpop.f32.mrf.mxu0
    %v5868 = vadd.f32 %v5854, %v5867
    %5869 = vdwg.mxu0
    %5870 = vmatpush.bf16.msra.mxu0 %v5795
    %5871 = vmatpush.bf16.msra.mxu0 %v5794
    %5872 = vmatpush.bf16.msra.mxu0 %v5793
    %5873 = vmatpush.bf16.msra.mxu0 %v5792
    %5874 = vmatpush.bf16.msra.mxu0 %v5791
    %5875 = vmatpush.bf16.msra.mxu0 %v5790
    %5876 = vmatpush.bf16.msra.mxu0 %v5789
    %5877 = vmatpush.bf16.msra.mxu0 %v5788
    %5878 = vmatmul.bf16.gmra.mxu0 %v5570
    %v5879 = vpop.f32.mrf.mxu0
    %v5880 = vadd.f32 %v5866, %v5879
    %v5881 = vpop.f32.mrf.mxu0
    %v5882 = vadd.f32 %v5868, %v5881
    %5883 = vdwg.mxu0
    %v5884 = vadd.f32 %v5493, %v5880
    %v5885 = vadd.f32 %v5494, %v5882
    %v5886 = vld [vmem:[#allocation2 + $0x900] sm:$0xff]
    %v5887 = vld [vmem:[#allocation2 + $0x908] sm:$0xff]
    %v5888 = vld [vmem:[#allocation2 + $0x910] sm:$0xff]
    %v5889 = vld [vmem:[#allocation2 + $0x918] sm:$0xff]
    %v5890 = vld [vmem:[#allocation2 + $0x920] sm:$0xff]
    %v5891 = vld [vmem:[#allocation2 + $0x928] sm:$0xff]
    %v5892 = vld [vmem:[#allocation2 + $0x930] sm:$0xff]
    %v5893 = vld [vmem:[#allocation2 + $0x938] sm:$0xff]
    %v5894 = vld [vmem:[#allocation2 + $0x940] sm:$0xff]
    %v5895 = vld [vmem:[#allocation2 + $0x948] sm:$0xff]
    %v5896 = vld [vmem:[#allocation2 + $0x950] sm:$0xff]
    %v5897 = vld [vmem:[#allocation2 + $0x958] sm:$0xff]
    %v5898 = vld [vmem:[#allocation2 + $0x960] sm:$0xff]
    %v5899 = vld [vmem:[#allocation2 + $0x968] sm:$0xff]
    %v5900 = vld [vmem:[#allocation2 + $0x970] sm:$0xff]
    %v5901 = vld [vmem:[#allocation2 + $0x978] sm:$0xff]
    %v5902 = vld [vmem:[#allocation2 + $0x980] sm:$0xff]
    %v5903 = vld [vmem:[#allocation2 + $0x988] sm:$0xff]
    %v5904 = vld [vmem:[#allocation2 + $0x990] sm:$0xff]
    %v5905 = vld [vmem:[#allocation2 + $0x998] sm:$0xff]
    %v5906 = vld [vmem:[#allocation2 + $0x9a0] sm:$0xff]
    %v5907 = vld [vmem:[#allocation2 + $0x9a8] sm:$0xff]
    %v5908 = vld [vmem:[#allocation2 + $0x9b0] sm:$0xff]
    %v5909 = vld [vmem:[#allocation2 + $0x9b8] sm:$0xff]
    %v5910 = vld [vmem:[#allocation2 + $0x9c0] sm:$0xff]
    %v5911 = vld [vmem:[#allocation2 + $0x9c8] sm:$0xff]
    %v5912 = vld [vmem:[#allocation2 + $0x9d0] sm:$0xff]
    %v5913 = vld [vmem:[#allocation2 + $0x9d8] sm:$0xff]
    %v5914 = vld [vmem:[#allocation2 + $0x9e0] sm:$0xff]
    %v5915 = vld [vmem:[#allocation2 + $0x9e8] sm:$0xff]
    %v5916 = vld [vmem:[#allocation2 + $0x9f0] sm:$0xff]
    %v5917 = vld [vmem:[#allocation2 + $0x9f8] sm:$0xff]
    %v5918 = vmax.f32 %v5886, %v5902
    %v5919 = vmax.f32 %v5887, %v5903
    %v5920 = vmax.f32 %v5888, %v5904
    %v5921 = vmax.f32 %v5889, %v5905
    %v5922 = vmax.f32 %v5890, %v5906
    %v5923 = vmax.f32 %v5891, %v5907
    %v5924 = vmax.f32 %v5892, %v5908
    %v5925 = vmax.f32 %v5893, %v5909
    %v5926 = vmax.f32 %v5894, %v5910
    %v5927 = vmax.f32 %v5895, %v5911
    %v5928 = vmax.f32 %v5896, %v5912
    %v5929 = vmax.f32 %v5897, %v5913
    %v5930 = vmax.f32 %v5898, %v5914
    %v5931 = vmax.f32 %v5899, %v5915
    %v5932 = vmax.f32 %v5900, %v5916
    %v5933 = vmax.f32 %v5901, %v5917
    %v5934 = vmax.f32 %v5918, %v5922
    %v5935 = vmax.f32 %v5919, %v5923
    %v5936 = vmax.f32 %v5920, %v5924
    %v5937 = vmax.f32 %v5921, %v5925
    %v5938 = vmax.f32 %v5926, %v5930
    %v5939 = vmax.f32 %v5927, %v5931
    %v5940 = vmax.f32 %v5928, %v5932
    %v5941 = vmax.f32 %v5929, %v5933
    %v5942 = vadd.f32 %v5934, %v2420
    %v5943 = vadd.f32 %v5935, %v2421
    %v5944 = vadd.f32 %v5936, %v2422
    %v5945 = vadd.f32 %v5937, %v2423
    %v5946 = vadd.f32 %v5938, %v2420
    %v5947 = vadd.f32 %v5939, %v2421
    %v5948 = vadd.f32 %v5940, %v2422
    %v5949 = vadd.f32 %v5941, %v2423
    %v5950 = vmax.f32 %v5942, 0.0
    %v5951 = vmax.f32 %v5943, 0.0
    %v5952 = vmax.f32 %v5944, 0.0
    %v5953 = vmax.f32 %v5945, 0.0
    %v5954 = vmax.f32 %v5946, 0.0
    %v5955 = vmax.f32 %v5947, 0.0
    %v5956 = vmax.f32 %v5948, 0.0
    %v5957 = vmax.f32 %v5949, 0.0
    %v5958 = vpack.c.bf16 %v5954, %v5950
    %v5959 = vpack.c.bf16 %v5955, %v5951
    %v5960 = vpack.c.bf16 %v5956, %v5952
    %v5961 = vpack.c.bf16 %v5957, %v5953
    %s5962 = scalar_lea.vmem [#allocation7], 2304
    %v5963 = vld [vmem:[%s5962] sm:$0xf]
    %v5964 = vld [vmem:[%s5962 + $0x4] sm:$0xf]
    %v5965 = vld [vmem:[%s5962 + $0x8] sm:$0xf]
    %v5966 = vld [vmem:[%s5962 + $0xc] sm:$0xf]
    %v5967 = vld [vmem:[%s5962 + $0x10] sm:$0xf]
    %v5968 = vld [vmem:[%s5962 + $0x14] sm:$0xf]
    %v5969 = vld [vmem:[%s5962 + $0x18] sm:$0xf]
    %v5970 = vld [vmem:[%s5962 + $0x1c] sm:$0xf]
    %v5971 = vld [vmem:[%s5962 + $0x20] sm:$0xf]
    %v5972 = vld [vmem:[%s5962 + $0x24] sm:$0xf]
    %v5973 = vld [vmem:[%s5962 + $0x28] sm:$0xf]
    %v5974 = vld [vmem:[%s5962 + $0x2c] sm:$0xf]
    %v5975 = vld [vmem:[%s5962 + $0x30] sm:$0xf]
    %v5976 = vld [vmem:[%s5962 + $0x34] sm:$0xf]
    %v5977 = vld [vmem:[%s5962 + $0x38] sm:$0xf]
    %v5978 = vld [vmem:[%s5962 + $0x3c] sm:$0xf]
    %v5979 = vld [vmem:[%s5962 + $0x40] sm:$0xf]
    %v5980 = vld [vmem:[%s5962 + $0x44] sm:$0xf]
    %v5981 = vld [vmem:[%s5962 + $0x48] sm:$0xf]
    %v5982 = vld [vmem:[%s5962 + $0x4c] sm:$0xf]
    %v5983 = vld [vmem:[%s5962 + $0x50] sm:$0xf]
    %v5984 = vld [vmem:[%s5962 + $0x54] sm:$0xf]
    %v5985 = vld [vmem:[%s5962 + $0x58] sm:$0xf]
    %v5986 = vld [vmem:[%s5962 + $0x5c] sm:$0xf]
    %v5987 = vld [vmem:[%s5962 + $0x60] sm:$0xf]
    %v5988 = vld [vmem:[%s5962 + $0x64] sm:$0xf]
    %v5989 = vld [vmem:[%s5962 + $0x68] sm:$0xf]
    %v5990 = vld [vmem:[%s5962 + $0x6c] sm:$0xf]
    %v5991 = vld [vmem:[%s5962 + $0x70] sm:$0xf]
    %v5992 = vld [vmem:[%s5962 + $0x74] sm:$0xf]
    %v5993 = vld [vmem:[%s5962 + $0x78] sm:$0xf]
    %v5994 = vld [vmem:[%s5962 + $0x7c] sm:$0xf]
    %v5995 = vld [vmem:[%s5962 + $0x80] sm:$0xf]
    %v5996 = vld [vmem:[%s5962 + $0x84] sm:$0xf]
    %v5997 = vld [vmem:[%s5962 + $0x88] sm:$0xf]
    %v5998 = vld [vmem:[%s5962 + $0x8c] sm:$0xf]
    %v5999 = vld [vmem:[%s5962 + $0x90] sm:$0xf]
    %v6000 = vld [vmem:[%s5962 + $0x94] sm:$0xf]
    %v6001 = vld [vmem:[%s5962 + $0x98] sm:$0xf]
    %v6002 = vld [vmem:[%s5962 + $0x9c] sm:$0xf]
    %v6003 = vld [vmem:[%s5962 + $0xa0] sm:$0xf]
    %v6004 = vld [vmem:[%s5962 + $0xa4] sm:$0xf]
    %v6005 = vld [vmem:[%s5962 + $0xa8] sm:$0xf]
    %v6006 = vld [vmem:[%s5962 + $0xac] sm:$0xf]
    %v6007 = vld [vmem:[%s5962 + $0xb0] sm:$0xf]
    %v6008 = vld [vmem:[%s5962 + $0xb4] sm:$0xf]
    %v6009 = vld [vmem:[%s5962 + $0xb8] sm:$0xf]
    %v6010 = vld [vmem:[%s5962 + $0xbc] sm:$0xf]
    %v6011 = vld [vmem:[%s5962 + $0xc0] sm:$0xf]
    %v6012 = vld [vmem:[%s5962 + $0xc4] sm:$0xf]
    %v6013 = vld [vmem:[%s5962 + $0xc8] sm:$0xf]
    %v6014 = vld [vmem:[%s5962 + $0xcc] sm:$0xf]
    %v6015 = vld [vmem:[%s5962 + $0xd0] sm:$0xf]
    %v6016 = vld [vmem:[%s5962 + $0xd4] sm:$0xf]
    %v6017 = vld [vmem:[%s5962 + $0xd8] sm:$0xf]
    %v6018 = vld [vmem:[%s5962 + $0xdc] sm:$0xf]
    %v6019 = vld [vmem:[%s5962 + $0xe0] sm:$0xf]
    %v6020 = vld [vmem:[%s5962 + $0xe4] sm:$0xf]
    %v6021 = vld [vmem:[%s5962 + $0xe8] sm:$0xf]
    %v6022 = vld [vmem:[%s5962 + $0xec] sm:$0xf]
    %v6023 = vld [vmem:[%s5962 + $0xf0] sm:$0xf]
    %v6024 = vld [vmem:[%s5962 + $0xf4] sm:$0xf]
    %v6025 = vld [vmem:[%s5962 + $0xf8] sm:$0xf]
    %v6026 = vld [vmem:[%s5962 + $0xfc] sm:$0xf]
    %v6091 = vunpack.c.l.b16 %v5963
    %v6092 = vunpack.c.l.b16 %v5964
    %v6093 = vunpack.c.l.b16 %v5965
    %v6094 = vunpack.c.l.b16 %v5966
    %v6095 = vunpack.c.l.b16 %v5967
    %v6096 = vunpack.c.l.b16 %v5968
    %v6097 = vunpack.c.l.b16 %v5969
    %v6098 = vunpack.c.l.b16 %v5970
    %v6099 = vunpack.c.l.b16 %v5971
    %v6100 = vunpack.c.l.b16 %v5972
    %v6101 = vunpack.c.l.b16 %v5973
    %v6102 = vunpack.c.l.b16 %v5974
    %v6103 = vunpack.c.l.b16 %v5975
    %v6104 = vunpack.c.l.b16 %v5976
    %v6105 = vunpack.c.l.b16 %v5977
    %v6106 = vunpack.c.l.b16 %v5978
    %v6107 = vunpack.c.l.b16 %v5979
    %v6108 = vunpack.c.l.b16 %v5980
    %v6109 = vunpack.c.l.b16 %v5981
    %v6110 = vunpack.c.l.b16 %v5982
    %v6111 = vunpack.c.l.b16 %v5983
    %v6112 = vunpack.c.l.b16 %v5984
    %v6113 = vunpack.c.l.b16 %v5985
    %v6114 = vunpack.c.l.b16 %v5986
    %v6115 = vunpack.c.l.b16 %v5987
    %v6116 = vunpack.c.l.b16 %v5988
    %v6117 = vunpack.c.l.b16 %v5989
    %v6118 = vunpack.c.l.b16 %v5990
    %v6119 = vunpack.c.l.b16 %v5991
    %v6120 = vunpack.c.l.b16 %v5992
    %v6121 = vunpack.c.l.b16 %v5993
    %v6122 = vunpack.c.l.b16 %v5994
    %v6123 = vunpack.c.l.b16 %v5995
    %v6124 = vunpack.c.l.b16 %v5996
    %v6125 = vunpack.c.l.b16 %v5997
    %v6126 = vunpack.c.l.b16 %v5998
    %v6127 = vunpack.c.l.b16 %v5999
    %v6128 = vunpack.c.l.b16 %v6000
    %v6129 = vunpack.c.l.b16 %v6001
    %v6130 = vunpack.c.l.b16 %v6002
    %v6131 = vunpack.c.l.b16 %v6003
    %v6132 = vunpack.c.l.b16 %v6004
    %v6133 = vunpack.c.l.b16 %v6005
    %v6134 = vunpack.c.l.b16 %v6006
    %v6135 = vunpack.c.l.b16 %v6007
    %v6136 = vunpack.c.l.b16 %v6008
    %v6137 = vunpack.c.l.b16 %v6009
    %v6138 = vunpack.c.l.b16 %v6010
    %v6139 = vunpack.c.l.b16 %v6011
    %v6140 = vunpack.c.l.b16 %v6012
    %v6141 = vunpack.c.l.b16 %v6013
    %v6142 = vunpack.c.l.b16 %v6014
    %v6143 = vunpack.c.l.b16 %v6015
    %v6144 = vunpack.c.l.b16 %v6016
    %v6145 = vunpack.c.l.b16 %v6017
    %v6146 = vunpack.c.l.b16 %v6018
    %v6147 = vunpack.c.l.b16 %v6019
    %v6148 = vunpack.c.l.b16 %v6020
    %v6149 = vunpack.c.l.b16 %v6021
    %v6150 = vunpack.c.l.b16 %v6022
    %v6151 = vunpack.c.l.b16 %v6023
    %v6152 = vunpack.c.l.b16 %v6024
    %v6153 = vunpack.c.l.b16 %v6025
    %v6154 = vunpack.c.l.b16 %v6026
    %v6155 = vpack.c.b16 %v6092, %v6091
    %v6156 = vpack.c.b16 %v6094, %v6093
    %v6157 = vpack.c.b16 %v6096, %v6095
    %v6158 = vpack.c.b16 %v6098, %v6097
    %v6159 = vpack.c.b16 %v6100, %v6099
    %v6160 = vpack.c.b16 %v6102, %v6101
    %v6161 = vpack.c.b16 %v6104, %v6103
    %v6162 = vpack.c.b16 %v6106, %v6105
    %v6163 = vpack.c.b16 %v6108, %v6107
    %v6164 = vpack.c.b16 %v6110, %v6109
    %v6165 = vpack.c.b16 %v6112, %v6111
    %v6166 = vpack.c.b16 %v6114, %v6113
    %v6167 = vpack.c.b16 %v6116, %v6115
    %v6168 = vpack.c.b16 %v6118, %v6117
    %v6169 = vpack.c.b16 %v6120, %v6119
    %v6170 = vpack.c.b16 %v6122, %v6121
    %v6171 = vpack.c.b16 %v6124, %v6123
    %v6172 = vpack.c.b16 %v6126, %v6125
    %v6173 = vpack.c.b16 %v6128, %v6127
    %v6174 = vpack.c.b16 %v6130, %v6129
    %v6175 = vpack.c.b16 %v6132, %v6131
    %v6176 = vpack.c.b16 %v6134, %v6133
    %v6177 = vpack.c.b16 %v6136, %v6135
    %v6178 = vpack.c.b16 %v6138, %v6137
    %v6179 = vpack.c.b16 %v6140, %v6139
    %v6180 = vpack.c.b16 %v6142, %v6141
    %v6181 = vpack.c.b16 %v6144, %v6143
    %v6182 = vpack.c.b16 %v6146, %v6145
    %v6183 = vpack.c.b16 %v6148, %v6147
    %v6184 = vpack.c.b16 %v6150, %v6149
    %v6185 = vpack.c.b16 %v6152, %v6151
    %v6186 = vpack.c.b16 %v6154, %v6153
    %6219 = vmatpush.bf16.msra.mxu0 %v6162
    %6220 = vmatpush.bf16.msra.mxu0 %v6161
    %6221 = vmatpush.bf16.msra.mxu0 %v6160
    %6222 = vmatpush.bf16.msra.mxu0 %v6159
    %6223 = vmatpush.bf16.msra.mxu0 %v6158
    %6224 = vmatpush.bf16.msra.mxu0 %v6157
    %6225 = vmatpush.bf16.msra.mxu0 %v6156
    %6226 = vmatpush.bf16.msra.mxu0 %v6155
    %6227 = vmatmul.bf16.gmra.mxu0 %v5958
    %v6228 = vpop.f32.mrf.mxu0
    %v6229 = vadd.f32 0.0, %v6228
    %v6230 = vpop.f32.mrf.mxu0
    %v6231 = vadd.f32 0.0, %v6230
    %6232 = vdwg.mxu0
    %6233 = vmatpush.bf16.msra.mxu0 %v6170
    %6234 = vmatpush.bf16.msra.mxu0 %v6169
    %6235 = vmatpush.bf16.msra.mxu0 %v6168
    %6236 = vmatpush.bf16.msra.mxu0 %v6167
    %6237 = vmatpush.bf16.msra.mxu0 %v6166
    %6238 = vmatpush.bf16.msra.mxu0 %v6165
    %6239 = vmatpush.bf16.msra.mxu0 %v6164
    %6240 = vmatpush.bf16.msra.mxu0 %v6163
    %6241 = vmatmul.bf16.gmra.mxu0 %v5959
    %v6242 = vpop.f32.mrf.mxu0
    %v6243 = vadd.f32 %v6229, %v6242
    %v6244 = vpop.f32.mrf.mxu0
    %v6245 = vadd.f32 %v6231, %v6244
    %6246 = vdwg.mxu0
    %6247 = vmatpush.bf16.msra.mxu0 %v6178
    %6248 = vmatpush.bf16.msra.mxu0 %v6177
    %6249 = vmatpush.bf16.msra.mxu0 %v6176
    %6250 = vmatpush.bf16.msra.mxu0 %v6175
    %6251 = vmatpush.bf16.msra.mxu0 %v6174
    %6252 = vmatpush.bf16.msra.mxu0 %v6173
    %6253 = vmatpush.bf16.msra.mxu0 %v6172
    %6254 = vmatpush.bf16.msra.mxu0 %v6171
    %6255 = vmatmul.bf16.gmra.mxu0 %v5960
    %v6256 = vpop.f32.mrf.mxu0
    %v6257 = vadd.f32 %v6243, %v6256
    %v6258 = vpop.f32.mrf.mxu0
    %v6259 = vadd.f32 %v6245, %v6258
    %6260 = vdwg.mxu0
    %6261 = vmatpush.bf16.msra.mxu0 %v6186
    %6262 = vmatpush.bf16.msra.mxu0 %v6185
    %6263 = vmatpush.bf16.msra.mxu0 %v6184
    %6264 = vmatpush.bf16.msra.mxu0 %v6183
    %6265 = vmatpush.bf16.msra.mxu0 %v6182
    %6266 = vmatpush.bf16.msra.mxu0 %v6181
    %6267 = vmatpush.bf16.msra.mxu0 %v6180
    %6268 = vmatpush.bf16.msra.mxu0 %v6179
    %6269 = vmatmul.bf16.gmra.mxu0 %v5961
    %v6270 = vpop.f32.mrf.mxu0
    %v6271 = vadd.f32 %v6257, %v6270
    %v6272 = vpop.f32.mrf.mxu0
    %v6273 = vadd.f32 %v6259, %v6272
    %6274 = vdwg.mxu0
    %v6275 = vadd.f32 %v5884, %v6271
    %v6276 = vadd.f32 %v5885, %v6273
    %v6277 = vld [vmem:[#allocation2 + $0xa00] sm:$0xff]
    %v6278 = vld [vmem:[#allocation2 + $0xa08] sm:$0xff]
    %v6279 = vld [vmem:[#allocation2 + $0xa10] sm:$0xff]
    %v6280 = vld [vmem:[#allocation2 + $0xa18] sm:$0xff]
    %v6281 = vld [vmem:[#allocation2 + $0xa20] sm:$0xff]
    %v6282 = vld [vmem:[#allocation2 + $0xa28] sm:$0xff]
    %v6283 = vld [vmem:[#allocation2 + $0xa30] sm:$0xff]
    %v6284 = vld [vmem:[#allocation2 + $0xa38] sm:$0xff]
    %v6285 = vld [vmem:[#allocation2 + $0xa40] sm:$0xff]
    %v6286 = vld [vmem:[#allocation2 + $0xa48] sm:$0xff]
    %v6287 = vld [vmem:[#allocation2 + $0xa50] sm:$0xff]
    %v6288 = vld [vmem:[#allocation2 + $0xa58] sm:$0xff]
    %v6289 = vld [vmem:[#allocation2 + $0xa60] sm:$0xff]
    %v6290 = vld [vmem:[#allocation2 + $0xa68] sm:$0xff]
    %v6291 = vld [vmem:[#allocation2 + $0xa70] sm:$0xff]
    %v6292 = vld [vmem:[#allocation2 + $0xa78] sm:$0xff]
    %v6293 = vld [vmem:[#allocation2 + $0xa80] sm:$0xff]
    %v6294 = vld [vmem:[#allocation2 + $0xa88] sm:$0xff]
    %v6295 = vld [vmem:[#allocation2 + $0xa90] sm:$0xff]
    %v6296 = vld [vmem:[#allocation2 + $0xa98] sm:$0xff]
    %v6297 = vld [vmem:[#allocation2 + $0xaa0] sm:$0xff]
    %v6298 = vld [vmem:[#allocation2 + $0xaa8] sm:$0xff]
    %v6299 = vld [vmem:[#allocation2 + $0xab0] sm:$0xff]
    %v6300 = vld [vmem:[#allocation2 + $0xab8] sm:$0xff]
    %v6301 = vld [vmem:[#allocation2 + $0xac0] sm:$0xff]
    %v6302 = vld [vmem:[#allocation2 + $0xac8] sm:$0xff]
    %v6303 = vld [vmem:[#allocation2 + $0xad0] sm:$0xff]
    %v6304 = vld [vmem:[#allocation2 + $0xad8] sm:$0xff]
    %v6305 = vld [vmem:[#allocation2 + $0xae0] sm:$0xff]
    %v6306 = vld [vmem:[#allocation2 + $0xae8] sm:$0xff]
    %v6307 = vld [vmem:[#allocation2 + $0xaf0] sm:$0xff]
    %v6308 = vld [vmem:[#allocation2 + $0xaf8] sm:$0xff]
    %v6309 = vmax.f32 %v6277, %v6293
    %v6310 = vmax.f32 %v6278, %v6294
    %v6311 = vmax.f32 %v6279, %v6295
    %v6312 = vmax.f32 %v6280, %v6296
    %v6313 = vmax.f32 %v6281, %v6297
    %v6314 = vmax.f32 %v6282, %v6298
    %v6315 = vmax.f32 %v6283, %v6299
    %v6316 = vmax.f32 %v6284, %v6300
    %v6317 = vmax.f32 %v6285, %v6301
    %v6318 = vmax.f32 %v6286, %v6302
    %v6319 = vmax.f32 %v6287, %v6303
    %v6320 = vmax.f32 %v6288, %v6304
    %v6321 = vmax.f32 %v6289, %v6305
    %v6322 = vmax.f32 %v6290, %v6306
    %v6323 = vmax.f32 %v6291, %v6307
    %v6324 = vmax.f32 %v6292, %v6308
    %v6325 = vmax.f32 %v6309, %v6313
    %v6326 = vmax.f32 %v6310, %v6314
    %v6327 = vmax.f32 %v6311, %v6315
    %v6328 = vmax.f32 %v6312, %v6316
    %v6329 = vmax.f32 %v6317, %v6321
    %v6330 = vmax.f32 %v6318, %v6322
    %v6331 = vmax.f32 %v6319, %v6323
    %v6332 = vmax.f32 %v6320, %v6324
    %v6333 = vadd.f32 %v6325, %v2420
    %v6334 = vadd.f32 %v6326, %v2421
    %v6335 = vadd.f32 %v6327, %v2422
    %v6336 = vadd.f32 %v6328, %v2423
    %v6337 = vadd.f32 %v6329, %v2420
    %v6338 = vadd.f32 %v6330, %v2421
    %v6339 = vadd.f32 %v6331, %v2422
    %v6340 = vadd.f32 %v6332, %v2423
    %v6341 = vmax.f32 %v6333, 0.0
    %v6342 = vmax.f32 %v6334, 0.0
    %v6343 = vmax.f32 %v6335, 0.0
    %v6344 = vmax.f32 %v6336, 0.0
    %v6345 = vmax.f32 %v6337, 0.0
    %v6346 = vmax.f32 %v6338, 0.0
    %v6347 = vmax.f32 %v6339, 0.0
    %v6348 = vmax.f32 %v6340, 0.0
    %v6349 = vpack.c.bf16 %v6345, %v6341
    %v6350 = vpack.c.bf16 %v6346, %v6342
    %v6351 = vpack.c.bf16 %v6347, %v6343
    %v6352 = vpack.c.bf16 %v6348, %v6344
    %s6353 = scalar_lea.vmem [#allocation7], 2560
    %v6354 = vld [vmem:[%s6353] sm:$0xf]
    %v6355 = vld [vmem:[%s6353 + $0x4] sm:$0xf]
    %v6356 = vld [vmem:[%s6353 + $0x8] sm:$0xf]
    %v6357 = vld [vmem:[%s6353 + $0xc] sm:$0xf]
    %v6358 = vld [vmem:[%s6353 + $0x10] sm:$0xf]
    %v6359 = vld [vmem:[%s6353 + $0x14] sm:$0xf]
    %v6360 = vld [vmem:[%s6353 + $0x18] sm:$0xf]
    %v6361 = vld [vmem:[%s6353 + $0x1c] sm:$0xf]
    %v6362 = vld [vmem:[%s6353 + $0x20] sm:$0xf]
    %v6363 = vld [vmem:[%s6353 + $0x24] sm:$0xf]
    %v6364 = vld [vmem:[%s6353 + $0x28] sm:$0xf]
    %v6365 = vld [vmem:[%s6353 + $0x2c] sm:$0xf]
    %v6366 = vld [vmem:[%s6353 + $0x30] sm:$0xf]
    %v6367 = vld [vmem:[%s6353 + $0x34] sm:$0xf]
    %v6368 = vld [vmem:[%s6353 + $0x38] sm:$0xf]
    %v6369 = vld [vmem:[%s6353 + $0x3c] sm:$0xf]
    %v6370 = vld [vmem:[%s6353 + $0x40] sm:$0xf]
    %v6371 = vld [vmem:[%s6353 + $0x44] sm:$0xf]
    %v6372 = vld [vmem:[%s6353 + $0x48] sm:$0xf]
    %v6373 = vld [vmem:[%s6353 + $0x4c] sm:$0xf]
    %v6374 = vld [vmem:[%s6353 + $0x50] sm:$0xf]
    %v6375 = vld [vmem:[%s6353 + $0x54] sm:$0xf]
    %v6376 = vld [vmem:[%s6353 + $0x58] sm:$0xf]
    %v6377 = vld [vmem:[%s6353 + $0x5c] sm:$0xf]
    %v6378 = vld [vmem:[%s6353 + $0x60] sm:$0xf]
    %v6379 = vld [vmem:[%s6353 + $0x64] sm:$0xf]
    %v6380 = vld [vmem:[%s6353 + $0x68] sm:$0xf]
    %v6381 = vld [vmem:[%s6353 + $0x6c] sm:$0xf]
    %v6382 = vld [vmem:[%s6353 + $0x70] sm:$0xf]
    %v6383 = vld [vmem:[%s6353 + $0x74] sm:$0xf]
    %v6384 = vld [vmem:[%s6353 + $0x78] sm:$0xf]
    %v6385 = vld [vmem:[%s6353 + $0x7c] sm:$0xf]
    %v6386 = vld [vmem:[%s6353 + $0x80] sm:$0xf]
    %v6387 = vld [vmem:[%s6353 + $0x84] sm:$0xf]
    %v6388 = vld [vmem:[%s6353 + $0x88] sm:$0xf]
    %v6389 = vld [vmem:[%s6353 + $0x8c] sm:$0xf]
    %v6390 = vld [vmem:[%s6353 + $0x90] sm:$0xf]
    %v6391 = vld [vmem:[%s6353 + $0x94] sm:$0xf]
    %v6392 = vld [vmem:[%s6353 + $0x98] sm:$0xf]
    %v6393 = vld [vmem:[%s6353 + $0x9c] sm:$0xf]
    %v6394 = vld [vmem:[%s6353 + $0xa0] sm:$0xf]
    %v6395 = vld [vmem:[%s6353 + $0xa4] sm:$0xf]
    %v6396 = vld [vmem:[%s6353 + $0xa8] sm:$0xf]
    %v6397 = vld [vmem:[%s6353 + $0xac] sm:$0xf]
    %v6398 = vld [vmem:[%s6353 + $0xb0] sm:$0xf]
    %v6399 = vld [vmem:[%s6353 + $0xb4] sm:$0xf]
    %v6400 = vld [vmem:[%s6353 + $0xb8] sm:$0xf]
    %v6401 = vld [vmem:[%s6353 + $0xbc] sm:$0xf]
    %v6402 = vld [vmem:[%s6353 + $0xc0] sm:$0xf]
    %v6403 = vld [vmem:[%s6353 + $0xc4] sm:$0xf]
    %v6404 = vld [vmem:[%s6353 + $0xc8] sm:$0xf]
    %v6405 = vld [vmem:[%s6353 + $0xcc] sm:$0xf]
    %v6406 = vld [vmem:[%s6353 + $0xd0] sm:$0xf]
    %v6407 = vld [vmem:[%s6353 + $0xd4] sm:$0xf]
    %v6408 = vld [vmem:[%s6353 + $0xd8] sm:$0xf]
    %v6409 = vld [vmem:[%s6353 + $0xdc] sm:$0xf]
    %v6410 = vld [vmem:[%s6353 + $0xe0] sm:$0xf]
    %v6411 = vld [vmem:[%s6353 + $0xe4] sm:$0xf]
    %v6412 = vld [vmem:[%s6353 + $0xe8] sm:$0xf]
    %v6413 = vld [vmem:[%s6353 + $0xec] sm:$0xf]
    %v6414 = vld [vmem:[%s6353 + $0xf0] sm:$0xf]
    %v6415 = vld [vmem:[%s6353 + $0xf4] sm:$0xf]
    %v6416 = vld [vmem:[%s6353 + $0xf8] sm:$0xf]
    %v6417 = vld [vmem:[%s6353 + $0xfc] sm:$0xf]
    %v6482 = vunpack.c.l.b16 %v6354
    %v6483 = vunpack.c.l.b16 %v6355
    %v6484 = vunpack.c.l.b16 %v6356
    %v6485 = vunpack.c.l.b16 %v6357
    %v6486 = vunpack.c.l.b16 %v6358
    %v6487 = vunpack.c.l.b16 %v6359
    %v6488 = vunpack.c.l.b16 %v6360
    %v6489 = vunpack.c.l.b16 %v6361
    %v6490 = vunpack.c.l.b16 %v6362
    %v6491 = vunpack.c.l.b16 %v6363
    %v6492 = vunpack.c.l.b16 %v6364
    %v6493 = vunpack.c.l.b16 %v6365
    %v6494 = vunpack.c.l.b16 %v6366
    %v6495 = vunpack.c.l.b16 %v6367
    %v6496 = vunpack.c.l.b16 %v6368
    %v6497 = vunpack.c.l.b16 %v6369
    %v6498 = vunpack.c.l.b16 %v6370
    %v6499 = vunpack.c.l.b16 %v6371
    %v6500 = vunpack.c.l.b16 %v6372
    %v6501 = vunpack.c.l.b16 %v6373
    %v6502 = vunpack.c.l.b16 %v6374
    %v6503 = vunpack.c.l.b16 %v6375
    %v6504 = vunpack.c.l.b16 %v6376
    %v6505 = vunpack.c.l.b16 %v6377
    %v6506 = vunpack.c.l.b16 %v6378
    %v6507 = vunpack.c.l.b16 %v6379
    %v6508 = vunpack.c.l.b16 %v6380
    %v6509 = vunpack.c.l.b16 %v6381
    %v6510 = vunpack.c.l.b16 %v6382
    %v6511 = vunpack.c.l.b16 %v6383
    %v6512 = vunpack.c.l.b16 %v6384
    %v6513 = vunpack.c.l.b16 %v6385
    %v6514 = vunpack.c.l.b16 %v6386
    %v6515 = vunpack.c.l.b16 %v6387
    %v6516 = vunpack.c.l.b16 %v6388
    %v6517 = vunpack.c.l.b16 %v6389
    %v6518 = vunpack.c.l.b16 %v6390
    %v6519 = vunpack.c.l.b16 %v6391
    %v6520 = vunpack.c.l.b16 %v6392
    %v6521 = vunpack.c.l.b16 %v6393
    %v6522 = vunpack.c.l.b16 %v6394
    %v6523 = vunpack.c.l.b16 %v6395
    %v6524 = vunpack.c.l.b16 %v6396
    %v6525 = vunpack.c.l.b16 %v6397
    %v6526 = vunpack.c.l.b16 %v6398
    %v6527 = vunpack.c.l.b16 %v6399
    %v6528 = vunpack.c.l.b16 %v6400
    %v6529 = vunpack.c.l.b16 %v6401
    %v6530 = vunpack.c.l.b16 %v6402
    %v6531 = vunpack.c.l.b16 %v6403
    %v6532 = vunpack.c.l.b16 %v6404
    %v6533 = vunpack.c.l.b16 %v6405
    %v6534 = vunpack.c.l.b16 %v6406
    %v6535 = vunpack.c.l.b16 %v6407
    %v6536 = vunpack.c.l.b16 %v6408
    %v6537 = vunpack.c.l.b16 %v6409
    %v6538 = vunpack.c.l.b16 %v6410
    %v6539 = vunpack.c.l.b16 %v6411
    %v6540 = vunpack.c.l.b16 %v6412
    %v6541 = vunpack.c.l.b16 %v6413
    %v6542 = vunpack.c.l.b16 %v6414
    %v6543 = vunpack.c.l.b16 %v6415
    %v6544 = vunpack.c.l.b16 %v6416
    %v6545 = vunpack.c.l.b16 %v6417
    %v6546 = vpack.c.b16 %v6483, %v6482
    %v6547 = vpack.c.b16 %v6485, %v6484
    %v6548 = vpack.c.b16 %v6487, %v6486
    %v6549 = vpack.c.b16 %v6489, %v6488
    %v6550 = vpack.c.b16 %v6491, %v6490
    %v6551 = vpack.c.b16 %v6493, %v6492
    %v6552 = vpack.c.b16 %v6495, %v6494
    %v6553 = vpack.c.b16 %v6497, %v6496
    %v6554 = vpack.c.b16 %v6499, %v6498
    %v6555 = vpack.c.b16 %v6501, %v6500
    %v6556 = vpack.c.b16 %v6503, %v6502
    %v6557 = vpack.c.b16 %v6505, %v6504
    %v6558 = vpack.c.b16 %v6507, %v6506
    %v6559 = vpack.c.b16 %v6509, %v6508
    %v6560 = vpack.c.b16 %v6511, %v6510
    %v6561 = vpack.c.b16 %v6513, %v6512
    %v6562 = vpack.c.b16 %v6515, %v6514
    %v6563 = vpack.c.b16 %v6517, %v6516
    %v6564 = vpack.c.b16 %v6519, %v6518
    %v6565 = vpack.c.b16 %v6521, %v6520
    %v6566 = vpack.c.b16 %v6523, %v6522
    %v6567 = vpack.c.b16 %v6525, %v6524
    %v6568 = vpack.c.b16 %v6527, %v6526
    %v6569 = vpack.c.b16 %v6529, %v6528
    %v6570 = vpack.c.b16 %v6531, %v6530
    %v6571 = vpack.c.b16 %v6533, %v6532
    %v6572 = vpack.c.b16 %v6535, %v6534
    %v6573 = vpack.c.b16 %v6537, %v6536
    %v6574 = vpack.c.b16 %v6539, %v6538
    %v6575 = vpack.c.b16 %v6541, %v6540
    %v6576 = vpack.c.b16 %v6543, %v6542
    %v6577 = vpack.c.b16 %v6545, %v6544
    %6610 = vmatpush.bf16.msra.mxu0 %v6553
    %6611 = vmatpush.bf16.msra.mxu0 %v6552
    %6612 = vmatpush.bf16.msra.mxu0 %v6551
    %6613 = vmatpush.bf16.msra.mxu0 %v6550
    %6614 = vmatpush.bf16.msra.mxu0 %v6549
    %6615 = vmatpush.bf16.msra.mxu0 %v6548
    %6616 = vmatpush.bf16.msra.mxu0 %v6547
    %6617 = vmatpush.bf16.msra.mxu0 %v6546
    %6618 = vmatmul.bf16.gmra.mxu0 %v6349
    %v6619 = vpop.f32.mrf.mxu0
    %v6620 = vadd.f32 0.0, %v6619
    %v6621 = vpop.f32.mrf.mxu0
    %v6622 = vadd.f32 0.0, %v6621
    %6623 = vdwg.mxu0
    %6624 = vmatpush.bf16.msra.mxu0 %v6561
    %6625 = vmatpush.bf16.msra.mxu0 %v6560
    %6626 = vmatpush.bf16.msra.mxu0 %v6559
    %6627 = vmatpush.bf16.msra.mxu0 %v6558
    %6628 = vmatpush.bf16.msra.mxu0 %v6557
    %6629 = vmatpush.bf16.msra.mxu0 %v6556
    %6630 = vmatpush.bf16.msra.mxu0 %v6555
    %6631 = vmatpush.bf16.msra.mxu0 %v6554
    %6632 = vmatmul.bf16.gmra.mxu0 %v6350
    %v6633 = vpop.f32.mrf.mxu0
    %v6634 = vadd.f32 %v6620, %v6633
    %v6635 = vpop.f32.mrf.mxu0
    %v6636 = vadd.f32 %v6622, %v6635
    %6637 = vdwg.mxu0
    %6638 = vmatpush.bf16.msra.mxu0 %v6569
    %6639 = vmatpush.bf16.msra.mxu0 %v6568
    %6640 = vmatpush.bf16.msra.mxu0 %v6567
    %6641 = vmatpush.bf16.msra.mxu0 %v6566
    %6642 = vmatpush.bf16.msra.mxu0 %v6565
    %6643 = vmatpush.bf16.msra.mxu0 %v6564
    %6644 = vmatpush.bf16.msra.mxu0 %v6563
    %6645 = vmatpush.bf16.msra.mxu0 %v6562
    %6646 = vmatmul.bf16.gmra.mxu0 %v6351
    %v6647 = vpop.f32.mrf.mxu0
    %v6648 = vadd.f32 %v6634, %v6647
    %v6649 = vpop.f32.mrf.mxu0
    %v6650 = vadd.f32 %v6636, %v6649
    %6651 = vdwg.mxu0
    %6652 = vmatpush.bf16.msra.mxu0 %v6577
    %6653 = vmatpush.bf16.msra.mxu0 %v6576
    %6654 = vmatpush.bf16.msra.mxu0 %v6575
    %6655 = vmatpush.bf16.msra.mxu0 %v6574
    %6656 = vmatpush.bf16.msra.mxu0 %v6573
    %6657 = vmatpush.bf16.msra.mxu0 %v6572
    %6658 = vmatpush.bf16.msra.mxu0 %v6571
    %6659 = vmatpush.bf16.msra.mxu0 %v6570
    %6660 = vmatmul.bf16.gmra.mxu0 %v6352
    %v6661 = vpop.f32.mrf.mxu0
    %v6662 = vadd.f32 %v6648, %v6661
    %v6663 = vpop.f32.mrf.mxu0
    %v6664 = vadd.f32 %v6650, %v6663
    %6665 = vdwg.mxu0
    %v6666 = vadd.f32 %v6275, %v6662
    %v6667 = vadd.f32 %v6276, %v6664
    %v6668 = vld [vmem:[#allocation2 + $0xb00] sm:$0xff]
    %v6669 = vld [vmem:[#allocation2 + $0xb08] sm:$0xff]
    %v6670 = vld [vmem:[#allocation2 + $0xb10] sm:$0xff]
    %v6671 = vld [vmem:[#allocation2 + $0xb18] sm:$0xff]
    %v6672 = vld [vmem:[#allocation2 + $0xb20] sm:$0xff]
    %v6673 = vld [vmem:[#allocation2 + $0xb28] sm:$0xff]
    %v6674 = vld [vmem:[#allocation2 + $0xb30] sm:$0xff]
    %v6675 = vld [vmem:[#allocation2 + $0xb38] sm:$0xff]
    %v6676 = vld [vmem:[#allocation2 + $0xb40] sm:$0xff]
    %v6677 = vld [vmem:[#allocation2 + $0xb48] sm:$0xff]
    %v6678 = vld [vmem:[#allocation2 + $0xb50] sm:$0xff]
    %v6679 = vld [vmem:[#allocation2 + $0xb58] sm:$0xff]
    %v6680 = vld [vmem:[#allocation2 + $0xb60] sm:$0xff]
    %v6681 = vld [vmem:[#allocation2 + $0xb68] sm:$0xff]
    %v6682 = vld [vmem:[#allocation2 + $0xb70] sm:$0xff]
    %v6683 = vld [vmem:[#allocation2 + $0xb78] sm:$0xff]
    %v6684 = vld [vmem:[#allocation2 + $0xb80] sm:$0xff]
    %v6685 = vld [vmem:[#allocation2 + $0xb88] sm:$0xff]
    %v6686 = vld [vmem:[#allocation2 + $0xb90] sm:$0xff]
    %v6687 = vld [vmem:[#allocation2 + $0xb98] sm:$0xff]
    %v6688 = vld [vmem:[#allocation2 + $0xba0] sm:$0xff]
    %v6689 = vld [vmem:[#allocation2 + $0xba8] sm:$0xff]
    %v6690 = vld [vmem:[#allocation2 + $0xbb0] sm:$0xff]
    %v6691 = vld [vmem:[#allocation2 + $0xbb8] sm:$0xff]
    %v6692 = vld [vmem:[#allocation2 + $0xbc0] sm:$0xff]
    %v6693 = vld [vmem:[#allocation2 + $0xbc8] sm:$0xff]
    %v6694 = vld [vmem:[#allocation2 + $0xbd0] sm:$0xff]
    %v6695 = vld [vmem:[#allocation2 + $0xbd8] sm:$0xff]
    %v6696 = vld [vmem:[#allocation2 + $0xbe0] sm:$0xff]
    %v6697 = vld [vmem:[#allocation2 + $0xbe8] sm:$0xff]
    %v6698 = vld [vmem:[#allocation2 + $0xbf0] sm:$0xff]
    %v6699 = vld [vmem:[#allocation2 + $0xbf8] sm:$0xff]
    %v6700 = vmax.f32 %v6668, %v6684
    %v6701 = vmax.f32 %v6669, %v6685
    %v6702 = vmax.f32 %v6670, %v6686
    %v6703 = vmax.f32 %v6671, %v6687
    %v6704 = vmax.f32 %v6672, %v6688
    %v6705 = vmax.f32 %v6673, %v6689
    %v6706 = vmax.f32 %v6674, %v6690
    %v6707 = vmax.f32 %v6675, %v6691
    %v6708 = vmax.f32 %v6676, %v6692
    %v6709 = vmax.f32 %v6677, %v6693
    %v6710 = vmax.f32 %v6678, %v6694
    %v6711 = vmax.f32 %v6679, %v6695
    %v6712 = vmax.f32 %v6680, %v6696
    %v6713 = vmax.f32 %v6681, %v6697
    %v6714 = vmax.f32 %v6682, %v6698
    %v6715 = vmax.f32 %v6683, %v6699
    %v6716 = vmax.f32 %v6700, %v6704
    %v6717 = vmax.f32 %v6701, %v6705
    %v6718 = vmax.f32 %v6702, %v6706
    %v6719 = vmax.f32 %v6703, %v6707
    %v6720 = vmax.f32 %v6708, %v6712
    %v6721 = vmax.f32 %v6709, %v6713
    %v6722 = vmax.f32 %v6710, %v6714
    %v6723 = vmax.f32 %v6711, %v6715
    %v6724 = vadd.f32 %v6716, %v2420
    %v6725 = vadd.f32 %v6717, %v2421
    %v6726 = vadd.f32 %v6718, %v2422
    %v6727 = vadd.f32 %v6719, %v2423
    %v6728 = vadd.f32 %v6720, %v2420
    %v6729 = vadd.f32 %v6721, %v2421
    %v6730 = vadd.f32 %v6722, %v2422
    %v6731 = vadd.f32 %v6723, %v2423
    %v6732 = vmax.f32 %v6724, 0.0
    %v6733 = vmax.f32 %v6725, 0.0
    %v6734 = vmax.f32 %v6726, 0.0
    %v6735 = vmax.f32 %v6727, 0.0
    %v6736 = vmax.f32 %v6728, 0.0
    %v6737 = vmax.f32 %v6729, 0.0
    %v6738 = vmax.f32 %v6730, 0.0
    %v6739 = vmax.f32 %v6731, 0.0
    %v6740 = vpack.c.bf16 %v6736, %v6732
    %v6741 = vpack.c.bf16 %v6737, %v6733
    %v6742 = vpack.c.bf16 %v6738, %v6734
    %v6743 = vpack.c.bf16 %v6739, %v6735
    %s6744 = scalar_lea.vmem [#allocation7], 2816
    %v6745 = vld [vmem:[%s6744] sm:$0xf]
    %v6746 = vld [vmem:[%s6744 + $0x4] sm:$0xf]
    %v6747 = vld [vmem:[%s6744 + $0x8] sm:$0xf]
    %v6748 = vld [vmem:[%s6744 + $0xc] sm:$0xf]
    %v6749 = vld [vmem:[%s6744 + $0x10] sm:$0xf]
    %v6750 = vld [vmem:[%s6744 + $0x14] sm:$0xf]
    %v6751 = vld [vmem:[%s6744 + $0x18] sm:$0xf]
    %v6752 = vld [vmem:[%s6744 + $0x1c] sm:$0xf]
    %v6753 = vld [vmem:[%s6744 + $0x20] sm:$0xf]
    %v6754 = vld [vmem:[%s6744 + $0x24] sm:$0xf]
    %v6755 = vld [vmem:[%s6744 + $0x28] sm:$0xf]
    %v6756 = vld [vmem:[%s6744 + $0x2c] sm:$0xf]
    %v6757 = vld [vmem:[%s6744 + $0x30] sm:$0xf]
    %v6758 = vld [vmem:[%s6744 + $0x34] sm:$0xf]
    %v6759 = vld [vmem:[%s6744 + $0x38] sm:$0xf]
    %v6760 = vld [vmem:[%s6744 + $0x3c] sm:$0xf]
    %v6761 = vld [vmem:[%s6744 + $0x40] sm:$0xf]
    %v6762 = vld [vmem:[%s6744 + $0x44] sm:$0xf]
    %v6763 = vld [vmem:[%s6744 + $0x48] sm:$0xf]
    %v6764 = vld [vmem:[%s6744 + $0x4c] sm:$0xf]
    %v6765 = vld [vmem:[%s6744 + $0x50] sm:$0xf]
    %v6766 = vld [vmem:[%s6744 + $0x54] sm:$0xf]
    %v6767 = vld [vmem:[%s6744 + $0x58] sm:$0xf]
    %v6768 = vld [vmem:[%s6744 + $0x5c] sm:$0xf]
    %v6769 = vld [vmem:[%s6744 + $0x60] sm:$0xf]
    %v6770 = vld [vmem:[%s6744 + $0x64] sm:$0xf]
    %v6771 = vld [vmem:[%s6744 + $0x68] sm:$0xf]
    %v6772 = vld [vmem:[%s6744 + $0x6c] sm:$0xf]
    %v6773 = vld [vmem:[%s6744 + $0x70] sm:$0xf]
    %v6774 = vld [vmem:[%s6744 + $0x74] sm:$0xf]
    %v6775 = vld [vmem:[%s6744 + $0x78] sm:$0xf]
    %v6776 = vld [vmem:[%s6744 + $0x7c] sm:$0xf]
    %v6777 = vld [vmem:[%s6744 + $0x80] sm:$0xf]
    %v6778 = vld [vmem:[%s6744 + $0x84] sm:$0xf]
    %v6779 = vld [vmem:[%s6744 + $0x88] sm:$0xf]
    %v6780 = vld [vmem:[%s6744 + $0x8c] sm:$0xf]
    %v6781 = vld [vmem:[%s6744 + $0x90] sm:$0xf]
    %v6782 = vld [vmem:[%s6744 + $0x94] sm:$0xf]
    %v6783 = vld [vmem:[%s6744 + $0x98] sm:$0xf]
    %v6784 = vld [vmem:[%s6744 + $0x9c] sm:$0xf]
    %v6785 = vld [vmem:[%s6744 + $0xa0] sm:$0xf]
    %v6786 = vld [vmem:[%s6744 + $0xa4] sm:$0xf]
    %v6787 = vld [vmem:[%s6744 + $0xa8] sm:$0xf]
    %v6788 = vld [vmem:[%s6744 + $0xac] sm:$0xf]
    %v6789 = vld [vmem:[%s6744 + $0xb0] sm:$0xf]
    %v6790 = vld [vmem:[%s6744 + $0xb4] sm:$0xf]
    %v6791 = vld [vmem:[%s6744 + $0xb8] sm:$0xf]
    %v6792 = vld [vmem:[%s6744 + $0xbc] sm:$0xf]
    %v6793 = vld [vmem:[%s6744 + $0xc0] sm:$0xf]
    %v6794 = vld [vmem:[%s6744 + $0xc4] sm:$0xf]
    %v6795 = vld [vmem:[%s6744 + $0xc8] sm:$0xf]
    %v6796 = vld [vmem:[%s6744 + $0xcc] sm:$0xf]
    %v6797 = vld [vmem:[%s6744 + $0xd0] sm:$0xf]
    %v6798 = vld [vmem:[%s6744 + $0xd4] sm:$0xf]
    %v6799 = vld [vmem:[%s6744 + $0xd8] sm:$0xf]
    %v6800 = vld [vmem:[%s6744 + $0xdc] sm:$0xf]
    %v6801 = vld [vmem:[%s6744 + $0xe0] sm:$0xf]
    %v6802 = vld [vmem:[%s6744 + $0xe4] sm:$0xf]
    %v6803 = vld [vmem:[%s6744 + $0xe8] sm:$0xf]
    %v6804 = vld [vmem:[%s6744 + $0xec] sm:$0xf]
    %v6805 = vld [vmem:[%s6744 + $0xf0] sm:$0xf]
    %v6806 = vld [vmem:[%s6744 + $0xf4] sm:$0xf]
    %v6807 = vld [vmem:[%s6744 + $0xf8] sm:$0xf]
    %v6808 = vld [vmem:[%s6744 + $0xfc] sm:$0xf]
    %v6873 = vunpack.c.l.b16 %v6745
    %v6874 = vunpack.c.l.b16 %v6746
    %v6875 = vunpack.c.l.b16 %v6747
    %v6876 = vunpack.c.l.b16 %v6748
    %v6877 = vunpack.c.l.b16 %v6749
    %v6878 = vunpack.c.l.b16 %v6750
    %v6879 = vunpack.c.l.b16 %v6751
    %v6880 = vunpack.c.l.b16 %v6752
    %v6881 = vunpack.c.l.b16 %v6753
    %v6882 = vunpack.c.l.b16 %v6754
    %v6883 = vunpack.c.l.b16 %v6755
    %v6884 = vunpack.c.l.b16 %v6756
    %v6885 = vunpack.c.l.b16 %v6757
    %v6886 = vunpack.c.l.b16 %v6758
    %v6887 = vunpack.c.l.b16 %v6759
    %v6888 = vunpack.c.l.b16 %v6760
    %v6889 = vunpack.c.l.b16 %v6761
    %v6890 = vunpack.c.l.b16 %v6762
    %v6891 = vunpack.c.l.b16 %v6763
    %v6892 = vunpack.c.l.b16 %v6764
    %v6893 = vunpack.c.l.b16 %v6765
    %v6894 = vunpack.c.l.b16 %v6766
    %v6895 = vunpack.c.l.b16 %v6767
    %v6896 = vunpack.c.l.b16 %v6768
    %v6897 = vunpack.c.l.b16 %v6769
    %v6898 = vunpack.c.l.b16 %v6770
    %v6899 = vunpack.c.l.b16 %v6771
    %v6900 = vunpack.c.l.b16 %v6772
    %v6901 = vunpack.c.l.b16 %v6773
    %v6902 = vunpack.c.l.b16 %v6774
    %v6903 = vunpack.c.l.b16 %v6775
    %v6904 = vunpack.c.l.b16 %v6776
    %v6905 = vunpack.c.l.b16 %v6777
    %v6906 = vunpack.c.l.b16 %v6778
    %v6907 = vunpack.c.l.b16 %v6779
    %v6908 = vunpack.c.l.b16 %v6780
    %v6909 = vunpack.c.l.b16 %v6781
    %v6910 = vunpack.c.l.b16 %v6782
    %v6911 = vunpack.c.l.b16 %v6783
    %v6912 = vunpack.c.l.b16 %v6784
    %v6913 = vunpack.c.l.b16 %v6785
    %v6914 = vunpack.c.l.b16 %v6786
    %v6915 = vunpack.c.l.b16 %v6787
    %v6916 = vunpack.c.l.b16 %v6788
    %v6917 = vunpack.c.l.b16 %v6789
    %v6918 = vunpack.c.l.b16 %v6790
    %v6919 = vunpack.c.l.b16 %v6791
    %v6920 = vunpack.c.l.b16 %v6792
    %v6921 = vunpack.c.l.b16 %v6793
    %v6922 = vunpack.c.l.b16 %v6794
    %v6923 = vunpack.c.l.b16 %v6795
    %v6924 = vunpack.c.l.b16 %v6796
    %v6925 = vunpack.c.l.b16 %v6797
    %v6926 = vunpack.c.l.b16 %v6798
    %v6927 = vunpack.c.l.b16 %v6799
    %v6928 = vunpack.c.l.b16 %v6800
    %v6929 = vunpack.c.l.b16 %v6801
    %v6930 = vunpack.c.l.b16 %v6802
    %v6931 = vunpack.c.l.b16 %v6803
    %v6932 = vunpack.c.l.b16 %v6804
    %v6933 = vunpack.c.l.b16 %v6805
    %v6934 = vunpack.c.l.b16 %v6806
    %v6935 = vunpack.c.l.b16 %v6807
    %v6936 = vunpack.c.l.b16 %v6808
    %v6937 = vpack.c.b16 %v6874, %v6873
    %v6938 = vpack.c.b16 %v6876, %v6875
    %v6939 = vpack.c.b16 %v6878, %v6877
    %v6940 = vpack.c.b16 %v6880, %v6879
    %v6941 = vpack.c.b16 %v6882, %v6881
    %v6942 = vpack.c.b16 %v6884, %v6883
    %v6943 = vpack.c.b16 %v6886, %v6885
    %v6944 = vpack.c.b16 %v6888, %v6887
    %v6945 = vpack.c.b16 %v6890, %v6889
    %v6946 = vpack.c.b16 %v6892, %v6891
    %v6947 = vpack.c.b16 %v6894, %v6893
    %v6948 = vpack.c.b16 %v6896, %v6895
    %v6949 = vpack.c.b16 %v6898, %v6897
    %v6950 = vpack.c.b16 %v6900, %v6899
    %v6951 = vpack.c.b16 %v6902, %v6901
    %v6952 = vpack.c.b16 %v6904, %v6903
    %v6953 = vpack.c.b16 %v6906, %v6905
    %v6954 = vpack.c.b16 %v6908, %v6907
    %v6955 = vpack.c.b16 %v6910, %v6909
    %v6956 = vpack.c.b16 %v6912, %v6911
    %v6957 = vpack.c.b16 %v6914, %v6913
    %v6958 = vpack.c.b16 %v6916, %v6915
    %v6959 = vpack.c.b16 %v6918, %v6917
    %v6960 = vpack.c.b16 %v6920, %v6919
    %v6961 = vpack.c.b16 %v6922, %v6921
    %v6962 = vpack.c.b16 %v6924, %v6923
    %v6963 = vpack.c.b16 %v6926, %v6925
    %v6964 = vpack.c.b16 %v6928, %v6927
    %v6965 = vpack.c.b16 %v6930, %v6929
    %v6966 = vpack.c.b16 %v6932, %v6931
    %v6967 = vpack.c.b16 %v6934, %v6933
    %v6968 = vpack.c.b16 %v6936, %v6935
    %7001 = vmatpush.bf16.msra.mxu0 %v6944
    %7002 = vmatpush.bf16.msra.mxu0 %v6943
    %7003 = vmatpush.bf16.msra.mxu0 %v6942
    %7004 = vmatpush.bf16.msra.mxu0 %v6941
    %7005 = vmatpush.bf16.msra.mxu0 %v6940
    %7006 = vmatpush.bf16.msra.mxu0 %v6939
    %7007 = vmatpush.bf16.msra.mxu0 %v6938
    %7008 = vmatpush.bf16.msra.mxu0 %v6937
    %7009 = vmatmul.bf16.gmra.mxu0 %v6740
    %v7010 = vpop.f32.mrf.mxu0
    %v7011 = vadd.f32 0.0, %v7010
    %v7012 = vpop.f32.mrf.mxu0
    %v7013 = vadd.f32 0.0, %v7012
    %7014 = vdwg.mxu0
    %7015 = vmatpush.bf16.msra.mxu0 %v6952
    %7016 = vmatpush.bf16.msra.mxu0 %v6951
    %7017 = vmatpush.bf16.msra.mxu0 %v6950
    %7018 = vmatpush.bf16.msra.mxu0 %v6949
    %7019 = vmatpush.bf16.msra.mxu0 %v6948
    %7020 = vmatpush.bf16.msra.mxu0 %v6947
    %7021 = vmatpush.bf16.msra.mxu0 %v6946
    %7022 = vmatpush.bf16.msra.mxu0 %v6945
    %7023 = vmatmul.bf16.gmra.mxu0 %v6741
    %v7024 = vpop.f32.mrf.mxu0
    %v7025 = vadd.f32 %v7011, %v7024
    %v7026 = vpop.f32.mrf.mxu0
    %v7027 = vadd.f32 %v7013, %v7026
    %7028 = vdwg.mxu0
    %7029 = vmatpush.bf16.msra.mxu0 %v6960
    %7030 = vmatpush.bf16.msra.mxu0 %v6959
    %7031 = vmatpush.bf16.msra.mxu0 %v6958
    %7032 = vmatpush.bf16.msra.mxu0 %v6957
    %7033 = vmatpush.bf16.msra.mxu0 %v6956
    %7034 = vmatpush.bf16.msra.mxu0 %v6955
    %7035 = vmatpush.bf16.msra.mxu0 %v6954
    %7036 = vmatpush.bf16.msra.mxu0 %v6953
    %7037 = vmatmul.bf16.gmra.mxu0 %v6742
    %v7038 = vpop.f32.mrf.mxu0
    %v7039 = vadd.f32 %v7025, %v7038
    %v7040 = vpop.f32.mrf.mxu0
    %v7041 = vadd.f32 %v7027, %v7040
    %7042 = vdwg.mxu0
    %7043 = vmatpush.bf16.msra.mxu0 %v6968
    %7044 = vmatpush.bf16.msra.mxu0 %v6967
    %7045 = vmatpush.bf16.msra.mxu0 %v6966
    %7046 = vmatpush.bf16.msra.mxu0 %v6965
    %7047 = vmatpush.bf16.msra.mxu0 %v6964
    %7048 = vmatpush.bf16.msra.mxu0 %v6963
    %7049 = vmatpush.bf16.msra.mxu0 %v6962
    %7050 = vmatpush.bf16.msra.mxu0 %v6961
    %7051 = vmatmul.bf16.gmra.mxu0 %v6743
    %v7052 = vpop.f32.mrf.mxu0
    %v7053 = vadd.f32 %v7039, %v7052
    %v7054 = vpop.f32.mrf.mxu0
    %v7055 = vadd.f32 %v7041, %v7054
    %7056 = vdwg.mxu0
    %v7057 = vadd.f32 %v6666, %v7053
    %v7058 = vadd.f32 %v6667, %v7055
    %v7059 = vld [vmem:[#allocation2 + $0xc00] sm:$0xff]
    %v7060 = vld [vmem:[#allocation2 + $0xc08] sm:$0xff]
    %v7061 = vld [vmem:[#allocation2 + $0xc10] sm:$0xff]
    %v7062 = vld [vmem:[#allocation2 + $0xc18] sm:$0xff]
    %v7063 = vld [vmem:[#allocation2 + $0xc20] sm:$0xff]
    %v7064 = vld [vmem:[#allocation2 + $0xc28] sm:$0xff]
    %v7065 = vld [vmem:[#allocation2 + $0xc30] sm:$0xff]
    %v7066 = vld [vmem:[#allocation2 + $0xc38] sm:$0xff]
    %v7067 = vld [vmem:[#allocation2 + $0xc40] sm:$0xff]
    %v7068 = vld [vmem:[#allocation2 + $0xc48] sm:$0xff]
    %v7069 = vld [vmem:[#allocation2 + $0xc50] sm:$0xff]
    %v7070 = vld [vmem:[#allocation2 + $0xc58] sm:$0xff]
    %v7071 = vld [vmem:[#allocation2 + $0xc60] sm:$0xff]
    %v7072 = vld [vmem:[#allocation2 + $0xc68] sm:$0xff]
    %v7073 = vld [vmem:[#allocation2 + $0xc70] sm:$0xff]
    %v7074 = vld [vmem:[#allocation2 + $0xc78] sm:$0xff]
    %v7075 = vld [vmem:[#allocation2 + $0xc80] sm:$0xff]
    %v7076 = vld [vmem:[#allocation2 + $0xc88] sm:$0xff]
    %v7077 = vld [vmem:[#allocation2 + $0xc90] sm:$0xff]
    %v7078 = vld [vmem:[#allocation2 + $0xc98] sm:$0xff]
    %v7079 = vld [vmem:[#allocation2 + $0xca0] sm:$0xff]
    %v7080 = vld [vmem:[#allocation2 + $0xca8] sm:$0xff]
    %v7081 = vld [vmem:[#allocation2 + $0xcb0] sm:$0xff]
    %v7082 = vld [vmem:[#allocation2 + $0xcb8] sm:$0xff]
    %v7083 = vld [vmem:[#allocation2 + $0xcc0] sm:$0xff]
    %v7084 = vld [vmem:[#allocation2 + $0xcc8] sm:$0xff]
    %v7085 = vld [vmem:[#allocation2 + $0xcd0] sm:$0xff]
    %v7086 = vld [vmem:[#allocation2 + $0xcd8] sm:$0xff]
    %v7087 = vld [vmem:[#allocation2 + $0xce0] sm:$0xff]
    %v7088 = vld [vmem:[#allocation2 + $0xce8] sm:$0xff]
    %v7089 = vld [vmem:[#allocation2 + $0xcf0] sm:$0xff]
    %v7090 = vld [vmem:[#allocation2 + $0xcf8] sm:$0xff]
    %v7091 = vmax.f32 %v7059, %v7075
    %v7092 = vmax.f32 %v7060, %v7076
    %v7093 = vmax.f32 %v7061, %v7077
    %v7094 = vmax.f32 %v7062, %v7078
    %v7095 = vmax.f32 %v7063, %v7079
    %v7096 = vmax.f32 %v7064, %v7080
    %v7097 = vmax.f32 %v7065, %v7081
    %v7098 = vmax.f32 %v7066, %v7082
    %v7099 = vmax.f32 %v7067, %v7083
    %v7100 = vmax.f32 %v7068, %v7084
    %v7101 = vmax.f32 %v7069, %v7085
    %v7102 = vmax.f32 %v7070, %v7086
    %v7103 = vmax.f32 %v7071, %v7087
    %v7104 = vmax.f32 %v7072, %v7088
    %v7105 = vmax.f32 %v7073, %v7089
    %v7106 = vmax.f32 %v7074, %v7090
    %v7107 = vmax.f32 %v7091, %v7095
    %v7108 = vmax.f32 %v7092, %v7096
    %v7109 = vmax.f32 %v7093, %v7097
    %v7110 = vmax.f32 %v7094, %v7098
    %v7111 = vmax.f32 %v7099, %v7103
    %v7112 = vmax.f32 %v7100, %v7104
    %v7113 = vmax.f32 %v7101, %v7105
    %v7114 = vmax.f32 %v7102, %v7106
    %v7115 = vadd.f32 %v7107, %v2420
    %v7116 = vadd.f32 %v7108, %v2421
    %v7117 = vadd.f32 %v7109, %v2422
    %v7118 = vadd.f32 %v7110, %v2423
    %v7119 = vadd.f32 %v7111, %v2420
    %v7120 = vadd.f32 %v7112, %v2421
    %v7121 = vadd.f32 %v7113, %v2422
    %v7122 = vadd.f32 %v7114, %v2423
    %v7123 = vmax.f32 %v7115, 0.0
    %v7124 = vmax.f32 %v7116, 0.0
    %v7125 = vmax.f32 %v7117, 0.0
    %v7126 = vmax.f32 %v7118, 0.0
    %v7127 = vmax.f32 %v7119, 0.0
    %v7128 = vmax.f32 %v7120, 0.0
    %v7129 = vmax.f32 %v7121, 0.0
    %v7130 = vmax.f32 %v7122, 0.0
    %v7131 = vpack.c.bf16 %v7127, %v7123
    %v7132 = vpack.c.bf16 %v7128, %v7124
    %v7133 = vpack.c.bf16 %v7129, %v7125
    %v7134 = vpack.c.bf16 %v7130, %v7126
    %s7135 = scalar_lea.vmem [#allocation7], 3072
    %v7136 = vld [vmem:[%s7135] sm:$0xf]
    %v7137 = vld [vmem:[%s7135 + $0x4] sm:$0xf]
    %v7138 = vld [vmem:[%s7135 + $0x8] sm:$0xf]
    %v7139 = vld [vmem:[%s7135 + $0xc] sm:$0xf]
    %v7140 = vld [vmem:[%s7135 + $0x10] sm:$0xf]
    %v7141 = vld [vmem:[%s7135 + $0x14] sm:$0xf]
    %v7142 = vld [vmem:[%s7135 + $0x18] sm:$0xf]
    %v7143 = vld [vmem:[%s7135 + $0x1c] sm:$0xf]
    %v7144 = vld [vmem:[%s7135 + $0x20] sm:$0xf]
    %v7145 = vld [vmem:[%s7135 + $0x24] sm:$0xf]
    %v7146 = vld [vmem:[%s7135 + $0x28] sm:$0xf]
    %v7147 = vld [vmem:[%s7135 + $0x2c] sm:$0xf]
    %v7148 = vld [vmem:[%s7135 + $0x30] sm:$0xf]
    %v7149 = vld [vmem:[%s7135 + $0x34] sm:$0xf]
    %v7150 = vld [vmem:[%s7135 + $0x38] sm:$0xf]
    %v7151 = vld [vmem:[%s7135 + $0x3c] sm:$0xf]
    %v7152 = vld [vmem:[%s7135 + $0x40] sm:$0xf]
    %v7153 = vld [vmem:[%s7135 + $0x44] sm:$0xf]
    %v7154 = vld [vmem:[%s7135 + $0x48] sm:$0xf]
    %v7155 = vld [vmem:[%s7135 + $0x4c] sm:$0xf]
    %v7156 = vld [vmem:[%s7135 + $0x50] sm:$0xf]
    %v7157 = vld [vmem:[%s7135 + $0x54] sm:$0xf]
    %v7158 = vld [vmem:[%s7135 + $0x58] sm:$0xf]
    %v7159 = vld [vmem:[%s7135 + $0x5c] sm:$0xf]
    %v7160 = vld [vmem:[%s7135 + $0x60] sm:$0xf]
    %v7161 = vld [vmem:[%s7135 + $0x64] sm:$0xf]
    %v7162 = vld [vmem:[%s7135 + $0x68] sm:$0xf]
    %v7163 = vld [vmem:[%s7135 + $0x6c] sm:$0xf]
    %v7164 = vld [vmem:[%s7135 + $0x70] sm:$0xf]
    %v7165 = vld [vmem:[%s7135 + $0x74] sm:$0xf]
    %v7166 = vld [vmem:[%s7135 + $0x78] sm:$0xf]
    %v7167 = vld [vmem:[%s7135 + $0x7c] sm:$0xf]
    %v7168 = vld [vmem:[%s7135 + $0x80] sm:$0xf]
    %v7169 = vld [vmem:[%s7135 + $0x84] sm:$0xf]
    %v7170 = vld [vmem:[%s7135 + $0x88] sm:$0xf]
    %v7171 = vld [vmem:[%s7135 + $0x8c] sm:$0xf]
    %v7172 = vld [vmem:[%s7135 + $0x90] sm:$0xf]
    %v7173 = vld [vmem:[%s7135 + $0x94] sm:$0xf]
    %v7174 = vld [vmem:[%s7135 + $0x98] sm:$0xf]
    %v7175 = vld [vmem:[%s7135 + $0x9c] sm:$0xf]
    %v7176 = vld [vmem:[%s7135 + $0xa0] sm:$0xf]
    %v7177 = vld [vmem:[%s7135 + $0xa4] sm:$0xf]
    %v7178 = vld [vmem:[%s7135 + $0xa8] sm:$0xf]
    %v7179 = vld [vmem:[%s7135 + $0xac] sm:$0xf]
    %v7180 = vld [vmem:[%s7135 + $0xb0] sm:$0xf]
    %v7181 = vld [vmem:[%s7135 + $0xb4] sm:$0xf]
    %v7182 = vld [vmem:[%s7135 + $0xb8] sm:$0xf]
    %v7183 = vld [vmem:[%s7135 + $0xbc] sm:$0xf]
    %v7184 = vld [vmem:[%s7135 + $0xc0] sm:$0xf]
    %v7185 = vld [vmem:[%s7135 + $0xc4] sm:$0xf]
    %v7186 = vld [vmem:[%s7135 + $0xc8] sm:$0xf]
    %v7187 = vld [vmem:[%s7135 + $0xcc] sm:$0xf]
    %v7188 = vld [vmem:[%s7135 + $0xd0] sm:$0xf]
    %v7189 = vld [vmem:[%s7135 + $0xd4] sm:$0xf]
    %v7190 = vld [vmem:[%s7135 + $0xd8] sm:$0xf]
    %v7191 = vld [vmem:[%s7135 + $0xdc] sm:$0xf]
    %v7192 = vld [vmem:[%s7135 + $0xe0] sm:$0xf]
    %v7193 = vld [vmem:[%s7135 + $0xe4] sm:$0xf]
    %v7194 = vld [vmem:[%s7135 + $0xe8] sm:$0xf]
    %v7195 = vld [vmem:[%s7135 + $0xec] sm:$0xf]
    %v7196 = vld [vmem:[%s7135 + $0xf0] sm:$0xf]
    %v7197 = vld [vmem:[%s7135 + $0xf4] sm:$0xf]
    %v7198 = vld [vmem:[%s7135 + $0xf8] sm:$0xf]
    %v7199 = vld [vmem:[%s7135 + $0xfc] sm:$0xf]
    %v7264 = vunpack.c.l.b16 %v7136
    %v7265 = vunpack.c.l.b16 %v7137
    %v7266 = vunpack.c.l.b16 %v7138
    %v7267 = vunpack.c.l.b16 %v7139
    %v7268 = vunpack.c.l.b16 %v7140
    %v7269 = vunpack.c.l.b16 %v7141
    %v7270 = vunpack.c.l.b16 %v7142
    %v7271 = vunpack.c.l.b16 %v7143
    %v7272 = vunpack.c.l.b16 %v7144
    %v7273 = vunpack.c.l.b16 %v7145
    %v7274 = vunpack.c.l.b16 %v7146
    %v7275 = vunpack.c.l.b16 %v7147
    %v7276 = vunpack.c.l.b16 %v7148
    %v7277 = vunpack.c.l.b16 %v7149
    %v7278 = vunpack.c.l.b16 %v7150
    %v7279 = vunpack.c.l.b16 %v7151
    %v7280 = vunpack.c.l.b16 %v7152
    %v7281 = vunpack.c.l.b16 %v7153
    %v7282 = vunpack.c.l.b16 %v7154
    %v7283 = vunpack.c.l.b16 %v7155
    %v7284 = vunpack.c.l.b16 %v7156
    %v7285 = vunpack.c.l.b16 %v7157
    %v7286 = vunpack.c.l.b16 %v7158
    %v7287 = vunpack.c.l.b16 %v7159
    %v7288 = vunpack.c.l.b16 %v7160
    %v7289 = vunpack.c.l.b16 %v7161
    %v7290 = vunpack.c.l.b16 %v7162
    %v7291 = vunpack.c.l.b16 %v7163
    %v7292 = vunpack.c.l.b16 %v7164
    %v7293 = vunpack.c.l.b16 %v7165
    %v7294 = vunpack.c.l.b16 %v7166
    %v7295 = vunpack.c.l.b16 %v7167
    %v7296 = vunpack.c.l.b16 %v7168
    %v7297 = vunpack.c.l.b16 %v7169
    %v7298 = vunpack.c.l.b16 %v7170
    %v7299 = vunpack.c.l.b16 %v7171
    %v7300 = vunpack.c.l.b16 %v7172
    %v7301 = vunpack.c.l.b16 %v7173
    %v7302 = vunpack.c.l.b16 %v7174
    %v7303 = vunpack.c.l.b16 %v7175
    %v7304 = vunpack.c.l.b16 %v7176
    %v7305 = vunpack.c.l.b16 %v7177
    %v7306 = vunpack.c.l.b16 %v7178
    %v7307 = vunpack.c.l.b16 %v7179
    %v7308 = vunpack.c.l.b16 %v7180
    %v7309 = vunpack.c.l.b16 %v7181
    %v7310 = vunpack.c.l.b16 %v7182
    %v7311 = vunpack.c.l.b16 %v7183
    %v7312 = vunpack.c.l.b16 %v7184
    %v7313 = vunpack.c.l.b16 %v7185
    %v7314 = vunpack.c.l.b16 %v7186
    %v7315 = vunpack.c.l.b16 %v7187
    %v7316 = vunpack.c.l.b16 %v7188
    %v7317 = vunpack.c.l.b16 %v7189
    %v7318 = vunpack.c.l.b16 %v7190
    %v7319 = vunpack.c.l.b16 %v7191
    %v7320 = vunpack.c.l.b16 %v7192
    %v7321 = vunpack.c.l.b16 %v7193
    %v7322 = vunpack.c.l.b16 %v7194
    %v7323 = vunpack.c.l.b16 %v7195
    %v7324 = vunpack.c.l.b16 %v7196
    %v7325 = vunpack.c.l.b16 %v7197
    %v7326 = vunpack.c.l.b16 %v7198
    %v7327 = vunpack.c.l.b16 %v7199
    %v7328 = vpack.c.b16 %v7265, %v7264
    %v7329 = vpack.c.b16 %v7267, %v7266
    %v7330 = vpack.c.b16 %v7269, %v7268
    %v7331 = vpack.c.b16 %v7271, %v7270
    %v7332 = vpack.c.b16 %v7273, %v7272
    %v7333 = vpack.c.b16 %v7275, %v7274
    %v7334 = vpack.c.b16 %v7277, %v7276
    %v7335 = vpack.c.b16 %v7279, %v7278
    %v7336 = vpack.c.b16 %v7281, %v7280
    %v7337 = vpack.c.b16 %v7283, %v7282
    %v7338 = vpack.c.b16 %v7285, %v7284
    %v7339 = vpack.c.b16 %v7287, %v7286
    %v7340 = vpack.c.b16 %v7289, %v7288
    %v7341 = vpack.c.b16 %v7291, %v7290
    %v7342 = vpack.c.b16 %v7293, %v7292
    %v7343 = vpack.c.b16 %v7295, %v7294
    %v7344 = vpack.c.b16 %v7297, %v7296
    %v7345 = vpack.c.b16 %v7299, %v7298
    %v7346 = vpack.c.b16 %v7301, %v7300
    %v7347 = vpack.c.b16 %v7303, %v7302
    %v7348 = vpack.c.b16 %v7305, %v7304
    %v7349 = vpack.c.b16 %v7307, %v7306
    %v7350 = vpack.c.b16 %v7309, %v7308
    %v7351 = vpack.c.b16 %v7311, %v7310
    %v7352 = vpack.c.b16 %v7313, %v7312
    %v7353 = vpack.c.b16 %v7315, %v7314
    %v7354 = vpack.c.b16 %v7317, %v7316
    %v7355 = vpack.c.b16 %v7319, %v7318
    %v7356 = vpack.c.b16 %v7321, %v7320
    %v7357 = vpack.c.b16 %v7323, %v7322
    %v7358 = vpack.c.b16 %v7325, %v7324
    %v7359 = vpack.c.b16 %v7327, %v7326
    %7392 = vmatpush.bf16.msra.mxu0 %v7335
    %7393 = vmatpush.bf16.msra.mxu0 %v7334
    %7394 = vmatpush.bf16.msra.mxu0 %v7333
    %7395 = vmatpush.bf16.msra.mxu0 %v7332
    %7396 = vmatpush.bf16.msra.mxu0 %v7331
    %7397 = vmatpush.bf16.msra.mxu0 %v7330
    %7398 = vmatpush.bf16.msra.mxu0 %v7329
    %7399 = vmatpush.bf16.msra.mxu0 %v7328
    %7400 = vmatmul.bf16.gmra.mxu0 %v7131
    %v7401 = vpop.f32.mrf.mxu0
    %v7402 = vadd.f32 0.0, %v7401
    %v7403 = vpop.f32.mrf.mxu0
    %v7404 = vadd.f32 0.0, %v7403
    %7405 = vdwg.mxu0
    %7406 = vmatpush.bf16.msra.mxu0 %v7343
    %7407 = vmatpush.bf16.msra.mxu0 %v7342
    %7408 = vmatpush.bf16.msra.mxu0 %v7341
    %7409 = vmatpush.bf16.msra.mxu0 %v7340
    %7410 = vmatpush.bf16.msra.mxu0 %v7339
    %7411 = vmatpush.bf16.msra.mxu0 %v7338
    %7412 = vmatpush.bf16.msra.mxu0 %v7337
    %7413 = vmatpush.bf16.msra.mxu0 %v7336
    %7414 = vmatmul.bf16.gmra.mxu0 %v7132
    %v7415 = vpop.f32.mrf.mxu0
    %v7416 = vadd.f32 %v7402, %v7415
    %v7417 = vpop.f32.mrf.mxu0
    %v7418 = vadd.f32 %v7404, %v7417
    %7419 = vdwg.mxu0
    %7420 = vmatpush.bf16.msra.mxu0 %v7351
    %7421 = vmatpush.bf16.msra.mxu0 %v7350
    %7422 = vmatpush.bf16.msra.mxu0 %v7349
    %7423 = vmatpush.bf16.msra.mxu0 %v7348
    %7424 = vmatpush.bf16.msra.mxu0 %v7347
    %7425 = vmatpush.bf16.msra.mxu0 %v7346
    %7426 = vmatpush.bf16.msra.mxu0 %v7345
    %7427 = vmatpush.bf16.msra.mxu0 %v7344
    %7428 = vmatmul.bf16.gmra.mxu0 %v7133
    %v7429 = vpop.f32.mrf.mxu0
    %v7430 = vadd.f32 %v7416, %v7429
    %v7431 = vpop.f32.mrf.mxu0
    %v7432 = vadd.f32 %v7418, %v7431
    %7433 = vdwg.mxu0
    %7434 = vmatpush.bf16.msra.mxu0 %v7359
    %7435 = vmatpush.bf16.msra.mxu0 %v7358
    %7436 = vmatpush.bf16.msra.mxu0 %v7357
    %7437 = vmatpush.bf16.msra.mxu0 %v7356
    %7438 = vmatpush.bf16.msra.mxu0 %v7355
    %7439 = vmatpush.bf16.msra.mxu0 %v7354
    %7440 = vmatpush.bf16.msra.mxu0 %v7353
    %7441 = vmatpush.bf16.msra.mxu0 %v7352
    %7442 = vmatmul.bf16.gmra.mxu0 %v7134
    %v7443 = vpop.f32.mrf.mxu0
    %v7444 = vadd.f32 %v7430, %v7443
    %v7445 = vpop.f32.mrf.mxu0
    %v7446 = vadd.f32 %v7432, %v7445
    %7447 = vdwg.mxu0
    %v7448 = vadd.f32 %v7057, %v7444
    %v7449 = vadd.f32 %v7058, %v7446
    %v7450 = vld [vmem:[#allocation2 + $0xd00] sm:$0xff]
    %v7451 = vld [vmem:[#allocation2 + $0xd08] sm:$0xff]
    %v7452 = vld [vmem:[#allocation2 + $0xd10] sm:$0xff]
    %v7453 = vld [vmem:[#allocation2 + $0xd18] sm:$0xff]
    %v7454 = vld [vmem:[#allocation2 + $0xd20] sm:$0xff]
    %v7455 = vld [vmem:[#allocation2 + $0xd28] sm:$0xff]
    %v7456 = vld [vmem:[#allocation2 + $0xd30] sm:$0xff]
    %v7457 = vld [vmem:[#allocation2 + $0xd38] sm:$0xff]
    %v7458 = vld [vmem:[#allocation2 + $0xd40] sm:$0xff]
    %v7459 = vld [vmem:[#allocation2 + $0xd48] sm:$0xff]
    %v7460 = vld [vmem:[#allocation2 + $0xd50] sm:$0xff]
    %v7461 = vld [vmem:[#allocation2 + $0xd58] sm:$0xff]
    %v7462 = vld [vmem:[#allocation2 + $0xd60] sm:$0xff]
    %v7463 = vld [vmem:[#allocation2 + $0xd68] sm:$0xff]
    %v7464 = vld [vmem:[#allocation2 + $0xd70] sm:$0xff]
    %v7465 = vld [vmem:[#allocation2 + $0xd78] sm:$0xff]
    %v7466 = vld [vmem:[#allocation2 + $0xd80] sm:$0xff]
    %v7467 = vld [vmem:[#allocation2 + $0xd88] sm:$0xff]
    %v7468 = vld [vmem:[#allocation2 + $0xd90] sm:$0xff]
    %v7469 = vld [vmem:[#allocation2 + $0xd98] sm:$0xff]
    %v7470 = vld [vmem:[#allocation2 + $0xda0] sm:$0xff]
    %v7471 = vld [vmem:[#allocation2 + $0xda8] sm:$0xff]
    %v7472 = vld [vmem:[#allocation2 + $0xdb0] sm:$0xff]
    %v7473 = vld [vmem:[#allocation2 + $0xdb8] sm:$0xff]
    %v7474 = vld [vmem:[#allocation2 + $0xdc0] sm:$0xff]
    %v7475 = vld [vmem:[#allocation2 + $0xdc8] sm:$0xff]
    %v7476 = vld [vmem:[#allocation2 + $0xdd0] sm:$0xff]
    %v7477 = vld [vmem:[#allocation2 + $0xdd8] sm:$0xff]
    %v7478 = vld [vmem:[#allocation2 + $0xde0] sm:$0xff]
    %v7479 = vld [vmem:[#allocation2 + $0xde8] sm:$0xff]
    %v7480 = vld [vmem:[#allocation2 + $0xdf0] sm:$0xff]
    %v7481 = vld [vmem:[#allocation2 + $0xdf8] sm:$0xff]
    %v7482 = vmax.f32 %v7450, %v7466
    %v7483 = vmax.f32 %v7451, %v7467
    %v7484 = vmax.f32 %v7452, %v7468
    %v7485 = vmax.f32 %v7453, %v7469
    %v7486 = vmax.f32 %v7454, %v7470
    %v7487 = vmax.f32 %v7455, %v7471
    %v7488 = vmax.f32 %v7456, %v7472
    %v7489 = vmax.f32 %v7457, %v7473
    %v7490 = vmax.f32 %v7458, %v7474
    %v7491 = vmax.f32 %v7459, %v7475
    %v7492 = vmax.f32 %v7460, %v7476
    %v7493 = vmax.f32 %v7461, %v7477
    %v7494 = vmax.f32 %v7462, %v7478
    %v7495 = vmax.f32 %v7463, %v7479
    %v7496 = vmax.f32 %v7464, %v7480
    %v7497 = vmax.f32 %v7465, %v7481
    %v7498 = vmax.f32 %v7482, %v7486
    %v7499 = vmax.f32 %v7483, %v7487
    %v7500 = vmax.f32 %v7484, %v7488
    %v7501 = vmax.f32 %v7485, %v7489
    %v7502 = vmax.f32 %v7490, %v7494
    %v7503 = vmax.f32 %v7491, %v7495
    %v7504 = vmax.f32 %v7492, %v7496
    %v7505 = vmax.f32 %v7493, %v7497
    %v7506 = vadd.f32 %v7498, %v2420
    %v7507 = vadd.f32 %v7499, %v2421
    %v7508 = vadd.f32 %v7500, %v2422
    %v7509 = vadd.f32 %v7501, %v2423
    %v7510 = vadd.f32 %v7502, %v2420
    %v7511 = vadd.f32 %v7503, %v2421
    %v7512 = vadd.f32 %v7504, %v2422
    %v7513 = vadd.f32 %v7505, %v2423
    %v7514 = vmax.f32 %v7506, 0.0
    %v7515 = vmax.f32 %v7507, 0.0
    %v7516 = vmax.f32 %v7508, 0.0
    %v7517 = vmax.f32 %v7509, 0.0
    %v7518 = vmax.f32 %v7510, 0.0
    %v7519 = vmax.f32 %v7511, 0.0
    %v7520 = vmax.f32 %v7512, 0.0
    %v7521 = vmax.f32 %v7513, 0.0
    %v7522 = vpack.c.bf16 %v7518, %v7514
    %v7523 = vpack.c.bf16 %v7519, %v7515
    %v7524 = vpack.c.bf16 %v7520, %v7516
    %v7525 = vpack.c.bf16 %v7521, %v7517
    %s7526 = scalar_lea.vmem [#allocation7], 3328
    %v7527 = vld [vmem:[%s7526] sm:$0xf]
    %v7528 = vld [vmem:[%s7526 + $0x4] sm:$0xf]
    %v7529 = vld [vmem:[%s7526 + $0x8] sm:$0xf]
    %v7530 = vld [vmem:[%s7526 + $0xc] sm:$0xf]
    %v7531 = vld [vmem:[%s7526 + $0x10] sm:$0xf]
    %v7532 = vld [vmem:[%s7526 + $0x14] sm:$0xf]
    %v7533 = vld [vmem:[%s7526 + $0x18] sm:$0xf]
    %v7534 = vld [vmem:[%s7526 + $0x1c] sm:$0xf]
    %v7535 = vld [vmem:[%s7526 + $0x20] sm:$0xf]
    %v7536 = vld [vmem:[%s7526 + $0x24] sm:$0xf]
    %v7537 = vld [vmem:[%s7526 + $0x28] sm:$0xf]
    %v7538 = vld [vmem:[%s7526 + $0x2c] sm:$0xf]
    %v7539 = vld [vmem:[%s7526 + $0x30] sm:$0xf]
    %v7540 = vld [vmem:[%s7526 + $0x34] sm:$0xf]
    %v7541 = vld [vmem:[%s7526 + $0x38] sm:$0xf]
    %v7542 = vld [vmem:[%s7526 + $0x3c] sm:$0xf]
    %v7543 = vld [vmem:[%s7526 + $0x40] sm:$0xf]
    %v7544 = vld [vmem:[%s7526 + $0x44] sm:$0xf]
    %v7545 = vld [vmem:[%s7526 + $0x48] sm:$0xf]
    %v7546 = vld [vmem:[%s7526 + $0x4c] sm:$0xf]
    %v7547 = vld [vmem:[%s7526 + $0x50] sm:$0xf]
    %v7548 = vld [vmem:[%s7526 + $0x54] sm:$0xf]
    %v7549 = vld [vmem:[%s7526 + $0x58] sm:$0xf]
    %v7550 = vld [vmem:[%s7526 + $0x5c] sm:$0xf]
    %v7551 = vld [vmem:[%s7526 + $0x60] sm:$0xf]
    %v7552 = vld [vmem:[%s7526 + $0x64] sm:$0xf]
    %v7553 = vld [vmem:[%s7526 + $0x68] sm:$0xf]
    %v7554 = vld [vmem:[%s7526 + $0x6c] sm:$0xf]
    %v7555 = vld [vmem:[%s7526 + $0x70] sm:$0xf]
    %v7556 = vld [vmem:[%s7526 + $0x74] sm:$0xf]
    %v7557 = vld [vmem:[%s7526 + $0x78] sm:$0xf]
    %v7558 = vld [vmem:[%s7526 + $0x7c] sm:$0xf]
    %v7559 = vld [vmem:[%s7526 + $0x80] sm:$0xf]
    %v7560 = vld [vmem:[%s7526 + $0x84] sm:$0xf]
    %v7561 = vld [vmem:[%s7526 + $0x88] sm:$0xf]
    %v7562 = vld [vmem:[%s7526 + $0x8c] sm:$0xf]
    %v7563 = vld [vmem:[%s7526 + $0x90] sm:$0xf]
    %v7564 = vld [vmem:[%s7526 + $0x94] sm:$0xf]
    %v7565 = vld [vmem:[%s7526 + $0x98] sm:$0xf]
    %v7566 = vld [vmem:[%s7526 + $0x9c] sm:$0xf]
    %v7567 = vld [vmem:[%s7526 + $0xa0] sm:$0xf]
    %v7568 = vld [vmem:[%s7526 + $0xa4] sm:$0xf]
    %v7569 = vld [vmem:[%s7526 + $0xa8] sm:$0xf]
    %v7570 = vld [vmem:[%s7526 + $0xac] sm:$0xf]
    %v7571 = vld [vmem:[%s7526 + $0xb0] sm:$0xf]
    %v7572 = vld [vmem:[%s7526 + $0xb4] sm:$0xf]
    %v7573 = vld [vmem:[%s7526 + $0xb8] sm:$0xf]
    %v7574 = vld [vmem:[%s7526 + $0xbc] sm:$0xf]
    %v7575 = vld [vmem:[%s7526 + $0xc0] sm:$0xf]
    %v7576 = vld [vmem:[%s7526 + $0xc4] sm:$0xf]
    %v7577 = vld [vmem:[%s7526 + $0xc8] sm:$0xf]
    %v7578 = vld [vmem:[%s7526 + $0xcc] sm:$0xf]
    %v7579 = vld [vmem:[%s7526 + $0xd0] sm:$0xf]
    %v7580 = vld [vmem:[%s7526 + $0xd4] sm:$0xf]
    %v7581 = vld [vmem:[%s7526 + $0xd8] sm:$0xf]
    %v7582 = vld [vmem:[%s7526 + $0xdc] sm:$0xf]
    %v7583 = vld [vmem:[%s7526 + $0xe0] sm:$0xf]
    %v7584 = vld [vmem:[%s7526 + $0xe4] sm:$0xf]
    %v7585 = vld [vmem:[%s7526 + $0xe8] sm:$0xf]
    %v7586 = vld [vmem:[%s7526 + $0xec] sm:$0xf]
    %v7587 = vld [vmem:[%s7526 + $0xf0] sm:$0xf]
    %v7588 = vld [vmem:[%s7526 + $0xf4] sm:$0xf]
    %v7589 = vld [vmem:[%s7526 + $0xf8] sm:$0xf]
    %v7590 = vld [vmem:[%s7526 + $0xfc] sm:$0xf]
    %v7655 = vunpack.c.l.b16 %v7527
    %v7656 = vunpack.c.l.b16 %v7528
    %v7657 = vunpack.c.l.b16 %v7529
    %v7658 = vunpack.c.l.b16 %v7530
    %v7659 = vunpack.c.l.b16 %v7531
    %v7660 = vunpack.c.l.b16 %v7532
    %v7661 = vunpack.c.l.b16 %v7533
    %v7662 = vunpack.c.l.b16 %v7534
    %v7663 = vunpack.c.l.b16 %v7535
    %v7664 = vunpack.c.l.b16 %v7536
    %v7665 = vunpack.c.l.b16 %v7537
    %v7666 = vunpack.c.l.b16 %v7538
    %v7667 = vunpack.c.l.b16 %v7539
    %v7668 = vunpack.c.l.b16 %v7540
    %v7669 = vunpack.c.l.b16 %v7541
    %v7670 = vunpack.c.l.b16 %v7542
    %v7671 = vunpack.c.l.b16 %v7543
    %v7672 = vunpack.c.l.b16 %v7544
    %v7673 = vunpack.c.l.b16 %v7545
    %v7674 = vunpack.c.l.b16 %v7546
    %v7675 = vunpack.c.l.b16 %v7547
    %v7676 = vunpack.c.l.b16 %v7548
    %v7677 = vunpack.c.l.b16 %v7549
    %v7678 = vunpack.c.l.b16 %v7550
    %v7679 = vunpack.c.l.b16 %v7551
    %v7680 = vunpack.c.l.b16 %v7552
    %v7681 = vunpack.c.l.b16 %v7553
    %v7682 = vunpack.c.l.b16 %v7554
    %v7683 = vunpack.c.l.b16 %v7555
    %v7684 = vunpack.c.l.b16 %v7556
    %v7685 = vunpack.c.l.b16 %v7557
    %v7686 = vunpack.c.l.b16 %v7558
    %v7687 = vunpack.c.l.b16 %v7559
    %v7688 = vunpack.c.l.b16 %v7560
    %v7689 = vunpack.c.l.b16 %v7561
    %v7690 = vunpack.c.l.b16 %v7562
    %v7691 = vunpack.c.l.b16 %v7563
    %v7692 = vunpack.c.l.b16 %v7564
    %v7693 = vunpack.c.l.b16 %v7565
    %v7694 = vunpack.c.l.b16 %v7566
    %v7695 = vunpack.c.l.b16 %v7567
    %v7696 = vunpack.c.l.b16 %v7568
    %v7697 = vunpack.c.l.b16 %v7569
    %v7698 = vunpack.c.l.b16 %v7570
    %v7699 = vunpack.c.l.b16 %v7571
    %v7700 = vunpack.c.l.b16 %v7572
    %v7701 = vunpack.c.l.b16 %v7573
    %v7702 = vunpack.c.l.b16 %v7574
    %v7703 = vunpack.c.l.b16 %v7575
    %v7704 = vunpack.c.l.b16 %v7576
    %v7705 = vunpack.c.l.b16 %v7577
    %v7706 = vunpack.c.l.b16 %v7578
    %v7707 = vunpack.c.l.b16 %v7579
    %v7708 = vunpack.c.l.b16 %v7580
    %v7709 = vunpack.c.l.b16 %v7581
    %v7710 = vunpack.c.l.b16 %v7582
    %v7711 = vunpack.c.l.b16 %v7583
    %v7712 = vunpack.c.l.b16 %v7584
    %v7713 = vunpack.c.l.b16 %v7585
    %v7714 = vunpack.c.l.b16 %v7586
    %v7715 = vunpack.c.l.b16 %v7587
    %v7716 = vunpack.c.l.b16 %v7588
    %v7717 = vunpack.c.l.b16 %v7589
    %v7718 = vunpack.c.l.b16 %v7590
    %v7719 = vpack.c.b16 %v7656, %v7655
    %v7720 = vpack.c.b16 %v7658, %v7657
    %v7721 = vpack.c.b16 %v7660, %v7659
    %v7722 = vpack.c.b16 %v7662, %v7661
    %v7723 = vpack.c.b16 %v7664, %v7663
    %v7724 = vpack.c.b16 %v7666, %v7665
    %v7725 = vpack.c.b16 %v7668, %v7667
    %v7726 = vpack.c.b16 %v7670, %v7669
    %v7727 = vpack.c.b16 %v7672, %v7671
    %v7728 = vpack.c.b16 %v7674, %v7673
    %v7729 = vpack.c.b16 %v7676, %v7675
    %v7730 = vpack.c.b16 %v7678, %v7677
    %v7731 = vpack.c.b16 %v7680, %v7679
    %v7732 = vpack.c.b16 %v7682, %v7681
    %v7733 = vpack.c.b16 %v7684, %v7683
    %v7734 = vpack.c.b16 %v7686, %v7685
    %v7735 = vpack.c.b16 %v7688, %v7687
    %v7736 = vpack.c.b16 %v7690, %v7689
    %v7737 = vpack.c.b16 %v7692, %v7691
    %v7738 = vpack.c.b16 %v7694, %v7693
    %v7739 = vpack.c.b16 %v7696, %v7695
    %v7740 = vpack.c.b16 %v7698, %v7697
    %v7741 = vpack.c.b16 %v7700, %v7699
    %v7742 = vpack.c.b16 %v7702, %v7701
    %v7743 = vpack.c.b16 %v7704, %v7703
    %v7744 = vpack.c.b16 %v7706, %v7705
    %v7745 = vpack.c.b16 %v7708, %v7707
    %v7746 = vpack.c.b16 %v7710, %v7709
    %v7747 = vpack.c.b16 %v7712, %v7711
    %v7748 = vpack.c.b16 %v7714, %v7713
    %v7749 = vpack.c.b16 %v7716, %v7715
    %v7750 = vpack.c.b16 %v7718, %v7717
    %7783 = vmatpush.bf16.msra.mxu0 %v7726
    %7784 = vmatpush.bf16.msra.mxu0 %v7725
    %7785 = vmatpush.bf16.msra.mxu0 %v7724
    %7786 = vmatpush.bf16.msra.mxu0 %v7723
    %7787 = vmatpush.bf16.msra.mxu0 %v7722
    %7788 = vmatpush.bf16.msra.mxu0 %v7721
    %7789 = vmatpush.bf16.msra.mxu0 %v7720
    %7790 = vmatpush.bf16.msra.mxu0 %v7719
    %7791 = vmatmul.bf16.gmra.mxu0 %v7522
    %v7792 = vpop.f32.mrf.mxu0
    %v7793 = vadd.f32 0.0, %v7792
    %v7794 = vpop.f32.mrf.mxu0
    %v7795 = vadd.f32 0.0, %v7794
    %7796 = vdwg.mxu0
    %7797 = vmatpush.bf16.msra.mxu0 %v7734
    %7798 = vmatpush.bf16.msra.mxu0 %v7733
    %7799 = vmatpush.bf16.msra.mxu0 %v7732
    %7800 = vmatpush.bf16.msra.mxu0 %v7731
    %7801 = vmatpush.bf16.msra.mxu0 %v7730
    %7802 = vmatpush.bf16.msra.mxu0 %v7729
    %7803 = vmatpush.bf16.msra.mxu0 %v7728
    %7804 = vmatpush.bf16.msra.mxu0 %v7727
    %7805 = vmatmul.bf16.gmra.mxu0 %v7523
    %v7806 = vpop.f32.mrf.mxu0
    %v7807 = vadd.f32 %v7793, %v7806
    %v7808 = vpop.f32.mrf.mxu0
    %v7809 = vadd.f32 %v7795, %v7808
    %7810 = vdwg.mxu0
    %7811 = vmatpush.bf16.msra.mxu0 %v7742
    %7812 = vmatpush.bf16.msra.mxu0 %v7741
    %7813 = vmatpush.bf16.msra.mxu0 %v7740
    %7814 = vmatpush.bf16.msra.mxu0 %v7739
    %7815 = vmatpush.bf16.msra.mxu0 %v7738
    %7816 = vmatpush.bf16.msra.mxu0 %v7737
    %7817 = vmatpush.bf16.msra.mxu0 %v7736
    %7818 = vmatpush.bf16.msra.mxu0 %v7735
    %7819 = vmatmul.bf16.gmra.mxu0 %v7524
    %v7820 = vpop.f32.mrf.mxu0
    %v7821 = vadd.f32 %v7807, %v7820
    %v7822 = vpop.f32.mrf.mxu0
    %v7823 = vadd.f32 %v7809, %v7822
    %7824 = vdwg.mxu0
    %7825 = vmatpush.bf16.msra.mxu0 %v7750
    %7826 = vmatpush.bf16.msra.mxu0 %v7749
    %7827 = vmatpush.bf16.msra.mxu0 %v7748
    %7828 = vmatpush.bf16.msra.mxu0 %v7747
    %7829 = vmatpush.bf16.msra.mxu0 %v7746
    %7830 = vmatpush.bf16.msra.mxu0 %v7745
    %7831 = vmatpush.bf16.msra.mxu0 %v7744
    %7832 = vmatpush.bf16.msra.mxu0 %v7743
    %7833 = vmatmul.bf16.gmra.mxu0 %v7525
    %v7834 = vpop.f32.mrf.mxu0
    %v7835 = vadd.f32 %v7821, %v7834
    %v7836 = vpop.f32.mrf.mxu0
    %v7837 = vadd.f32 %v7823, %v7836
    %7838 = vdwg.mxu0
    %v7839 = vadd.f32 %v7448, %v7835
    %v7840 = vadd.f32 %v7449, %v7837
    %v7841 = vld [vmem:[#allocation8] sm:$0x1]
    %v7843 = vperm.slane %v7841, 0
    %v7845 = vadd.f32 %v7839, %v7843
    %v7846 = vadd.f32 %v7840, %v7843
    %v7847 = vmax.f32 %v7845, 0.0
    %v7848 = vmax.f32 %v7846, 0.0
    %v7849 = vpack.c.bf16 %v7848, %v7847
    %v7850 = vld [vmem:[#allocation10] sm:$0xf]
    %v7851 = vld [vmem:[#allocation10 + $0x4] sm:$0xf]
    %v7852 = vld [vmem:[#allocation10 + $0x8] sm:$0xf]
    %v7853 = vld [vmem:[#allocation10 + $0xc] sm:$0xf]
    %v7854 = vld [vmem:[#allocation10 + $0x10] sm:$0xf]
    %v7855 = vld [vmem:[#allocation10 + $0x14] sm:$0xf]
    %v7856 = vld [vmem:[#allocation10 + $0x18] sm:$0xf]
    %v7857 = vld [vmem:[#allocation10 + $0x1c] sm:$0xf]
    %v7858 = vld [vmem:[#allocation10 + $0x20] sm:$0xf]
    %v7859 = vld [vmem:[#allocation10 + $0x24] sm:$0xf]
    %v7860 = vld [vmem:[#allocation10 + $0x28] sm:$0xf]
    %v7861 = vld [vmem:[#allocation10 + $0x2c] sm:$0xf]
    %v7862 = vld [vmem:[#allocation10 + $0x30] sm:$0xf]
    %v7863 = vld [vmem:[#allocation10 + $0x34] sm:$0xf]
    %v7864 = vld [vmem:[#allocation10 + $0x38] sm:$0xf]
    %v7865 = vld [vmem:[#allocation10 + $0x3c] sm:$0xf]
    %v7866 = vld [vmem:[#allocation11] sm:$0x1]
    %v7868 = vperm.slane %v7866, 0
    %v7886 = vunpack.c.l.b16 %v7850
    %v7887 = vunpack.c.l.b16 %v7851
    %v7888 = vunpack.c.l.b16 %v7852
    %v7889 = vunpack.c.l.b16 %v7853
    %v7890 = vunpack.c.l.b16 %v7854
    %v7891 = vunpack.c.l.b16 %v7855
    %v7892 = vunpack.c.l.b16 %v7856
    %v7893 = vunpack.c.l.b16 %v7857
    %v7894 = vunpack.c.l.b16 %v7858
    %v7895 = vunpack.c.l.b16 %v7859
    %v7896 = vunpack.c.l.b16 %v7860
    %v7897 = vunpack.c.l.b16 %v7861
    %v7898 = vunpack.c.l.b16 %v7862
    %v7899 = vunpack.c.l.b16 %v7863
    %v7900 = vunpack.c.l.b16 %v7864
    %v7901 = vunpack.c.l.b16 %v7865
    %v7902 = vpack.c.b16 %v7887, %v7886
    %v7903 = vpack.c.b16 %v7889, %v7888
    %v7904 = vpack.c.b16 %v7891, %v7890
    %v7905 = vpack.c.b16 %v7893, %v7892
    %v7906 = vpack.c.b16 %v7895, %v7894
    %v7907 = vpack.c.b16 %v7897, %v7896
    %v7908 = vpack.c.b16 %v7899, %v7898
    %v7909 = vpack.c.b16 %v7901, %v7900
    %7918 = vmatpush.bf16.msra.mxu0 %v7909
    %7919 = vmatpush.bf16.msra.mxu0 %v7908
    %7920 = vmatpush.bf16.msra.mxu0 %v7907
    %7921 = vmatpush.bf16.msra.mxu0 %v7906
    %7922 = vmatpush.bf16.msra.mxu0 %v7905
    %7923 = vmatpush.bf16.msra.mxu0 %v7904
    %7924 = vmatpush.bf16.msra.mxu0 %v7903
    %7925 = vmatpush.bf16.msra.mxu0 %v7902
    %7926 = vmatmul.bf16.gmra.mxu0 %v7849
    %v7927 = vpop.f32.mrf.mxu0
    %v7928 = vadd.f32 %v7868, %v7927
    %v7929 = vpop.f32.mrf.mxu0
    %v7930 = vadd.f32 %v7868, %v7929
    %7931 = vdwg.mxu0
    %7932 = vst [vmem:[%s7] sm:$0xff] %v7928
    %7933 = vst [vmem:[%s7 + $0x8] sm:$0xff] %v7930
    // Predicated region
    $region54: #{simple_nn_forward.1} parent=1 // pred_check
      _
    $region55: #{simple_nn_forward.1} parent=1 // pred_check_branch
      %7935 = sbr.rel (0) target = $region57
    $region56: #{simple_nn_forward.1} parent=1 // pred_region
      _
    $region57: #{simple_nn_forward.1} parent=1 // pred_fallthru
      _
    // Predicated region
    $region58: #{simple_nn_forward.1} parent=1 // pred_check
      _
    $region59: #{simple_nn_forward.1} parent=1 // pred_check_branch
      %7937 = sbr.rel (0) target = $region61
    $region60: #{simple_nn_forward.1} parent=1 // pred_region
      _
    $region61: #{simple_nn_forward.1} parent=1 // pred_fallthru
      _
    %7938 = vsyncpa [#allocation4], 1
    %7939 = vsyncpa [#allocation6], 1
    %7940 = vsyncpa [#allocation9], 1
    %7941 = vsyncpa [#allocation12], 1

</llo_original>
